<compile_context>
chip_gen: v7x
topology: tpu7x:2x2x1
jax: 0.10.0
libtpu: 0.0.40
codegen_flags: <defaults>
</compile_context>

<pallas_src>
import functools
import math

import jax
import jax.numpy as jnp
from jax import lax
from jax.experimental import pallas as pl
from jax.experimental.pallas import tpu as pltpu

# MXU input dtype and inter-kernel activation storage dtype.  Flip both to
# jnp.float32 for closest parity with the PyTorch f32 reference (accumulation is
# always f32 via preferred_element_type).
MATMUL_DTYPE = jnp.bfloat16
ACT_DTYPE = jnp.bfloat16
LN_EPS = 1e-5  # torch.nn.LayerNorm default


def _default_vmem_limit():
    """~96 MiB on 128-MiB parts (v5e/v6e), ~48 MiB on 64-MiB parts (v7x)."""
    try:
        cap = pltpu.get_tpu_info().vmem_capacity_bytes
    except Exception:
        cap = 64 * 1024 * 1024
    return int(min(96 * 1024 * 1024, (cap * 3) // 4))


VMEM_LIMIT_BYTES = _default_vmem_limit()


def _compiler_params(grid_rank):
    return pltpu.CompilerParams(
        dimension_semantics=("parallel",) * grid_rank,
        vmem_limit_bytes=VMEM_LIMIT_BYTES,
    )


def _layernorm(s, gamma, beta):
    # s: [rows, D] f32, gamma/beta: [1, D] f32
    mean = jnp.mean(s, axis=-1, keepdims=True)
    var = jnp.mean((s - mean) ** 2, axis=-1, keepdims=True)
    return (s - mean) * lax.rsqrt(var + LN_EPS) * gamma + beta


def _choose_tile(m, big=1024, small=512):
    # Full block when small (always legal: equals the full array dim); otherwise a
    # large multiple-of-8 row tile sized to the VMEM budget; cdiv handles remainders.
    target = big if VMEM_LIMIT_BYTES >= 64 * 1024 * 1024 else small
    return m if m <= target else target


# --------------------- kernel 1: fused Q/K/V projection ---------------------

def _qkv_proj_kernel(x_ref, w_ref, b_ref, q_ref, k_ref, v_ref):
    acc = jnp.dot(x_ref[...].astype(MATMUL_DTYPE),
                  w_ref[...].astype(MATMUL_DTYPE),
                  preferred_element_type=jnp.float32) + b_ref[...]
    D = q_ref.shape[1]
    q_ref[...] = acc[:, :D].astype(q_ref.dtype)
    k_ref[...] = acc[:, D:2 * D].astype(k_ref.dtype)
    v_ref[...] = acc[:, 2 * D:].astype(v_ref.dtype)


def qkv_projection(x2d, wqkv, bqkv, tm):
    M, D = x2d.shape
    N = wqkv.shape[1]  # 3*D
    out = jax.ShapeDtypeStruct((M, D), ACT_DTYPE)
    rspec = pl.BlockSpec((tm, D), lambda i: (i, 0))
    return pl.pallas_call(
        _qkv_proj_kernel,
        out_shape=(out, out, out),
        grid=(pl.cdiv(M, tm),),
        in_specs=[pl.BlockSpec((tm, D), lambda i: (i, 0)),
                  pl.BlockSpec((D, N), lambda i: (0, 0)),   # weights VMEM-resident
                  pl.BlockSpec((1, N), lambda i: (0, 0))],
        out_specs=(rspec, rspec, rspec),
        compiler_params=_compiler_params(1),
    )(x2d, wqkv, bqkv.reshape(1, N))


# ------ kernel 2: attention + output projection + residual + LayerNorm ------

def _attn_out_ln_kernel(q_ref, k_ref, v_ref, xres_ref, wo_ref, bo_ref,
                        g_ref, beta_ref, o_ref, ctx_sc, *, n_heads, scale):
    D = q_ref.shape[2]
    dh = D // n_heads
    q = q_ref[0]            # [tq, D]  MATMUL_DTYPE/ACT_DTYPE
    k = k_ref[0]            # [L,  D]  (VMEM-resident across q tiles of the same b)
    v = v_ref[0]            # [L,  D]

    # Scores are bounded to [tq, L]; the full [L, L] matrix never materializes.
    # TODO(synk): for L so large that resident K/V per batch element no longer fit
    # VMEM, add a KV grid axis with flash-style online softmax.
    for h in range(n_heads):                       # static, trace-time unrolled
        q_h = q[:, h * dh:(h + 1) * dh]
        k_h = k[:, h * dh:(h + 1) * dh]
        v_h = v[:, h * dh:(h + 1) * dh]
        s = lax.dot_general(q_h, k_h, (((1,), (1,)), ((), ())),
                            preferred_element_type=jnp.float32) * scale
        s = s - jnp.max(s, axis=-1, keepdims=True)
        p = jnp.exp(s)
        p = p * pl.reciprocal(jnp.sum(p, axis=-1, keepdims=True), approx=True)
        ctx_h = jnp.dot(p.astype(MATMUL_DTYPE), v_h,
                        preferred_element_type=jnp.float32)        # [tq, dh]
        # Immediate lane-slice store into VMEM scratch bounds live ranges across the
        # head loop (no per-head small-K out-proj matmuls, no reshape/transpose).
        ctx_sc[:, h * dh:(h + 1) * dh] = ctx_h.astype(ctx_sc.dtype)

    # Single full-K output projection on the MXU.
    out = jnp.dot(ctx_sc[...], wo_ref[...].astype(MATMUL_DTYPE),
                  preferred_element_type=jnp.float32) + bo_ref[...]
    s2 = xres_ref[0].astype(jnp.float32) + out      # x + dropout(new_x), eval mode
    o_ref[0] = _layernorm(s2, g_ref[...], beta_ref[...]).astype(o_ref.dtype)


def attention_out_ln(q, k, v, xres, wo, bo, gamma, beta, n_heads, scale, tq):
    B, L, D = q.shape
    kernel = functools.partial(_attn_out_ln_kernel, n_heads=n_heads, scale=scale)
    vec = lambda a: a.reshape(1, D)
    qspec = pl.BlockSpec((1, tq, D), lambda b, i: (b, i, 0))
    kvspec = pl.BlockSpec((1, L, D), lambda b, i: (b, 0, 0))   # constant in q axis
    return pl.pallas_call(
        kernel,
        out_shape=jax.ShapeDtypeStruct((B, L, D), ACT_DTYPE),
        grid=(B, pl.cdiv(L, tq)),
        in_specs=[qspec, kvspec, kvspec, qspec,
                  pl.BlockSpec((D, D), lambda b, i: (0, 0)),
                  pl.BlockSpec((1, D), lambda b, i: (0, 0)),
                  pl.BlockSpec((1, D), lambda b, i: (0, 0)),
                  pl.BlockSpec((1, D), lambda b, i: (0, 0))],
        out_specs=qspec,
        scratch_shapes=[pltpu.VMEM((tq, D), MATMUL_DTYPE)],
        compiler_params=_compiler_params(2),
    )(q, k, v, xres, wo, vec(bo), vec(gamma), vec(beta))


# ------ kernel 3: FFN (conv1->relu->conv2) + residual + LN (+ final LN) -----

def _ffn_ln_kernel(x_ref, w1_ref, b1_ref, w2_ref, b2_ref, g_ref, beta_ref,
                   *rest, final_ln):
    if final_ln:
        gN_ref, bN_ref, o_ref = rest
    else:
        (o_ref,) = rest
    x = x_ref[...]
    h = jnp.dot(x.astype(MATMUL_DTYPE), w1_ref[...].astype(MATMUL_DTYPE),
                preferred_element_type=jnp.float32)
    h = jnp.maximum(h + b1_ref[...], 0.0)
    y = jnp.dot(h.astype(MATMUL_DTYPE), w2_ref[...].astype(MATMUL_DTYPE),
                preferred_element_type=jnp.float32) + b2_ref[...]
    s = _layernorm(x.astype(jnp.float32) + y, g_ref[...], beta_ref[...])
    if final_ln:                                   # fused Encoder.norm for last layer
        s = _layernorm(s, gN_ref[...], bN_ref[...])
    o_ref[...] = s.astype(o_ref.dtype)


def ffn_add_ln(x2d, w1, b1, w2, b2, gamma, beta, tm, out_dtype,
               final_gamma=None, final_beta=None):
    M, D = x2d.shape
    F = w1.shape[1]
    final_ln = final_gamma is not None
    kernel = functools.partial(_ffn_ln_kernel, final_ln=final_ln)
    cspec = lambda shape: pl.BlockSpec(shape, lambda i: (0, 0))
    in_specs = [pl.BlockSpec((tm, D), lambda i: (i, 0)),
                cspec((D, F)), cspec((1, F)), cspec((F, D)), cspec((1, D)),
                cspec((1, D)), cspec((1, D))]
    args = [x2d, w1, b1.reshape(1, F), w2, b2.reshape(1, D),
            gamma.reshape(1, D), beta.reshape(1, D)]
    if final_ln:
        in_specs += [cspec((1, D)), cspec((1, D))]
        args += [final_gamma.reshape(1, D), final_beta.reshape(1, D)]
    return pl.pallas_call(
        kernel,
        out_shape=jax.ShapeDtypeStruct((M, D), out_dtype),
        grid=(pl.cdiv(M, tm),),
        in_specs=in_specs,
        out_specs=pl.BlockSpec((tm, D), lambda i: (i, 0)),
        compiler_params=_compiler_params(1),
    )(*args)


# -------------- kernel 4: standalone LayerNorm (zero-layer edge case) -------

def _ln_kernel(x_ref, g_ref, beta_ref, o_ref):
    s = x_ref[...].astype(jnp.float32)
    o_ref[...] = _layernorm(s, g_ref[...], beta_ref[...]).astype(o_ref.dtype)


def layernorm(x2d, gamma, beta, tm, out_dtype):
    M, D = x2d.shape
    return pl.pallas_call(
        _ln_kernel,
        out_shape=jax.ShapeDtypeStruct((M, D), out_dtype),
        grid=(pl.cdiv(M, tm),),
        in_specs=[pl.BlockSpec((tm, D), lambda i: (i, 0)),
                  pl.BlockSpec((1, D), lambda i: (0, 0)),
                  pl.BlockSpec((1, D), lambda i: (0, 0))],
        out_specs=pl.BlockSpec((tm, D), lambda i: (i, 0)),
        compiler_params=_compiler_params(1),
    )(x2d, gamma.reshape(1, D), beta.reshape(1, D))


# --------------------------- Encoder forward pass ---------------------------

def encoder_layer_forward(x, p, n_heads, final_norm=None, out_dtype=None):
    """One EncoderLayer; if final_norm is given, the Encoder's final LN is fused in."""
    B, L, D = x.shape
    M = B * L
    tm = _choose_tile(M)
    tq = _choose_tile(L, big=512, small=256)

    q, k, v = qkv_projection(x.reshape(M, D), p["wqkv"], p["bqkv"], tm)  # bf16 [M,D]x3
    q = q.reshape(B, L, D)
    k = k.reshape(B, L, D)
    v = v.reshape(B, L, D)

    scale = 1.0 / math.sqrt(D // n_heads)           # FullAttention default
    x_ln1 = attention_out_ln(q, k, v, x, p["wo"], p["bo"], p["g1"], p["beta1"],
                             n_heads, scale, tq)    # [B, L, D]

    fg, fb = final_norm if final_norm is not None else (None, None)
    out = ffn_add_ln(x_ln1.reshape(M, D), p["w1"], p["bf1"], p["w2"], p["bf2"],
                     p["g2"], p["beta2"], tm,
                     out_dtype if out_dtype is not None else ACT_DTYPE,
                     final_gamma=fg, final_beta=fb)  # [M, D]
    return out.reshape(B, L, D), None                # output_attention=False


def encoder_forward(x, params, n_heads):
    """Encoder.forward with conv_layers=None, norm_layer=LayerNorm(d_model)."""
    attns = []
    in_dtype = x.dtype
    layers = params["layers"]
    if len(layers) == 0:
        B, L, D = x.shape
        M = B * L
        y = layernorm(x.reshape(M, D), params["gN"], params["betaN"],
                      _choose_tile(M), in_dtype).reshape(B, L, D)
        return y, attns
    for idx, p in enumerate(layers):
        last = idx == len(layers) - 1
        x, attn = encoder_layer_forward(
            x, p, n_heads,
            final_norm=(params["gN"], params["betaN"]) if last else None,
            out_dtype=in_dtype if last else ACT_DTYPE)
        attns.append(attn)
    return x, attns


# ------------------------------- init + main --------------------------------

def init_params(key, d_model, d_ff, e_layers):
    layers = []
    for _ in range(e_layers):
        keys = jax.random.split(key, 5)
        key = keys[0]
        layers.append(dict(
            # Q/K/V projection weights concatenated -> single [D, 3D] matmul (bf16).
            wqkv=(0.02 * jax.random.normal(keys[1], (d_model, 3 * d_model),
                                           jnp.float32)).astype(MATMUL_DTYPE),
            bqkv=jnp.zeros((3 * d_model,), jnp.float32),
            wo=(0.02 * jax.random.normal(keys[2], (d_model, d_model),
                                         jnp.float32)).astype(MATMUL_DTYPE),
            bo=jnp.zeros((d_model,), jnp.float32),
            w1=(0.02 * jax.random.normal(keys[3], (d_model, d_ff),
                                         jnp.float32)).astype(MATMUL_DTYPE),
            bf1=jnp.zeros((d_ff,), jnp.float32),
            w2=(0.02 * jax.random.normal(keys[4], (d_ff, d_model),
                                         jnp.float32)).astype(MATMUL_DTYPE),
            bf2=jnp.zeros((d_model,), jnp.float32),
            g1=jnp.ones((d_model,), jnp.float32),
            beta1=jnp.zeros((d_model,), jnp.float32),
            g2=jnp.ones((d_model,), jnp.float32),
            beta2=jnp.zeros((d_model,), jnp.float32),
        ))
    return dict(layers=layers,
                gN=jnp.ones((d_model,), jnp.float32),
                betaN=jnp.zeros((d_model,), jnp.float32))


if __name__ == "__main__":
    # Small demo shapes; real configs should use d_model (and d_model/n_heads)
    # as multiples of 128 for lane-dense vregs/stores.
    B, L, D = 2, 64, 128        # batch, seq len, d_model
    H, FF, NL = 4, 256, 2       # heads, d_ff, number of encoder layers

    key = jax.random.PRNGKey(0)
    k_x, k_p = jax.random.split(key)
    x = jax.random.normal(k_x, (B, L, D), jnp.float32)
    params = init_params(k_p, D, FF, NL)

    fwd = jax.jit(lambda xx, pp: encoder_forward(xx, pp, H))
    out, attns = fwd(x, params)
    out = jax.block_until_ready(out)

    assert out.shape == (B, L, D)
    assert out.dtype == x.dtype
    assert len(attns) == NL
    assert all(a is None for a in attns)
    assert bool(jnp.all(jnp.isfinite(out)))
    print("KERNEL_OK")
</pallas_src>

<mosaic_0001>
module attributes {stable_mosaic.version = 11 : i64} {
  func.func @_qkv_proj_kernel(%arg0: i32, %arg1: memref<128x128xf32, #tpu.memory_space<vmem>>, %arg2: memref<128x384xbf16, #tpu.memory_space<vmem>>, %arg3: memref<1x384xf32, #tpu.memory_space<vmem>>, %arg4: memref<128x128xbf16, #tpu.memory_space<vmem>>, %arg5: memref<128x128xbf16, #tpu.memory_space<vmem>>, %arg6: memref<128x128xbf16, #tpu.memory_space<vmem>>) attributes {dimension_semantics = [#tpu.dimension_semantics<parallel>], iteration_bounds = array<i64: 1>, scalar_prefetch = 0 : i64, scratch_operands = 0 : i64, tpu.core_type = #tpu.core_type<tc>, window_params = [{transform_indices = @transform_0, window_bounds = array<i64: 128, 128>}, {pipeline_mode = #tpu.pipeline_mode<synchronous>, transform_indices = @transform_1, window_bounds = array<i64: 128, 384>}, {pipeline_mode = #tpu.pipeline_mode<synchronous>, transform_indices = @transform_2, window_bounds = array<i64: 1, 384>}, {transform_indices = @transform_3, window_bounds = array<i64: 128, 128>}, {transform_indices = @transform_4, window_bounds = array<i64: 128, 128>}, {transform_indices = @transform_5, window_bounds = array<i64: 128, 128>}]} {
    %c0 = arith.constant 0 : index
    %c0_0 = arith.constant 0 : index
    %0 = vector.load %arg1[%c0, %c0_0] : memref<128x128xf32, #tpu.memory_space<vmem>>, vector<128x128xf32>
    %1 = arith.truncf %0 : vector<128x128xf32> to vector<128x128xbf16>
    %c0_1 = arith.constant 0 : index
    %c0_2 = arith.constant 0 : index
    %2 = vector.load %arg2[%c0_1, %c0_2] : memref<128x384xbf16, #tpu.memory_space<vmem>>, vector<128x384xbf16>
    %cst = arith.constant dense<0.000000e+00> : vector<128x384xf32>
    %3 = tpu.matmul %1, %2, %cst {dimension_numbers = #tpu.dot_dimension_numbers<[1], [0], [0], [1], [0, 0, 1, 1], [], []>} : vector<128x128xbf16>, vector<128x384xbf16>, vector<128x384xf32> -> vector<128x384xf32>
    %c0_3 = arith.constant 0 : index
    %c0_4 = arith.constant 0 : index
    %4 = vector.load %arg3[%c0_3, %c0_4] : memref<1x384xf32, #tpu.memory_space<vmem>>, vector<1x384xf32>
    %5 = vector.broadcast %4 : vector<1x384xf32> to vector<128x384xf32>
    %6 = arith.addf %3, %5 : vector<128x384xf32>
    %7 = vector.extract_strided_slice %6 {offsets = [0, 0], sizes = [128, 128], strides = [1, 1]} : vector<128x384xf32> to vector<128x128xf32>
    %8 = arith.truncf %7 : vector<128x128xf32> to vector<128x128xbf16>
    %c0_5 = arith.constant 0 : index
    %c0_6 = arith.constant 0 : index
    %9 = vector.load %arg4[%c0_5, %c0_6] : memref<128x128xbf16, #tpu.memory_space<vmem>>, vector<128x128xbf16>
    tpu.vector_store %arg4[%c0_5, %c0_6], %8 {strides = array<i32>} : memref<128x128xbf16, #tpu.memory_space<vmem>>, vector<128x128xbf16>,
    %10 = vector.extract_strided_slice %6 {offsets = [0, 128], sizes = [128, 128], strides = [1, 1]} : vector<128x384xf32> to vector<128x128xf32>
    %11 = arith.truncf %10 : vector<128x128xf32> to vector<128x128xbf16>
    %c0_7 = arith.constant 0 : index
    %c0_8 = arith.constant 0 : index
    %12 = vector.load %arg5[%c0_7, %c0_8] : memref<128x128xbf16, #tpu.memory_space<vmem>>, vector<128x128xbf16>
    tpu.vector_store %arg5[%c0_7, %c0_8], %11 {strides = array<i32>} : memref<128x128xbf16, #tpu.memory_space<vmem>>, vector<128x128xbf16>,
    %13 = vector.extract_strided_slice %6 {offsets = [0, 256], sizes = [128, 128], strides = [1, 1]} : vector<128x384xf32> to vector<128x128xf32>
    %14 = arith.truncf %13 : vector<128x128xf32> to vector<128x128xbf16>
    %c0_9 = arith.constant 0 : index
    %c0_10 = arith.constant 0 : index
    %15 = vector.load %arg6[%c0_9, %c0_10] : memref<128x128xbf16, #tpu.memory_space<vmem>>, vector<128x128xbf16>
    tpu.vector_store %arg6[%c0_9, %c0_10], %14 {strides = array<i32>} : memref<128x128xbf16, #tpu.memory_space<vmem>>, vector<128x128xbf16>,
    return
  }
  func.func @transform_0(%arg0: i32) -> (i32, i32) {
    %c0_i32 = arith.constant 0 : i32
    %c0_i32_0 = arith.constant 0 : i32
    return %arg0, %c0_i32 : i32, i32
  }
  func.func @transform_1(%arg0: i32) -> (i32, i32) {
    %c0_i32 = arith.constant 0 : i32
    %c0_i32_0 = arith.constant 0 : i32
    %c0_i32_1 = arith.constant 0 : i32
    return %c0_i32, %c0_i32_0 : i32, i32
  }
  func.func @transform_2(%arg0: i32) -> (i32, i32) {
    %c0_i32 = arith.constant 0 : i32
    %c0_i32_0 = arith.constant 0 : i32
    %c0_i32_1 = arith.constant 0 : i32
    return %c0_i32, %c0_i32_0 : i32, i32
  }
  func.func @transform_3(%arg0: i32) -> (i32, i32) {
    %c0_i32 = arith.constant 0 : i32
    %c0_i32_0 = arith.constant 0 : i32
    return %arg0, %c0_i32 : i32, i32
  }
  func.func @transform_4(%arg0: i32) -> (i32, i32) {
    %c0_i32 = arith.constant 0 : i32
    %c0_i32_0 = arith.constant 0 : i32
    return %arg0, %c0_i32 : i32, i32
  }
  func.func @transform_5(%arg0: i32) -> (i32, i32) {
    %c0_i32 = arith.constant 0 : i32
    %c0_i32_0 = arith.constant 0 : i32
    return %arg0, %c0_i32 : i32, i32
  }
}

module attributes {stable_mosaic.version = 11 : i64} {
  func.func @_ffn_ln_kernel(%arg0: i32, %arg1: memref<128x128xbf16, #tpu.memory_space<vmem>>, %arg2: memref<128x256xbf16, #tpu.memory_space<vmem>>, %arg3: memref<1x256xf32, #tpu.memory_space<vmem>>, %arg4: memref<256x128xbf16, #tpu.memory_space<vmem>>, %arg5: memref<1x128xf32, #tpu.memory_space<vmem>>, %arg6: memref<1x128xf32, #tpu.memory_space<vmem>>, %arg7: memref<1x128xf32, #tpu.memory_space<vmem>>, %arg8: memref<128x128xbf16, #tpu.memory_space<vmem>>) attributes {dimension_semantics = [#tpu.dimension_semantics<parallel>], iteration_bounds = array<i64: 1>, scalar_prefetch = 0 : i64, scratch_operands = 0 : i64, tpu.core_type = #tpu.core_type<tc>, window_params = [{transform_indices = @transform_0, window_bounds = array<i64: 128, 128>}, {pipeline_mode = #tpu.pipeline_mode<synchronous>, transform_indices = @transform_1, window_bounds = array<i64: 128, 256>}, {pipeline_mode = #tpu.pipeline_mode<synchronous>, transform_indices = @transform_2, window_bounds = array<i64: 1, 256>}, {pipeline_mode = #tpu.pipeline_mode<synchronous>, transform_indices = @transform_3, window_bounds = array<i64: 256, 128>}, {pipeline_mode = #tpu.pipeline_mode<synchronous>, transform_indices = @transform_4, window_bounds = array<i64: 1, 128>}, {pipeline_mode = #tpu.pipeline_mode<synchronous>, transform_indices = @transform_5, window_bounds = array<i64: 1, 128>}, {pipeline_mode = #tpu.pipeline_mode<synchronous>, transform_indices = @transform_6, window_bounds = array<i64: 1, 128>}, {transform_indices = @transform_7, window_bounds = array<i64: 128, 128>}]} {
    %c0 = arith.constant 0 : index
    %c0_0 = arith.constant 0 : index
    %0 = vector.load %arg1[%c0, %c0_0] : memref<128x128xbf16, #tpu.memory_space<vmem>>, vector<128x128xbf16>
    %c0_1 = arith.constant 0 : index
    %c0_2 = arith.constant 0 : index
    %1 = vector.load %arg2[%c0_1, %c0_2] : memref<128x256xbf16, #tpu.memory_space<vmem>>, vector<128x256xbf16>
    %cst = arith.constant dense<0.000000e+00> : vector<128x256xf32>
    %2 = tpu.matmul %0, %1, %cst {dimension_numbers = #tpu.dot_dimension_numbers<[1], [0], [0], [1], [0, 0, 1, 1], [], []>} : vector<128x128xbf16>, vector<128x256xbf16>, vector<128x256xf32> -> vector<128x256xf32>
    %c0_3 = arith.constant 0 : index
    %c0_4 = arith.constant 0 : index
    %3 = vector.load %arg3[%c0_3, %c0_4] : memref<1x256xf32, #tpu.memory_space<vmem>>, vector<1x256xf32>
    %4 = vector.broadcast %3 : vector<1x256xf32> to vector<128x256xf32>
    %5 = arith.addf %2, %4 : vector<128x256xf32>
    %cst_5 = arith.constant 0.000000e+00 : f32
    %6 = vector.broadcast %cst_5 : f32 to vector<128x256xf32>
    %7 = arith.maximumf %5, %6 : vector<128x256xf32>
    %8 = arith.truncf %7 : vector<128x256xf32> to vector<128x256xbf16>
    %c0_6 = arith.constant 0 : index
    %c0_7 = arith.constant 0 : index
    %9 = vector.load %arg4[%c0_6, %c0_7] : memref<256x128xbf16, #tpu.memory_space<vmem>>, vector<256x128xbf16>
    %cst_8 = arith.constant dense<0.000000e+00> : vector<128x128xf32>
    %10 = tpu.matmul %8, %9, %cst_8 {dimension_numbers = #tpu.dot_dimension_numbers<[1], [0], [0], [1], [0, 0, 1, 1], [], []>} : vector<128x256xbf16>, vector<256x128xbf16>, vector<128x128xf32> -> vector<128x128xf32>
    %c0_9 = arith.constant 0 : index
    %c0_10 = arith.constant 0 : index
    %11 = vector.load %arg5[%c0_9, %c0_10] : memref<1x128xf32, #tpu.memory_space<vmem>>, vector<1x128xf32>
    %12 = vector.broadcast %11 : vector<1x128xf32> to vector<128x128xf32>
    %13 = arith.addf %10, %12 : vector<128x128xf32>
    %14 = arith.extf %0 : vector<128x128xbf16> to vector<128x128xf32>
    %15 = arith.addf %14, %13 : vector<128x128xf32>
    %c0_11 = arith.constant 0 : index
    %c0_12 = arith.constant 0 : index
    %16 = vector.load %arg6[%c0_11, %c0_12] : memref<1x128xf32, #tpu.memory_space<vmem>>, vector<1x128xf32>
    %c0_13 = arith.constant 0 : index
    %c0_14 = arith.constant 0 : index
    %17 = vector.load %arg7[%c0_13, %c0_14] : memref<1x128xf32, #tpu.memory_space<vmem>>, vector<1x128xf32>
    %cst_15 = arith.constant dense<0.000000e+00> : vector<128xf32>
    %18 = vector.multi_reduction <add>, %15, %cst_15 [1] : vector<128x128xf32> to vector<128xf32>
    %19 = vector.shape_cast %18 : vector<128xf32> to vector<128x1xf32>
    %cst_16 = arith.constant 1.280000e+02 : f32
    %20 = vector.broadcast %cst_16 : f32 to vector<128x1xf32>
    %21 = arith.divf %19, %20 : vector<128x1xf32>
    %22 = vector.broadcast %21 : vector<128x1xf32> to vector<128x128xf32>
    %23 = arith.subf %15, %22 : vector<128x128xf32>
    %24 = arith.mulf %23, %23 : vector<128x128xf32>
    %cst_17 = arith.constant dense<0.000000e+00> : vector<128xf32>
    %25 = vector.multi_reduction <add>, %24, %cst_17 [1] : vector<128x128xf32> to vector<128xf32>
    %26 = vector.shape_cast %25 : vector<128xf32> to vector<128x1xf32>
    %cst_18 = arith.constant 1.280000e+02 : f32
    %27 = vector.broadcast %cst_18 : f32 to vector<128x1xf32>
    %28 = arith.divf %26, %27 : vector<128x1xf32>
    %29 = vector.broadcast %21 : vector<128x1xf32> to vector<128x128xf32>
    %30 = arith.subf %15, %29 : vector<128x128xf32>
    %cst_19 = arith.constant 9.99999974E-6 : f32
    %31 = vector.broadcast %cst_19 : f32 to vector<128x1xf32>
    %32 = arith.addf %28, %31 : vector<128x1xf32>
    %33 = math.rsqrt %32 : vector<128x1xf32>
    %34 = vector.broadcast %33 : vector<128x1xf32> to vector<128x128xf32>
    %35 = arith.mulf %30, %34 : vector<128x128xf32>
    %36 = vector.broadcast %16 : vector<1x128xf32> to vector<128x128xf32>
    %37 = arith.mulf %35, %36 : vector<128x128xf32>
    %38 = vector.broadcast %17 : vector<1x128xf32> to vector<128x128xf32>
    %39 = arith.addf %37, %38 : vector<128x128xf32>
    %40 = arith.truncf %39 : vector<128x128xf32> to vector<128x128xbf16>
    %c0_20 = arith.constant 0 : index
    %c0_21 = arith.constant 0 : index
    %41 = vector.load %arg8[%c0_20, %c0_21] : memref<128x128xbf16, #tpu.memory_space<vmem>>, vector<128x128xbf16>
    tpu.vector_store %arg8[%c0_20, %c0_21], %40 {strides = array<i32>} : memref<128x128xbf16, #tpu.memory_space<vmem>>, vector<128x128xbf16>,
    return
  }
  func.func @transform_0(%arg0: i32) -> (i32, i32) {
    %c0_i32 = arith.constant 0 : i32
    %c0_i32_0 = arith.constant 0 : i32
    return %arg0, %c0_i32 : i32, i32
  }
  func.func @transform_1(%arg0: i32) -> (i32, i32) {
    %c0_i32 = arith.constant 0 : i32
    %c0_i32_0 = arith.constant 0 : i32
    %c0_i32_1 = arith.constant 0 : i32
    return %c0_i32, %c0_i32_0 : i32, i32
  }
  func.func @transform_2(%arg0: i32) -> (i32, i32) {
    %c0_i32 = arith.constant 0 : i32
    %c0_i32_0 = arith.constant 0 : i32
    %c0_i32_1 = arith.constant 0 : i32
    return %c0_i32, %c0_i32_0 : i32, i32
  }
  func.func @transform_3(%arg0: i32) -> (i32, i32) {
    %c0_i32 = arith.constant 0 : i32
    %c0_i32_0 = arith.constant 0 : i32
    %c0_i32_1 = arith.constant 0 : i32
    return %c0_i32, %c0_i32_0 : i32, i32
  }
  func.func @transform_4(%arg0: i32) -> (i32, i32) {
    %c0_i32 = arith.constant 0 : i32
    %c0_i32_0 = arith.constant 0 : i32
    %c0_i32_1 = arith.constant 0 : i32
    return %c0_i32, %c0_i32_0 : i32, i32
  }
  func.func @transform_5(%arg0: i32) -> (i32, i32) {
    %c0_i32 = arith.constant 0 : i32
    %c0_i32_0 = arith.constant 0 : i32
    %c0_i32_1 = arith.constant 0 : i32
    return %c0_i32, %c0_i32_0 : i32, i32
  }
  func.func @transform_6(%arg0: i32) -> (i32, i32) {
    %c0_i32 = arith.constant 0 : i32
    %c0_i32_0 = arith.constant 0 : i32
    %c0_i32_1 = arith.constant 0 : i32
    return %c0_i32, %c0_i32_0 : i32, i32
  }
  func.func @transform_7(%arg0: i32) -> (i32, i32) {
    %c0_i32 = arith.constant 0 : i32
    %c0_i32_0 = arith.constant 0 : i32
    return %arg0, %c0_i32 : i32, i32
  }
}

module attributes {stable_mosaic.version = 11 : i64} {
  func.func @_attn_out_ln_kernel(%arg0: i32, %arg1: i32, %arg2: memref<1x64x128xbf16, #tpu.memory_space<vmem>>, %arg3: memref<1x64x128xbf16, #tpu.memory_space<vmem>>, %arg4: memref<1x64x128xbf16, #tpu.memory_space<vmem>>, %arg5: memref<1x64x128xf32, #tpu.memory_space<vmem>>, %arg6: memref<128x128xbf16, #tpu.memory_space<vmem>>, %arg7: memref<1x128xf32, #tpu.memory_space<vmem>>, %arg8: memref<1x128xf32, #tpu.memory_space<vmem>>, %arg9: memref<1x128xf32, #tpu.memory_space<vmem>>, %arg10: memref<1x64x128xbf16, #tpu.memory_space<vmem>>, %arg11: memref<64x128xbf16, #tpu.memory_space<vmem>>) attributes {dimension_semantics = [#tpu.dimension_semantics<parallel>, #tpu.dimension_semantics<parallel>], iteration_bounds = array<i64: 2, 1>, scalar_prefetch = 0 : i64, scratch_operands = 1 : i64, tpu.core_type = #tpu.core_type<tc>, window_params = [{transform_indices = @transform_0, window_bounds = array<i64: 1, 64, 128>}, {transform_indices = @transform_1, window_bounds = array<i64: 1, 64, 128>}, {transform_indices = @transform_2, window_bounds = array<i64: 1, 64, 128>}, {transform_indices = @transform_3, window_bounds = array<i64: 1, 64, 128>}, {pipeline_mode = #tpu.pipeline_mode<synchronous>, transform_indices = @transform_4, window_bounds = array<i64: 128, 128>}, {pipeline_mode = #tpu.pipeline_mode<synchronous>, transform_indices = @transform_5, window_bounds = array<i64: 1, 128>}, {pipeline_mode = #tpu.pipeline_mode<synchronous>, transform_indices = @transform_6, window_bounds = array<i64: 1, 128>}, {pipeline_mode = #tpu.pipeline_mode<synchronous>, transform_indices = @transform_7, window_bounds = array<i64: 1, 128>}, {transform_indices = @transform_8, window_bounds = array<i64: 1, 64, 128>}]} {
    %c0 = arith.constant 0 : index
    %c0_0 = arith.constant 0 : index
    %c0_1 = arith.constant 0 : index
    %0 = vector.load %arg2[%c0, %c0_0, %c0_1] : memref<1x64x128xbf16, #tpu.memory_space<vmem>>, vector<1x64x128xbf16>
    %1 = vector.shape_cast %0 : vector<1x64x128xbf16> to vector<64x128xbf16>
    %c0_2 = arith.constant 0 : index
    %c0_3 = arith.constant 0 : index
    %c0_4 = arith.constant 0 : index
    %2 = vector.load %arg3[%c0_2, %c0_3, %c0_4] : memref<1x64x128xbf16, #tpu.memory_space<vmem>>, vector<1x64x128xbf16>
    %3 = vector.shape_cast %2 : vector<1x64x128xbf16> to vector<64x128xbf16>
    %c0_5 = arith.constant 0 : index
    %c0_6 = arith.constant 0 : index
    %c0_7 = arith.constant 0 : index
    %4 = vector.load %arg4[%c0_5, %c0_6, %c0_7] : memref<1x64x128xbf16, #tpu.memory_space<vmem>>, vector<1x64x128xbf16>
    %5 = vector.shape_cast %4 : vector<1x64x128xbf16> to vector<64x128xbf16>
    %6 = vector.extract_strided_slice %1 {offsets = [0, 0], sizes = [64, 32], strides = [1, 1]} : vector<64x128xbf16> to vector<64x32xbf16>
    %7 = vector.extract_strided_slice %3 {offsets = [0, 0], sizes = [64, 32], strides = [1, 1]} : vector<64x128xbf16> to vector<64x32xbf16>
    %8 = vector.extract_strided_slice %5 {offsets = [0, 0], sizes = [64, 32], strides = [1, 1]} : vector<64x128xbf16> to vector<64x32xbf16>
    %cst = arith.constant dense<0.000000e+00> : vector<64x64xf32>
    %9 = tpu.matmul %6, %7, %cst {dimension_numbers = #tpu.dot_dimension_numbers<[1], [1], [0], [0], [0, 0, 1, 0], [], []>} : vector<64x32xbf16>, vector<64x32xbf16>, vector<64x64xf32> -> vector<64x64xf32>
    %cst_8 = arith.constant 0.176776692 : f32
    %10 = vector.broadcast %cst_8 : f32 to vector<64x64xf32>
    %11 = arith.mulf %9, %10 : vector<64x64xf32>
    %cst_9 = arith.constant dense<0xFF800000> : vector<64xf32>
    %12 = vector.multi_reduction <maximumf>, %11, %cst_9 [1] : vector<64x64xf32> to vector<64xf32>
    %13 = vector.shape_cast %12 : vector<64xf32> to vector<64x1xf32>
    %14 = vector.broadcast %13 : vector<64x1xf32> to vector<64x64xf32>
    %15 = arith.subf %11, %14 : vector<64x64xf32>
    %16 = math.exp %15 : vector<64x64xf32>
    %cst_10 = arith.constant dense<0.000000e+00> : vector<64xf32>
    %17 = vector.multi_reduction <add>, %16, %cst_10 [1] : vector<64x64xf32> to vector<64xf32>
    %18 = vector.shape_cast %17 : vector<64xf32> to vector<64x1xf32>
    %19 = tpu.reciprocal %18 {approx = true} : vector<64x1xf32> -> vector<64x1xf32>
    %20 = vector.broadcast %19 : vector<64x1xf32> to vector<64x64xf32>
    %21 = arith.mulf %16, %20 : vector<64x64xf32>
    %22 = arith.truncf %21 : vector<64x64xf32> to vector<64x64xbf16>
    %cst_11 = arith.constant dense<0.000000e+00> : vector<64x32xf32>
    %23 = tpu.matmul %22, %8, %cst_11 {dimension_numbers = #tpu.dot_dimension_numbers<[1], [0], [0], [1], [0, 0, 1, 1], [], []>} : vector<64x64xbf16>, vector<64x32xbf16>, vector<64x32xf32> -> vector<64x32xf32>
    %24 = arith.truncf %23 : vector<64x32xf32> to vector<64x32xbf16>
    %c0_12 = arith.constant 0 : index
    %c0_13 = arith.constant 0 : index
    %25 = vector.load %arg11[%c0_12, %c0_13] : memref<64x128xbf16, #tpu.memory_space<vmem>>, vector<64x32xbf16>
    tpu.vector_store %arg11[%c0_12, %c0_13], %24 {strides = array<i32>} : memref<64x128xbf16, #tpu.memory_space<vmem>>, vector<64x32xbf16>,
    %26 = vector.extract_strided_slice %1 {offsets = [0, 32], sizes = [64, 32], strides = [1, 1]} : vector<64x128xbf16> to vector<64x32xbf16>
    %27 = vector.extract_strided_slice %3 {offsets = [0, 32], sizes = [64, 32], strides = [1, 1]} : vector<64x128xbf16> to vector<64x32xbf16>
    %28 = vector.extract_strided_slice %5 {offsets = [0, 32], sizes = [64, 32], strides = [1, 1]} : vector<64x128xbf16> to vector<64x32xbf16>
    %cst_14 = arith.constant dense<0.000000e+00> : vector<64x64xf32>
    %29 = tpu.matmul %26, %27, %cst_14 {dimension_numbers = #tpu.dot_dimension_numbers<[1], [1], [0], [0], [0, 0, 1, 0], [], []>} : vector<64x32xbf16>, vector<64x32xbf16>, vector<64x64xf32> -> vector<64x64xf32>
    %cst_15 = arith.constant 0.176776692 : f32
    %30 = vector.broadcast %cst_15 : f32 to vector<64x64xf32>
    %31 = arith.mulf %29, %30 : vector<64x64xf32>
    %cst_16 = arith.constant dense<0xFF800000> : vector<64xf32>
    %32 = vector.multi_reduction <maximumf>, %31, %cst_16 [1] : vector<64x64xf32> to vector<64xf32>
    %33 = vector.shape_cast %32 : vector<64xf32> to vector<64x1xf32>
    %34 = vector.broadcast %33 : vector<64x1xf32> to vector<64x64xf32>
    %35 = arith.subf %31, %34 : vector<64x64xf32>
    %36 = math.exp %35 : vector<64x64xf32>
    %cst_17 = arith.constant dense<0.000000e+00> : vector<64xf32>
    %37 = vector.multi_reduction <add>, %36, %cst_17 [1] : vector<64x64xf32> to vector<64xf32>
    %38 = vector.shape_cast %37 : vector<64xf32> to vector<64x1xf32>
    %39 = tpu.reciprocal %38 {approx = true} : vector<64x1xf32> -> vector<64x1xf32>
    %40 = vector.broadcast %39 : vector<64x1xf32> to vector<64x64xf32>
    %41 = arith.mulf %36, %40 : vector<64x64xf32>
    %42 = arith.truncf %41 : vector<64x64xf32> to vector<64x64xbf16>
    %cst_18 = arith.constant dense<0.000000e+00> : vector<64x32xf32>
    %43 = tpu.matmul %42, %28, %cst_18 {dimension_numbers = #tpu.dot_dimension_numbers<[1], [0], [0], [1], [0, 0, 1, 1], [], []>} : vector<64x64xbf16>, vector<64x32xbf16>, vector<64x32xf32> -> vector<64x32xf32>
    %44 = arith.truncf %43 : vector<64x32xf32> to vector<64x32xbf16>
    %c0_19 = arith.constant 0 : index
    %c32 = arith.constant 32 : index
    %45 = vector.load %arg11[%c0_19, %c32] : memref<64x128xbf16, #tpu.memory_space<vmem>>, vector<64x32xbf16>
    tpu.vector_store %arg11[%c0_19, %c32], %44 {strides = array<i32>} : memref<64x128xbf16, #tpu.memory_space<vmem>>, vector<64x32xbf16>,
    %46 = vector.extract_strided_slice %1 {offsets = [0, 64], sizes = [64, 32], strides = [1, 1]} : vector<64x128xbf16> to vector<64x32xbf16>
    %47 = vector.extract_strided_slice %3 {offsets = [0, 64], sizes = [64, 32], strides = [1, 1]} : vector<64x128xbf16> to vector<64x32xbf16>
    %48 = vector.extract_strided_slice %5 {offsets = [0, 64], sizes = [64, 32], strides = [1, 1]} : vector<64x128xbf16> to vector<64x32xbf16>
    %cst_20 = arith.constant dense<0.000000e+00> : vector<64x64xf32>
    %49 = tpu.matmul %46, %47, %cst_20 {dimension_numbers = #tpu.dot_dimension_numbers<[1], [1], [0], [0], [0, 0, 1, 0], [], []>} : vector<64x32xbf16>, vector<64x32xbf16>, vector<64x64xf32> -> vector<64x64xf32>
    %cst_21 = arith.constant 0.176776692 : f32
    %50 = vector.broadcast %cst_21 : f32 to vector<64x64xf32>
    %51 = arith.mulf %49, %50 : vector<64x64xf32>
    %cst_22 = arith.constant dense<0xFF800000> : vector<64xf32>
    %52 = vector.multi_reduction <maximumf>, %51, %cst_22 [1] : vector<64x64xf32> to vector<64xf32>
    %53 = vector.shape_cast %52 : vector<64xf32> to vector<64x1xf32>
    %54 = vector.broadcast %53 : vector<64x1xf32> to vector<64x64xf32>
    %55 = arith.subf %51, %54 : vector<64x64xf32>
    %56 = math.exp %55 : vector<64x64xf32>
    %cst_23 = arith.constant dense<0.000000e+00> : vector<64xf32>
    %57 = vector.multi_reduction <add>, %56, %cst_23 [1] : vector<64x64xf32> to vector<64xf32>
    %58 = vector.shape_cast %57 : vector<64xf32> to vector<64x1xf32>
    %59 = tpu.reciprocal %58 {approx = true} : vector<64x1xf32> -> vector<64x1xf32>
    %60 = vector.broadcast %59 : vector<64x1xf32> to vector<64x64xf32>
    %61 = arith.mulf %56, %60 : vector<64x64xf32>
    %62 = arith.truncf %61 : vector<64x64xf32> to vector<64x64xbf16>
    %cst_24 = arith.constant dense<0.000000e+00> : vector<64x32xf32>
    %63 = tpu.matmul %62, %48, %cst_24 {dimension_numbers = #tpu.dot_dimension_numbers<[1], [0], [0], [1], [0, 0, 1, 1], [], []>} : vector<64x64xbf16>, vector<64x32xbf16>, vector<64x32xf32> -> vector<64x32xf32>
    %64 = arith.truncf %63 : vector<64x32xf32> to vector<64x32xbf16>
    %c0_25 = arith.constant 0 : index
    %c64 = arith.constant 64 : index
    %65 = vector.load %arg11[%c0_25, %c64] : memref<64x128xbf16, #tpu.memory_space<vmem>>, vector<64x32xbf16>
    tpu.vector_store %arg11[%c0_25, %c64], %64 {strides = array<i32>} : memref<64x128xbf16, #tpu.memory_space<vmem>>, vector<64x32xbf16>,
    %66 = vector.extract_strided_slice %1 {offsets = [0, 96], sizes = [64, 32], strides = [1, 1]} : vector<64x128xbf16> to vector<64x32xbf16>
    %67 = vector.extract_strided_slice %3 {offsets = [0, 96], sizes = [64, 32], strides = [1, 1]} : vector<64x128xbf16> to vector<64x32xbf16>
    %68 = vector.extract_strided_slice %5 {offsets = [0, 96], sizes = [64, 32], strides = [1, 1]} : vector<64x128xbf16> to vector<64x32xbf16>
    %cst_26 = arith.constant dense<0.000000e+00> : vector<64x64xf32>
    %69 = tpu.matmul %66, %67, %cst_26 {dimension_numbers = #tpu.dot_dimension_numbers<[1], [1], [0], [0], [0, 0, 1, 0], [], []>} : vector<64x32xbf16>, vector<64x32xbf16>, vector<64x64xf32> -> vector<64x64xf32>
    %cst_27 = arith.constant 0.176776692 : f32
    %70 = vector.broadcast %cst_27 : f32 to vector<64x64xf32>
    %71 = arith.mulf %69, %70 : vector<64x64xf32>
    %cst_28 = arith.constant dense<0xFF800000> : vector<64xf32>
    %72 = vector.multi_reduction <maximumf>, %71, %cst_28 [1] : vector<64x64xf32> to vector<64xf32>
    %73 = vector.shape_cast %72 : vector<64xf32> to vector<64x1xf32>
    %74 = vector.broadcast %73 : vector<64x1xf32> to vector<64x64xf32>
    %75 = arith.subf %71, %74 : vector<64x64xf32>
    %76 = math.exp %75 : vector<64x64xf32>
    %cst_29 = arith.constant dense<0.000000e+00> : vector<64xf32>
    %77 = vector.multi_reduction <add>, %76, %cst_29 [1] : vector<64x64xf32> to vector<64xf32>
    %78 = vector.shape_cast %77 : vector<64xf32> to vector<64x1xf32>
    %79 = tpu.reciprocal %78 {approx = true} : vector<64x1xf32> -> vector<64x1xf32>
    %80 = vector.broadcast %79 : vector<64x1xf32> to vector<64x64xf32>
    %81 = arith.mulf %76, %80 : vector<64x64xf32>
    %82 = arith.truncf %81 : vector<64x64xf32> to vector<64x64xbf16>
    %cst_30 = arith.constant dense<0.000000e+00> : vector<64x32xf32>
    %83 = tpu.matmul %82, %68, %cst_30 {dimension_numbers = #tpu.dot_dimension_numbers<[1], [0], [0], [1], [0, 0, 1, 1], [], []>} : vector<64x64xbf16>, vector<64x32xbf16>, vector<64x32xf32> -> vector<64x32xf32>
    %84 = arith.truncf %83 : vector<64x32xf32> to vector<64x32xbf16>
    %c0_31 = arith.constant 0 : index
    %c96 = arith.constant 96 : index
    %85 = vector.load %arg11[%c0_31, %c96] : memref<64x128xbf16, #tpu.memory_space<vmem>>, vector<64x32xbf16>
    tpu.vector_store %arg11[%c0_31, %c96], %84 {strides = array<i32>} : memref<64x128xbf16, #tpu.memory_space<vmem>>, vector<64x32xbf16>,
    %c0_32 = arith.constant 0 : index
    %c0_33 = arith.constant 0 : index
    %86 = vector.load %arg11[%c0_32, %c0_33] : memref<64x128xbf16, #tpu.memory_space<vmem>>, vector<64x128xbf16>
    %c0_34 = arith.constant 0 : index
    %c0_35 = arith.constant 0 : index
    %87 = vector.load %arg6[%c0_34, %c0_35] : memref<128x128xbf16, #tpu.memory_space<vmem>>, vector<128x128xbf16>
    %cst_36 = arith.constant dense<0.000000e+00> : vector<64x128xf32>
    %88 = tpu.matmul %86, %87, %cst_36 {dimension_numbers = #tpu.dot_dimension_numbers<[1], [0], [0], [1], [0, 0, 1, 1], [], []>} : vector<64x128xbf16>, vector<128x128xbf16>, vector<64x128xf32> -> vector<64x128xf32>
    %c0_37 = arith.constant 0 : index
    %c0_38 = arith.constant 0 : index
    %89 = vector.load %arg7[%c0_37, %c0_38] : memref<1x128xf32, #tpu.memory_space<vmem>>, vector<1x128xf32>
    %90 = vector.broadcast %89 : vector<1x128xf32> to vector<64x128xf32>
    %91 = arith.addf %88, %90 : vector<64x128xf32>
    %c0_39 = arith.constant 0 : index
    %c0_40 = arith.constant 0 : index
    %c0_41 = arith.constant 0 : index
    %92 = vector.load %arg5[%c0_39, %c0_40, %c0_41] : memref<1x64x128xf32, #tpu.memory_space<vmem>>, vector<1x64x128xf32>
    %93 = vector.shape_cast %92 : vector<1x64x128xf32> to vector<64x128xf32>
    %94 = arith.addf %93, %91 : vector<64x128xf32>
    %c0_42 = arith.constant 0 : index
    %c0_43 = arith.constant 0 : index
    %95 = vector.load %arg8[%c0_42, %c0_43] : memref<1x128xf32, #tpu.memory_space<vmem>>, vector<1x128xf32>
    %c0_44 = arith.constant 0 : index
    %c0_45 = arith.constant 0 : index
    %96 = vector.load %arg9[%c0_44, %c0_45] : memref<1x128xf32, #tpu.memory_space<vmem>>, vector<1x128xf32>
    %cst_46 = arith.constant dense<0.000000e+00> : vector<64xf32>
    %97 = vector.multi_reduction <add>, %94, %cst_46 [1] : vector<64x128xf32> to vector<64xf32>
    %98 = vector.shape_cast %97 : vector<64xf32> to vector<64x1xf32>
    %cst_47 = arith.constant 1.280000e+02 : f32
    %99 = vector.broadcast %cst_47 : f32 to vector<64x1xf32>
    %100 = arith.divf %98, %99 : vector<64x1xf32>
    %101 = vector.broadcast %100 : vector<64x1xf32> to vector<64x128xf32>
    %102 = arith.subf %94, %101 : vector<64x128xf32>
    %103 = arith.mulf %102, %102 : vector<64x128xf32>
    %cst_48 = arith.constant dense<0.000000e+00> : vector<64xf32>
    %104 = vector.multi_reduction <add>, %103, %cst_48 [1] : vector<64x128xf32> to vector<64xf32>
    %105 = vector.shape_cast %104 : vector<64xf32> to vector<64x1xf32>
    %cst_49 = arith.constant 1.280000e+02 : f32
    %106 = vector.broadcast %cst_49 : f32 to vector<64x1xf32>
    %107 = arith.divf %105, %106 : vector<64x1xf32>
    %108 = vector.broadcast %100 : vector<64x1xf32> to vector<64x128xf32>
    %109 = arith.subf %94, %108 : vector<64x128xf32>
    %cst_50 = arith.constant 9.99999974E-6 : f32
    %110 = vector.broadcast %cst_50 : f32 to vector<64x1xf32>
    %111 = arith.addf %107, %110 : vector<64x1xf32>
    %112 = math.rsqrt %111 : vector<64x1xf32>
    %113 = vector.broadcast %112 : vector<64x1xf32> to vector<64x128xf32>
    %114 = arith.mulf %109, %113 : vector<64x128xf32>
    %115 = vector.broadcast %95 : vector<1x128xf32> to vector<64x128xf32>
    %116 = arith.mulf %114, %115 : vector<64x128xf32>
    %117 = vector.broadcast %96 : vector<1x128xf32> to vector<64x128xf32>
    %118 = arith.addf %116, %117 : vector<64x128xf32>
    %119 = arith.truncf %118 : vector<64x128xf32> to vector<64x128xbf16>
    %c0_51 = arith.constant 0 : index
    %c0_52 = arith.constant 0 : index
    %c0_53 = arith.constant 0 : index
    %120 = vector.load %arg10[%c0_51, %c0_52, %c0_53] : memref<1x64x128xbf16, #tpu.memory_space<vmem>>, vector<1x64x128xbf16>
    %121 = vector.shape_cast %120 : vector<1x64x128xbf16> to vector<64x128xbf16>
    %122 = vector.shape_cast %119 : vector<64x128xbf16> to vector<1x64x128xbf16>
    tpu.vector_store %arg10[%c0_51, %c0_52, %c0_53], %122 {strides = array<i32>} : memref<1x64x128xbf16, #tpu.memory_space<vmem>>, vector<1x64x128xbf16>,
    return
  }
  func.func @transform_0(%arg0: i32, %arg1: i32) -> (i32, i32, i32) {
    %c0_i32 = arith.constant 0 : i32
    %c0_i32_0 = arith.constant 0 : i32
    return %arg0, %arg1, %c0_i32 : i32, i32, i32
  }
  func.func @transform_1(%arg0: i32, %arg1: i32) -> (i32, i32, i32) {
    %c0_i32 = arith.constant 0 : i32
    %c0_i32_0 = arith.constant 0 : i32
    %c0_i32_1 = arith.constant 0 : i32
    return %arg0, %c0_i32, %c0_i32_0 : i32, i32, i32
  }
  func.func @transform_2(%arg0: i32, %arg1: i32) -> (i32, i32, i32) {
    %c0_i32 = arith.constant 0 : i32
    %c0_i32_0 = arith.constant 0 : i32
    %c0_i32_1 = arith.constant 0 : i32
    return %arg0, %c0_i32, %c0_i32_0 : i32, i32, i32
  }
  func.func @transform_3(%arg0: i32, %arg1: i32) -> (i32, i32, i32) {
    %c0_i32 = arith.constant 0 : i32
    %c0_i32_0 = arith.constant 0 : i32
    return %arg0, %arg1, %c0_i32 : i32, i32, i32
  }
  func.func @transform_4(%arg0: i32, %arg1: i32) -> (i32, i32) {
    %c0_i32 = arith.constant 0 : i32
    %c0_i32_0 = arith.constant 0 : i32
    %c0_i32_1 = arith.constant 0 : i32
    return %c0_i32, %c0_i32_0 : i32, i32
  }
  func.func @transform_5(%arg0: i32, %arg1: i32) -> (i32, i32) {
    %c0_i32 = arith.constant 0 : i32
    %c0_i32_0 = arith.constant 0 : i32
    %c0_i32_1 = arith.constant 0 : i32
    return %c0_i32, %c0_i32_0 : i32, i32
  }
  func.func @transform_6(%arg0: i32, %arg1: i32) -> (i32, i32) {
    %c0_i32 = arith.constant 0 : i32
    %c0_i32_0 = arith.constant 0 : i32
    %c0_i32_1 = arith.constant 0 : i32
    return %c0_i32, %c0_i32_0 : i32, i32
  }
  func.func @transform_7(%arg0: i32, %arg1: i32) -> (i32, i32) {
    %c0_i32 = arith.constant 0 : i32
    %c0_i32_0 = arith.constant 0 : i32
    %c0_i32_1 = arith.constant 0 : i32
    return %c0_i32, %c0_i32_0 : i32, i32
  }
  func.func @transform_8(%arg0: i32, %arg1: i32) -> (i32, i32, i32) {
    %c0_i32 = arith.constant 0 : i32
    %c0_i32_0 = arith.constant 0 : i32
    return %arg0, %arg1, %c0_i32 : i32, i32, i32
  }
}

module attributes {stable_mosaic.version = 11 : i64} {
  func.func @_qkv_proj_kernel(%arg0: i32, %arg1: memref<128x128xbf16, #tpu.memory_space<vmem>>, %arg2: memref<128x384xbf16, #tpu.memory_space<vmem>>, %arg3: memref<1x384xf32, #tpu.memory_space<vmem>>, %arg4: memref<128x128xbf16, #tpu.memory_space<vmem>>, %arg5: memref<128x128xbf16, #tpu.memory_space<vmem>>, %arg6: memref<128x128xbf16, #tpu.memory_space<vmem>>) attributes {dimension_semantics = [#tpu.dimension_semantics<parallel>], iteration_bounds = array<i64: 1>, scalar_prefetch = 0 : i64, scratch_operands = 0 : i64, tpu.core_type = #tpu.core_type<tc>, window_params = [{transform_indices = @transform_0, window_bounds = array<i64: 128, 128>}, {pipeline_mode = #tpu.pipeline_mode<synchronous>, transform_indices = @transform_1, window_bounds = array<i64: 128, 384>}, {pipeline_mode = #tpu.pipeline_mode<synchronous>, transform_indices = @transform_2, window_bounds = array<i64: 1, 384>}, {transform_indices = @transform_3, window_bounds = array<i64: 128, 128>}, {transform_indices = @transform_4, window_bounds = array<i64: 128, 128>}, {transform_indices = @transform_5, window_bounds = array<i64: 128, 128>}]} {
    %c0 = arith.constant 0 : index
    %c0_0 = arith.constant 0 : index
    %0 = vector.load %arg1[%c0, %c0_0] : memref<128x128xbf16, #tpu.memory_space<vmem>>, vector<128x128xbf16>
    %c0_1 = arith.constant 0 : index
    %c0_2 = arith.constant 0 : index
    %1 = vector.load %arg2[%c0_1, %c0_2] : memref<128x384xbf16, #tpu.memory_space<vmem>>, vector<128x384xbf16>
    %cst = arith.constant dense<0.000000e+00> : vector<128x384xf32>
    %2 = tpu.matmul %0, %1, %cst {dimension_numbers = #tpu.dot_dimension_numbers<[1], [0], [0], [1], [0, 0, 1, 1], [], []>} : vector<128x128xbf16>, vector<128x384xbf16>, vector<128x384xf32> -> vector<128x384xf32>
    %c0_3 = arith.constant 0 : index
    %c0_4 = arith.constant 0 : index
    %3 = vector.load %arg3[%c0_3, %c0_4] : memref<1x384xf32, #tpu.memory_space<vmem>>, vector<1x384xf32>
    %4 = vector.broadcast %3 : vector<1x384xf32> to vector<128x384xf32>
    %5 = arith.addf %2, %4 : vector<128x384xf32>
    %6 = vector.extract_strided_slice %5 {offsets = [0, 0], sizes = [128, 128], strides = [1, 1]} : vector<128x384xf32> to vector<128x128xf32>
    %7 = arith.truncf %6 : vector<128x128xf32> to vector<128x128xbf16>
    %c0_5 = arith.constant 0 : index
    %c0_6 = arith.constant 0 : index
    %8 = vector.load %arg4[%c0_5, %c0_6] : memref<128x128xbf16, #tpu.memory_space<vmem>>, vector<128x128xbf16>
    tpu.vector_store %arg4[%c0_5, %c0_6], %7 {strides = array<i32>} : memref<128x128xbf16, #tpu.memory_space<vmem>>, vector<128x128xbf16>,
    %9 = vector.extract_strided_slice %5 {offsets = [0, 128], sizes = [128, 128], strides = [1, 1]} : vector<128x384xf32> to vector<128x128xf32>
    %10 = arith.truncf %9 : vector<128x128xf32> to vector<128x128xbf16>
    %c0_7 = arith.constant 0 : index
    %c0_8 = arith.constant 0 : index
    %11 = vector.load %arg5[%c0_7, %c0_8] : memref<128x128xbf16, #tpu.memory_space<vmem>>, vector<128x128xbf16>
    tpu.vector_store %arg5[%c0_7, %c0_8], %10 {strides = array<i32>} : memref<128x128xbf16, #tpu.memory_space<vmem>>, vector<128x128xbf16>,
    %12 = vector.extract_strided_slice %5 {offsets = [0, 256], sizes = [128, 128], strides = [1, 1]} : vector<128x384xf32> to vector<128x128xf32>
    %13 = arith.truncf %12 : vector<128x128xf32> to vector<128x128xbf16>
    %c0_9 = arith.constant 0 : index
    %c0_10 = arith.constant 0 : index
    %14 = vector.load %arg6[%c0_9, %c0_10] : memref<128x128xbf16, #tpu.memory_space<vmem>>, vector<128x128xbf16>
    tpu.vector_store %arg6[%c0_9, %c0_10], %13 {strides = array<i32>} : memref<128x128xbf16, #tpu.memory_space<vmem>>, vector<128x128xbf16>,
    return
  }
  func.func @transform_0(%arg0: i32) -> (i32, i32) {
    %c0_i32 = arith.constant 0 : i32
    %c0_i32_0 = arith.constant 0 : i32
    return %arg0, %c0_i32 : i32, i32
  }
  func.func @transform_1(%arg0: i32) -> (i32, i32) {
    %c0_i32 = arith.constant 0 : i32
    %c0_i32_0 = arith.constant 0 : i32
    %c0_i32_1 = arith.constant 0 : i32
    return %c0_i32, %c0_i32_0 : i32, i32
  }
  func.func @transform_2(%arg0: i32) -> (i32, i32) {
    %c0_i32 = arith.constant 0 : i32
    %c0_i32_0 = arith.constant 0 : i32
    %c0_i32_1 = arith.constant 0 : i32
    return %c0_i32, %c0_i32_0 : i32, i32
  }
  func.func @transform_3(%arg0: i32) -> (i32, i32) {
    %c0_i32 = arith.constant 0 : i32
    %c0_i32_0 = arith.constant 0 : i32
    return %arg0, %c0_i32 : i32, i32
  }
  func.func @transform_4(%arg0: i32) -> (i32, i32) {
    %c0_i32 = arith.constant 0 : i32
    %c0_i32_0 = arith.constant 0 : i32
    return %arg0, %c0_i32 : i32, i32
  }
  func.func @transform_5(%arg0: i32) -> (i32, i32) {
    %c0_i32 = arith.constant 0 : i32
    %c0_i32_0 = arith.constant 0 : i32
    return %arg0, %c0_i32 : i32, i32
  }
}

module attributes {stable_mosaic.version = 11 : i64} {
  func.func @_ffn_ln_kernel(%arg0: i32, %arg1: memref<128x128xbf16, #tpu.memory_space<vmem>>, %arg2: memref<128x256xbf16, #tpu.memory_space<vmem>>, %arg3: memref<1x256xf32, #tpu.memory_space<vmem>>, %arg4: memref<256x128xbf16, #tpu.memory_space<vmem>>, %arg5: memref<1x128xf32, #tpu.memory_space<vmem>>, %arg6: memref<1x128xf32, #tpu.memory_space<vmem>>, %arg7: memref<1x128xf32, #tpu.memory_space<vmem>>, %arg8: memref<1x128xf32, #tpu.memory_space<vmem>>, %arg9: memref<1x128xf32, #tpu.memory_space<vmem>>, %arg10: memref<128x128xf32, #tpu.memory_space<vmem>>) attributes {dimension_semantics = [#tpu.dimension_semantics<parallel>], iteration_bounds = array<i64: 1>, scalar_prefetch = 0 : i64, scratch_operands = 0 : i64, tpu.core_type = #tpu.core_type<tc>, window_params = [{transform_indices = @transform_0, window_bounds = array<i64: 128, 128>}, {pipeline_mode = #tpu.pipeline_mode<synchronous>, transform_indices = @transform_1, window_bounds = array<i64: 128, 256>}, {pipeline_mode = #tpu.pipeline_mode<synchronous>, transform_indices = @transform_2, window_bounds = array<i64: 1, 256>}, {pipeline_mode = #tpu.pipeline_mode<synchronous>, transform_indices = @transform_3, window_bounds = array<i64: 256, 128>}, {pipeline_mode = #tpu.pipeline_mode<synchronous>, transform_indices = @transform_4, window_bounds = array<i64: 1, 128>}, {pipeline_mode = #tpu.pipeline_mode<synchronous>, transform_indices = @transform_5, window_bounds = array<i64: 1, 128>}, {pipeline_mode = #tpu.pipeline_mode<synchronous>, transform_indices = @transform_6, window_bounds = array<i64: 1, 128>}, {pipeline_mode = #tpu.pipeline_mode<synchronous>, transform_indices = @transform_7, window_bounds = array<i64: 1, 128>}, {pipeline_mode = #tpu.pipeline_mode<synchronous>, transform_indices = @transform_8, window_bounds = array<i64: 1, 128>}, {transform_indices = @transform_9, window_bounds = array<i64: 128, 128>}]} {
    %c0 = arith.constant 0 : index
    %c0_0 = arith.constant 0 : index
    %0 = vector.load %arg1[%c0, %c0_0] : memref<128x128xbf16, #tpu.memory_space<vmem>>, vector<128x128xbf16>
    %c0_1 = arith.constant 0 : index
    %c0_2 = arith.constant 0 : index
    %1 = vector.load %arg2[%c0_1, %c0_2] : memref<128x256xbf16, #tpu.memory_space<vmem>>, vector<128x256xbf16>
    %cst = arith.constant dense<0.000000e+00> : vector<128x256xf32>
    %2 = tpu.matmul %0, %1, %cst {dimension_numbers = #tpu.dot_dimension_numbers<[1], [0], [0], [1], [0, 0, 1, 1], [], []>} : vector<128x128xbf16>, vector<128x256xbf16>, vector<128x256xf32> -> vector<128x256xf32>
    %c0_3 = arith.constant 0 : index
    %c0_4 = arith.constant 0 : index
    %3 = vector.load %arg3[%c0_3, %c0_4] : memref<1x256xf32, #tpu.memory_space<vmem>>, vector<1x256xf32>
    %4 = vector.broadcast %3 : vector<1x256xf32> to vector<128x256xf32>
    %5 = arith.addf %2, %4 : vector<128x256xf32>
    %cst_5 = arith.constant 0.000000e+00 : f32
    %6 = vector.broadcast %cst_5 : f32 to vector<128x256xf32>
    %7 = arith.maximumf %5, %6 : vector<128x256xf32>
    %8 = arith.truncf %7 : vector<128x256xf32> to vector<128x256xbf16>
    %c0_6 = arith.constant 0 : index
    %c0_7 = arith.constant 0 : index
    %9 = vector.load %arg4[%c0_6, %c0_7] : memref<256x128xbf16, #tpu.memory_space<vmem>>, vector<256x128xbf16>
    %cst_8 = arith.constant dense<0.000000e+00> : vector<128x128xf32>
    %10 = tpu.matmul %8, %9, %cst_8 {dimension_numbers = #tpu.dot_dimension_numbers<[1], [0], [0], [1], [0, 0, 1, 1], [], []>} : vector<128x256xbf16>, vector<256x128xbf16>, vector<128x128xf32> -> vector<128x128xf32>
    %c0_9 = arith.constant 0 : index
    %c0_10 = arith.constant 0 : index
    %11 = vector.load %arg5[%c0_9, %c0_10] : memref<1x128xf32, #tpu.memory_space<vmem>>, vector<1x128xf32>
    %12 = vector.broadcast %11 : vector<1x128xf32> to vector<128x128xf32>
    %13 = arith.addf %10, %12 : vector<128x128xf32>
    %14 = arith.extf %0 : vector<128x128xbf16> to vector<128x128xf32>
    %15 = arith.addf %14, %13 : vector<128x128xf32>
    %c0_11 = arith.constant 0 : index
    %c0_12 = arith.constant 0 : index
    %16 = vector.load %arg6[%c0_11, %c0_12] : memref<1x128xf32, #tpu.memory_space<vmem>>, vector<1x128xf32>
    %c0_13 = arith.constant 0 : index
    %c0_14 = arith.constant 0 : index
    %17 = vector.load %arg7[%c0_13, %c0_14] : memref<1x128xf32, #tpu.memory_space<vmem>>, vector<1x128xf32>
    %cst_15 = arith.constant dense<0.000000e+00> : vector<128xf32>
    %18 = vector.multi_reduction <add>, %15, %cst_15 [1] : vector<128x128xf32> to vector<128xf32>
    %19 = vector.shape_cast %18 : vector<128xf32> to vector<128x1xf32>
    %cst_16 = arith.constant 1.280000e+02 : f32
    %20 = vector.broadcast %cst_16 : f32 to vector<128x1xf32>
    %21 = arith.divf %19, %20 : vector<128x1xf32>
    %22 = vector.broadcast %21 : vector<128x1xf32> to vector<128x128xf32>
    %23 = arith.subf %15, %22 : vector<128x128xf32>
    %24 = arith.mulf %23, %23 : vector<128x128xf32>
    %cst_17 = arith.constant dense<0.000000e+00> : vector<128xf32>
    %25 = vector.multi_reduction <add>, %24, %cst_17 [1] : vector<128x128xf32> to vector<128xf32>
    %26 = vector.shape_cast %25 : vector<128xf32> to vector<128x1xf32>
    %cst_18 = arith.constant 1.280000e+02 : f32
    %27 = vector.broadcast %cst_18 : f32 to vector<128x1xf32>
    %28 = arith.divf %26, %27 : vector<128x1xf32>
    %29 = vector.broadcast %21 : vector<128x1xf32> to vector<128x128xf32>
    %30 = arith.subf %15, %29 : vector<128x128xf32>
    %cst_19 = arith.constant 9.99999974E-6 : f32
    %31 = vector.broadcast %cst_19 : f32 to vector<128x1xf32>
    %32 = arith.addf %28, %31 : vector<128x1xf32>
    %33 = math.rsqrt %32 : vector<128x1xf32>
    %34 = vector.broadcast %33 : vector<128x1xf32> to vector<128x128xf32>
    %35 = arith.mulf %30, %34 : vector<128x128xf32>
    %36 = vector.broadcast %16 : vector<1x128xf32> to vector<128x128xf32>
    %37 = arith.mulf %35, %36 : vector<128x128xf32>
    %38 = vector.broadcast %17 : vector<1x128xf32> to vector<128x128xf32>
    %39 = arith.addf %37, %38 : vector<128x128xf32>
    %c0_20 = arith.constant 0 : index
    %c0_21 = arith.constant 0 : index
    %40 = vector.load %arg8[%c0_20, %c0_21] : memref<1x128xf32, #tpu.memory_space<vmem>>, vector<1x128xf32>
    %c0_22 = arith.constant 0 : index
    %c0_23 = arith.constant 0 : index
    %41 = vector.load %arg9[%c0_22, %c0_23] : memref<1x128xf32, #tpu.memory_space<vmem>>, vector<1x128xf32>
    %cst_24 = arith.constant dense<0.000000e+00> : vector<128xf32>
    %42 = vector.multi_reduction <add>, %39, %cst_24 [1] : vector<128x128xf32> to vector<128xf32>
    %43 = vector.shape_cast %42 : vector<128xf32> to vector<128x1xf32>
    %cst_25 = arith.constant 1.280000e+02 : f32
    %44 = vector.broadcast %cst_25 : f32 to vector<128x1xf32>
    %45 = arith.divf %43, %44 : vector<128x1xf32>
    %46 = vector.broadcast %45 : vector<128x1xf32> to vector<128x128xf32>
    %47 = arith.subf %39, %46 : vector<128x128xf32>
    %48 = arith.mulf %47, %47 : vector<128x128xf32>
    %cst_26 = arith.constant dense<0.000000e+00> : vector<128xf32>
    %49 = vector.multi_reduction <add>, %48, %cst_26 [1] : vector<128x128xf32> to vector<128xf32>
    %50 = vector.shape_cast %49 : vector<128xf32> to vector<128x1xf32>
    %cst_27 = arith.constant 1.280000e+02 : f32
    %51 = vector.broadcast %cst_27 : f32 to vector<128x1xf32>
    %52 = arith.divf %50, %51 : vector<128x1xf32>
    %53 = vector.broadcast %45 : vector<128x1xf32> to vector<128x128xf32>
    %54 = arith.subf %39, %53 : vector<128x128xf32>
    %cst_28 = arith.constant 9.99999974E-6 : f32
    %55 = vector.broadcast %cst_28 : f32 to vector<128x1xf32>
    %56 = arith.addf %52, %55 : vector<128x1xf32>
    %57 = math.rsqrt %56 : vector<128x1xf32>
    %58 = vector.broadcast %57 : vector<128x1xf32> to vector<128x128xf32>
    %59 = arith.mulf %54, %58 : vector<128x128xf32>
    %60 = vector.broadcast %40 : vector<1x128xf32> to vector<128x128xf32>
    %61 = arith.mulf %59, %60 : vector<128x128xf32>
    %62 = vector.broadcast %41 : vector<1x128xf32> to vector<128x128xf32>
    %63 = arith.addf %61, %62 : vector<128x128xf32>
    %c0_29 = arith.constant 0 : index
    %c0_30 = arith.constant 0 : index
    %64 = vector.load %arg10[%c0_29, %c0_30] : memref<128x128xf32, #tpu.memory_space<vmem>>, vector<128x128xf32>
    tpu.vector_store %arg10[%c0_29, %c0_30], %63 {strides = array<i32>} : memref<128x128xf32, #tpu.memory_space<vmem>>, vector<128x128xf32>,
    return
  }
  func.func @transform_0(%arg0: i32) -> (i32, i32) {
    %c0_i32 = arith.constant 0 : i32
    %c0_i32_0 = arith.constant 0 : i32
    return %arg0, %c0_i32 : i32, i32
  }
  func.func @transform_1(%arg0: i32) -> (i32, i32) {
    %c0_i32 = arith.constant 0 : i32
    %c0_i32_0 = arith.constant 0 : i32
    %c0_i32_1 = arith.constant 0 : i32
    return %c0_i32, %c0_i32_0 : i32, i32
  }
  func.func @transform_2(%arg0: i32) -> (i32, i32) {
    %c0_i32 = arith.constant 0 : i32
    %c0_i32_0 = arith.constant 0 : i32
    %c0_i32_1 = arith.constant 0 : i32
    return %c0_i32, %c0_i32_0 : i32, i32
  }
  func.func @transform_3(%arg0: i32) -> (i32, i32) {
    %c0_i32 = arith.constant 0 : i32
    %c0_i32_0 = arith.constant 0 : i32
    %c0_i32_1 = arith.constant 0 : i32
    return %c0_i32, %c0_i32_0 : i32, i32
  }
  func.func @transform_4(%arg0: i32) -> (i32, i32) {
    %c0_i32 = arith.constant 0 : i32
    %c0_i32_0 = arith.constant 0 : i32
    %c0_i32_1 = arith.constant 0 : i32
    return %c0_i32, %c0_i32_0 : i32, i32
  }
  func.func @transform_5(%arg0: i32) -> (i32, i32) {
    %c0_i32 = arith.constant 0 : i32
    %c0_i32_0 = arith.constant 0 : i32
    %c0_i32_1 = arith.constant 0 : i32
    return %c0_i32, %c0_i32_0 : i32, i32
  }
  func.func @transform_6(%arg0: i32) -> (i32, i32) {
    %c0_i32 = arith.constant 0 : i32
    %c0_i32_0 = arith.constant 0 : i32
    %c0_i32_1 = arith.constant 0 : i32
    return %c0_i32, %c0_i32_0 : i32, i32
  }
  func.func @transform_7(%arg0: i32) -> (i32, i32) {
    %c0_i32 = arith.constant 0 : i32
    %c0_i32_0 = arith.constant 0 : i32
    %c0_i32_1 = arith.constant 0 : i32
    return %c0_i32, %c0_i32_0 : i32, i32
  }
  func.func @transform_8(%arg0: i32) -> (i32, i32) {
    %c0_i32 = arith.constant 0 : i32
    %c0_i32_0 = arith.constant 0 : i32
    %c0_i32_1 = arith.constant 0 : i32
    return %c0_i32, %c0_i32_0 : i32, i32
  }
  func.func @transform_9(%arg0: i32) -> (i32, i32) {
    %c0_i32 = arith.constant 0 : i32
    %c0_i32_0 = arith.constant 0 : i32
    return %arg0, %c0_i32 : i32, i32
  }
}

module attributes {stable_mosaic.version = 11 : i64} {
  func.func @_attn_out_ln_kernel(%arg0: i32, %arg1: i32, %arg2: memref<1x64x128xbf16, #tpu.memory_space<vmem>>, %arg3: memref<1x64x128xbf16, #tpu.memory_space<vmem>>, %arg4: memref<1x64x128xbf16, #tpu.memory_space<vmem>>, %arg5: memref<1x64x128xbf16, #tpu.memory_space<vmem>>, %arg6: memref<128x128xbf16, #tpu.memory_space<vmem>>, %arg7: memref<1x128xf32, #tpu.memory_space<vmem>>, %arg8: memref<1x128xf32, #tpu.memory_space<vmem>>, %arg9: memref<1x128xf32, #tpu.memory_space<vmem>>, %arg10: memref<1x64x128xbf16, #tpu.memory_space<vmem>>, %arg11: memref<64x128xbf16, #tpu.memory_space<vmem>>) attributes {dimension_semantics = [#tpu.dimension_semantics<parallel>, #tpu.dimension_semantics<parallel>], iteration_bounds = array<i64: 2, 1>, scalar_prefetch = 0 : i64, scratch_operands = 1 : i64, tpu.core_type = #tpu.core_type<tc>, window_params = [{transform_indices = @transform_0, window_bounds = array<i64: 1, 64, 128>}, {transform_indices = @transform_1, window_bounds = array<i64: 1, 64, 128>}, {transform_indices = @transform_2, window_bounds = array<i64: 1, 64, 128>}, {transform_indices = @transform_3, window_bounds = array<i64: 1, 64, 128>}, {pipeline_mode = #tpu.pipeline_mode<synchronous>, transform_indices = @transform_4, window_bounds = array<i64: 128, 128>}, {pipeline_mode = #tpu.pipeline_mode<synchronous>, transform_indices = @transform_5, window_bounds = array<i64: 1, 128>}, {pipeline_mode = #tpu.pipeline_mode<synchronous>, transform_indices = @transform_6, window_bounds = array<i64: 1, 128>}, {pipeline_mode = #tpu.pipeline_mode<synchronous>, transform_indices = @transform_7, window_bounds = array<i64: 1, 128>}, {transform_indices = @transform_8, window_bounds = array<i64: 1, 64, 128>}]} {
    %c0 = arith.constant 0 : index
    %c0_0 = arith.constant 0 : index
    %c0_1 = arith.constant 0 : index
    %0 = vector.load %arg2[%c0, %c0_0, %c0_1] : memref<1x64x128xbf16, #tpu.memory_space<vmem>>, vector<1x64x128xbf16>
    %1 = vector.shape_cast %0 : vector<1x64x128xbf16> to vector<64x128xbf16>
    %c0_2 = arith.constant 0 : index
    %c0_3 = arith.constant 0 : index
    %c0_4 = arith.constant 0 : index
    %2 = vector.load %arg3[%c0_2, %c0_3, %c0_4] : memref<1x64x128xbf16, #tpu.memory_space<vmem>>, vector<1x64x128xbf16>
    %3 = vector.shape_cast %2 : vector<1x64x128xbf16> to vector<64x128xbf16>
    %c0_5 = arith.constant 0 : index
    %c0_6 = arith.constant 0 : index
    %c0_7 = arith.constant 0 : index
    %4 = vector.load %arg4[%c0_5, %c0_6, %c0_7] : memref<1x64x128xbf16, #tpu.memory_space<vmem>>, vector<1x64x128xbf16>
    %5 = vector.shape_cast %4 : vector<1x64x128xbf16> to vector<64x128xbf16>
    %6 = vector.extract_strided_slice %1 {offsets = [0, 0], sizes = [64, 32], strides = [1, 1]} : vector<64x128xbf16> to vector<64x32xbf16>
    %7 = vector.extract_strided_slice %3 {offsets = [0, 0], sizes = [64, 32], strides = [1, 1]} : vector<64x128xbf16> to vector<64x32xbf16>
    %8 = vector.extract_strided_slice %5 {offsets = [0, 0], sizes = [64, 32], strides = [1, 1]} : vector<64x128xbf16> to vector<64x32xbf16>
    %cst = arith.constant dense<0.000000e+00> : vector<64x64xf32>
    %9 = tpu.matmul %6, %7, %cst {dimension_numbers = #tpu.dot_dimension_numbers<[1], [1], [0], [0], [0, 0, 1, 0], [], []>} : vector<64x32xbf16>, vector<64x32xbf16>, vector<64x64xf32> -> vector<64x64xf32>
    %cst_8 = arith.constant 0.176776692 : f32
    %10 = vector.broadcast %cst_8 : f32 to vector<64x64xf32>
    %11 = arith.mulf %9, %10 : vector<64x64xf32>
    %cst_9 = arith.constant dense<0xFF800000> : vector<64xf32>
    %12 = vector.multi_reduction <maximumf>, %11, %cst_9 [1] : vector<64x64xf32> to vector<64xf32>
    %13 = vector.shape_cast %12 : vector<64xf32> to vector<64x1xf32>
    %14 = vector.broadcast %13 : vector<64x1xf32> to vector<64x64xf32>
    %15 = arith.subf %11, %14 : vector<64x64xf32>
    %16 = math.exp %15 : vector<64x64xf32>
    %cst_10 = arith.constant dense<0.000000e+00> : vector<64xf32>
    %17 = vector.multi_reduction <add>, %16, %cst_10 [1] : vector<64x64xf32> to vector<64xf32>
    %18 = vector.shape_cast %17 : vector<64xf32> to vector<64x1xf32>
    %19 = tpu.reciprocal %18 {approx = true} : vector<64x1xf32> -> vector<64x1xf32>
    %20 = vector.broadcast %19 : vector<64x1xf32> to vector<64x64xf32>
    %21 = arith.mulf %16, %20 : vector<64x64xf32>
    %22 = arith.truncf %21 : vector<64x64xf32> to vector<64x64xbf16>
    %cst_11 = arith.constant dense<0.000000e+00> : vector<64x32xf32>
    %23 = tpu.matmul %22, %8, %cst_11 {dimension_numbers = #tpu.dot_dimension_numbers<[1], [0], [0], [1], [0, 0, 1, 1], [], []>} : vector<64x64xbf16>, vector<64x32xbf16>, vector<64x32xf32> -> vector<64x32xf32>
    %24 = arith.truncf %23 : vector<64x32xf32> to vector<64x32xbf16>
    %c0_12 = arith.constant 0 : index
    %c0_13 = arith.constant 0 : index
    %25 = vector.load %arg11[%c0_12, %c0_13] : memref<64x128xbf16, #tpu.memory_space<vmem>>, vector<64x32xbf16>
    tpu.vector_store %arg11[%c0_12, %c0_13], %24 {strides = array<i32>} : memref<64x128xbf16, #tpu.memory_space<vmem>>, vector<64x32xbf16>,
    %26 = vector.extract_strided_slice %1 {offsets = [0, 32], sizes = [64, 32], strides = [1, 1]} : vector<64x128xbf16> to vector<64x32xbf16>
    %27 = vector.extract_strided_slice %3 {offsets = [0, 32], sizes = [64, 32], strides = [1, 1]} : vector<64x128xbf16> to vector<64x32xbf16>
    %28 = vector.extract_strided_slice %5 {offsets = [0, 32], sizes = [64, 32], strides = [1, 1]} : vector<64x128xbf16> to vector<64x32xbf16>
    %cst_14 = arith.constant dense<0.000000e+00> : vector<64x64xf32>
    %29 = tpu.matmul %26, %27, %cst_14 {dimension_numbers = #tpu.dot_dimension_numbers<[1], [1], [0], [0], [0, 0, 1, 0], [], []>} : vector<64x32xbf16>, vector<64x32xbf16>, vector<64x64xf32> -> vector<64x64xf32>
    %cst_15 = arith.constant 0.176776692 : f32
    %30 = vector.broadcast %cst_15 : f32 to vector<64x64xf32>
    %31 = arith.mulf %29, %30 : vector<64x64xf32>
    %cst_16 = arith.constant dense<0xFF800000> : vector<64xf32>
    %32 = vector.multi_reduction <maximumf>, %31, %cst_16 [1] : vector<64x64xf32> to vector<64xf32>
    %33 = vector.shape_cast %32 : vector<64xf32> to vector<64x1xf32>
    %34 = vector.broadcast %33 : vector<64x1xf32> to vector<64x64xf32>
    %35 = arith.subf %31, %34 : vector<64x64xf32>
    %36 = math.exp %35 : vector<64x64xf32>
    %cst_17 = arith.constant dense<0.000000e+00> : vector<64xf32>
    %37 = vector.multi_reduction <add>, %36, %cst_17 [1] : vector<64x64xf32> to vector<64xf32>
    %38 = vector.shape_cast %37 : vector<64xf32> to vector<64x1xf32>
    %39 = tpu.reciprocal %38 {approx = true} : vector<64x1xf32> -> vector<64x1xf32>
    %40 = vector.broadcast %39 : vector<64x1xf32> to vector<64x64xf32>
    %41 = arith.mulf %36, %40 : vector<64x64xf32>
    %42 = arith.truncf %41 : vector<64x64xf32> to vector<64x64xbf16>
    %cst_18 = arith.constant dense<0.000000e+00> : vector<64x32xf32>
    %43 = tpu.matmul %42, %28, %cst_18 {dimension_numbers = #tpu.dot_dimension_numbers<[1], [0], [0], [1], [0, 0, 1, 1], [], []>} : vector<64x64xbf16>, vector<64x32xbf16>, vector<64x32xf32> -> vector<64x32xf32>
    %44 = arith.truncf %43 : vector<64x32xf32> to vector<64x32xbf16>
    %c0_19 = arith.constant 0 : index
    %c32 = arith.constant 32 : index
    %45 = vector.load %arg11[%c0_19, %c32] : memref<64x128xbf16, #tpu.memory_space<vmem>>, vector<64x32xbf16>
    tpu.vector_store %arg11[%c0_19, %c32], %44 {strides = array<i32>} : memref<64x128xbf16, #tpu.memory_space<vmem>>, vector<64x32xbf16>,
    %46 = vector.extract_strided_slice %1 {offsets = [0, 64], sizes = [64, 32], strides = [1, 1]} : vector<64x128xbf16> to vector<64x32xbf16>
    %47 = vector.extract_strided_slice %3 {offsets = [0, 64], sizes = [64, 32], strides = [1, 1]} : vector<64x128xbf16> to vector<64x32xbf16>
    %48 = vector.extract_strided_slice %5 {offsets = [0, 64], sizes = [64, 32], strides = [1, 1]} : vector<64x128xbf16> to vector<64x32xbf16>
    %cst_20 = arith.constant dense<0.000000e+00> : vector<64x64xf32>
    %49 = tpu.matmul %46, %47, %cst_20 {dimension_numbers = #tpu.dot_dimension_numbers<[1], [1], [0], [0], [0, 0, 1, 0], [], []>} : vector<64x32xbf16>, vector<64x32xbf16>, vector<64x64xf32> -> vector<64x64xf32>
    %cst_21 = arith.constant 0.176776692 : f32
    %50 = vector.broadcast %cst_21 : f32 to vector<64x64xf32>
    %51 = arith.mulf %49, %50 : vector<64x64xf32>
    %cst_22 = arith.constant dense<0xFF800000> : vector<64xf32>
    %52 = vector.multi_reduction <maximumf>, %51, %cst_22 [1] : vector<64x64xf32> to vector<64xf32>
    %53 = vector.shape_cast %52 : vector<64xf32> to vector<64x1xf32>
    %54 = vector.broadcast %53 : vector<64x1xf32> to vector<64x64xf32>
    %55 = arith.subf %51, %54 : vector<64x64xf32>
    %56 = math.exp %55 : vector<64x64xf32>
    %cst_23 = arith.constant dense<0.000000e+00> : vector<64xf32>
    %57 = vector.multi_reduction <add>, %56, %cst_23 [1] : vector<64x64xf32> to vector<64xf32>
    %58 = vector.shape_cast %57 : vector<64xf32> to vector<64x1xf32>
    %59 = tpu.reciprocal %58 {approx = true} : vector<64x1xf32> -> vector<64x1xf32>
    %60 = vector.broadcast %59 : vector<64x1xf32> to vector<64x64xf32>
    %61 = arith.mulf %56, %60 : vector<64x64xf32>
    %62 = arith.truncf %61 : vector<64x64xf32> to vector<64x64xbf16>
    %cst_24 = arith.constant dense<0.000000e+00> : vector<64x32xf32>
    %63 = tpu.matmul %62, %48, %cst_24 {dimension_numbers = #tpu.dot_dimension_numbers<[1], [0], [0], [1], [0, 0, 1, 1], [], []>} : vector<64x64xbf16>, vector<64x32xbf16>, vector<64x32xf32> -> vector<64x32xf32>
    %64 = arith.truncf %63 : vector<64x32xf32> to vector<64x32xbf16>
    %c0_25 = arith.constant 0 : index
    %c64 = arith.constant 64 : index
    %65 = vector.load %arg11[%c0_25, %c64] : memref<64x128xbf16, #tpu.memory_space<vmem>>, vector<64x32xbf16>
    tpu.vector_store %arg11[%c0_25, %c64], %64 {strides = array<i32>} : memref<64x128xbf16, #tpu.memory_space<vmem>>, vector<64x32xbf16>,
    %66 = vector.extract_strided_slice %1 {offsets = [0, 96], sizes = [64, 32], strides = [1, 1]} : vector<64x128xbf16> to vector<64x32xbf16>
    %67 = vector.extract_strided_slice %3 {offsets = [0, 96], sizes = [64, 32], strides = [1, 1]} : vector<64x128xbf16> to vector<64x32xbf16>
    %68 = vector.extract_strided_slice %5 {offsets = [0, 96], sizes = [64, 32], strides = [1, 1]} : vector<64x128xbf16> to vector<64x32xbf16>
    %cst_26 = arith.constant dense<0.000000e+00> : vector<64x64xf32>
    %69 = tpu.matmul %66, %67, %cst_26 {dimension_numbers = #tpu.dot_dimension_numbers<[1], [1], [0], [0], [0, 0, 1, 0], [], []>} : vector<64x32xbf16>, vector<64x32xbf16>, vector<64x64xf32> -> vector<64x64xf32>
    %cst_27 = arith.constant 0.176776692 : f32
    %70 = vector.broadcast %cst_27 : f32 to vector<64x64xf32>
    %71 = arith.mulf %69, %70 : vector<64x64xf32>
    %cst_28 = arith.constant dense<0xFF800000> : vector<64xf32>
    %72 = vector.multi_reduction <maximumf>, %71, %cst_28 [1] : vector<64x64xf32> to vector<64xf32>
    %73 = vector.shape_cast %72 : vector<64xf32> to vector<64x1xf32>
    %74 = vector.broadcast %73 : vector<64x1xf32> to vector<64x64xf32>
    %75 = arith.subf %71, %74 : vector<64x64xf32>
    %76 = math.exp %75 : vector<64x64xf32>
    %cst_29 = arith.constant dense<0.000000e+00> : vector<64xf32>
    %77 = vector.multi_reduction <add>, %76, %cst_29 [1] : vector<64x64xf32> to vector<64xf32>
    %78 = vector.shape_cast %77 : vector<64xf32> to vector<64x1xf32>
    %79 = tpu.reciprocal %78 {approx = true} : vector<64x1xf32> -> vector<64x1xf32>
    %80 = vector.broadcast %79 : vector<64x1xf32> to vector<64x64xf32>
    %81 = arith.mulf %76, %80 : vector<64x64xf32>
    %82 = arith.truncf %81 : vector<64x64xf32> to vector<64x64xbf16>
    %cst_30 = arith.constant dense<0.000000e+00> : vector<64x32xf32>
    %83 = tpu.matmul %82, %68, %cst_30 {dimension_numbers = #tpu.dot_dimension_numbers<[1], [0], [0], [1], [0, 0, 1, 1], [], []>} : vector<64x64xbf16>, vector<64x32xbf16>, vector<64x32xf32> -> vector<64x32xf32>
    %84 = arith.truncf %83 : vector<64x32xf32> to vector<64x32xbf16>
    %c0_31 = arith.constant 0 : index
    %c96 = arith.constant 96 : index
    %85 = vector.load %arg11[%c0_31, %c96] : memref<64x128xbf16, #tpu.memory_space<vmem>>, vector<64x32xbf16>
    tpu.vector_store %arg11[%c0_31, %c96], %84 {strides = array<i32>} : memref<64x128xbf16, #tpu.memory_space<vmem>>, vector<64x32xbf16>,
    %c0_32 = arith.constant 0 : index
    %c0_33 = arith.constant 0 : index
    %86 = vector.load %arg11[%c0_32, %c0_33] : memref<64x128xbf16, #tpu.memory_space<vmem>>, vector<64x128xbf16>
    %c0_34 = arith.constant 0 : index
    %c0_35 = arith.constant 0 : index
    %87 = vector.load %arg6[%c0_34, %c0_35] : memref<128x128xbf16, #tpu.memory_space<vmem>>, vector<128x128xbf16>
    %cst_36 = arith.constant dense<0.000000e+00> : vector<64x128xf32>
    %88 = tpu.matmul %86, %87, %cst_36 {dimension_numbers = #tpu.dot_dimension_numbers<[1], [0], [0], [1], [0, 0, 1, 1], [], []>} : vector<64x128xbf16>, vector<128x128xbf16>, vector<64x128xf32> -> vector<64x128xf32>
    %c0_37 = arith.constant 0 : index
    %c0_38 = arith.constant 0 : index
    %89 = vector.load %arg7[%c0_37, %c0_38] : memref<1x128xf32, #tpu.memory_space<vmem>>, vector<1x128xf32>
    %90 = vector.broadcast %89 : vector<1x128xf32> to vector<64x128xf32>
    %91 = arith.addf %88, %90 : vector<64x128xf32>
    %c0_39 = arith.constant 0 : index
    %c0_40 = arith.constant 0 : index
    %c0_41 = arith.constant 0 : index
    %92 = vector.load %arg5[%c0_39, %c0_40, %c0_41] : memref<1x64x128xbf16, #tpu.memory_space<vmem>>, vector<1x64x128xbf16>
    %93 = vector.shape_cast %92 : vector<1x64x128xbf16> to vector<64x128xbf16>
    %94 = arith.extf %93 : vector<64x128xbf16> to vector<64x128xf32>
    %95 = arith.addf %94, %91 : vector<64x128xf32>
    %c0_42 = arith.constant 0 : index
    %c0_43 = arith.constant 0 : index
    %96 = vector.load %arg8[%c0_42, %c0_43] : memref<1x128xf32, #tpu.memory_space<vmem>>, vector<1x128xf32>
    %c0_44 = arith.constant 0 : index
    %c0_45 = arith.constant 0 : index
    %97 = vector.load %arg9[%c0_44, %c0_45] : memref<1x128xf32, #tpu.memory_space<vmem>>, vector<1x128xf32>
    %cst_46 = arith.constant dense<0.000000e+00> : vector<64xf32>
    %98 = vector.multi_reduction <add>, %95, %cst_46 [1] : vector<64x128xf32> to vector<64xf32>
    %99 = vector.shape_cast %98 : vector<64xf32> to vector<64x1xf32>
    %cst_47 = arith.constant 1.280000e+02 : f32
    %100 = vector.broadcast %cst_47 : f32 to vector<64x1xf32>
    %101 = arith.divf %99, %100 : vector<64x1xf32>
    %102 = vector.broadcast %101 : vector<64x1xf32> to vector<64x128xf32>
    %103 = arith.subf %95, %102 : vector<64x128xf32>
    %104 = arith.mulf %103, %103 : vector<64x128xf32>
    %cst_48 = arith.constant dense<0.000000e+00> : vector<64xf32>
    %105 = vector.multi_reduction <add>, %104, %cst_48 [1] : vector<64x128xf32> to vector<64xf32>
    %106 = vector.shape_cast %105 : vector<64xf32> to vector<64x1xf32>
    %cst_49 = arith.constant 1.280000e+02 : f32
    %107 = vector.broadcast %cst_49 : f32 to vector<64x1xf32>
    %108 = arith.divf %106, %107 : vector<64x1xf32>
    %109 = vector.broadcast %101 : vector<64x1xf32> to vector<64x128xf32>
    %110 = arith.subf %95, %109 : vector<64x128xf32>
    %cst_50 = arith.constant 9.99999974E-6 : f32
    %111 = vector.broadcast %cst_50 : f32 to vector<64x1xf32>
    %112 = arith.addf %108, %111 : vector<64x1xf32>
    %113 = math.rsqrt %112 : vector<64x1xf32>
    %114 = vector.broadcast %113 : vector<64x1xf32> to vector<64x128xf32>
    %115 = arith.mulf %110, %114 : vector<64x128xf32>
    %116 = vector.broadcast %96 : vector<1x128xf32> to vector<64x128xf32>
    %117 = arith.mulf %115, %116 : vector<64x128xf32>
    %118 = vector.broadcast %97 : vector<1x128xf32> to vector<64x128xf32>
    %119 = arith.addf %117, %118 : vector<64x128xf32>
    %120 = arith.truncf %119 : vector<64x128xf32> to vector<64x128xbf16>
    %c0_51 = arith.constant 0 : index
    %c0_52 = arith.constant 0 : index
    %c0_53 = arith.constant 0 : index
    %121 = vector.load %arg10[%c0_51, %c0_52, %c0_53] : memref<1x64x128xbf16, #tpu.memory_space<vmem>>, vector<1x64x128xbf16>
    %122 = vector.shape_cast %121 : vector<1x64x128xbf16> to vector<64x128xbf16>
    %123 = vector.shape_cast %120 : vector<64x128xbf16> to vector<1x64x128xbf16>
    tpu.vector_store %arg10[%c0_51, %c0_52, %c0_53], %123 {strides = array<i32>} : memref<1x64x128xbf16, #tpu.memory_space<vmem>>, vector<1x64x128xbf16>,
    return
  }
  func.func @transform_0(%arg0: i32, %arg1: i32) -> (i32, i32, i32) {
    %c0_i32 = arith.constant 0 : i32
    %c0_i32_0 = arith.constant 0 : i32
    return %arg0, %arg1, %c0_i32 : i32, i32, i32
  }
  func.func @transform_1(%arg0: i32, %arg1: i32) -> (i32, i32, i32) {
    %c0_i32 = arith.constant 0 : i32
    %c0_i32_0 = arith.constant 0 : i32
    %c0_i32_1 = arith.constant 0 : i32
    return %arg0, %c0_i32, %c0_i32_0 : i32, i32, i32
  }
  func.func @transform_2(%arg0: i32, %arg1: i32) -> (i32, i32, i32) {
    %c0_i32 = arith.constant 0 : i32
    %c0_i32_0 = arith.constant 0 : i32
    %c0_i32_1 = arith.constant 0 : i32
    return %arg0, %c0_i32, %c0_i32_0 : i32, i32, i32
  }
  func.func @transform_3(%arg0: i32, %arg1: i32) -> (i32, i32, i32) {
    %c0_i32 = arith.constant 0 : i32
    %c0_i32_0 = arith.constant 0 : i32
    return %arg0, %arg1, %c0_i32 : i32, i32, i32
  }
  func.func @transform_4(%arg0: i32, %arg1: i32) -> (i32, i32) {
    %c0_i32 = arith.constant 0 : i32
    %c0_i32_0 = arith.constant 0 : i32
    %c0_i32_1 = arith.constant 0 : i32
    return %c0_i32, %c0_i32_0 : i32, i32
  }
  func.func @transform_5(%arg0: i32, %arg1: i32) -> (i32, i32) {
    %c0_i32 = arith.constant 0 : i32
    %c0_i32_0 = arith.constant 0 : i32
    %c0_i32_1 = arith.constant 0 : i32
    return %c0_i32, %c0_i32_0 : i32, i32
  }
  func.func @transform_6(%arg0: i32, %arg1: i32) -> (i32, i32) {
    %c0_i32 = arith.constant 0 : i32
    %c0_i32_0 = arith.constant 0 : i32
    %c0_i32_1 = arith.constant 0 : i32
    return %c0_i32, %c0_i32_0 : i32, i32
  }
  func.func @transform_7(%arg0: i32, %arg1: i32) -> (i32, i32) {
    %c0_i32 = arith.constant 0 : i32
    %c0_i32_0 = arith.constant 0 : i32
    %c0_i32_1 = arith.constant 0 : i32
    return %c0_i32, %c0_i32_0 : i32, i32
  }
  func.func @transform_8(%arg0: i32, %arg1: i32) -> (i32, i32, i32) {
    %c0_i32 = arith.constant 0 : i32
    %c0_i32_0 = arith.constant 0 : i32
    return %arg0, %arg1, %c0_i32 : i32, i32, i32
  }
}

</mosaic_0001>

<llo_original>
// kernel: _lambda_.6
$region0: #{_lambda_.6}
  #allocation0 [shape = 'u32[]', space=smem, size = 0x4, offset = 0x4, fixed_abs, tag = 'smem constant byte address 0x4 - core index']
  #allocation1 [shape = 'u32[144,128]{1,0:T(1,128)}', space=vmem, size = 0x12000, scoped, tag = 'internal scratch']
  %s0 = inlined_call_operand.vmem [shape: f32[128,128], index: 0, kind: input, shape index: {}]
  %s1 = inlined_call_operand.hbm [shape: bf16[128,384], index: 1, kind: input, shape index: {}]
  %s2 = inlined_call_operand.vmem [shape: f32[1,384], index: 2, kind: input, shape index: {}]
  %s3 = inlined_call_operand.vmem [shape: bf16[128,128], index: 3, kind: output, shape index: {0}]
  %s4 = inlined_call_operand.vmem [shape: bf16[128,128], index: 4, kind: output, shape index: {1}]
  %s5 = inlined_call_operand.vmem [shape: bf16[128,128], index: 5, kind: output, shape index: {2}]
  %6 = xla_tuple %s3, %s4, %s5
  %s7 = sld [smem:[#allocation0]]
  $region42: #{_lambda_.6} parent=0
    _
  %s9 = ssub.s32 1, %s7
  %s10 = scalar_select 0, %s9, %s7
  $region1: #{_lambda_.6} parent=0
    #allocation2 [shape = 'u8[98304]{0}', space=vmem, size = 0x18000, scoped, tag = 'input window, operand 1, single buffered']
    #allocation3 [shape = 's32[1]{0}', space=sflag, size = 0x4, scoped, tag = 'scoped memory for _lambda_.6']
    %11 = vsyncpa [#allocation3], 0
    // Predicated region
    $region2: #{_lambda_.6} parent=1 // pred_check
      _
    $region3: #{_lambda_.6} parent=1 // pred_check_branch
      %13 = sbr.rel (0) target = $region5
    $region4: #{_lambda_.6} parent=1 // pred_region
      _
    $region5: #{_lambda_.6} parent=1 // pred_fallthru
      _
    // Predicated region
    $region6: #{_lambda_.6} parent=1 // pred_check
      _
    $region7: #{_lambda_.6} parent=1 // pred_check_branch
      %15 = sbr.rel (0) target = $region9
    $region8: #{_lambda_.6} parent=1 // pred_region
      %s17 = ssub.s32 3072, 3072
      %18 = vsyncadd [#allocation3], %s17
      %s19 = sshll.u32 [#allocation2], 4
      %s20 = int_to_ptr.vmem [resolvable:$true] %s19
      %25 = dma.hbm_to_vmem [thread:$0]  %s1, 3072, %s20, [#allocation3], 192, 192, 12
    $region9: #{_lambda_.6} parent=1 // pred_fallthru
      _
    // Predicated region
    $region10: #{_lambda_.6} parent=1 // pred_check
      _
    $region11: #{_lambda_.6} parent=1 // pred_check_branch
      %27 = sbr.rel (0) target = $region13
    $region12: #{_lambda_.6} parent=1 // pred_region
      _
    $region13: #{_lambda_.6} parent=1 // pred_fallthru
      _
    // Predicated region
    $region14: #{_lambda_.6} parent=1 // pred_check
      _
    $region15: #{_lambda_.6} parent=1 // pred_check_branch
      %29 = sbr.rel (0) target = $region17
    $region16: #{_lambda_.6} parent=1 // pred_region
      %30 = dma.done [#allocation3], 3072
    $region17: #{_lambda_.6} parent=1 // pred_fallthru
      _
    %v32 = vld [vmem:[%s0] sm:$0xff]
    %v33 = vld [vmem:[%s0 + $0x8] sm:$0xff]
    %v34 = vld [vmem:[%s0 + $0x10] sm:$0xff]
    %v35 = vld [vmem:[%s0 + $0x18] sm:$0xff]
    %v36 = vld [vmem:[%s0 + $0x20] sm:$0xff]
    %v37 = vld [vmem:[%s0 + $0x28] sm:$0xff]
    %v38 = vld [vmem:[%s0 + $0x30] sm:$0xff]
    %v39 = vld [vmem:[%s0 + $0x38] sm:$0xff]
    %v40 = vld [vmem:[%s0 + $0x40] sm:$0xff]
    %v41 = vld [vmem:[%s0 + $0x48] sm:$0xff]
    %v42 = vld [vmem:[%s0 + $0x50] sm:$0xff]
    %v43 = vld [vmem:[%s0 + $0x58] sm:$0xff]
    %v44 = vld [vmem:[%s0 + $0x60] sm:$0xff]
    %v45 = vld [vmem:[%s0 + $0x68] sm:$0xff]
    %v46 = vld [vmem:[%s0 + $0x70] sm:$0xff]
    %v47 = vld [vmem:[%s0 + $0x78] sm:$0xff]
    %v48 = vpack.c.bf16 %v33, %v32
    %v49 = vpack.c.bf16 %v35, %v34
    %v50 = vpack.c.bf16 %v37, %v36
    %v51 = vpack.c.bf16 %v39, %v38
    %v52 = vpack.c.bf16 %v41, %v40
    %v53 = vpack.c.bf16 %v43, %v42
    %v54 = vpack.c.bf16 %v45, %v44
    %v55 = vpack.c.bf16 %v47, %v46
    %v56 = vld [vmem:[#allocation2] sm:$0xff]
    %v57 = vld [vmem:[#allocation2 + $0x8] sm:$0xf]
    %v58 = vld [vmem:[#allocation2 + $0xc] sm:$0xff]
    %v59 = vld [vmem:[#allocation2 + $0x14] sm:$0xf]
    %v60 = vld [vmem:[#allocation2 + $0x18] sm:$0xff]
    %v61 = vld [vmem:[#allocation2 + $0x20] sm:$0xf]
    %v62 = vld [vmem:[#allocation2 + $0x24] sm:$0xff]
    %v63 = vld [vmem:[#allocation2 + $0x2c] sm:$0xf]
    %v64 = vld [vmem:[#allocation2 + $0x30] sm:$0xff]
    %v65 = vld [vmem:[#allocation2 + $0x38] sm:$0xf]
    %v66 = vld [vmem:[#allocation2 + $0x3c] sm:$0xff]
    %v67 = vld [vmem:[#allocation2 + $0x44] sm:$0xf]
    %v68 = vld [vmem:[#allocation2 + $0x48] sm:$0xff]
    %v69 = vld [vmem:[#allocation2 + $0x50] sm:$0xf]
    %v70 = vld [vmem:[#allocation2 + $0x54] sm:$0xff]
    %v71 = vld [vmem:[#allocation2 + $0x5c] sm:$0xf]
    %v72 = vld [vmem:[#allocation2 + $0x60] sm:$0xff]
    %v73 = vld [vmem:[#allocation2 + $0x68] sm:$0xf]
    %v74 = vld [vmem:[#allocation2 + $0x6c] sm:$0xff]
    %v75 = vld [vmem:[#allocation2 + $0x74] sm:$0xf]
    %v76 = vld [vmem:[#allocation2 + $0x78] sm:$0xff]
    %v77 = vld [vmem:[#allocation2 + $0x80] sm:$0xf]
    %v78 = vld [vmem:[#allocation2 + $0x84] sm:$0xff]
    %v79 = vld [vmem:[#allocation2 + $0x8c] sm:$0xf]
    %v80 = vld [vmem:[#allocation2 + $0x90] sm:$0xff]
    %v81 = vld [vmem:[#allocation2 + $0x98] sm:$0xf]
    %v82 = vld [vmem:[#allocation2 + $0x9c] sm:$0xff]
    %v83 = vld [vmem:[#allocation2 + $0xa4] sm:$0xf]
    %v84 = vld [vmem:[#allocation2 + $0xa8] sm:$0xff]
    %v85 = vld [vmem:[#allocation2 + $0xb0] sm:$0xf]
    %v86 = vld [vmem:[#allocation2 + $0xb4] sm:$0xff]
    %v87 = vld [vmem:[#allocation2 + $0xbc] sm:$0xf]
    %v88 = vld [vmem:[%s2] sm:$0x7]
    %v90 = vlaneseq
    %v91 = vshrl.u32 %v90, 7
    %v92 = vsub.s32 0, %v91
    %v93 = vrot.slane %v88, %v92
    %v94 = vlaneseq
    %v95 = vshrl.u32 %v94, 7
    %v96 = vsub.s32 1, %v95
    %v97 = vrot.slane %v88, %v96
    %v98 = vlaneseq
    %v99 = vshrl.u32 %v98, 7
    %v100 = vsub.s32 2, %v99
    %v101 = vrot.slane %v88, %v100
    %v137 = vunpack.c.l.b16 %v56
    %v138 = vunpack.c.h.b16 %v56
    %v139 = vunpack.c.l.b16 %v57
    %v140 = vunpack.c.l.b16 %v58
    %v141 = vunpack.c.h.b16 %v58
    %v142 = vunpack.c.l.b16 %v59
    %v143 = vunpack.c.l.b16 %v60
    %v144 = vunpack.c.h.b16 %v60
    %v145 = vunpack.c.l.b16 %v61
    %v146 = vunpack.c.l.b16 %v62
    %v147 = vunpack.c.h.b16 %v62
    %v148 = vunpack.c.l.b16 %v63
    %v149 = vunpack.c.l.b16 %v64
    %v150 = vunpack.c.h.b16 %v64
    %v151 = vunpack.c.l.b16 %v65
    %v152 = vunpack.c.l.b16 %v66
    %v153 = vunpack.c.h.b16 %v66
    %v154 = vunpack.c.l.b16 %v67
    %v155 = vunpack.c.l.b16 %v68
    %v156 = vunpack.c.h.b16 %v68
    %v157 = vunpack.c.l.b16 %v69
    %v158 = vunpack.c.l.b16 %v70
    %v159 = vunpack.c.h.b16 %v70
    %v160 = vunpack.c.l.b16 %v71
    %v161 = vunpack.c.l.b16 %v72
    %v162 = vunpack.c.h.b16 %v72
    %v163 = vunpack.c.l.b16 %v73
    %v164 = vunpack.c.l.b16 %v74
    %v165 = vunpack.c.h.b16 %v74
    %v166 = vunpack.c.l.b16 %v75
    %v167 = vunpack.c.l.b16 %v76
    %v168 = vunpack.c.h.b16 %v76
    %v169 = vunpack.c.l.b16 %v77
    %v170 = vunpack.c.l.b16 %v78
    %v171 = vunpack.c.h.b16 %v78
    %v172 = vunpack.c.l.b16 %v79
    %v173 = vunpack.c.l.b16 %v80
    %v174 = vunpack.c.h.b16 %v80
    %v175 = vunpack.c.l.b16 %v81
    %v176 = vunpack.c.l.b16 %v82
    %v177 = vunpack.c.h.b16 %v82
    %v178 = vunpack.c.l.b16 %v83
    %v179 = vunpack.c.l.b16 %v84
    %v180 = vunpack.c.h.b16 %v84
    %v181 = vunpack.c.l.b16 %v85
    %v182 = vunpack.c.l.b16 %v86
    %v183 = vunpack.c.h.b16 %v86
    %v184 = vunpack.c.l.b16 %v87
    %v185 = vpack.c.b16 %v140, %v137
    %v186 = vpack.c.b16 %v141, %v138
    %v187 = vpack.c.b16 %v142, %v139
    %v188 = vpack.c.b16 %v146, %v143
    %v189 = vpack.c.b16 %v147, %v144
    %v190 = vpack.c.b16 %v148, %v145
    %v191 = vpack.c.b16 %v152, %v149
    %v192 = vpack.c.b16 %v153, %v150
    %v193 = vpack.c.b16 %v154, %v151
    %v194 = vpack.c.b16 %v158, %v155
    %v195 = vpack.c.b16 %v159, %v156
    %v196 = vpack.c.b16 %v160, %v157
    %v197 = vpack.c.b16 %v164, %v161
    %v198 = vpack.c.b16 %v165, %v162
    %v199 = vpack.c.b16 %v166, %v163
    %v200 = vpack.c.b16 %v170, %v167
    %v201 = vpack.c.b16 %v171, %v168
    %v202 = vpack.c.b16 %v172, %v169
    %v203 = vpack.c.b16 %v176, %v173
    %v204 = vpack.c.b16 %v177, %v174
    %v205 = vpack.c.b16 %v178, %v175
    %v206 = vpack.c.b16 %v182, %v179
    %v207 = vpack.c.b16 %v183, %v180
    %v208 = vpack.c.b16 %v184, %v181
    %233 = vmatprep.subr.bf16.mxu0 %v186
    %234 = vmatpush1.bf16.msra.mxu0 %v185
    %235 = vmatprep.subr.bf16.mxu0 %v189
    %236 = vmatpush1.bf16.msra.mxu0 %v188
    %237 = vmatprep.subr.bf16.mxu0 %v192
    %238 = vmatpush1.bf16.msra.mxu0 %v191
    %239 = vmatprep.subr.bf16.mxu0 %v195
    %240 = vmatpush1.bf16.msra.mxu0 %v194
    %241 = vmatprep.subr.bf16.mxu0 %v198
    %242 = vmatpush1.bf16.msra.mxu0 %v197
    %243 = vmatprep.subr.bf16.mxu0 %v201
    %244 = vmatpush1.bf16.msra.mxu0 %v200
    %245 = vmatprep.subr.bf16.mxu0 %v204
    %246 = vmatpush1.bf16.msra.mxu0 %v203
    %247 = vmatprep.subr.bf16.mxu0 %v207
    %248 = vmatpush1.bf16.msra.mxu0 %v206
    %249 = vmatprep.subr.bf16.mxu0 0
    %250 = vmatpush1.bf16.msra.mxu0 0
    %251 = vmatprep.subr.bf16.mxu0 0
    %252 = vmatpush1.bf16.msra.mxu0 0
    %253 = vmatprep.subr.bf16.mxu0 0
    %254 = vmatpush1.bf16.msra.mxu0 0
    %255 = vmatprep.subr.bf16.mxu0 0
    %256 = vmatpush1.bf16.msra.mxu0 0
    %257 = vmatprep.subr.bf16.mxu0 0
    %258 = vmatpush1.bf16.msra.mxu0 0
    %259 = vmatprep.subr.bf16.mxu0 0
    %260 = vmatpush1.bf16.msra.mxu0 0
    %261 = vmatprep.subr.bf16.mxu0 0
    %262 = vmatpush1.bf16.msra.mxu0 0
    %263 = vmatprep.subr.bf16.mxu0 0
    %264 = vmatpush1.bf16.msra.mxu0 0
    %265 = vmatprep.mubr.bf16.mxu0 0
    %266 = vmatmul.mubr.bf16.gmra.mrb[0].mxu0 %v48
    %v267 = vpop.f32.mrb[0].mxu0
    %v268 = vadd.f32 %v93, %v267
    %v269 = vpop.f32.mrb[0].mxu0
    %v270 = vadd.f32 %v97, %v269
    %v271 = vpop.f32.mrb[0].mxu0
    %v272 = vadd.f32 %v93, %v271
    %v273 = vpop.f32.mrb[0].mxu0
    %v274 = vadd.f32 %v97, %v273
    %275 = vmatprep.mubr.bf16.mxu0 0
    %276 = vmatmul.mubr.bf16.gmra.mrb[0].mxu0 %v49
    %v277 = vpop.f32.mrb[0].mxu0
    %v278 = vadd.f32 %v93, %v277
    %v279 = vpop.f32.mrb[0].mxu0
    %v280 = vadd.f32 %v97, %v279
    %v281 = vpop.f32.mrb[0].mxu0
    %v282 = vadd.f32 %v93, %v281
    %v283 = vpop.f32.mrb[0].mxu0
    %v284 = vadd.f32 %v97, %v283
    %285 = vmatprep.mubr.bf16.mxu0 0
    %286 = vmatmul.mubr.bf16.gmra.mrb[0].mxu0 %v50
    %v287 = vpop.f32.mrb[0].mxu0
    %v288 = vadd.f32 %v93, %v287
    %v289 = vpop.f32.mrb[0].mxu0
    %v290 = vadd.f32 %v97, %v289
    %v291 = vpop.f32.mrb[0].mxu0
    %v292 = vadd.f32 %v93, %v291
    %v293 = vpop.f32.mrb[0].mxu0
    %v294 = vadd.f32 %v97, %v293
    %295 = vmatprep.mubr.bf16.mxu0 0
    %296 = vmatmul.mubr.bf16.gmra.mrb[0].mxu0 %v51
    %v297 = vpop.f32.mrb[0].mxu0
    %v298 = vadd.f32 %v93, %v297
    %v299 = vpop.f32.mrb[0].mxu0
    %v300 = vadd.f32 %v97, %v299
    %v301 = vpop.f32.mrb[0].mxu0
    %v302 = vadd.f32 %v93, %v301
    %v303 = vpop.f32.mrb[0].mxu0
    %v304 = vadd.f32 %v97, %v303
    %305 = vmatprep.mubr.bf16.mxu0 0
    %306 = vmatmul.mubr.bf16.gmra.mrb[0].mxu0 %v52
    %v307 = vpop.f32.mrb[0].mxu0
    %v308 = vadd.f32 %v93, %v307
    %v309 = vpop.f32.mrb[0].mxu0
    %v310 = vadd.f32 %v97, %v309
    %v311 = vpop.f32.mrb[0].mxu0
    %v312 = vadd.f32 %v93, %v311
    %v313 = vpop.f32.mrb[0].mxu0
    %v314 = vadd.f32 %v97, %v313
    %315 = vmatprep.mubr.bf16.mxu0 0
    %316 = vmatmul.mubr.bf16.gmra.mrb[0].mxu0 %v53
    %v317 = vpop.f32.mrb[0].mxu0
    %v318 = vadd.f32 %v93, %v317
    %v319 = vpop.f32.mrb[0].mxu0
    %v320 = vadd.f32 %v97, %v319
    %v321 = vpop.f32.mrb[0].mxu0
    %v322 = vadd.f32 %v93, %v321
    %v323 = vpop.f32.mrb[0].mxu0
    %v324 = vadd.f32 %v97, %v323
    %325 = vmatprep.mubr.bf16.mxu0 0
    %326 = vmatmul.mubr.bf16.gmra.mrb[0].mxu0 %v54
    %v327 = vpop.f32.mrb[0].mxu0
    %v328 = vadd.f32 %v93, %v327
    %v329 = vpop.f32.mrb[0].mxu0
    %v330 = vadd.f32 %v97, %v329
    %v331 = vpop.f32.mrb[0].mxu0
    %v332 = vadd.f32 %v93, %v331
    %v333 = vpop.f32.mrb[0].mxu0
    %v334 = vadd.f32 %v97, %v333
    %335 = vmatprep.mubr.bf16.mxu0 0
    %336 = vmatmul.mubr.bf16.gmra.mrb[0].mxu0 %v55
    %v337 = vpop.f32.mrb[0].mxu0
    %v338 = vadd.f32 %v93, %v337
    %v339 = vpop.f32.mrb[0].mxu0
    %v340 = vadd.f32 %v97, %v339
    %v341 = vpop.f32.mrb[0].mxu0
    %v342 = vadd.f32 %v93, %v341
    %v343 = vpop.f32.mrb[0].mxu0
    %v344 = vadd.f32 %v97, %v343
    %345 = vdwg.mxu0
    %346 = vmatprep.subr.bf16.mxu0 0
    %347 = vmatpush1.bf16.msra.mxu0 %v187
    %348 = vmatprep.subr.bf16.mxu0 0
    %349 = vmatpush1.bf16.msra.mxu0 %v190
    %350 = vmatprep.subr.bf16.mxu0 0
    %351 = vmatpush1.bf16.msra.mxu0 %v193
    %352 = vmatprep.subr.bf16.mxu0 0
    %353 = vmatpush1.bf16.msra.mxu0 %v196
    %354 = vmatprep.subr.bf16.mxu0 0
    %355 = vmatpush1.bf16.msra.mxu0 %v199
    %356 = vmatprep.subr.bf16.mxu0 0
    %357 = vmatpush1.bf16.msra.mxu0 %v202
    %358 = vmatprep.subr.bf16.mxu0 0
    %359 = vmatpush1.bf16.msra.mxu0 %v205
    %360 = vmatprep.subr.bf16.mxu0 0
    %361 = vmatpush1.bf16.msra.mxu0 %v208
    %362 = vmatprep.subr.bf16.mxu0 0
    %363 = vmatpush1.bf16.msra.mxu0 0
    %364 = vmatprep.subr.bf16.mxu0 0
    %365 = vmatpush1.bf16.msra.mxu0 0
    %366 = vmatprep.subr.bf16.mxu0 0
    %367 = vmatpush1.bf16.msra.mxu0 0
    %368 = vmatprep.subr.bf16.mxu0 0
    %369 = vmatpush1.bf16.msra.mxu0 0
    %370 = vmatprep.subr.bf16.mxu0 0
    %371 = vmatpush1.bf16.msra.mxu0 0
    %372 = vmatprep.subr.bf16.mxu0 0
    %373 = vmatpush1.bf16.msra.mxu0 0
    %374 = vmatprep.subr.bf16.mxu0 0
    %375 = vmatpush1.bf16.msra.mxu0 0
    %376 = vmatprep.subr.bf16.mxu0 0
    %377 = vmatpush1.bf16.msra.mxu0 0
    %378 = vmatprep.mubr.bf16.mxu0 0
    %379 = vmatmul.mubr.bf16.gmra.mrb[0].mxu0 %v48
    %v380 = vpop.f32.mrb[0].mxu0
    %v381 = vadd.f32 %v101, %v380
    %v382 = vpop.f32.mrb[0].mxu0
    %v383 = vpop.f32.mrb[0].mxu0
    %v384 = vadd.f32 %v101, %v383
    %v385 = vpop.f32.mrb[0].mxu0
    %386 = vmatprep.mubr.bf16.mxu0 0
    %387 = vmatmul.mubr.bf16.gmra.mrb[0].mxu0 %v49
    %v388 = vpop.f32.mrb[0].mxu0
    %v389 = vadd.f32 %v101, %v388
    %v390 = vpop.f32.mrb[0].mxu0
    %v391 = vpop.f32.mrb[0].mxu0
    %v392 = vadd.f32 %v101, %v391
    %v393 = vpop.f32.mrb[0].mxu0
    %394 = vmatprep.mubr.bf16.mxu0 0
    %395 = vmatmul.mubr.bf16.gmra.mrb[0].mxu0 %v50
    %v396 = vpop.f32.mrb[0].mxu0
    %v397 = vadd.f32 %v101, %v396
    %v398 = vpop.f32.mrb[0].mxu0
    %v399 = vpop.f32.mrb[0].mxu0
    %v400 = vadd.f32 %v101, %v399
    %v401 = vpop.f32.mrb[0].mxu0
    %402 = vmatprep.mubr.bf16.mxu0 0
    %403 = vmatmul.mubr.bf16.gmra.mrb[0].mxu0 %v51
    %v404 = vpop.f32.mrb[0].mxu0
    %v405 = vadd.f32 %v101, %v404
    %v406 = vpop.f32.mrb[0].mxu0
    %v407 = vpop.f32.mrb[0].mxu0
    %v408 = vadd.f32 %v101, %v407
    %v409 = vpop.f32.mrb[0].mxu0
    %410 = vmatprep.mubr.bf16.mxu0 0
    %411 = vmatmul.mubr.bf16.gmra.mrb[0].mxu0 %v52
    %v412 = vpop.f32.mrb[0].mxu0
    %v413 = vadd.f32 %v101, %v412
    %v414 = vpop.f32.mrb[0].mxu0
    %v415 = vpop.f32.mrb[0].mxu0
    %v416 = vadd.f32 %v101, %v415
    %v417 = vpop.f32.mrb[0].mxu0
    %418 = vmatprep.mubr.bf16.mxu0 0
    %419 = vmatmul.mubr.bf16.gmra.mrb[0].mxu0 %v53
    %v420 = vpop.f32.mrb[0].mxu0
    %v421 = vadd.f32 %v101, %v420
    %v422 = vpop.f32.mrb[0].mxu0
    %v423 = vpop.f32.mrb[0].mxu0
    %v424 = vadd.f32 %v101, %v423
    %v425 = vpop.f32.mrb[0].mxu0
    %426 = vmatprep.mubr.bf16.mxu0 0
    %427 = vmatmul.mubr.bf16.gmra.mrb[0].mxu0 %v54
    %v428 = vpop.f32.mrb[0].mxu0
    %v429 = vadd.f32 %v101, %v428
    %v430 = vpop.f32.mrb[0].mxu0
    %v431 = vpop.f32.mrb[0].mxu0
    %v432 = vadd.f32 %v101, %v431
    %v433 = vpop.f32.mrb[0].mxu0
    %434 = vmatprep.mubr.bf16.mxu0 0
    %435 = vmatmul.mubr.bf16.gmra.mrb[0].mxu0 %v55
    %v436 = vpop.f32.mrb[0].mxu0
    %v437 = vadd.f32 %v101, %v436
    %v438 = vpop.f32.mrb[0].mxu0
    %v439 = vpop.f32.mrb[0].mxu0
    %v440 = vadd.f32 %v101, %v439
    %v441 = vpop.f32.mrb[0].mxu0
    %442 = vdwg.mxu0
    %v443 = vpack.c.bf16 %v272, %v268
    %v444 = vpack.c.bf16 %v282, %v278
    %v445 = vpack.c.bf16 %v292, %v288
    %v446 = vpack.c.bf16 %v302, %v298
    %v447 = vpack.c.bf16 %v312, %v308
    %v448 = vpack.c.bf16 %v322, %v318
    %v449 = vpack.c.bf16 %v332, %v328
    %v450 = vpack.c.bf16 %v342, %v338
    %v459 = vunpack.c.l.b16 %v443
    %v460 = vunpack.c.h.b16 %v443
    %v461 = vunpack.c.l.b16 %v444
    %v462 = vunpack.c.h.b16 %v444
    %v463 = vunpack.c.l.b16 %v445
    %v464 = vunpack.c.h.b16 %v445
    %v465 = vunpack.c.l.b16 %v446
    %v466 = vunpack.c.h.b16 %v446
    %v467 = vunpack.c.l.b16 %v447
    %v468 = vunpack.c.h.b16 %v447
    %v469 = vunpack.c.l.b16 %v448
    %v470 = vunpack.c.h.b16 %v448
    %v471 = vunpack.c.l.b16 %v449
    %v472 = vunpack.c.h.b16 %v449
    %v473 = vunpack.c.l.b16 %v450
    %v474 = vunpack.c.h.b16 %v450
    %v475 = vpack.c.b16 %v459, %v459
    %v476 = vpack.c.b16 %v460, %v460
    %v477 = vpack.c.b16 %v461, %v461
    %v478 = vpack.c.b16 %v462, %v462
    %v479 = vpack.c.b16 %v463, %v463
    %v480 = vpack.c.b16 %v464, %v464
    %v481 = vpack.c.b16 %v465, %v465
    %v482 = vpack.c.b16 %v466, %v466
    %v483 = vpack.c.b16 %v467, %v467
    %v484 = vpack.c.b16 %v468, %v468
    %v485 = vpack.c.b16 %v469, %v469
    %v486 = vpack.c.b16 %v470, %v470
    %v487 = vpack.c.b16 %v471, %v471
    %v488 = vpack.c.b16 %v472, %v472
    %v489 = vpack.c.b16 %v473, %v473
    %v490 = vpack.c.b16 %v474, %v474
    %507 = vst [vmem:[%s3] sm:$0xf] %v475
    %508 = vst [vmem:[%s3 + $0x4] sm:$0xf] %v476
    %509 = vst [vmem:[%s3 + $0x8] sm:$0xf] %v477
    %510 = vst [vmem:[%s3 + $0xc] sm:$0xf] %v478
    %511 = vst [vmem:[%s3 + $0x10] sm:$0xf] %v479
    %512 = vst [vmem:[%s3 + $0x14] sm:$0xf] %v480
    %513 = vst [vmem:[%s3 + $0x18] sm:$0xf] %v481
    %514 = vst [vmem:[%s3 + $0x1c] sm:$0xf] %v482
    %515 = vst [vmem:[%s3 + $0x20] sm:$0xf] %v483
    %516 = vst [vmem:[%s3 + $0x24] sm:$0xf] %v484
    %517 = vst [vmem:[%s3 + $0x28] sm:$0xf] %v485
    %518 = vst [vmem:[%s3 + $0x2c] sm:$0xf] %v486
    %519 = vst [vmem:[%s3 + $0x30] sm:$0xf] %v487
    %520 = vst [vmem:[%s3 + $0x34] sm:$0xf] %v488
    %521 = vst [vmem:[%s3 + $0x38] sm:$0xf] %v489
    %522 = vst [vmem:[%s3 + $0x3c] sm:$0xf] %v490
    %v523 = vpack.c.bf16 %v274, %v270
    %v524 = vpack.c.bf16 %v284, %v280
    %v525 = vpack.c.bf16 %v294, %v290
    %v526 = vpack.c.bf16 %v304, %v300
    %v527 = vpack.c.bf16 %v314, %v310
    %v528 = vpack.c.bf16 %v324, %v320
    %v529 = vpack.c.bf16 %v334, %v330
    %v530 = vpack.c.bf16 %v344, %v340
    %v539 = vunpack.c.l.b16 %v523
    %v540 = vunpack.c.h.b16 %v523
    %v541 = vunpack.c.l.b16 %v524
    %v542 = vunpack.c.h.b16 %v524
    %v543 = vunpack.c.l.b16 %v525
    %v544 = vunpack.c.h.b16 %v525
    %v545 = vunpack.c.l.b16 %v526
    %v546 = vunpack.c.h.b16 %v526
    %v547 = vunpack.c.l.b16 %v527
    %v548 = vunpack.c.h.b16 %v527
    %v549 = vunpack.c.l.b16 %v528
    %v550 = vunpack.c.h.b16 %v528
    %v551 = vunpack.c.l.b16 %v529
    %v552 = vunpack.c.h.b16 %v529
    %v553 = vunpack.c.l.b16 %v530
    %v554 = vunpack.c.h.b16 %v530
    %v555 = vpack.c.b16 %v539, %v539
    %v556 = vpack.c.b16 %v540, %v540
    %v557 = vpack.c.b16 %v541, %v541
    %v558 = vpack.c.b16 %v542, %v542
    %v559 = vpack.c.b16 %v543, %v543
    %v560 = vpack.c.b16 %v544, %v544
    %v561 = vpack.c.b16 %v545, %v545
    %v562 = vpack.c.b16 %v546, %v546
    %v563 = vpack.c.b16 %v547, %v547
    %v564 = vpack.c.b16 %v548, %v548
    %v565 = vpack.c.b16 %v549, %v549
    %v566 = vpack.c.b16 %v550, %v550
    %v567 = vpack.c.b16 %v551, %v551
    %v568 = vpack.c.b16 %v552, %v552
    %v569 = vpack.c.b16 %v553, %v553
    %v570 = vpack.c.b16 %v554, %v554
    %587 = vst [vmem:[%s4] sm:$0xf] %v555
    %588 = vst [vmem:[%s4 + $0x4] sm:$0xf] %v556
    %589 = vst [vmem:[%s4 + $0x8] sm:$0xf] %v557
    %590 = vst [vmem:[%s4 + $0xc] sm:$0xf] %v558
    %591 = vst [vmem:[%s4 + $0x10] sm:$0xf] %v559
    %592 = vst [vmem:[%s4 + $0x14] sm:$0xf] %v560
    %593 = vst [vmem:[%s4 + $0x18] sm:$0xf] %v561
    %594 = vst [vmem:[%s4 + $0x1c] sm:$0xf] %v562
    %595 = vst [vmem:[%s4 + $0x20] sm:$0xf] %v563
    %596 = vst [vmem:[%s4 + $0x24] sm:$0xf] %v564
    %597 = vst [vmem:[%s4 + $0x28] sm:$0xf] %v565
    %598 = vst [vmem:[%s4 + $0x2c] sm:$0xf] %v566
    %599 = vst [vmem:[%s4 + $0x30] sm:$0xf] %v567
    %600 = vst [vmem:[%s4 + $0x34] sm:$0xf] %v568
    %601 = vst [vmem:[%s4 + $0x38] sm:$0xf] %v569
    %602 = vst [vmem:[%s4 + $0x3c] sm:$0xf] %v570
    %v603 = vpack.c.bf16 %v384, %v381
    %v604 = vpack.c.bf16 %v392, %v389
    %v605 = vpack.c.bf16 %v400, %v397
    %v606 = vpack.c.bf16 %v408, %v405
    %v607 = vpack.c.bf16 %v416, %v413
    %v608 = vpack.c.bf16 %v424, %v421
    %v609 = vpack.c.bf16 %v432, %v429
    %v610 = vpack.c.bf16 %v440, %v437
    %v619 = vunpack.c.l.b16 %v603
    %v620 = vunpack.c.h.b16 %v603
    %v621 = vunpack.c.l.b16 %v604
    %v622 = vunpack.c.h.b16 %v604
    %v623 = vunpack.c.l.b16 %v605
    %v624 = vunpack.c.h.b16 %v605
    %v625 = vunpack.c.l.b16 %v606
    %v626 = vunpack.c.h.b16 %v606
    %v627 = vunpack.c.l.b16 %v607
    %v628 = vunpack.c.h.b16 %v607
    %v629 = vunpack.c.l.b16 %v608
    %v630 = vunpack.c.h.b16 %v608
    %v631 = vunpack.c.l.b16 %v609
    %v632 = vunpack.c.h.b16 %v609
    %v633 = vunpack.c.l.b16 %v610
    %v634 = vunpack.c.h.b16 %v610
    %v635 = vpack.c.b16 %v619, %v619
    %v636 = vpack.c.b16 %v620, %v620
    %v637 = vpack.c.b16 %v621, %v621
    %v638 = vpack.c.b16 %v622, %v622
    %v639 = vpack.c.b16 %v623, %v623
    %v640 = vpack.c.b16 %v624, %v624
    %v641 = vpack.c.b16 %v625, %v625
    %v642 = vpack.c.b16 %v626, %v626
    %v643 = vpack.c.b16 %v627, %v627
    %v644 = vpack.c.b16 %v628, %v628
    %v645 = vpack.c.b16 %v629, %v629
    %v646 = vpack.c.b16 %v630, %v630
    %v647 = vpack.c.b16 %v631, %v631
    %v648 = vpack.c.b16 %v632, %v632
    %v649 = vpack.c.b16 %v633, %v633
    %v650 = vpack.c.b16 %v634, %v634
    %667 = vst [vmem:[%s5] sm:$0xf] %v635
    %668 = vst [vmem:[%s5 + $0x4] sm:$0xf] %v636
    %669 = vst [vmem:[%s5 + $0x8] sm:$0xf] %v637
    %670 = vst [vmem:[%s5 + $0xc] sm:$0xf] %v638
    %671 = vst [vmem:[%s5 + $0x10] sm:$0xf] %v639
    %672 = vst [vmem:[%s5 + $0x14] sm:$0xf] %v640
    %673 = vst [vmem:[%s5 + $0x18] sm:$0xf] %v641
    %674 = vst [vmem:[%s5 + $0x1c] sm:$0xf] %v642
    %675 = vst [vmem:[%s5 + $0x20] sm:$0xf] %v643
    %676 = vst [vmem:[%s5 + $0x24] sm:$0xf] %v644
    %677 = vst [vmem:[%s5 + $0x28] sm:$0xf] %v645
    %678 = vst [vmem:[%s5 + $0x2c] sm:$0xf] %v646
    %679 = vst [vmem:[%s5 + $0x30] sm:$0xf] %v647
    %680 = vst [vmem:[%s5 + $0x34] sm:$0xf] %v648
    %681 = vst [vmem:[%s5 + $0x38] sm:$0xf] %v649
    %682 = vst [vmem:[%s5 + $0x3c] sm:$0xf] %v650
    // Predicated region
    $region18: #{_lambda_.6} parent=1 // pred_check
      _
    $region19: #{_lambda_.6} parent=1 // pred_check_branch
      %684 = sbr.rel (0) target = $region21
    $region20: #{_lambda_.6} parent=1 // pred_region
      _
    $region21: #{_lambda_.6} parent=1 // pred_fallthru
      _
    // Predicated region
    $region22: #{_lambda_.6} parent=1 // pred_check
      _
    $region23: #{_lambda_.6} parent=1 // pred_check_branch
      %686 = sbr.rel (0) target = $region25
    $region24: #{_lambda_.6} parent=1 // pred_region
      _
    $region25: #{_lambda_.6} parent=1 // pred_fallthru
      _
    // Predicated region
    $region26: #{_lambda_.6} parent=1 // pred_check
      _
    $region27: #{_lambda_.6} parent=1 // pred_check_branch
      %688 = sbr.rel (0) target = $region29
    $region28: #{_lambda_.6} parent=1 // pred_region
      _
    $region29: #{_lambda_.6} parent=1 // pred_fallthru
      _
    // Predicated region
    $region30: #{_lambda_.6} parent=1 // pred_check
      _
    $region31: #{_lambda_.6} parent=1 // pred_check_branch
      %690 = sbr.rel (0) target = $region33
    $region32: #{_lambda_.6} parent=1 // pred_region
      _
    $region33: #{_lambda_.6} parent=1 // pred_fallthru
      _
    // Predicated region
    $region34: #{_lambda_.6} parent=1 // pred_check
      _
    $region35: #{_lambda_.6} parent=1 // pred_check_branch
      %692 = sbr.rel (0) target = $region37
    $region36: #{_lambda_.6} parent=1 // pred_region
      _
    $region37: #{_lambda_.6} parent=1 // pred_fallthru
      _
    // Predicated region
    $region38: #{_lambda_.6} parent=1 // pred_check
      _
    $region39: #{_lambda_.6} parent=1 // pred_check_branch
      %694 = sbr.rel (0) target = $region41
    $region40: #{_lambda_.6} parent=1 // pred_region
      _
    $region41: #{_lambda_.6} parent=1 // pred_fallthru
      _
    %695 = vsyncpa [#allocation3], 1

// kernel: _lambda_.8
$region0: #{_lambda_.8}
  #allocation0 [shape = 'u32[]', space=smem, size = 0x4, offset = 0x4, fixed_abs, tag = 'smem constant byte address 0x4 - core index']
  #allocation1 [shape = 'u32[144,128]{1,0:T(1,128)}', space=vmem, size = 0x12000, scoped, tag = 'internal scratch']
  %s0 = inlined_call_operand.vmem [shape: bf16[128,128], index: 0, kind: input, shape index: {}]
  %s1 = inlined_call_operand.vmem [shape: bf16[128,256], index: 1, kind: input, shape index: {}]
  %s2 = inlined_call_operand.vmem [shape: f32[1,256], index: 2, kind: input, shape index: {}]
  %s3 = inlined_call_operand.vmem [shape: bf16[256,128], index: 3, kind: input, shape index: {}]
  %s4 = inlined_call_operand.vmem [shape: f32[1,128], index: 4, kind: input, shape index: {}]
  %s5 = inlined_call_operand.vmem [shape: f32[1,128], index: 5, kind: input, shape index: {}]
  %s6 = inlined_call_operand.vmem [shape: f32[1,128], index: 6, kind: input, shape index: {}]
  %s7 = inlined_call_operand.vmem [shape: bf16[128,128], index: 7, kind: output, shape index: {}]
  %s8 = sld [smem:[#allocation0]]
  $region38: #{_lambda_.8} parent=0
    _
  %s10 = ssub.s32 1, %s8
  %s11 = scalar_select 0, %s10, %s8
  // Predicated region
  $region2: #{_lambda_.8} parent=0 // pred_check
    _
  $region3: #{_lambda_.8} parent=0 // pred_check_branch
    %13 = sbr.rel (0) target = $region5
  $region4: #{_lambda_.8} parent=0 // pred_region
    _
  $region5: #{_lambda_.8} parent=0 // pred_fallthru
    _
  // Predicated region
  $region6: #{_lambda_.8} parent=0 // pred_check
    _
  $region7: #{_lambda_.8} parent=0 // pred_check_branch
    %15 = sbr.rel (0) target = $region9
  $region8: #{_lambda_.8} parent=0 // pred_region
    _
  $region9: #{_lambda_.8} parent=0 // pred_fallthru
    _
  // Predicated region
  $region10: #{_lambda_.8} parent=0 // pred_check
    _
  $region11: #{_lambda_.8} parent=0 // pred_check_branch
    %17 = sbr.rel (0) target = $region13
  $region12: #{_lambda_.8} parent=0 // pred_region
    _
  $region13: #{_lambda_.8} parent=0 // pred_fallthru
    _
  // Predicated region
  $region14: #{_lambda_.8} parent=0 // pred_check
    _
  $region15: #{_lambda_.8} parent=0 // pred_check_branch
    %19 = sbr.rel (0) target = $region17
  $region16: #{_lambda_.8} parent=0 // pred_region
    _
  $region17: #{_lambda_.8} parent=0 // pred_fallthru
    _
  // Predicated region
  $region18: #{_lambda_.8} parent=0 // pred_check
    _
  $region19: #{_lambda_.8} parent=0 // pred_check_branch
    %21 = sbr.rel (0) target = $region21
  $region20: #{_lambda_.8} parent=0 // pred_region
    _
  $region21: #{_lambda_.8} parent=0 // pred_fallthru
    _
  // Predicated region
  $region22: #{_lambda_.8} parent=0 // pred_check
    _
  $region23: #{_lambda_.8} parent=0 // pred_check_branch
    %23 = sbr.rel (0) target = $region25
  $region24: #{_lambda_.8} parent=0 // pred_region
    _
  $region25: #{_lambda_.8} parent=0 // pred_fallthru
    _
  // Predicated region
  $region26: #{_lambda_.8} parent=0 // pred_check
    _
  $region27: #{_lambda_.8} parent=0 // pred_check_branch
    %25 = sbr.rel (0) target = $region29
  $region28: #{_lambda_.8} parent=0 // pred_region
    _
  $region29: #{_lambda_.8} parent=0 // pred_fallthru
    _
  %v27 = vld [vmem:[%s0] sm:$0xf]
  %v28 = vld [vmem:[%s0 + $0x4] sm:$0xf]
  %v29 = vld [vmem:[%s0 + $0x8] sm:$0xf]
  %v30 = vld [vmem:[%s0 + $0xc] sm:$0xf]
  %v31 = vld [vmem:[%s0 + $0x10] sm:$0xf]
  %v32 = vld [vmem:[%s0 + $0x14] sm:$0xf]
  %v33 = vld [vmem:[%s0 + $0x18] sm:$0xf]
  %v34 = vld [vmem:[%s0 + $0x1c] sm:$0xf]
  %v35 = vld [vmem:[%s0 + $0x20] sm:$0xf]
  %v36 = vld [vmem:[%s0 + $0x24] sm:$0xf]
  %v37 = vld [vmem:[%s0 + $0x28] sm:$0xf]
  %v38 = vld [vmem:[%s0 + $0x2c] sm:$0xf]
  %v39 = vld [vmem:[%s0 + $0x30] sm:$0xf]
  %v40 = vld [vmem:[%s0 + $0x34] sm:$0xf]
  %v41 = vld [vmem:[%s0 + $0x38] sm:$0xf]
  %v42 = vld [vmem:[%s0 + $0x3c] sm:$0xf]
  %v43 = vld [vmem:[%s1] sm:$0xff]
  %v44 = vld [vmem:[%s1 + $0x8] sm:$0xff]
  %v45 = vld [vmem:[%s1 + $0x10] sm:$0xff]
  %v46 = vld [vmem:[%s1 + $0x18] sm:$0xff]
  %v47 = vld [vmem:[%s1 + $0x20] sm:$0xff]
  %v48 = vld [vmem:[%s1 + $0x28] sm:$0xff]
  %v49 = vld [vmem:[%s1 + $0x30] sm:$0xff]
  %v50 = vld [vmem:[%s1 + $0x38] sm:$0xff]
  %v51 = vld [vmem:[%s1 + $0x40] sm:$0xff]
  %v52 = vld [vmem:[%s1 + $0x48] sm:$0xff]
  %v53 = vld [vmem:[%s1 + $0x50] sm:$0xff]
  %v54 = vld [vmem:[%s1 + $0x58] sm:$0xff]
  %v55 = vld [vmem:[%s1 + $0x60] sm:$0xff]
  %v56 = vld [vmem:[%s1 + $0x68] sm:$0xff]
  %v57 = vld [vmem:[%s1 + $0x70] sm:$0xff]
  %v58 = vld [vmem:[%s1 + $0x78] sm:$0xff]
  %v59 = vld [vmem:[%s2] sm:$0x3]
  %v61 = vlaneseq
  %v62 = vshrl.u32 %v61, 7
  %v63 = vsub.s32 0, %v62
  %v64 = vrot.slane %v59, %v63
  %v65 = vlaneseq
  %v66 = vshrl.u32 %v65, 7
  %v67 = vsub.s32 1, %v66
  %v68 = vrot.slane %v59, %v67
  %v87 = vunpack.c.l.b16 %v27
  %v88 = vunpack.c.l.b16 %v28
  %v89 = vunpack.c.l.b16 %v29
  %v90 = vunpack.c.l.b16 %v30
  %v91 = vunpack.c.l.b16 %v31
  %v92 = vunpack.c.l.b16 %v32
  %v93 = vunpack.c.l.b16 %v33
  %v94 = vunpack.c.l.b16 %v34
  %v95 = vunpack.c.l.b16 %v35
  %v96 = vunpack.c.l.b16 %v36
  %v97 = vunpack.c.l.b16 %v37
  %v98 = vunpack.c.l.b16 %v38
  %v99 = vunpack.c.l.b16 %v39
  %v100 = vunpack.c.l.b16 %v40
  %v101 = vunpack.c.l.b16 %v41
  %v102 = vunpack.c.l.b16 %v42
  %v103 = vpack.c.b16 %v88, %v87
  %v104 = vpack.c.b16 %v90, %v89
  %v105 = vpack.c.b16 %v92, %v91
  %v106 = vpack.c.b16 %v94, %v93
  %v107 = vpack.c.b16 %v96, %v95
  %v108 = vpack.c.b16 %v98, %v97
  %v109 = vpack.c.b16 %v100, %v99
  %v110 = vpack.c.b16 %v102, %v101
  %v135 = vunpack.c.l.b16 %v43
  %v136 = vunpack.c.h.b16 %v43
  %v137 = vunpack.c.l.b16 %v44
  %v138 = vunpack.c.h.b16 %v44
  %v139 = vunpack.c.l.b16 %v45
  %v140 = vunpack.c.h.b16 %v45
  %v141 = vunpack.c.l.b16 %v46
  %v142 = vunpack.c.h.b16 %v46
  %v143 = vunpack.c.l.b16 %v47
  %v144 = vunpack.c.h.b16 %v47
  %v145 = vunpack.c.l.b16 %v48
  %v146 = vunpack.c.h.b16 %v48
  %v147 = vunpack.c.l.b16 %v49
  %v148 = vunpack.c.h.b16 %v49
  %v149 = vunpack.c.l.b16 %v50
  %v150 = vunpack.c.h.b16 %v50
  %v151 = vunpack.c.l.b16 %v51
  %v152 = vunpack.c.h.b16 %v51
  %v153 = vunpack.c.l.b16 %v52
  %v154 = vunpack.c.h.b16 %v52
  %v155 = vunpack.c.l.b16 %v53
  %v156 = vunpack.c.h.b16 %v53
  %v157 = vunpack.c.l.b16 %v54
  %v158 = vunpack.c.h.b16 %v54
  %v159 = vunpack.c.l.b16 %v55
  %v160 = vunpack.c.h.b16 %v55
  %v161 = vunpack.c.l.b16 %v56
  %v162 = vunpack.c.h.b16 %v56
  %v163 = vunpack.c.l.b16 %v57
  %v164 = vunpack.c.h.b16 %v57
  %v165 = vunpack.c.l.b16 %v58
  %v166 = vunpack.c.h.b16 %v58
  %v167 = vpack.c.b16 %v137, %v135
  %v168 = vpack.c.b16 %v138, %v136
  %v169 = vpack.c.b16 %v141, %v139
  %v170 = vpack.c.b16 %v142, %v140
  %v171 = vpack.c.b16 %v145, %v143
  %v172 = vpack.c.b16 %v146, %v144
  %v173 = vpack.c.b16 %v149, %v147
  %v174 = vpack.c.b16 %v150, %v148
  %v175 = vpack.c.b16 %v153, %v151
  %v176 = vpack.c.b16 %v154, %v152
  %v177 = vpack.c.b16 %v157, %v155
  %v178 = vpack.c.b16 %v158, %v156
  %v179 = vpack.c.b16 %v161, %v159
  %v180 = vpack.c.b16 %v162, %v160
  %v181 = vpack.c.b16 %v165, %v163
  %v182 = vpack.c.b16 %v166, %v164
  %199 = vmatprep.subr.bf16.mxu0 %v168
  %200 = vmatpush1.bf16.msra.mxu0 %v167
  %201 = vmatprep.subr.bf16.mxu0 %v170
  %202 = vmatpush1.bf16.msra.mxu0 %v169
  %203 = vmatprep.subr.bf16.mxu0 %v172
  %204 = vmatpush1.bf16.msra.mxu0 %v171
  %205 = vmatprep.subr.bf16.mxu0 %v174
  %206 = vmatpush1.bf16.msra.mxu0 %v173
  %207 = vmatprep.subr.bf16.mxu0 %v176
  %208 = vmatpush1.bf16.msra.mxu0 %v175
  %209 = vmatprep.subr.bf16.mxu0 %v178
  %210 = vmatpush1.bf16.msra.mxu0 %v177
  %211 = vmatprep.subr.bf16.mxu0 %v180
  %212 = vmatpush1.bf16.msra.mxu0 %v179
  %213 = vmatprep.subr.bf16.mxu0 %v182
  %214 = vmatpush1.bf16.msra.mxu0 %v181
  %215 = vmatprep.subr.bf16.mxu0 0
  %216 = vmatpush1.bf16.msra.mxu0 0
  %217 = vmatprep.subr.bf16.mxu0 0
  %218 = vmatpush1.bf16.msra.mxu0 0
  %219 = vmatprep.subr.bf16.mxu0 0
  %220 = vmatpush1.bf16.msra.mxu0 0
  %221 = vmatprep.subr.bf16.mxu0 0
  %222 = vmatpush1.bf16.msra.mxu0 0
  %223 = vmatprep.subr.bf16.mxu0 0
  %224 = vmatpush1.bf16.msra.mxu0 0
  %225 = vmatprep.subr.bf16.mxu0 0
  %226 = vmatpush1.bf16.msra.mxu0 0
  %227 = vmatprep.subr.bf16.mxu0 0
  %228 = vmatpush1.bf16.msra.mxu0 0
  %229 = vmatprep.subr.bf16.mxu0 0
  %230 = vmatpush1.bf16.msra.mxu0 0
  %231 = vmatprep.mubr.bf16.mxu0 0
  %232 = vmatmul.mubr.bf16.gmra.mrb[0].mxu0 %v103
  %v233 = vpop.f32.mrb[0].mxu0
  %v234 = vadd.f32 %v64, %v233
  %v235 = vpop.f32.mrb[0].mxu0
  %v236 = vadd.f32 %v68, %v235
  %v237 = vpop.f32.mrb[0].mxu0
  %v238 = vadd.f32 %v64, %v237
  %v239 = vpop.f32.mrb[0].mxu0
  %v240 = vadd.f32 %v68, %v239
  %241 = vmatprep.mubr.bf16.mxu0 0
  %242 = vmatmul.mubr.bf16.gmra.mrb[0].mxu0 %v104
  %v243 = vpop.f32.mrb[0].mxu0
  %v244 = vadd.f32 %v64, %v243
  %v245 = vpop.f32.mrb[0].mxu0
  %v246 = vadd.f32 %v68, %v245
  %v247 = vpop.f32.mrb[0].mxu0
  %v248 = vadd.f32 %v64, %v247
  %v249 = vpop.f32.mrb[0].mxu0
  %v250 = vadd.f32 %v68, %v249
  %251 = vmatprep.mubr.bf16.mxu0 0
  %252 = vmatmul.mubr.bf16.gmra.mrb[0].mxu0 %v105
  %v253 = vpop.f32.mrb[0].mxu0
  %v254 = vadd.f32 %v64, %v253
  %v255 = vpop.f32.mrb[0].mxu0
  %v256 = vadd.f32 %v68, %v255
  %v257 = vpop.f32.mrb[0].mxu0
  %v258 = vadd.f32 %v64, %v257
  %v259 = vpop.f32.mrb[0].mxu0
  %v260 = vadd.f32 %v68, %v259
  %261 = vmatprep.mubr.bf16.mxu0 0
  %262 = vmatmul.mubr.bf16.gmra.mrb[0].mxu0 %v106
  %v263 = vpop.f32.mrb[0].mxu0
  %v264 = vadd.f32 %v64, %v263
  %v265 = vpop.f32.mrb[0].mxu0
  %v266 = vadd.f32 %v68, %v265
  %v267 = vpop.f32.mrb[0].mxu0
  %v268 = vadd.f32 %v64, %v267
  %v269 = vpop.f32.mrb[0].mxu0
  %v270 = vadd.f32 %v68, %v269
  %271 = vmatprep.mubr.bf16.mxu0 0
  %272 = vmatmul.mubr.bf16.gmra.mrb[0].mxu0 %v107
  %v273 = vpop.f32.mrb[0].mxu0
  %v274 = vadd.f32 %v64, %v273
  %v275 = vpop.f32.mrb[0].mxu0
  %v276 = vadd.f32 %v68, %v275
  %v277 = vpop.f32.mrb[0].mxu0
  %v278 = vadd.f32 %v64, %v277
  %v279 = vpop.f32.mrb[0].mxu0
  %v280 = vadd.f32 %v68, %v279
  %281 = vmatprep.mubr.bf16.mxu0 0
  %282 = vmatmul.mubr.bf16.gmra.mrb[0].mxu0 %v108
  %v283 = vpop.f32.mrb[0].mxu0
  %v284 = vadd.f32 %v64, %v283
  %v285 = vpop.f32.mrb[0].mxu0
  %v286 = vadd.f32 %v68, %v285
  %v287 = vpop.f32.mrb[0].mxu0
  %v288 = vadd.f32 %v64, %v287
  %v289 = vpop.f32.mrb[0].mxu0
  %v290 = vadd.f32 %v68, %v289
  %291 = vmatprep.mubr.bf16.mxu0 0
  %292 = vmatmul.mubr.bf16.gmra.mrb[0].mxu0 %v109
  %v293 = vpop.f32.mrb[0].mxu0
  %v294 = vadd.f32 %v64, %v293
  %v295 = vpop.f32.mrb[0].mxu0
  %v296 = vadd.f32 %v68, %v295
  %v297 = vpop.f32.mrb[0].mxu0
  %v298 = vadd.f32 %v64, %v297
  %v299 = vpop.f32.mrb[0].mxu0
  %v300 = vadd.f32 %v68, %v299
  %301 = vmatprep.mubr.bf16.mxu0 0
  %302 = vmatmul.mubr.bf16.gmra.mrb[0].mxu0 %v110
  %v303 = vpop.f32.mrb[0].mxu0
  %v304 = vadd.f32 %v64, %v303
  %v305 = vpop.f32.mrb[0].mxu0
  %v306 = vadd.f32 %v68, %v305
  %v307 = vpop.f32.mrb[0].mxu0
  %v308 = vadd.f32 %v64, %v307
  %v309 = vpop.f32.mrb[0].mxu0
  %v310 = vadd.f32 %v68, %v309
  %311 = vdwg.mxu0
  %v312 = vmax.f32 %v234, 0.0
  %v313 = vmax.f32 %v236, 0.0
  %v314 = vmax.f32 %v238, 0.0
  %v315 = vmax.f32 %v240, 0.0
  %v316 = vmax.f32 %v244, 0.0
  %v317 = vmax.f32 %v246, 0.0
  %v318 = vmax.f32 %v248, 0.0
  %v319 = vmax.f32 %v250, 0.0
  %v320 = vmax.f32 %v254, 0.0
  %v321 = vmax.f32 %v256, 0.0
  %v322 = vmax.f32 %v258, 0.0
  %v323 = vmax.f32 %v260, 0.0
  %v324 = vmax.f32 %v264, 0.0
  %v325 = vmax.f32 %v266, 0.0
  %v326 = vmax.f32 %v268, 0.0
  %v327 = vmax.f32 %v270, 0.0
  %v328 = vmax.f32 %v274, 0.0
  %v329 = vmax.f32 %v276, 0.0
  %v330 = vmax.f32 %v278, 0.0
  %v331 = vmax.f32 %v280, 0.0
  %v332 = vmax.f32 %v284, 0.0
  %v333 = vmax.f32 %v286, 0.0
  %v334 = vmax.f32 %v288, 0.0
  %v335 = vmax.f32 %v290, 0.0
  %v336 = vmax.f32 %v294, 0.0
  %v337 = vmax.f32 %v296, 0.0
  %v338 = vmax.f32 %v298, 0.0
  %v339 = vmax.f32 %v300, 0.0
  %v340 = vmax.f32 %v304, 0.0
  %v341 = vmax.f32 %v306, 0.0
  %v342 = vmax.f32 %v308, 0.0
  %v343 = vmax.f32 %v310, 0.0
  %v344 = vpack.c.bf16 %v314, %v312
  %v345 = vpack.c.bf16 %v315, %v313
  %v346 = vpack.c.bf16 %v318, %v316
  %v347 = vpack.c.bf16 %v319, %v317
  %v348 = vpack.c.bf16 %v322, %v320
  %v349 = vpack.c.bf16 %v323, %v321
  %v350 = vpack.c.bf16 %v326, %v324
  %v351 = vpack.c.bf16 %v327, %v325
  %v352 = vpack.c.bf16 %v330, %v328
  %v353 = vpack.c.bf16 %v331, %v329
  %v354 = vpack.c.bf16 %v334, %v332
  %v355 = vpack.c.bf16 %v335, %v333
  %v356 = vpack.c.bf16 %v338, %v336
  %v357 = vpack.c.bf16 %v339, %v337
  %v358 = vpack.c.bf16 %v342, %v340
  %v359 = vpack.c.bf16 %v343, %v341
  %v360 = vld [vmem:[%s3] sm:$0xf]
  %v361 = vld [vmem:[%s3 + $0x4] sm:$0xf]
  %v362 = vld [vmem:[%s3 + $0x8] sm:$0xf]
  %v363 = vld [vmem:[%s3 + $0xc] sm:$0xf]
  %v364 = vld [vmem:[%s3 + $0x10] sm:$0xf]
  %v365 = vld [vmem:[%s3 + $0x14] sm:$0xf]
  %v366 = vld [vmem:[%s3 + $0x18] sm:$0xf]
  %v367 = vld [vmem:[%s3 + $0x1c] sm:$0xf]
  %v368 = vld [vmem:[%s3 + $0x20] sm:$0xf]
  %v369 = vld [vmem:[%s3 + $0x24] sm:$0xf]
  %v370 = vld [vmem:[%s3 + $0x28] sm:$0xf]
  %v371 = vld [vmem:[%s3 + $0x2c] sm:$0xf]
  %v372 = vld [vmem:[%s3 + $0x30] sm:$0xf]
  %v373 = vld [vmem:[%s3 + $0x34] sm:$0xf]
  %v374 = vld [vmem:[%s3 + $0x38] sm:$0xf]
  %v375 = vld [vmem:[%s3 + $0x3c] sm:$0xf]
  %v376 = vld [vmem:[%s3 + $0x40] sm:$0xf]
  %v377 = vld [vmem:[%s3 + $0x44] sm:$0xf]
  %v378 = vld [vmem:[%s3 + $0x48] sm:$0xf]
  %v379 = vld [vmem:[%s3 + $0x4c] sm:$0xf]
  %v380 = vld [vmem:[%s3 + $0x50] sm:$0xf]
  %v381 = vld [vmem:[%s3 + $0x54] sm:$0xf]
  %v382 = vld [vmem:[%s3 + $0x58] sm:$0xf]
  %v383 = vld [vmem:[%s3 + $0x5c] sm:$0xf]
  %v384 = vld [vmem:[%s3 + $0x60] sm:$0xf]
  %v385 = vld [vmem:[%s3 + $0x64] sm:$0xf]
  %v386 = vld [vmem:[%s3 + $0x68] sm:$0xf]
  %v387 = vld [vmem:[%s3 + $0x6c] sm:$0xf]
  %v388 = vld [vmem:[%s3 + $0x70] sm:$0xf]
  %v389 = vld [vmem:[%s3 + $0x74] sm:$0xf]
  %v390 = vld [vmem:[%s3 + $0x78] sm:$0xf]
  %v391 = vld [vmem:[%s3 + $0x7c] sm:$0xf]
  %v392 = vld [vmem:[%s4] sm:$0x1]
  %v394 = vlaneseq
  %v395 = vshrl.u32 %v394, 7
  %v396 = vsub.s32 0, %v395
  %v397 = vrot.slane %v392, %v396
  %v431 = vunpack.c.l.b16 %v360
  %v432 = vunpack.c.l.b16 %v361
  %v433 = vunpack.c.l.b16 %v362
  %v434 = vunpack.c.l.b16 %v363
  %v435 = vunpack.c.l.b16 %v364
  %v436 = vunpack.c.l.b16 %v365
  %v437 = vunpack.c.l.b16 %v366
  %v438 = vunpack.c.l.b16 %v367
  %v439 = vunpack.c.l.b16 %v368
  %v440 = vunpack.c.l.b16 %v369
  %v441 = vunpack.c.l.b16 %v370
  %v442 = vunpack.c.l.b16 %v371
  %v443 = vunpack.c.l.b16 %v372
  %v444 = vunpack.c.l.b16 %v373
  %v445 = vunpack.c.l.b16 %v374
  %v446 = vunpack.c.l.b16 %v375
  %v447 = vunpack.c.l.b16 %v376
  %v448 = vunpack.c.l.b16 %v377
  %v449 = vunpack.c.l.b16 %v378
  %v450 = vunpack.c.l.b16 %v379
  %v451 = vunpack.c.l.b16 %v380
  %v452 = vunpack.c.l.b16 %v381
  %v453 = vunpack.c.l.b16 %v382
  %v454 = vunpack.c.l.b16 %v383
  %v455 = vunpack.c.l.b16 %v384
  %v456 = vunpack.c.l.b16 %v385
  %v457 = vunpack.c.l.b16 %v386
  %v458 = vunpack.c.l.b16 %v387
  %v459 = vunpack.c.l.b16 %v388
  %v460 = vunpack.c.l.b16 %v389
  %v461 = vunpack.c.l.b16 %v390
  %v462 = vunpack.c.l.b16 %v391
  %v463 = vpack.c.b16 %v432, %v431
  %v464 = vpack.c.b16 %v434, %v433
  %v465 = vpack.c.b16 %v436, %v435
  %v466 = vpack.c.b16 %v438, %v437
  %v467 = vpack.c.b16 %v440, %v439
  %v468 = vpack.c.b16 %v442, %v441
  %v469 = vpack.c.b16 %v444, %v443
  %v470 = vpack.c.b16 %v446, %v445
  %v471 = vpack.c.b16 %v448, %v447
  %v472 = vpack.c.b16 %v450, %v449
  %v473 = vpack.c.b16 %v452, %v451
  %v474 = vpack.c.b16 %v454, %v453
  %v475 = vpack.c.b16 %v456, %v455
  %v476 = vpack.c.b16 %v458, %v457
  %v477 = vpack.c.b16 %v460, %v459
  %v478 = vpack.c.b16 %v462, %v461
  %495 = vmatprep.subr.bf16.mxu0 0
  %496 = vmatpush1.bf16.msra.mxu0 %v463
  %497 = vmatprep.subr.bf16.mxu0 0
  %498 = vmatpush1.bf16.msra.mxu0 %v464
  %499 = vmatprep.subr.bf16.mxu0 0
  %500 = vmatpush1.bf16.msra.mxu0 %v465
  %501 = vmatprep.subr.bf16.mxu0 0
  %502 = vmatpush1.bf16.msra.mxu0 %v466
  %503 = vmatprep.subr.bf16.mxu0 0
  %504 = vmatpush1.bf16.msra.mxu0 %v467
  %505 = vmatprep.subr.bf16.mxu0 0
  %506 = vmatpush1.bf16.msra.mxu0 %v468
  %507 = vmatprep.subr.bf16.mxu0 0
  %508 = vmatpush1.bf16.msra.mxu0 %v469
  %509 = vmatprep.subr.bf16.mxu0 0
  %510 = vmatpush1.bf16.msra.mxu0 %v470
  %511 = vmatprep.subr.bf16.mxu0 0
  %512 = vmatpush1.bf16.msra.mxu0 %v471
  %513 = vmatprep.subr.bf16.mxu0 0
  %514 = vmatpush1.bf16.msra.mxu0 %v472
  %515 = vmatprep.subr.bf16.mxu0 0
  %516 = vmatpush1.bf16.msra.mxu0 %v473
  %517 = vmatprep.subr.bf16.mxu0 0
  %518 = vmatpush1.bf16.msra.mxu0 %v474
  %519 = vmatprep.subr.bf16.mxu0 0
  %520 = vmatpush1.bf16.msra.mxu0 %v475
  %521 = vmatprep.subr.bf16.mxu0 0
  %522 = vmatpush1.bf16.msra.mxu0 %v476
  %523 = vmatprep.subr.bf16.mxu0 0
  %524 = vmatpush1.bf16.msra.mxu0 %v477
  %525 = vmatprep.subr.bf16.mxu0 0
  %526 = vmatpush1.bf16.msra.mxu0 %v478
  %527 = vmatprep.mubr.bf16.mxu0 %v345
  %528 = vmatmul.mubr.bf16.gmra.mrb[0].mxu0 %v344
  %v529 = vpop.f32.mrb[0].mxu0
  %v530 = vadd.f32 %v397, %v529
  %v531 = vpop.f32.mrb[0].mxu0
  %v532 = vpop.f32.mrb[0].mxu0
  %v533 = vadd.f32 %v397, %v532
  %v534 = vpop.f32.mrb[0].mxu0
  %535 = vmatprep.mubr.bf16.mxu0 %v347
  %536 = vmatmul.mubr.bf16.gmra.mrb[0].mxu0 %v346
  %v537 = vpop.f32.mrb[0].mxu0
  %v538 = vadd.f32 %v397, %v537
  %v539 = vpop.f32.mrb[0].mxu0
  %v540 = vpop.f32.mrb[0].mxu0
  %v541 = vadd.f32 %v397, %v540
  %v542 = vpop.f32.mrb[0].mxu0
  %543 = vmatprep.mubr.bf16.mxu0 %v349
  %544 = vmatmul.mubr.bf16.gmra.mrb[0].mxu0 %v348
  %v545 = vpop.f32.mrb[0].mxu0
  %v546 = vadd.f32 %v397, %v545
  %v547 = vpop.f32.mrb[0].mxu0
  %v548 = vpop.f32.mrb[0].mxu0
  %v549 = vadd.f32 %v397, %v548
  %v550 = vpop.f32.mrb[0].mxu0
  %551 = vmatprep.mubr.bf16.mxu0 %v351
  %552 = vmatmul.mubr.bf16.gmra.mrb[0].mxu0 %v350
  %v553 = vpop.f32.mrb[0].mxu0
  %v554 = vadd.f32 %v397, %v553
  %v555 = vpop.f32.mrb[0].mxu0
  %v556 = vpop.f32.mrb[0].mxu0
  %v557 = vadd.f32 %v397, %v556
  %v558 = vpop.f32.mrb[0].mxu0
  %559 = vmatprep.mubr.bf16.mxu0 %v353
  %560 = vmatmul.mubr.bf16.gmra.mrb[0].mxu0 %v352
  %v561 = vpop.f32.mrb[0].mxu0
  %v562 = vadd.f32 %v397, %v561
  %v563 = vpop.f32.mrb[0].mxu0
  %v564 = vpop.f32.mrb[0].mxu0
  %v565 = vadd.f32 %v397, %v564
  %v566 = vpop.f32.mrb[0].mxu0
  %567 = vmatprep.mubr.bf16.mxu0 %v355
  %568 = vmatmul.mubr.bf16.gmra.mrb[0].mxu0 %v354
  %v569 = vpop.f32.mrb[0].mxu0
  %v570 = vadd.f32 %v397, %v569
  %v571 = vpop.f32.mrb[0].mxu0
  %v572 = vpop.f32.mrb[0].mxu0
  %v573 = vadd.f32 %v397, %v572
  %v574 = vpop.f32.mrb[0].mxu0
  %575 = vmatprep.mubr.bf16.mxu0 %v357
  %576 = vmatmul.mubr.bf16.gmra.mrb[0].mxu0 %v356
  %v577 = vpop.f32.mrb[0].mxu0
  %v578 = vadd.f32 %v397, %v577
  %v579 = vpop.f32.mrb[0].mxu0
  %v580 = vpop.f32.mrb[0].mxu0
  %v581 = vadd.f32 %v397, %v580
  %v582 = vpop.f32.mrb[0].mxu0
  %583 = vmatprep.mubr.bf16.mxu0 %v359
  %584 = vmatmul.mubr.bf16.gmra.mrb[0].mxu0 %v358
  %v585 = vpop.f32.mrb[0].mxu0
  %v586 = vadd.f32 %v397, %v585
  %v587 = vpop.f32.mrb[0].mxu0
  %v588 = vpop.f32.mrb[0].mxu0
  %v589 = vadd.f32 %v397, %v588
  %v590 = vpop.f32.mrb[0].mxu0
  %591 = vdwg.mxu0
  %v592 = vunpack.c.l.bf16 %v27
  %v593 = vunpack.c.l.bf16 %v28
  %v594 = vunpack.c.l.bf16 %v29
  %v595 = vunpack.c.l.bf16 %v30
  %v596 = vunpack.c.l.bf16 %v31
  %v597 = vunpack.c.l.bf16 %v32
  %v598 = vunpack.c.l.bf16 %v33
  %v599 = vunpack.c.l.bf16 %v34
  %v600 = vunpack.c.l.bf16 %v35
  %v601 = vunpack.c.l.bf16 %v36
  %v602 = vunpack.c.l.bf16 %v37
  %v603 = vunpack.c.l.bf16 %v38
  %v604 = vunpack.c.l.bf16 %v39
  %v605 = vunpack.c.l.bf16 %v40
  %v606 = vunpack.c.l.bf16 %v41
  %v607 = vunpack.c.l.bf16 %v42
  %v608 = vadd.f32 %v592, %v530
  %v609 = vadd.f32 %v593, %v533
  %v610 = vadd.f32 %v594, %v538
  %v611 = vadd.f32 %v595, %v541
  %v612 = vadd.f32 %v596, %v546
  %v613 = vadd.f32 %v597, %v549
  %v614 = vadd.f32 %v598, %v554
  %v615 = vadd.f32 %v599, %v557
  %v616 = vadd.f32 %v600, %v562
  %v617 = vadd.f32 %v601, %v565
  %v618 = vadd.f32 %v602, %v570
  %v619 = vadd.f32 %v603, %v573
  %v620 = vadd.f32 %v604, %v578
  %v621 = vadd.f32 %v605, %v581
  %v622 = vadd.f32 %v606, %v586
  %v623 = vadd.f32 %v607, %v589
  %v624 = vld [vmem:[%s5] sm:$0x1]
  %v625 = vld [vmem:[%s6] sm:$0x1]
  %626 = vadd.xlane.f32.xlu0 %v608
  %v627 = vpop.xlane.xlu0 %626
  %628 = vadd.xlane.f32.xlu0 %v609
  %v629 = vpop.xlane.xlu0 %628
  %630 = vadd.xlane.f32.xlu0 %v610
  %v631 = vpop.xlane.xlu0 %630
  %632 = vadd.xlane.f32.xlu0 %v611
  %v633 = vpop.xlane.xlu0 %632
  %634 = vadd.xlane.f32.xlu0 %v612
  %v635 = vpop.xlane.xlu0 %634
  %636 = vadd.xlane.f32.xlu0 %v613
  %v637 = vpop.xlane.xlu0 %636
  %638 = vadd.xlane.f32.xlu0 %v614
  %v639 = vpop.xlane.xlu0 %638
  %640 = vadd.xlane.f32.xlu0 %v615
  %v641 = vpop.xlane.xlu0 %640
  %642 = vadd.xlane.f32.xlu0 %v616
  %v643 = vpop.xlane.xlu0 %642
  %644 = vadd.xlane.f32.xlu0 %v617
  %v645 = vpop.xlane.xlu0 %644
  %646 = vadd.xlane.f32.xlu0 %v618
  %v647 = vpop.xlane.xlu0 %646
  %648 = vadd.xlane.f32.xlu0 %v619
  %v649 = vpop.xlane.xlu0 %648
  %650 = vadd.xlane.f32.xlu0 %v620
  %v651 = vpop.xlane.xlu0 %650
  %652 = vadd.xlane.f32.xlu0 %v621
  %v653 = vpop.xlane.xlu0 %652
  %654 = vadd.xlane.f32.xlu0 %v622
  %v655 = vpop.xlane.xlu0 %654
  %656 = vadd.xlane.f32.xlu0 %v623
  %v657 = vpop.xlane.xlu0 %656
  %v658 = vrcp.pop 128.0
  %v659 = vmul.f32 %v627, %v658
  %v660 = vmul.f32 %v629, %v658
  %v661 = vmul.f32 %v631, %v658
  %v662 = vmul.f32 %v633, %v658
  %v663 = vmul.f32 %v635, %v658
  %v664 = vmul.f32 %v637, %v658
  %v665 = vmul.f32 %v639, %v658
  %v666 = vmul.f32 %v641, %v658
  %v667 = vmul.f32 %v643, %v658
  %v668 = vmul.f32 %v645, %v658
  %v669 = vmul.f32 %v647, %v658
  %v670 = vmul.f32 %v649, %v658
  %v671 = vmul.f32 %v651, %v658
  %v672 = vmul.f32 %v653, %v658
  %v673 = vmul.f32 %v655, %v658
  %v674 = vmul.f32 %v657, %v658
  %v675 = vsub.f32 %v608, %v659
  %v676 = vsub.f32 %v609, %v660
  %v677 = vsub.f32 %v610, %v661
  %v678 = vsub.f32 %v611, %v662
  %v679 = vsub.f32 %v612, %v663
  %v680 = vsub.f32 %v613, %v664
  %v681 = vsub.f32 %v614, %v665
  %v682 = vsub.f32 %v615, %v666
  %v683 = vsub.f32 %v616, %v667
  %v684 = vsub.f32 %v617, %v668
  %v685 = vsub.f32 %v618, %v669
  %v686 = vsub.f32 %v619, %v670
  %v687 = vsub.f32 %v620, %v671
  %v688 = vsub.f32 %v621, %v672
  %v689 = vsub.f32 %v622, %v673
  %v690 = vsub.f32 %v623, %v674
  %v691 = vmul.f32 %v675, %v675
  %v692 = vmul.f32 %v676, %v676
  %v693 = vmul.f32 %v677, %v677
  %v694 = vmul.f32 %v678, %v678
  %v695 = vmul.f32 %v679, %v679
  %v696 = vmul.f32 %v680, %v680
  %v697 = vmul.f32 %v681, %v681
  %v698 = vmul.f32 %v682, %v682
  %v699 = vmul.f32 %v683, %v683
  %v700 = vmul.f32 %v684, %v684
  %v701 = vmul.f32 %v685, %v685
  %v702 = vmul.f32 %v686, %v686
  %v703 = vmul.f32 %v687, %v687
  %v704 = vmul.f32 %v688, %v688
  %v705 = vmul.f32 %v689, %v689
  %v706 = vmul.f32 %v690, %v690
  %707 = vadd.xlane.f32.xlu0 %v691
  %v708 = vpop.xlane.xlu0 %707
  %709 = vadd.xlane.f32.xlu0 %v692
  %v710 = vpop.xlane.xlu0 %709
  %711 = vadd.xlane.f32.xlu0 %v693
  %v712 = vpop.xlane.xlu0 %711
  %713 = vadd.xlane.f32.xlu0 %v694
  %v714 = vpop.xlane.xlu0 %713
  %715 = vadd.xlane.f32.xlu0 %v695
  %v716 = vpop.xlane.xlu0 %715
  %717 = vadd.xlane.f32.xlu0 %v696
  %v718 = vpop.xlane.xlu0 %717
  %719 = vadd.xlane.f32.xlu0 %v697
  %v720 = vpop.xlane.xlu0 %719
  %721 = vadd.xlane.f32.xlu0 %v698
  %v722 = vpop.xlane.xlu0 %721
  %723 = vadd.xlane.f32.xlu0 %v699
  %v724 = vpop.xlane.xlu0 %723
  %725 = vadd.xlane.f32.xlu0 %v700
  %v726 = vpop.xlane.xlu0 %725
  %727 = vadd.xlane.f32.xlu0 %v701
  %v728 = vpop.xlane.xlu0 %727
  %729 = vadd.xlane.f32.xlu0 %v702
  %v730 = vpop.xlane.xlu0 %729
  %731 = vadd.xlane.f32.xlu0 %v703
  %v732 = vpop.xlane.xlu0 %731
  %733 = vadd.xlane.f32.xlu0 %v704
  %v734 = vpop.xlane.xlu0 %733
  %735 = vadd.xlane.f32.xlu0 %v705
  %v736 = vpop.xlane.xlu0 %735
  %737 = vadd.xlane.f32.xlu0 %v706
  %v738 = vpop.xlane.xlu0 %737
  %v739 = vmul.f32 %v708, %v658
  %v740 = vmul.f32 %v710, %v658
  %v741 = vmul.f32 %v712, %v658
  %v742 = vmul.f32 %v714, %v658
  %v743 = vmul.f32 %v716, %v658
  %v744 = vmul.f32 %v718, %v658
  %v745 = vmul.f32 %v720, %v658
  %v746 = vmul.f32 %v722, %v658
  %v747 = vmul.f32 %v724, %v658
  %v748 = vmul.f32 %v726, %v658
  %v749 = vmul.f32 %v728, %v658
  %v750 = vmul.f32 %v730, %v658
  %v751 = vmul.f32 %v732, %v658
  %v752 = vmul.f32 %v734, %v658
  %v753 = vmul.f32 %v736, %v658
  %v754 = vmul.f32 %v738, %v658
  %v755 = vadd.f32 %v739, 1e-05
  %v756 = vadd.f32 %v740, 1e-05
  %v757 = vadd.f32 %v741, 1e-05
  %v758 = vadd.f32 %v742, 1e-05
  %v759 = vadd.f32 %v743, 1e-05
  %v760 = vadd.f32 %v744, 1e-05
  %v761 = vadd.f32 %v745, 1e-05
  %v762 = vadd.f32 %v746, 1e-05
  %v763 = vadd.f32 %v747, 1e-05
  %v764 = vadd.f32 %v748, 1e-05
  %v765 = vadd.f32 %v749, 1e-05
  %v766 = vadd.f32 %v750, 1e-05
  %v767 = vadd.f32 %v751, 1e-05
  %v768 = vadd.f32 %v752, 1e-05
  %v769 = vadd.f32 %v753, 1e-05
  %v770 = vadd.f32 %v754, 1e-05
  %v771 = vrsqrt.pop %v755
  %v772 = vrsqrt.pop %v756
  %v773 = vrsqrt.pop %v757
  %v774 = vrsqrt.pop %v758
  %v775 = vrsqrt.pop %v759
  %v776 = vrsqrt.pop %v760
  %v777 = vrsqrt.pop %v761
  %v778 = vrsqrt.pop %v762
  %v779 = vrsqrt.pop %v763
  %v780 = vrsqrt.pop %v764
  %v781 = vrsqrt.pop %v765
  %v782 = vrsqrt.pop %v766
  %v783 = vrsqrt.pop %v767
  %v784 = vrsqrt.pop %v768
  %v785 = vrsqrt.pop %v769
  %v786 = vrsqrt.pop %v770
  %v787 = vmul.f32 %v675, %v771
  %v788 = vmul.f32 %v676, %v772
  %v789 = vmul.f32 %v677, %v773
  %v790 = vmul.f32 %v678, %v774
  %v791 = vmul.f32 %v679, %v775
  %v792 = vmul.f32 %v680, %v776
  %v793 = vmul.f32 %v681, %v777
  %v794 = vmul.f32 %v682, %v778
  %v795 = vmul.f32 %v683, %v779
  %v796 = vmul.f32 %v684, %v780
  %v797 = vmul.f32 %v685, %v781
  %v798 = vmul.f32 %v686, %v782
  %v799 = vmul.f32 %v687, %v783
  %v800 = vmul.f32 %v688, %v784
  %v801 = vmul.f32 %v689, %v785
  %v802 = vmul.f32 %v690, %v786
  %v804 = vlaneseq
  %v805 = vshrl.u32 %v804, 7
  %v806 = vsub.s32 0, %v805
  %v807 = vrot.slane %v624, %v806
  %v809 = vmul.f32 %v787, %v807
  %v810 = vmul.f32 %v788, %v807
  %v811 = vmul.f32 %v789, %v807
  %v812 = vmul.f32 %v790, %v807
  %v813 = vmul.f32 %v791, %v807
  %v814 = vmul.f32 %v792, %v807
  %v815 = vmul.f32 %v793, %v807
  %v816 = vmul.f32 %v794, %v807
  %v817 = vmul.f32 %v795, %v807
  %v818 = vmul.f32 %v796, %v807
  %v819 = vmul.f32 %v797, %v807
  %v820 = vmul.f32 %v798, %v807
  %v821 = vmul.f32 %v799, %v807
  %v822 = vmul.f32 %v800, %v807
  %v823 = vmul.f32 %v801, %v807
  %v824 = vmul.f32 %v802, %v807
  %v826 = vlaneseq
  %v827 = vshrl.u32 %v826, 7
  %v828 = vsub.s32 0, %v827
  %v829 = vrot.slane %v625, %v828
  %v831 = vadd.f32 %v809, %v829
  %v832 = vadd.f32 %v810, %v829
  %v833 = vadd.f32 %v811, %v829
  %v834 = vadd.f32 %v812, %v829
  %v835 = vadd.f32 %v813, %v829
  %v836 = vadd.f32 %v814, %v829
  %v837 = vadd.f32 %v815, %v829
  %v838 = vadd.f32 %v816, %v829
  %v839 = vadd.f32 %v817, %v829
  %v840 = vadd.f32 %v818, %v829
  %v841 = vadd.f32 %v819, %v829
  %v842 = vadd.f32 %v820, %v829
  %v843 = vadd.f32 %v821, %v829
  %v844 = vadd.f32 %v822, %v829
  %v845 = vadd.f32 %v823, %v829
  %v846 = vadd.f32 %v824, %v829
  %v847 = vpack.c.bf16 %v832, %v831
  %v848 = vpack.c.bf16 %v834, %v833
  %v849 = vpack.c.bf16 %v836, %v835
  %v850 = vpack.c.bf16 %v838, %v837
  %v851 = vpack.c.bf16 %v840, %v839
  %v852 = vpack.c.bf16 %v842, %v841
  %v853 = vpack.c.bf16 %v844, %v843
  %v854 = vpack.c.bf16 %v846, %v845
  %v863 = vunpack.c.l.b16 %v847
  %v864 = vunpack.c.h.b16 %v847
  %v865 = vunpack.c.l.b16 %v848
  %v866 = vunpack.c.h.b16 %v848
  %v867 = vunpack.c.l.b16 %v849
  %v868 = vunpack.c.h.b16 %v849
  %v869 = vunpack.c.l.b16 %v850
  %v870 = vunpack.c.h.b16 %v850
  %v871 = vunpack.c.l.b16 %v851
  %v872 = vunpack.c.h.b16 %v851
  %v873 = vunpack.c.l.b16 %v852
  %v874 = vunpack.c.h.b16 %v852
  %v875 = vunpack.c.l.b16 %v853
  %v876 = vunpack.c.h.b16 %v853
  %v877 = vunpack.c.l.b16 %v854
  %v878 = vunpack.c.h.b16 %v854
  %v879 = vpack.c.b16 %v863, %v863
  %v880 = vpack.c.b16 %v864, %v864
  %v881 = vpack.c.b16 %v865, %v865
  %v882 = vpack.c.b16 %v866, %v866
  %v883 = vpack.c.b16 %v867, %v867
  %v884 = vpack.c.b16 %v868, %v868
  %v885 = vpack.c.b16 %v869, %v869
  %v886 = vpack.c.b16 %v870, %v870
  %v887 = vpack.c.b16 %v871, %v871
  %v888 = vpack.c.b16 %v872, %v872
  %v889 = vpack.c.b16 %v873, %v873
  %v890 = vpack.c.b16 %v874, %v874
  %v891 = vpack.c.b16 %v875, %v875
  %v892 = vpack.c.b16 %v876, %v876
  %v893 = vpack.c.b16 %v877, %v877
  %v894 = vpack.c.b16 %v878, %v878
  %911 = vst [vmem:[%s7] sm:$0xf] %v879
  %912 = vst [vmem:[%s7 + $0x4] sm:$0xf] %v880
  %913 = vst [vmem:[%s7 + $0x8] sm:$0xf] %v881
  %914 = vst [vmem:[%s7 + $0xc] sm:$0xf] %v882
  %915 = vst [vmem:[%s7 + $0x10] sm:$0xf] %v883
  %916 = vst [vmem:[%s7 + $0x14] sm:$0xf] %v884
  %917 = vst [vmem:[%s7 + $0x18] sm:$0xf] %v885
  %918 = vst [vmem:[%s7 + $0x1c] sm:$0xf] %v886
  %919 = vst [vmem:[%s7 + $0x20] sm:$0xf] %v887
  %920 = vst [vmem:[%s7 + $0x24] sm:$0xf] %v888
  %921 = vst [vmem:[%s7 + $0x28] sm:$0xf] %v889
  %922 = vst [vmem:[%s7 + $0x2c] sm:$0xf] %v890
  %923 = vst [vmem:[%s7 + $0x30] sm:$0xf] %v891
  %924 = vst [vmem:[%s7 + $0x34] sm:$0xf] %v892
  %925 = vst [vmem:[%s7 + $0x38] sm:$0xf] %v893
  %926 = vst [vmem:[%s7 + $0x3c] sm:$0xf] %v894
  // Predicated region
  $region30: #{_lambda_.8} parent=0 // pred_check
    _
  $region31: #{_lambda_.8} parent=0 // pred_check_branch
    %928 = sbr.rel (0) target = $region33
  $region32: #{_lambda_.8} parent=0 // pred_region
    _
  $region33: #{_lambda_.8} parent=0 // pred_fallthru
    _
  // Predicated region
  $region34: #{_lambda_.8} parent=0 // pred_check
    _
  $region35: #{_lambda_.8} parent=0 // pred_check_branch
    %930 = sbr.rel (0) target = $region37
  $region36: #{_lambda_.8} parent=0 // pred_region
    _
  $region37: #{_lambda_.8} parent=0 // pred_fallthru
    _

// kernel: _lambda_.9
$region0: #{_lambda_.9}
  #allocation0 [shape = 'u32[]', space=smem, size = 0x4, offset = 0x4, fixed_abs, tag = 'smem constant byte address 0x4 - core index']
  #allocation1 [shape = 'u32[144,128]{1,0:T(1,128)}', space=vmem, size = 0x12000, scoped, tag = 'internal scratch']
  %s0 = inlined_call_operand.vmem [shape: bf16[128,128], index: 0, kind: input, shape index: {}]
  %s1 = inlined_call_operand.vmem [shape: bf16[128,384], index: 1, kind: input, shape index: {}]
  %s2 = inlined_call_operand.vmem [shape: f32[1,384], index: 2, kind: input, shape index: {}]
  %s3 = inlined_call_operand.vmem [shape: bf16[128,128], index: 3, kind: output, shape index: {0}]
  %s4 = inlined_call_operand.vmem [shape: bf16[128,128], index: 4, kind: output, shape index: {1}]
  %s5 = inlined_call_operand.vmem [shape: bf16[128,128], index: 5, kind: output, shape index: {2}]
  %6 = xla_tuple %s3, %s4, %s5
  %s7 = sld [smem:[#allocation0]]
  $region38: #{_lambda_.9} parent=0
    _
  %s9 = ssub.s32 1, %s7
  %s10 = scalar_select 0, %s9, %s7
  // Predicated region
  $region2: #{_lambda_.9} parent=0 // pred_check
    _
  $region3: #{_lambda_.9} parent=0 // pred_check_branch
    %12 = sbr.rel (0) target = $region5
  $region4: #{_lambda_.9} parent=0 // pred_region
    _
  $region5: #{_lambda_.9} parent=0 // pred_fallthru
    _
  // Predicated region
  $region6: #{_lambda_.9} parent=0 // pred_check
    _
  $region7: #{_lambda_.9} parent=0 // pred_check_branch
    %14 = sbr.rel (0) target = $region9
  $region8: #{_lambda_.9} parent=0 // pred_region
    _
  $region9: #{_lambda_.9} parent=0 // pred_fallthru
    _
  // Predicated region
  $region10: #{_lambda_.9} parent=0 // pred_check
    _
  $region11: #{_lambda_.9} parent=0 // pred_check_branch
    %16 = sbr.rel (0) target = $region13
  $region12: #{_lambda_.9} parent=0 // pred_region
    _
  $region13: #{_lambda_.9} parent=0 // pred_fallthru
    _
  %v18 = vld [vmem:[%s0] sm:$0xf]
  %v19 = vld [vmem:[%s0 + $0x4] sm:$0xf]
  %v20 = vld [vmem:[%s0 + $0x8] sm:$0xf]
  %v21 = vld [vmem:[%s0 + $0xc] sm:$0xf]
  %v22 = vld [vmem:[%s0 + $0x10] sm:$0xf]
  %v23 = vld [vmem:[%s0 + $0x14] sm:$0xf]
  %v24 = vld [vmem:[%s0 + $0x18] sm:$0xf]
  %v25 = vld [vmem:[%s0 + $0x1c] sm:$0xf]
  %v26 = vld [vmem:[%s0 + $0x20] sm:$0xf]
  %v27 = vld [vmem:[%s0 + $0x24] sm:$0xf]
  %v28 = vld [vmem:[%s0 + $0x28] sm:$0xf]
  %v29 = vld [vmem:[%s0 + $0x2c] sm:$0xf]
  %v30 = vld [vmem:[%s0 + $0x30] sm:$0xf]
  %v31 = vld [vmem:[%s0 + $0x34] sm:$0xf]
  %v32 = vld [vmem:[%s0 + $0x38] sm:$0xf]
  %v33 = vld [vmem:[%s0 + $0x3c] sm:$0xf]
  %v34 = vld [vmem:[%s1] sm:$0xff]
  %v35 = vld [vmem:[%s1 + $0x8] sm:$0xf]
  %v36 = vld [vmem:[%s1 + $0xc] sm:$0xff]
  %v37 = vld [vmem:[%s1 + $0x14] sm:$0xf]
  %v38 = vld [vmem:[%s1 + $0x18] sm:$0xff]
  %v39 = vld [vmem:[%s1 + $0x20] sm:$0xf]
  %v40 = vld [vmem:[%s1 + $0x24] sm:$0xff]
  %v41 = vld [vmem:[%s1 + $0x2c] sm:$0xf]
  %v42 = vld [vmem:[%s1 + $0x30] sm:$0xff]
  %v43 = vld [vmem:[%s1 + $0x38] sm:$0xf]
  %v44 = vld [vmem:[%s1 + $0x3c] sm:$0xff]
  %v45 = vld [vmem:[%s1 + $0x44] sm:$0xf]
  %v46 = vld [vmem:[%s1 + $0x48] sm:$0xff]
  %v47 = vld [vmem:[%s1 + $0x50] sm:$0xf]
  %v48 = vld [vmem:[%s1 + $0x54] sm:$0xff]
  %v49 = vld [vmem:[%s1 + $0x5c] sm:$0xf]
  %v50 = vld [vmem:[%s1 + $0x60] sm:$0xff]
  %v51 = vld [vmem:[%s1 + $0x68] sm:$0xf]
  %v52 = vld [vmem:[%s1 + $0x6c] sm:$0xff]
  %v53 = vld [vmem:[%s1 + $0x74] sm:$0xf]
  %v54 = vld [vmem:[%s1 + $0x78] sm:$0xff]
  %v55 = vld [vmem:[%s1 + $0x80] sm:$0xf]
  %v56 = vld [vmem:[%s1 + $0x84] sm:$0xff]
  %v57 = vld [vmem:[%s1 + $0x8c] sm:$0xf]
  %v58 = vld [vmem:[%s1 + $0x90] sm:$0xff]
  %v59 = vld [vmem:[%s1 + $0x98] sm:$0xf]
  %v60 = vld [vmem:[%s1 + $0x9c] sm:$0xff]
  %v61 = vld [vmem:[%s1 + $0xa4] sm:$0xf]
  %v62 = vld [vmem:[%s1 + $0xa8] sm:$0xff]
  %v63 = vld [vmem:[%s1 + $0xb0] sm:$0xf]
  %v64 = vld [vmem:[%s1 + $0xb4] sm:$0xff]
  %v65 = vld [vmem:[%s1 + $0xbc] sm:$0xf]
  %v66 = vld [vmem:[%s2] sm:$0x7]
  %v68 = vlaneseq
  %v69 = vshrl.u32 %v68, 7
  %v70 = vsub.s32 0, %v69
  %v71 = vrot.slane %v66, %v70
  %v72 = vlaneseq
  %v73 = vshrl.u32 %v72, 7
  %v74 = vsub.s32 1, %v73
  %v75 = vrot.slane %v66, %v74
  %v76 = vlaneseq
  %v77 = vshrl.u32 %v76, 7
  %v78 = vsub.s32 2, %v77
  %v79 = vrot.slane %v66, %v78
  %v99 = vunpack.c.l.b16 %v18
  %v100 = vunpack.c.l.b16 %v19
  %v101 = vunpack.c.l.b16 %v20
  %v102 = vunpack.c.l.b16 %v21
  %v103 = vunpack.c.l.b16 %v22
  %v104 = vunpack.c.l.b16 %v23
  %v105 = vunpack.c.l.b16 %v24
  %v106 = vunpack.c.l.b16 %v25
  %v107 = vunpack.c.l.b16 %v26
  %v108 = vunpack.c.l.b16 %v27
  %v109 = vunpack.c.l.b16 %v28
  %v110 = vunpack.c.l.b16 %v29
  %v111 = vunpack.c.l.b16 %v30
  %v112 = vunpack.c.l.b16 %v31
  %v113 = vunpack.c.l.b16 %v32
  %v114 = vunpack.c.l.b16 %v33
  %v115 = vpack.c.b16 %v100, %v99
  %v116 = vpack.c.b16 %v102, %v101
  %v117 = vpack.c.b16 %v104, %v103
  %v118 = vpack.c.b16 %v106, %v105
  %v119 = vpack.c.b16 %v108, %v107
  %v120 = vpack.c.b16 %v110, %v109
  %v121 = vpack.c.b16 %v112, %v111
  %v122 = vpack.c.b16 %v114, %v113
  %v163 = vunpack.c.l.b16 %v34
  %v164 = vunpack.c.h.b16 %v34
  %v165 = vunpack.c.l.b16 %v35
  %v166 = vunpack.c.l.b16 %v36
  %v167 = vunpack.c.h.b16 %v36
  %v168 = vunpack.c.l.b16 %v37
  %v169 = vunpack.c.l.b16 %v38
  %v170 = vunpack.c.h.b16 %v38
  %v171 = vunpack.c.l.b16 %v39
  %v172 = vunpack.c.l.b16 %v40
  %v173 = vunpack.c.h.b16 %v40
  %v174 = vunpack.c.l.b16 %v41
  %v175 = vunpack.c.l.b16 %v42
  %v176 = vunpack.c.h.b16 %v42
  %v177 = vunpack.c.l.b16 %v43
  %v178 = vunpack.c.l.b16 %v44
  %v179 = vunpack.c.h.b16 %v44
  %v180 = vunpack.c.l.b16 %v45
  %v181 = vunpack.c.l.b16 %v46
  %v182 = vunpack.c.h.b16 %v46
  %v183 = vunpack.c.l.b16 %v47
  %v184 = vunpack.c.l.b16 %v48
  %v185 = vunpack.c.h.b16 %v48
  %v186 = vunpack.c.l.b16 %v49
  %v187 = vunpack.c.l.b16 %v50
  %v188 = vunpack.c.h.b16 %v50
  %v189 = vunpack.c.l.b16 %v51
  %v190 = vunpack.c.l.b16 %v52
  %v191 = vunpack.c.h.b16 %v52
  %v192 = vunpack.c.l.b16 %v53
  %v193 = vunpack.c.l.b16 %v54
  %v194 = vunpack.c.h.b16 %v54
  %v195 = vunpack.c.l.b16 %v55
  %v196 = vunpack.c.l.b16 %v56
  %v197 = vunpack.c.h.b16 %v56
  %v198 = vunpack.c.l.b16 %v57
  %v199 = vunpack.c.l.b16 %v58
  %v200 = vunpack.c.h.b16 %v58
  %v201 = vunpack.c.l.b16 %v59
  %v202 = vunpack.c.l.b16 %v60
  %v203 = vunpack.c.h.b16 %v60
  %v204 = vunpack.c.l.b16 %v61
  %v205 = vunpack.c.l.b16 %v62
  %v206 = vunpack.c.h.b16 %v62
  %v207 = vunpack.c.l.b16 %v63
  %v208 = vunpack.c.l.b16 %v64
  %v209 = vunpack.c.h.b16 %v64
  %v210 = vunpack.c.l.b16 %v65
  %v211 = vpack.c.b16 %v166, %v163
  %v212 = vpack.c.b16 %v167, %v164
  %v213 = vpack.c.b16 %v168, %v165
  %v214 = vpack.c.b16 %v172, %v169
  %v215 = vpack.c.b16 %v173, %v170
  %v216 = vpack.c.b16 %v174, %v171
  %v217 = vpack.c.b16 %v178, %v175
  %v218 = vpack.c.b16 %v179, %v176
  %v219 = vpack.c.b16 %v180, %v177
  %v220 = vpack.c.b16 %v184, %v181
  %v221 = vpack.c.b16 %v185, %v182
  %v222 = vpack.c.b16 %v186, %v183
  %v223 = vpack.c.b16 %v190, %v187
  %v224 = vpack.c.b16 %v191, %v188
  %v225 = vpack.c.b16 %v192, %v189
  %v226 = vpack.c.b16 %v196, %v193
  %v227 = vpack.c.b16 %v197, %v194
  %v228 = vpack.c.b16 %v198, %v195
  %v229 = vpack.c.b16 %v202, %v199
  %v230 = vpack.c.b16 %v203, %v200
  %v231 = vpack.c.b16 %v204, %v201
  %v232 = vpack.c.b16 %v208, %v205
  %v233 = vpack.c.b16 %v209, %v206
  %v234 = vpack.c.b16 %v210, %v207
  %259 = vmatprep.subr.bf16.mxu0 %v212
  %260 = vmatpush1.bf16.msra.mxu0 %v211
  %261 = vmatprep.subr.bf16.mxu0 %v215
  %262 = vmatpush1.bf16.msra.mxu0 %v214
  %263 = vmatprep.subr.bf16.mxu0 %v218
  %264 = vmatpush1.bf16.msra.mxu0 %v217
  %265 = vmatprep.subr.bf16.mxu0 %v221
  %266 = vmatpush1.bf16.msra.mxu0 %v220
  %267 = vmatprep.subr.bf16.mxu0 %v224
  %268 = vmatpush1.bf16.msra.mxu0 %v223
  %269 = vmatprep.subr.bf16.mxu0 %v227
  %270 = vmatpush1.bf16.msra.mxu0 %v226
  %271 = vmatprep.subr.bf16.mxu0 %v230
  %272 = vmatpush1.bf16.msra.mxu0 %v229
  %273 = vmatprep.subr.bf16.mxu0 %v233
  %274 = vmatpush1.bf16.msra.mxu0 %v232
  %275 = vmatprep.subr.bf16.mxu0 0
  %276 = vmatpush1.bf16.msra.mxu0 0
  %277 = vmatprep.subr.bf16.mxu0 0
  %278 = vmatpush1.bf16.msra.mxu0 0
  %279 = vmatprep.subr.bf16.mxu0 0
  %280 = vmatpush1.bf16.msra.mxu0 0
  %281 = vmatprep.subr.bf16.mxu0 0
  %282 = vmatpush1.bf16.msra.mxu0 0
  %283 = vmatprep.subr.bf16.mxu0 0
  %284 = vmatpush1.bf16.msra.mxu0 0
  %285 = vmatprep.subr.bf16.mxu0 0
  %286 = vmatpush1.bf16.msra.mxu0 0
  %287 = vmatprep.subr.bf16.mxu0 0
  %288 = vmatpush1.bf16.msra.mxu0 0
  %289 = vmatprep.subr.bf16.mxu0 0
  %290 = vmatpush1.bf16.msra.mxu0 0
  %291 = vmatprep.mubr.bf16.mxu0 0
  %292 = vmatmul.mubr.bf16.gmra.mrb[0].mxu0 %v115
  %v293 = vpop.f32.mrb[0].mxu0
  %v294 = vadd.f32 %v71, %v293
  %v295 = vpop.f32.mrb[0].mxu0
  %v296 = vadd.f32 %v75, %v295
  %v297 = vpop.f32.mrb[0].mxu0
  %v298 = vadd.f32 %v71, %v297
  %v299 = vpop.f32.mrb[0].mxu0
  %v300 = vadd.f32 %v75, %v299
  %301 = vmatprep.mubr.bf16.mxu0 0
  %302 = vmatmul.mubr.bf16.gmra.mrb[0].mxu0 %v116
  %v303 = vpop.f32.mrb[0].mxu0
  %v304 = vadd.f32 %v71, %v303
  %v305 = vpop.f32.mrb[0].mxu0
  %v306 = vadd.f32 %v75, %v305
  %v307 = vpop.f32.mrb[0].mxu0
  %v308 = vadd.f32 %v71, %v307
  %v309 = vpop.f32.mrb[0].mxu0
  %v310 = vadd.f32 %v75, %v309
  %311 = vmatprep.mubr.bf16.mxu0 0
  %312 = vmatmul.mubr.bf16.gmra.mrb[0].mxu0 %v117
  %v313 = vpop.f32.mrb[0].mxu0
  %v314 = vadd.f32 %v71, %v313
  %v315 = vpop.f32.mrb[0].mxu0
  %v316 = vadd.f32 %v75, %v315
  %v317 = vpop.f32.mrb[0].mxu0
  %v318 = vadd.f32 %v71, %v317
  %v319 = vpop.f32.mrb[0].mxu0
  %v320 = vadd.f32 %v75, %v319
  %321 = vmatprep.mubr.bf16.mxu0 0
  %322 = vmatmul.mubr.bf16.gmra.mrb[0].mxu0 %v118
  %v323 = vpop.f32.mrb[0].mxu0
  %v324 = vadd.f32 %v71, %v323
  %v325 = vpop.f32.mrb[0].mxu0
  %v326 = vadd.f32 %v75, %v325
  %v327 = vpop.f32.mrb[0].mxu0
  %v328 = vadd.f32 %v71, %v327
  %v329 = vpop.f32.mrb[0].mxu0
  %v330 = vadd.f32 %v75, %v329
  %331 = vmatprep.mubr.bf16.mxu0 0
  %332 = vmatmul.mubr.bf16.gmra.mrb[0].mxu0 %v119
  %v333 = vpop.f32.mrb[0].mxu0
  %v334 = vadd.f32 %v71, %v333
  %v335 = vpop.f32.mrb[0].mxu0
  %v336 = vadd.f32 %v75, %v335
  %v337 = vpop.f32.mrb[0].mxu0
  %v338 = vadd.f32 %v71, %v337
  %v339 = vpop.f32.mrb[0].mxu0
  %v340 = vadd.f32 %v75, %v339
  %341 = vmatprep.mubr.bf16.mxu0 0
  %342 = vmatmul.mubr.bf16.gmra.mrb[0].mxu0 %v120
  %v343 = vpop.f32.mrb[0].mxu0
  %v344 = vadd.f32 %v71, %v343
  %v345 = vpop.f32.mrb[0].mxu0
  %v346 = vadd.f32 %v75, %v345
  %v347 = vpop.f32.mrb[0].mxu0
  %v348 = vadd.f32 %v71, %v347
  %v349 = vpop.f32.mrb[0].mxu0
  %v350 = vadd.f32 %v75, %v349
  %351 = vmatprep.mubr.bf16.mxu0 0
  %352 = vmatmul.mubr.bf16.gmra.mrb[0].mxu0 %v121
  %v353 = vpop.f32.mrb[0].mxu0
  %v354 = vadd.f32 %v71, %v353
  %v355 = vpop.f32.mrb[0].mxu0
  %v356 = vadd.f32 %v75, %v355
  %v357 = vpop.f32.mrb[0].mxu0
  %v358 = vadd.f32 %v71, %v357
  %v359 = vpop.f32.mrb[0].mxu0
  %v360 = vadd.f32 %v75, %v359
  %361 = vmatprep.mubr.bf16.mxu0 0
  %362 = vmatmul.mubr.bf16.gmra.mrb[0].mxu0 %v122
  %v363 = vpop.f32.mrb[0].mxu0
  %v364 = vadd.f32 %v71, %v363
  %v365 = vpop.f32.mrb[0].mxu0
  %v366 = vadd.f32 %v75, %v365
  %v367 = vpop.f32.mrb[0].mxu0
  %v368 = vadd.f32 %v71, %v367
  %v369 = vpop.f32.mrb[0].mxu0
  %v370 = vadd.f32 %v75, %v369
  %371 = vdwg.mxu0
  %372 = vmatprep.subr.bf16.mxu0 0
  %373 = vmatpush1.bf16.msra.mxu0 %v213
  %374 = vmatprep.subr.bf16.mxu0 0
  %375 = vmatpush1.bf16.msra.mxu0 %v216
  %376 = vmatprep.subr.bf16.mxu0 0
  %377 = vmatpush1.bf16.msra.mxu0 %v219
  %378 = vmatprep.subr.bf16.mxu0 0
  %379 = vmatpush1.bf16.msra.mxu0 %v222
  %380 = vmatprep.subr.bf16.mxu0 0
  %381 = vmatpush1.bf16.msra.mxu0 %v225
  %382 = vmatprep.subr.bf16.mxu0 0
  %383 = vmatpush1.bf16.msra.mxu0 %v228
  %384 = vmatprep.subr.bf16.mxu0 0
  %385 = vmatpush1.bf16.msra.mxu0 %v231
  %386 = vmatprep.subr.bf16.mxu0 0
  %387 = vmatpush1.bf16.msra.mxu0 %v234
  %388 = vmatprep.subr.bf16.mxu0 0
  %389 = vmatpush1.bf16.msra.mxu0 0
  %390 = vmatprep.subr.bf16.mxu0 0
  %391 = vmatpush1.bf16.msra.mxu0 0
  %392 = vmatprep.subr.bf16.mxu0 0
  %393 = vmatpush1.bf16.msra.mxu0 0
  %394 = vmatprep.subr.bf16.mxu0 0
  %395 = vmatpush1.bf16.msra.mxu0 0
  %396 = vmatprep.subr.bf16.mxu0 0
  %397 = vmatpush1.bf16.msra.mxu0 0
  %398 = vmatprep.subr.bf16.mxu0 0
  %399 = vmatpush1.bf16.msra.mxu0 0
  %400 = vmatprep.subr.bf16.mxu0 0
  %401 = vmatpush1.bf16.msra.mxu0 0
  %402 = vmatprep.subr.bf16.mxu0 0
  %403 = vmatpush1.bf16.msra.mxu0 0
  %404 = vmatprep.mubr.bf16.mxu0 0
  %405 = vmatmul.mubr.bf16.gmra.mrb[0].mxu0 %v115
  %v406 = vpop.f32.mrb[0].mxu0
  %v407 = vadd.f32 %v79, %v406
  %v408 = vpop.f32.mrb[0].mxu0
  %v409 = vpop.f32.mrb[0].mxu0
  %v410 = vadd.f32 %v79, %v409
  %v411 = vpop.f32.mrb[0].mxu0
  %412 = vmatprep.mubr.bf16.mxu0 0
  %413 = vmatmul.mubr.bf16.gmra.mrb[0].mxu0 %v116
  %v414 = vpop.f32.mrb[0].mxu0
  %v415 = vadd.f32 %v79, %v414
  %v416 = vpop.f32.mrb[0].mxu0
  %v417 = vpop.f32.mrb[0].mxu0
  %v418 = vadd.f32 %v79, %v417
  %v419 = vpop.f32.mrb[0].mxu0
  %420 = vmatprep.mubr.bf16.mxu0 0
  %421 = vmatmul.mubr.bf16.gmra.mrb[0].mxu0 %v117
  %v422 = vpop.f32.mrb[0].mxu0
  %v423 = vadd.f32 %v79, %v422
  %v424 = vpop.f32.mrb[0].mxu0
  %v425 = vpop.f32.mrb[0].mxu0
  %v426 = vadd.f32 %v79, %v425
  %v427 = vpop.f32.mrb[0].mxu0
  %428 = vmatprep.mubr.bf16.mxu0 0
  %429 = vmatmul.mubr.bf16.gmra.mrb[0].mxu0 %v118
  %v430 = vpop.f32.mrb[0].mxu0
  %v431 = vadd.f32 %v79, %v430
  %v432 = vpop.f32.mrb[0].mxu0
  %v433 = vpop.f32.mrb[0].mxu0
  %v434 = vadd.f32 %v79, %v433
  %v435 = vpop.f32.mrb[0].mxu0
  %436 = vmatprep.mubr.bf16.mxu0 0
  %437 = vmatmul.mubr.bf16.gmra.mrb[0].mxu0 %v119
  %v438 = vpop.f32.mrb[0].mxu0
  %v439 = vadd.f32 %v79, %v438
  %v440 = vpop.f32.mrb[0].mxu0
  %v441 = vpop.f32.mrb[0].mxu0
  %v442 = vadd.f32 %v79, %v441
  %v443 = vpop.f32.mrb[0].mxu0
  %444 = vmatprep.mubr.bf16.mxu0 0
  %445 = vmatmul.mubr.bf16.gmra.mrb[0].mxu0 %v120
  %v446 = vpop.f32.mrb[0].mxu0
  %v447 = vadd.f32 %v79, %v446
  %v448 = vpop.f32.mrb[0].mxu0
  %v449 = vpop.f32.mrb[0].mxu0
  %v450 = vadd.f32 %v79, %v449
  %v451 = vpop.f32.mrb[0].mxu0
  %452 = vmatprep.mubr.bf16.mxu0 0
  %453 = vmatmul.mubr.bf16.gmra.mrb[0].mxu0 %v121
  %v454 = vpop.f32.mrb[0].mxu0
  %v455 = vadd.f32 %v79, %v454
  %v456 = vpop.f32.mrb[0].mxu0
  %v457 = vpop.f32.mrb[0].mxu0
  %v458 = vadd.f32 %v79, %v457
  %v459 = vpop.f32.mrb[0].mxu0
  %460 = vmatprep.mubr.bf16.mxu0 0
  %461 = vmatmul.mubr.bf16.gmra.mrb[0].mxu0 %v122
  %v462 = vpop.f32.mrb[0].mxu0
  %v463 = vadd.f32 %v79, %v462
  %v464 = vpop.f32.mrb[0].mxu0
  %v465 = vpop.f32.mrb[0].mxu0
  %v466 = vadd.f32 %v79, %v465
  %v467 = vpop.f32.mrb[0].mxu0
  %468 = vdwg.mxu0
  %v469 = vpack.c.bf16 %v298, %v294
  %v470 = vpack.c.bf16 %v308, %v304
  %v471 = vpack.c.bf16 %v318, %v314
  %v472 = vpack.c.bf16 %v328, %v324
  %v473 = vpack.c.bf16 %v338, %v334
  %v474 = vpack.c.bf16 %v348, %v344
  %v475 = vpack.c.bf16 %v358, %v354
  %v476 = vpack.c.bf16 %v368, %v364
  %v485 = vunpack.c.l.b16 %v469
  %v486 = vunpack.c.h.b16 %v469
  %v487 = vunpack.c.l.b16 %v470
  %v488 = vunpack.c.h.b16 %v470
  %v489 = vunpack.c.l.b16 %v471
  %v490 = vunpack.c.h.b16 %v471
  %v491 = vunpack.c.l.b16 %v472
  %v492 = vunpack.c.h.b16 %v472
  %v493 = vunpack.c.l.b16 %v473
  %v494 = vunpack.c.h.b16 %v473
  %v495 = vunpack.c.l.b16 %v474
  %v496 = vunpack.c.h.b16 %v474
  %v497 = vunpack.c.l.b16 %v475
  %v498 = vunpack.c.h.b16 %v475
  %v499 = vunpack.c.l.b16 %v476
  %v500 = vunpack.c.h.b16 %v476
  %v501 = vpack.c.b16 %v485, %v485
  %v502 = vpack.c.b16 %v486, %v486
  %v503 = vpack.c.b16 %v487, %v487
  %v504 = vpack.c.b16 %v488, %v488
  %v505 = vpack.c.b16 %v489, %v489
  %v506 = vpack.c.b16 %v490, %v490
  %v507 = vpack.c.b16 %v491, %v491
  %v508 = vpack.c.b16 %v492, %v492
  %v509 = vpack.c.b16 %v493, %v493
  %v510 = vpack.c.b16 %v494, %v494
  %v511 = vpack.c.b16 %v495, %v495
  %v512 = vpack.c.b16 %v496, %v496
  %v513 = vpack.c.b16 %v497, %v497
  %v514 = vpack.c.b16 %v498, %v498
  %v515 = vpack.c.b16 %v499, %v499
  %v516 = vpack.c.b16 %v500, %v500
  %533 = vst [vmem:[%s3] sm:$0xf] %v501
  %534 = vst [vmem:[%s3 + $0x4] sm:$0xf] %v502
  %535 = vst [vmem:[%s3 + $0x8] sm:$0xf] %v503
  %536 = vst [vmem:[%s3 + $0xc] sm:$0xf] %v504
  %537 = vst [vmem:[%s3 + $0x10] sm:$0xf] %v505
  %538 = vst [vmem:[%s3 + $0x14] sm:$0xf] %v506
  %539 = vst [vmem:[%s3 + $0x18] sm:$0xf] %v507
  %540 = vst [vmem:[%s3 + $0x1c] sm:$0xf] %v508
  %541 = vst [vmem:[%s3 + $0x20] sm:$0xf] %v509
  %542 = vst [vmem:[%s3 + $0x24] sm:$0xf] %v510
  %543 = vst [vmem:[%s3 + $0x28] sm:$0xf] %v511
  %544 = vst [vmem:[%s3 + $0x2c] sm:$0xf] %v512
  %545 = vst [vmem:[%s3 + $0x30] sm:$0xf] %v513
  %546 = vst [vmem:[%s3 + $0x34] sm:$0xf] %v514
  %547 = vst [vmem:[%s3 + $0x38] sm:$0xf] %v515
  %548 = vst [vmem:[%s3 + $0x3c] sm:$0xf] %v516
  %v549 = vpack.c.bf16 %v300, %v296
  %v550 = vpack.c.bf16 %v310, %v306
  %v551 = vpack.c.bf16 %v320, %v316
  %v552 = vpack.c.bf16 %v330, %v326
  %v553 = vpack.c.bf16 %v340, %v336
  %v554 = vpack.c.bf16 %v350, %v346
  %v555 = vpack.c.bf16 %v360, %v356
  %v556 = vpack.c.bf16 %v370, %v366
  %v565 = vunpack.c.l.b16 %v549
  %v566 = vunpack.c.h.b16 %v549
  %v567 = vunpack.c.l.b16 %v550
  %v568 = vunpack.c.h.b16 %v550
  %v569 = vunpack.c.l.b16 %v551
  %v570 = vunpack.c.h.b16 %v551
  %v571 = vunpack.c.l.b16 %v552
  %v572 = vunpack.c.h.b16 %v552
  %v573 = vunpack.c.l.b16 %v553
  %v574 = vunpack.c.h.b16 %v553
  %v575 = vunpack.c.l.b16 %v554
  %v576 = vunpack.c.h.b16 %v554
  %v577 = vunpack.c.l.b16 %v555
  %v578 = vunpack.c.h.b16 %v555
  %v579 = vunpack.c.l.b16 %v556
  %v580 = vunpack.c.h.b16 %v556
  %v581 = vpack.c.b16 %v565, %v565
  %v582 = vpack.c.b16 %v566, %v566
  %v583 = vpack.c.b16 %v567, %v567
  %v584 = vpack.c.b16 %v568, %v568
  %v585 = vpack.c.b16 %v569, %v569
  %v586 = vpack.c.b16 %v570, %v570
  %v587 = vpack.c.b16 %v571, %v571
  %v588 = vpack.c.b16 %v572, %v572
  %v589 = vpack.c.b16 %v573, %v573
  %v590 = vpack.c.b16 %v574, %v574
  %v591 = vpack.c.b16 %v575, %v575
  %v592 = vpack.c.b16 %v576, %v576
  %v593 = vpack.c.b16 %v577, %v577
  %v594 = vpack.c.b16 %v578, %v578
  %v595 = vpack.c.b16 %v579, %v579
  %v596 = vpack.c.b16 %v580, %v580
  %613 = vst [vmem:[%s4] sm:$0xf] %v581
  %614 = vst [vmem:[%s4 + $0x4] sm:$0xf] %v582
  %615 = vst [vmem:[%s4 + $0x8] sm:$0xf] %v583
  %616 = vst [vmem:[%s4 + $0xc] sm:$0xf] %v584
  %617 = vst [vmem:[%s4 + $0x10] sm:$0xf] %v585
  %618 = vst [vmem:[%s4 + $0x14] sm:$0xf] %v586
  %619 = vst [vmem:[%s4 + $0x18] sm:$0xf] %v587
  %620 = vst [vmem:[%s4 + $0x1c] sm:$0xf] %v588
  %621 = vst [vmem:[%s4 + $0x20] sm:$0xf] %v589
  %622 = vst [vmem:[%s4 + $0x24] sm:$0xf] %v590
  %623 = vst [vmem:[%s4 + $0x28] sm:$0xf] %v591
  %624 = vst [vmem:[%s4 + $0x2c] sm:$0xf] %v592
  %625 = vst [vmem:[%s4 + $0x30] sm:$0xf] %v593
  %626 = vst [vmem:[%s4 + $0x34] sm:$0xf] %v594
  %627 = vst [vmem:[%s4 + $0x38] sm:$0xf] %v595
  %628 = vst [vmem:[%s4 + $0x3c] sm:$0xf] %v596
  %v629 = vpack.c.bf16 %v410, %v407
  %v630 = vpack.c.bf16 %v418, %v415
  %v631 = vpack.c.bf16 %v426, %v423
  %v632 = vpack.c.bf16 %v434, %v431
  %v633 = vpack.c.bf16 %v442, %v439
  %v634 = vpack.c.bf16 %v450, %v447
  %v635 = vpack.c.bf16 %v458, %v455
  %v636 = vpack.c.bf16 %v466, %v463
  %v645 = vunpack.c.l.b16 %v629
  %v646 = vunpack.c.h.b16 %v629
  %v647 = vunpack.c.l.b16 %v630
  %v648 = vunpack.c.h.b16 %v630
  %v649 = vunpack.c.l.b16 %v631
  %v650 = vunpack.c.h.b16 %v631
  %v651 = vunpack.c.l.b16 %v632
  %v652 = vunpack.c.h.b16 %v632
  %v653 = vunpack.c.l.b16 %v633
  %v654 = vunpack.c.h.b16 %v633
  %v655 = vunpack.c.l.b16 %v634
  %v656 = vunpack.c.h.b16 %v634
  %v657 = vunpack.c.l.b16 %v635
  %v658 = vunpack.c.h.b16 %v635
  %v659 = vunpack.c.l.b16 %v636
  %v660 = vunpack.c.h.b16 %v636
  %v661 = vpack.c.b16 %v645, %v645
  %v662 = vpack.c.b16 %v646, %v646
  %v663 = vpack.c.b16 %v647, %v647
  %v664 = vpack.c.b16 %v648, %v648
  %v665 = vpack.c.b16 %v649, %v649
  %v666 = vpack.c.b16 %v650, %v650
  %v667 = vpack.c.b16 %v651, %v651
  %v668 = vpack.c.b16 %v652, %v652
  %v669 = vpack.c.b16 %v653, %v653
  %v670 = vpack.c.b16 %v654, %v654
  %v671 = vpack.c.b16 %v655, %v655
  %v672 = vpack.c.b16 %v656, %v656
  %v673 = vpack.c.b16 %v657, %v657
  %v674 = vpack.c.b16 %v658, %v658
  %v675 = vpack.c.b16 %v659, %v659
  %v676 = vpack.c.b16 %v660, %v660
  %693 = vst [vmem:[%s5] sm:$0xf] %v661
  %694 = vst [vmem:[%s5 + $0x4] sm:$0xf] %v662
  %695 = vst [vmem:[%s5 + $0x8] sm:$0xf] %v663
  %696 = vst [vmem:[%s5 + $0xc] sm:$0xf] %v664
  %697 = vst [vmem:[%s5 + $0x10] sm:$0xf] %v665
  %698 = vst [vmem:[%s5 + $0x14] sm:$0xf] %v666
  %699 = vst [vmem:[%s5 + $0x18] sm:$0xf] %v667
  %700 = vst [vmem:[%s5 + $0x1c] sm:$0xf] %v668
  %701 = vst [vmem:[%s5 + $0x20] sm:$0xf] %v669
  %702 = vst [vmem:[%s5 + $0x24] sm:$0xf] %v670
  %703 = vst [vmem:[%s5 + $0x28] sm:$0xf] %v671
  %704 = vst [vmem:[%s5 + $0x2c] sm:$0xf] %v672
  %705 = vst [vmem:[%s5 + $0x30] sm:$0xf] %v673
  %706 = vst [vmem:[%s5 + $0x34] sm:$0xf] %v674
  %707 = vst [vmem:[%s5 + $0x38] sm:$0xf] %v675
  %708 = vst [vmem:[%s5 + $0x3c] sm:$0xf] %v676
  // Predicated region
  $region14: #{_lambda_.9} parent=0 // pred_check
    _
  $region15: #{_lambda_.9} parent=0 // pred_check_branch
    %710 = sbr.rel (0) target = $region17
  $region16: #{_lambda_.9} parent=0 // pred_region
    _
  $region17: #{_lambda_.9} parent=0 // pred_fallthru
    _
  // Predicated region
  $region18: #{_lambda_.9} parent=0 // pred_check
    _
  $region19: #{_lambda_.9} parent=0 // pred_check_branch
    %712 = sbr.rel (0) target = $region21
  $region20: #{_lambda_.9} parent=0 // pred_region
    _
  $region21: #{_lambda_.9} parent=0 // pred_fallthru
    _
  // Predicated region
  $region22: #{_lambda_.9} parent=0 // pred_check
    _
  $region23: #{_lambda_.9} parent=0 // pred_check_branch
    %714 = sbr.rel (0) target = $region25
  $region24: #{_lambda_.9} parent=0 // pred_region
    _
  $region25: #{_lambda_.9} parent=0 // pred_fallthru
    _
  // Predicated region
  $region26: #{_lambda_.9} parent=0 // pred_check
    _
  $region27: #{_lambda_.9} parent=0 // pred_check_branch
    %716 = sbr.rel (0) target = $region29
  $region28: #{_lambda_.9} parent=0 // pred_region
    _
  $region29: #{_lambda_.9} parent=0 // pred_fallthru
    _
  // Predicated region
  $region30: #{_lambda_.9} parent=0 // pred_check
    _
  $region31: #{_lambda_.9} parent=0 // pred_check_branch
    %718 = sbr.rel (0) target = $region33
  $region32: #{_lambda_.9} parent=0 // pred_region
    _
  $region33: #{_lambda_.9} parent=0 // pred_fallthru
    _
  // Predicated region
  $region34: #{_lambda_.9} parent=0 // pred_check
    _
  $region35: #{_lambda_.9} parent=0 // pred_check_branch
    %720 = sbr.rel (0) target = $region37
  $region36: #{_lambda_.9} parent=0 // pred_region
    _
  $region37: #{_lambda_.9} parent=0 // pred_fallthru
    _

// kernel: _lambda_.7
$region0: #{_lambda_.7}
  #allocation0 [shape = 'u32[]', space=smem, size = 0x4, offset = 0x4, fixed_abs, tag = 'smem constant byte address 0x4 - core index']
  #allocation1 [shape = 'u32[144,128]{1,0:T(1,128)}', space=vmem, size = 0x12000, scoped, tag = 'internal scratch']
  #allocation2 [shape = 'bf16[64,128]{1,0:T(16,128)(2,1)}', space=vmem, size = 0x4000, scoped, tag = 'scratch operand']
  %s0 = inlined_call_operand.vmem [shape: bf16[2,64,128], index: 0, kind: input, shape index: {}]
  %s1 = inlined_call_operand.vmem [shape: bf16[2,64,128], index: 1, kind: input, shape index: {}]
  %s2 = inlined_call_operand.vmem [shape: bf16[2,64,128], index: 2, kind: input, shape index: {}]
  %s3 = inlined_call_operand.vmem [shape: f32[2,64,128], index: 3, kind: input, shape index: {}]
  %s4 = inlined_call_operand.vmem [shape: bf16[128,128], index: 4, kind: input, shape index: {}]
  %s5 = inlined_call_operand.vmem [shape: f32[1,128], index: 5, kind: input, shape index: {}]
  %s6 = inlined_call_operand.vmem [shape: f32[1,128], index: 6, kind: input, shape index: {}]
  %s7 = inlined_call_operand.vmem [shape: f32[1,128], index: 7, kind: input, shape index: {}]
  %s8 = inlined_call_operand.vmem [shape: bf16[2,64,128], index: 8, kind: output, shape index: {}]
  %s9 = sld [smem:[#allocation0]]
  $region65: #{_lambda_.7} parent=0
    _
  %s11 = ssub.s32 1, %s9
  %s12 = scalar_select 0, %s11, %s9
  loop: start=0, step=1, limit=4
  $region2: #{_lambda_.7} parent=0 // loop_pre_header
    _
  $region3: #{_lambda_.7} parent=0 // loop_header
    %s14 = sphi 0, %s18
    %p15 = scmp.ge.s32.totalorder %s14, 4
    %s21 = sphi 0, %s33
    %s22 = sphi 0, %s29
    %s23 = sphi 0, %s21
    %s24 = sphi 0, %s22
    %s25 = sphi 0, %s23
    %s26 = sphi 0, %s24
    %s38 = sphi 0, %s40
    %s41 = sphi 0, %s38
    %s42 = sphi 0, %s41
    %s58 = sphi 0, %s42
    %s64 = sphi 0, %s66
    %s67 = sphi 0, %s64
    %s68 = sphi 0, %s67
    %s84 = sphi 0, %s68
    %s90 = sphi 0, %s92
    %s93 = sphi 0, %s90
    %s94 = sphi 0, %s93
    %s110 = sphi 0, %s94
    %s118 = sphi 0, %s120
    %s121 = sphi 0, %s118
    %s122 = sphi 0, %s121
    %s138 = sphi 0, %s122
    %s142 = sphi 0, %s142
    %s144 = sphi 0, %s142
    %s145 = sphi 0, %s144
    %s159 = sphi 0, %s145
    %s163 = sphi 0, %s163
    %s165 = sphi 0, %s163
    %s166 = sphi 0, %s165
    %s180 = sphi 0, %s166
    %s184 = sphi 0, %s184
    %s186 = sphi 0, %s184
    %s187 = sphi 0, %s186
    %s201 = sphi 0, %s187
    %s205 = sphi 0, %s205
    %s207 = sphi 0, %s205
    %s208 = sphi 0, %s207
    %s222 = sphi 0, %s208
    %s230 = sphi 0, %s232
    %s233 = sphi 0, %s230
    %s234 = sphi 0, %s233
    %s250 = sphi 0, %s234
  $region4: #{_lambda_.7} parent=0 // loop_header_branch
    %17 = sbr.rel (%p15) target = $region8
  $region5: #{_lambda_.7} parent=0 // loop_body
    %s19 = ssub.s32 %s14, 1
    %s20 = ssub.s32 %s14, 2
    %s27 = sadd.s32 1, %s22
    %p28 = scmp.ge.s32.totalorder %s27, 1
    %s29 = scalar_select %p28, 0, %s27
    %s30 = sadd.s32 1, %s21
    %s31 = scalar_select %p28, %s30, %s21
    %p32 = scmp.ge.s32.totalorder %s31, 2
    %s33 = scalar_select %p32, 0, %s31
    %s34 = ssub.s32 %s21, %s33
    %s35 = ssub.s32 %s22, %s29
    %s36 = sor.u32 %s34, %s35
    %p37 = scmp.eq.s32.totalorder %s36, 0
    %s39 = sadd.s32 %s38, 1
    %s40 = scalar_select %p37, %s38, %s39
    %p43 = pneg %p37
    %p44 = scmp.eq.s32.totalorder %s14, 1
    %p45 = por %p43, %p44
    %p46 = scmp.ne.s32.totalorder %s38, %s41
    %p47 = scmp.eq.s32.totalorder %s14, 0
    %p48 = por %p46, %p47
    %p49 = scmp.ne.s32.totalorder %s38, %s41
    %p50 = scmp.eq.s32.totalorder %s19, 1
    %p51 = por %p49, %p50
    %p52 = scmp.ne.s32.totalorder %s41, %s42
    %p53 = scmp.eq.s32.totalorder %s19, 0
    %p54 = por %p52, %p53
    %p55 = scmp.ne.s32.totalorder %s41, %s42
    %p56 = scmp.eq.s32.totalorder %s20, 1
    %p57 = por %p55, %p56
    %p59 = scmp.ne.s32.totalorder %s42, %s58
    %p60 = scmp.eq.s32.totalorder %s20, 0
    %p61 = por %p59, %p60
    %s62 = ssub.s32 %s21, %s33
    %p63 = scmp.eq.s32.totalorder %s62, 0
    %s65 = sadd.s32 %s64, 1
    %s66 = scalar_select %p63, %s64, %s65
    %p69 = pneg %p63
    %p70 = scmp.eq.s32.totalorder %s14, 1
    %p71 = por %p69, %p70
    %p72 = scmp.ne.s32.totalorder %s64, %s67
    %p73 = scmp.eq.s32.totalorder %s14, 0
    %p74 = por %p72, %p73
    %p75 = scmp.ne.s32.totalorder %s64, %s67
    %p76 = scmp.eq.s32.totalorder %s19, 1
    %p77 = por %p75, %p76
    %p78 = scmp.ne.s32.totalorder %s67, %s68
    %p79 = scmp.eq.s32.totalorder %s19, 0
    %p80 = por %p78, %p79
    %p81 = scmp.ne.s32.totalorder %s67, %s68
    %p82 = scmp.eq.s32.totalorder %s20, 1
    %p83 = por %p81, %p82
    %p85 = scmp.ne.s32.totalorder %s68, %s84
    %p86 = scmp.eq.s32.totalorder %s20, 0
    %p87 = por %p85, %p86
    %s88 = ssub.s32 %s21, %s33
    %p89 = scmp.eq.s32.totalorder %s88, 0
    %s91 = sadd.s32 %s90, 1
    %s92 = scalar_select %p89, %s90, %s91
    %p95 = pneg %p89
    %p96 = scmp.eq.s32.totalorder %s14, 1
    %p97 = por %p95, %p96
    %p98 = scmp.ne.s32.totalorder %s90, %s93
    %p99 = scmp.eq.s32.totalorder %s14, 0
    %p100 = por %p98, %p99
    %p101 = scmp.ne.s32.totalorder %s90, %s93
    %p102 = scmp.eq.s32.totalorder %s19, 1
    %p103 = por %p101, %p102
    %p104 = scmp.ne.s32.totalorder %s93, %s94
    %p105 = scmp.eq.s32.totalorder %s19, 0
    %p106 = por %p104, %p105
    %p107 = scmp.ne.s32.totalorder %s93, %s94
    %p108 = scmp.eq.s32.totalorder %s20, 1
    %p109 = por %p107, %p108
    %p111 = scmp.ne.s32.totalorder %s94, %s110
    %p112 = scmp.eq.s32.totalorder %s20, 0
    %p113 = por %p111, %p112
    %s114 = ssub.s32 %s21, %s33
    %s115 = ssub.s32 %s22, %s29
    %s116 = sor.u32 %s114, %s115
    %p117 = scmp.eq.s32.totalorder %s116, 0
    %s119 = sadd.s32 %s118, 1
    %s120 = scalar_select %p117, %s118, %s119
    %p123 = pneg %p117
    %p124 = scmp.eq.s32.totalorder %s14, 1
    %p125 = por %p123, %p124
    %p126 = scmp.ne.s32.totalorder %s118, %s121
    %p127 = scmp.eq.s32.totalorder %s14, 0
    %p128 = por %p126, %p127
    %p129 = scmp.ne.s32.totalorder %s118, %s121
    %p130 = scmp.eq.s32.totalorder %s19, 1
    %p131 = por %p129, %p130
    %p132 = scmp.ne.s32.totalorder %s121, %s122
    %p133 = scmp.eq.s32.totalorder %s19, 0
    %p134 = por %p132, %p133
    %p135 = scmp.ne.s32.totalorder %s121, %s122
    %p136 = scmp.eq.s32.totalorder %s20, 1
    %p137 = por %p135, %p136
    %p139 = scmp.ne.s32.totalorder %s122, %s138
    %p140 = scmp.eq.s32.totalorder %s20, 0
    %p141 = por %p139, %p140
    %s143 = sadd.s32 %s142, 1
    %p146 = scmp.eq.s32.totalorder %s14, 1
    %p147 = scmp.ne.s32.totalorder %s142, %s144
    %p148 = scmp.eq.s32.totalorder %s14, 0
    %p149 = por %p147, %p148
    %p150 = scmp.ne.s32.totalorder %s142, %s144
    %p151 = scmp.eq.s32.totalorder %s19, 1
    %p152 = por %p150, %p151
    %p153 = scmp.ne.s32.totalorder %s144, %s145
    %p154 = scmp.eq.s32.totalorder %s19, 0
    %p155 = por %p153, %p154
    %p156 = scmp.ne.s32.totalorder %s144, %s145
    %p157 = scmp.eq.s32.totalorder %s20, 1
    %p158 = por %p156, %p157
    %p160 = scmp.ne.s32.totalorder %s145, %s159
    %p161 = scmp.eq.s32.totalorder %s20, 0
    %p162 = por %p160, %p161
    %s164 = sadd.s32 %s163, 1
    %p167 = scmp.eq.s32.totalorder %s14, 1
    %p168 = scmp.ne.s32.totalorder %s163, %s165
    %p169 = scmp.eq.s32.totalorder %s14, 0
    %p170 = por %p168, %p169
    %p171 = scmp.ne.s32.totalorder %s163, %s165
    %p172 = scmp.eq.s32.totalorder %s19, 1
    %p173 = por %p171, %p172
    %p174 = scmp.ne.s32.totalorder %s165, %s166
    %p175 = scmp.eq.s32.totalorder %s19, 0
    %p176 = por %p174, %p175
    %p177 = scmp.ne.s32.totalorder %s165, %s166
    %p178 = scmp.eq.s32.totalorder %s20, 1
    %p179 = por %p177, %p178
    %p181 = scmp.ne.s32.totalorder %s166, %s180
    %p182 = scmp.eq.s32.totalorder %s20, 0
    %p183 = por %p181, %p182
    %s185 = sadd.s32 %s184, 1
    %p188 = scmp.eq.s32.totalorder %s14, 1
    %p189 = scmp.ne.s32.totalorder %s184, %s186
    %p190 = scmp.eq.s32.totalorder %s14, 0
    %p191 = por %p189, %p190
    %p192 = scmp.ne.s32.totalorder %s184, %s186
    %p193 = scmp.eq.s32.totalorder %s19, 1
    %p194 = por %p192, %p193
    %p195 = scmp.ne.s32.totalorder %s186, %s187
    %p196 = scmp.eq.s32.totalorder %s19, 0
    %p197 = por %p195, %p196
    %p198 = scmp.ne.s32.totalorder %s186, %s187
    %p199 = scmp.eq.s32.totalorder %s20, 1
    %p200 = por %p198, %p199
    %p202 = scmp.ne.s32.totalorder %s187, %s201
    %p203 = scmp.eq.s32.totalorder %s20, 0
    %p204 = por %p202, %p203
    %s206 = sadd.s32 %s205, 1
    %p209 = scmp.eq.s32.totalorder %s14, 1
    %p210 = scmp.ne.s32.totalorder %s205, %s207
    %p211 = scmp.eq.s32.totalorder %s14, 0
    %p212 = por %p210, %p211
    %p213 = scmp.ne.s32.totalorder %s205, %s207
    %p214 = scmp.eq.s32.totalorder %s19, 1
    %p215 = por %p213, %p214
    %p216 = scmp.ne.s32.totalorder %s207, %s208
    %p217 = scmp.eq.s32.totalorder %s19, 0
    %p218 = por %p216, %p217
    %p219 = scmp.ne.s32.totalorder %s207, %s208
    %p220 = scmp.eq.s32.totalorder %s20, 1
    %p221 = por %p219, %p220
    %p223 = scmp.ne.s32.totalorder %s208, %s222
    %p224 = scmp.eq.s32.totalorder %s20, 0
    %p225 = por %p223, %p224
    %s226 = ssub.s32 %s21, %s33
    %s227 = ssub.s32 %s22, %s29
    %s228 = sor.u32 %s226, %s227
    %p229 = scmp.eq.s32.totalorder %s228, 0
    %s231 = sadd.s32 %s230, 1
    %s232 = scalar_select %p229, %s230, %s231
    %p235 = pneg %p229
    %p236 = scmp.eq.s32.totalorder %s14, 1
    %p237 = por %p235, %p236
    %p238 = scmp.ne.s32.totalorder %s230, %s233
    %p239 = scmp.eq.s32.totalorder %s14, 0
    %p240 = por %p238, %p239
    %p241 = scmp.ne.s32.totalorder %s230, %s233
    %p242 = scmp.eq.s32.totalorder %s19, 1
    %p243 = por %p241, %p242
    %p244 = scmp.ne.s32.totalorder %s233, %s234
    %p245 = scmp.eq.s32.totalorder %s19, 0
    %p246 = por %p244, %p245
    %p247 = scmp.ne.s32.totalorder %s233, %s234
    %p248 = scmp.eq.s32.totalorder %s20, 1
    %p249 = por %p247, %p248
    %p251 = scmp.ne.s32.totalorder %s234, %s250
    %p252 = scmp.eq.s32.totalorder %s20, 0
    %p253 = por %p251, %p252
    %p254 = scmp.le.s32.totalorder 1, %s14
    %p255 = scmp.lt.s32.totalorder %s14, 3
    %p256 = pnand %p254, %p255
    %p257 = pneg %p256
    // Predicated region
    $region9: #{_lambda_.7} parent=5 // pred_check
      _
    $region10: #{_lambda_.7} parent=5 // pred_check_branch
      %259 = sbr.rel (%p256) target = $region12
    $region11: #{_lambda_.7} parent=5 // pred_region
      %s260 = ssub.s32 %s14, 1
      // Predicated region
      $region13: #{_lambda_.7} parent=11 // pred_check
        %p261 = pneg %p155
      $region14: #{_lambda_.7} parent=11 // pred_check_branch
        %263 = sbr.rel (%p261) target = $region16
      $region15: #{_lambda_.7} parent=11 // pred_region
        _
      $region16: #{_lambda_.7} parent=11 // pred_fallthru
        _
      // Predicated region
      $region17: #{_lambda_.7} parent=11 // pred_check
        %p264 = pneg %p176
      $region18: #{_lambda_.7} parent=11 // pred_check_branch
        %266 = sbr.rel (%p264) target = $region20
      $region19: #{_lambda_.7} parent=11 // pred_region
        _
      $region20: #{_lambda_.7} parent=11 // pred_fallthru
        _
      // Predicated region
      $region21: #{_lambda_.7} parent=11 // pred_check
        %p267 = pneg %p197
      $region22: #{_lambda_.7} parent=11 // pred_check_branch
        %269 = sbr.rel (%p267) target = $region24
      $region23: #{_lambda_.7} parent=11 // pred_region
        _
      $region24: #{_lambda_.7} parent=11 // pred_fallthru
        _
      // Predicated region
      $region25: #{_lambda_.7} parent=11 // pred_check
        %p270 = pneg %p218
      $region26: #{_lambda_.7} parent=11 // pred_check_branch
        %272 = sbr.rel (%p270) target = $region28
      $region27: #{_lambda_.7} parent=11 // pred_region
        _
      $region28: #{_lambda_.7} parent=11 // pred_fallthru
        _
    $region12: #{_lambda_.7} parent=5 // pred_fallthru
      _
    %p273 = scmp.lt.s32.totalorder %s14, 2
    // Predicated region
    $region29: #{_lambda_.7} parent=5 // pred_check
      %p274 = pneg %p273
    $region30: #{_lambda_.7} parent=5 // pred_check_branch
      %276 = sbr.rel (%p274) target = $region32
    $region31: #{_lambda_.7} parent=5 // pred_region
      // Predicated region
      $region33: #{_lambda_.7} parent=31 // pred_check
        %p277 = pneg %p48
      $region34: #{_lambda_.7} parent=31 // pred_check_branch
        %279 = sbr.rel (%p277) target = $region36
      $region35: #{_lambda_.7} parent=31 // pred_region
        %s280 = smul.u32 8, %s22
        %p281 = scmp.lt.s32.totalorder %s21, 1
        %s282 = scalar_select %p281, %s21, 1
        %p283 = scmp.lt.s32.totalorder %s280, 7
        %s284 = scalar_select %p283, %s280, 7
        %s285 = smul.addr %s282, 8
        %s286 = sadd.s32 %s284, %s285
        %s287 = smul.addr %s286, 4
        %s288 = scalar_lea.vmem %s0, %s287
        %s289 = smul.u32 8, %s22
      $region36: #{_lambda_.7} parent=31 // pred_fallthru
        _
      // Predicated region
      $region37: #{_lambda_.7} parent=31 // pred_check
        %p290 = pneg %p74
      $region38: #{_lambda_.7} parent=31 // pred_check_branch
        %292 = sbr.rel (%p290) target = $region40
      $region39: #{_lambda_.7} parent=31 // pred_region
        %p293 = scmp.lt.s32.totalorder %s21, 1
        %s294 = scalar_select %p293, %s21, 1
        %s295 = smul.addr %s294, 8
        %s296 = smul.addr %s295, 4
        %s297 = scalar_lea.vmem %s1, %s296
      $region40: #{_lambda_.7} parent=31 // pred_fallthru
        _
      // Predicated region
      $region41: #{_lambda_.7} parent=31 // pred_check
        %p298 = pneg %p100
      $region42: #{_lambda_.7} parent=31 // pred_check_branch
        %300 = sbr.rel (%p298) target = $region44
      $region43: #{_lambda_.7} parent=31 // pred_region
        %p301 = scmp.lt.s32.totalorder %s21, 1
        %s302 = scalar_select %p301, %s21, 1
        %s303 = smul.addr %s302, 8
        %s304 = smul.addr %s303, 4
        %s305 = scalar_lea.vmem %s2, %s304
      $region44: #{_lambda_.7} parent=31 // pred_fallthru
        _
      // Predicated region
      $region45: #{_lambda_.7} parent=31 // pred_check
        %p306 = pneg %p128
      $region46: #{_lambda_.7} parent=31 // pred_check_branch
        %308 = sbr.rel (%p306) target = $region48
      $region47: #{_lambda_.7} parent=31 // pred_region
        %s309 = smul.u32 8, %s22
        %p310 = scmp.lt.s32.totalorder %s21, 1
        %s311 = scalar_select %p310, %s21, 1
        %p312 = scmp.lt.s32.totalorder %s309, 7
        %s313 = scalar_select %p312, %s309, 7
        %s314 = smul.addr %s311, 8
        %s315 = sadd.s32 %s313, %s314
        %s316 = smul.addr %s315, 8
        %s317 = scalar_lea.vmem %s3, %s316
        %s318 = smul.u32 8, %s22
      $region48: #{_lambda_.7} parent=31 // pred_fallthru
        _
    $region32: #{_lambda_.7} parent=5 // pred_fallthru
      _
    %p319 = scmp.le.s32.totalorder 1, %s14
    %p320 = scmp.lt.s32.totalorder %s14, 3
    %p321 = pnand %p319, %p320
    %p322 = pneg %p321
    // Predicated region
    $region49: #{_lambda_.7} parent=5 // pred_check
      _
    $region50: #{_lambda_.7} parent=5 // pred_check_branch
      %324 = sbr.rel (%p321) target = $region52
    $region51: #{_lambda_.7} parent=5 // pred_region
      %s325 = ssub.s32 %s14, 1
      %s326 = smul.u32 8, %s24
      %p327 = scmp.lt.s32.totalorder %s23, 1
      %s328 = scalar_select %p327, %s23, 1
      %p329 = scmp.lt.s32.totalorder %s326, 7
      %s330 = scalar_select %p329, %s326, 7
      %s331 = smul.addr %s328, 8
      %s332 = sadd.s32 %s330, %s331
      %s333 = smul.addr %s332, 4
      %s334 = scalar_lea.vmem %s0, %s333
      %p335 = pneg %p54
      %p336 = pneg %p51
      %p337 = scmp.lt.s32.totalorder %s23, 1
      %s338 = scalar_select %p337, %s23, 1
      %s339 = smul.addr %s338, 8
      %s340 = smul.addr %s339, 4
      %s341 = scalar_lea.vmem %s1, %s340
      %p342 = pneg %p80
      %p343 = pneg %p77
      %p344 = scmp.lt.s32.totalorder %s23, 1
      %s345 = scalar_select %p344, %s23, 1
      %s346 = smul.addr %s345, 8
      %s347 = smul.addr %s346, 4
      %s348 = scalar_lea.vmem %s2, %s347
      %p349 = pneg %p106
      %p350 = pneg %p103
      %s351 = smul.u32 8, %s24
      %p352 = scmp.lt.s32.totalorder %s23, 1
      %s353 = scalar_select %p352, %s23, 1
      %p354 = scmp.lt.s32.totalorder %s351, 7
      %s355 = scalar_select %p354, %s351, 7
      %s356 = smul.addr %s353, 8
      %s357 = sadd.s32 %s355, %s356
      %s358 = smul.addr %s357, 8
      %s359 = scalar_lea.vmem %s3, %s358
      %p360 = pneg %p134
      %p361 = pneg %p131
      %p362 = pneg %p155
      %p363 = pneg %p152
      %p364 = pneg %p176
      %p365 = pneg %p173
      %p366 = pneg %p197
      %p367 = pneg %p194
      %p368 = pneg %p218
      %p369 = pneg %p215
      %p370 = pneg %p246
      %p371 = pneg %p243
      %s372 = smul.u32 8, %s24
      %p373 = scmp.lt.s32.totalorder %s23, 1
      %s374 = scalar_select %p373, %s23, 1
      %p375 = scmp.lt.s32.totalorder %s372, 7
      %s376 = scalar_select %p375, %s372, 7
      %s377 = smul.addr %s374, 8
      %s378 = sadd.s32 %s376, %s377
      %s379 = smul.addr %s378, 4
      %s380 = scalar_lea.vmem %s8, %s379
      %s381 = smul.u32 8, %s24
      %p382 = scmp.lt.s32.totalorder %s23, 1
      %s383 = scalar_select %p382, %s23, 1
      %p384 = scmp.lt.s32.totalorder %s381, 7
      %s385 = scalar_select %p384, %s381, 7
      %s386 = smul.addr %s383, 8
      %s387 = sadd.s32 %s385, %s386
      %s388 = smul.addr %s387, 4
      %s389 = scalar_lea.vmem %s0, %s388
      %s390 = smul.u32 8, %s24
      %p391 = scmp.lt.s32.totalorder %s23, 1
      %s392 = scalar_select %p391, %s23, 1
      %s393 = smul.addr %s392, 8
      %s394 = smul.addr %s393, 4
      %s395 = scalar_lea.vmem %s1, %s394
      %p396 = scmp.lt.s32.totalorder %s23, 1
      %s397 = scalar_select %p396, %s23, 1
      %s398 = smul.addr %s397, 8
      %s399 = smul.addr %s398, 4
      %s400 = scalar_lea.vmem %s2, %s399
      %s401 = smul.u32 8, %s24
      %p402 = scmp.lt.s32.totalorder %s23, 1
      %s403 = scalar_select %p402, %s23, 1
      %p404 = scmp.lt.s32.totalorder %s401, 7
      %s405 = scalar_select %p404, %s401, 7
      %s406 = smul.addr %s403, 8
      %s407 = sadd.s32 %s405, %s406
      %s408 = smul.addr %s407, 8
      %s409 = scalar_lea.vmem %s3, %s408
      %s410 = smul.u32 8, %s24
      %s411 = smul.u32 8, %s24
      %p412 = scmp.lt.s32.totalorder %s23, 1
      %s413 = scalar_select %p412, %s23, 1
      %p414 = scmp.lt.s32.totalorder %s411, 7
      %s415 = scalar_select %p414, %s411, 7
      %s416 = smul.addr %s413, 8
      %s417 = sadd.s32 %s415, %s416
      %s418 = smul.addr %s417, 4
      %s419 = scalar_lea.vmem %s8, %s418
      %s420 = smul.u32 8, %s24
      %v422 = vld [vmem:[%s389] sm:$0xf]
      %v423 = vld [vmem:[%s389 + $0x4] sm:$0xf]
      %v424 = vld [vmem:[%s389 + $0x8] sm:$0xf]
      %v425 = vld [vmem:[%s389 + $0xc] sm:$0xf]
      %v426 = vld [vmem:[%s389 + $0x10] sm:$0xf]
      %v427 = vld [vmem:[%s389 + $0x14] sm:$0xf]
      %v428 = vld [vmem:[%s389 + $0x18] sm:$0xf]
      %v429 = vld [vmem:[%s389 + $0x1c] sm:$0xf]
      %v430 = vld [vmem:[%s395] sm:$0xf]
      %v431 = vld [vmem:[%s395 + $0x4] sm:$0xf]
      %v432 = vld [vmem:[%s395 + $0x8] sm:$0xf]
      %v433 = vld [vmem:[%s395 + $0xc] sm:$0xf]
      %v434 = vld [vmem:[%s395 + $0x10] sm:$0xf]
      %v435 = vld [vmem:[%s395 + $0x14] sm:$0xf]
      %v436 = vld [vmem:[%s395 + $0x18] sm:$0xf]
      %v437 = vld [vmem:[%s395 + $0x1c] sm:$0xf]
      %v438 = vld [vmem:[%s400] sm:$0xf]
      %v439 = vld [vmem:[%s400 + $0x4] sm:$0xf]
      %v440 = vld [vmem:[%s400 + $0x8] sm:$0xf]
      %v441 = vld [vmem:[%s400 + $0xc] sm:$0xf]
      %v442 = vld [vmem:[%s400 + $0x10] sm:$0xf]
      %v443 = vld [vmem:[%s400 + $0x14] sm:$0xf]
      %v444 = vld [vmem:[%s400 + $0x18] sm:$0xf]
      %v445 = vld [vmem:[%s400 + $0x1c] sm:$0xf]
      %v454 = vunpack.c.l.b16 %v422
      %v455 = vunpack.c.l.b16 %v423
      %v456 = vunpack.c.l.b16 %v424
      %v457 = vunpack.c.l.b16 %v425
      %v458 = vunpack.c.l.b16 %v426
      %v459 = vunpack.c.l.b16 %v427
      %v460 = vunpack.c.l.b16 %v428
      %v461 = vunpack.c.l.b16 %v429
      %v462 = vpack.c.b16 %v455, %v454
      %v463 = vpack.c.b16 %v457, %v456
      %v464 = vpack.c.b16 %v459, %v458
      %v465 = vpack.c.b16 %v461, %v460
      %v474 = vunpack.c.l.b16 %v430
      %v475 = vunpack.c.l.b16 %v431
      %v476 = vunpack.c.l.b16 %v432
      %v477 = vunpack.c.l.b16 %v433
      %v478 = vunpack.c.l.b16 %v434
      %v479 = vunpack.c.l.b16 %v435
      %v480 = vunpack.c.l.b16 %v436
      %v481 = vunpack.c.l.b16 %v437
      %v482 = vpack.c.b16 %v475, %v474
      %v483 = vpack.c.b16 %v477, %v476
      %v484 = vpack.c.b16 %v479, %v478
      %v485 = vpack.c.b16 %v481, %v480
      %vm486 = vcmask 261120
      %v488 = vsel %vm486, %v462, 0
      %v491 = vsel %vm486, %v463, 0
      %v494 = vsel %vm486, %v464, 0
      %v497 = vsel %vm486, %v465, 0
      %v500 = vsel %vm486, %v482, 0
      %v503 = vsel %vm486, %v483, 0
      %v506 = vsel %vm486, %v484, 0
      %v509 = vsel %vm486, %v485, 0
      %511 = vmatprep.subr.bf16.mxu0 0
      %512 = vmatpush1.bf16.xpose.msra.mxu0 %v500
      %513 = vmatprep.subr.bf16.mxu0 0
      %514 = vmatpush1.bf16.xpose.msra.mxu0 %v503
      %515 = vmatprep.subr.bf16.mxu0 0
      %516 = vmatpush1.bf16.xpose.msra.mxu0 %v506
      %517 = vmatprep.subr.bf16.mxu0 0
      %518 = vmatpush1.bf16.xpose.msra.mxu0 %v509
      %519 = vmatprep.subr.bf16.mxu0 0
      %520 = vmatpush1.bf16.xpose.msra.mxu0 0
      %521 = vmatprep.subr.bf16.mxu0 0
      %522 = vmatpush1.bf16.xpose.msra.mxu0 0
      %523 = vmatprep.subr.bf16.mxu0 0
      %524 = vmatpush1.bf16.xpose.msra.mxu0 0
      %525 = vmatprep.subr.bf16.mxu0 0
      %526 = vmatpush1.bf16.xpose.msra.mxu0 0
      %527 = vmatprep.subr.bf16.mxu0 0
      %528 = vmatpush1.bf16.xpose.msra.mxu0 0
      %529 = vmatprep.subr.bf16.mxu0 0
      %530 = vmatpush1.bf16.xpose.msra.mxu0 0
      %531 = vmatprep.subr.bf16.mxu0 0
      %532 = vmatpush1.bf16.xpose.msra.mxu0 0
      %533 = vmatprep.subr.bf16.mxu0 0
      %534 = vmatpush1.bf16.xpose.msra.mxu0 0
      %535 = vmatprep.subr.bf16.mxu0 0
      %536 = vmatpush1.bf16.xpose.msra.mxu0 0
      %537 = vmatprep.subr.bf16.mxu0 0
      %538 = vmatpush1.bf16.xpose.msra.mxu0 0
      %539 = vmatprep.subr.bf16.mxu0 0
      %540 = vmatpush1.bf16.xpose.msra.mxu0 0
      %541 = vmatprep.subr.bf16.mxu0 0
      %542 = vmatpush1.bf16.xpose.msra.mxu0 0
      %543 = vmatprep.mubr.bf16.mxu0 0
      %544 = vmatmul.mubr.bf16.gmra.mrb[0].mxu0 %v488
      %v545 = vpop.f32.mrb[0].mxu0
      %v546 = vadd.f32 0.0, %v545
      %v547 = vpop.f32.mrb[0].mxu0
      %v548 = vpop.f32.mrb[0].mxu0
      %v549 = vadd.f32 0.0, %v548
      %v550 = vpop.f32.mrb[0].mxu0
      %551 = vmatprep.mubr.bf16.mxu0 0
      %552 = vmatmul.mubr.bf16.gmra.mrb[0].mxu0 %v491
      %v553 = vpop.f32.mrb[0].mxu0
      %v554 = vadd.f32 0.0, %v553
      %v555 = vpop.f32.mrb[0].mxu0
      %v556 = vpop.f32.mrb[0].mxu0
      %v557 = vadd.f32 0.0, %v556
      %v558 = vpop.f32.mrb[0].mxu0
      %559 = vmatprep.mubr.bf16.mxu0 0
      %560 = vmatmul.mubr.bf16.gmra.mrb[0].mxu0 %v494
      %v561 = vpop.f32.mrb[0].mxu0
      %v562 = vadd.f32 0.0, %v561
      %v563 = vpop.f32.mrb[0].mxu0
      %v564 = vpop.f32.mrb[0].mxu0
      %v565 = vadd.f32 0.0, %v564
      %v566 = vpop.f32.mrb[0].mxu0
      %567 = vmatprep.mubr.bf16.mxu0 0
      %568 = vmatmul.mubr.bf16.gmra.mrb[0].mxu0 %v497
      %v569 = vpop.f32.mrb[0].mxu0
      %v570 = vadd.f32 0.0, %v569
      %v571 = vpop.f32.mrb[0].mxu0
      %v572 = vpop.f32.mrb[0].mxu0
      %v573 = vadd.f32 0.0, %v572
      %v574 = vpop.f32.mrb[0].mxu0
      %575 = vdwg.mxu0
      %v576 = vmul.f32 %v546, 0.17677669
      %v577 = vmul.f32 %v549, 0.17677669
      %v578 = vmul.f32 %v554, 0.17677669
      %v579 = vmul.f32 %v557, 0.17677669
      %v580 = vmul.f32 %v562, 0.17677669
      %v581 = vmul.f32 %v565, 0.17677669
      %v582 = vmul.f32 %v570, 0.17677669
      %v583 = vmul.f32 %v573, 0.17677669
      %vm584 = vcmask 523264
      %v585 = vsel %vm584, %v576, -inf
      %586 = vmax.xlane.f32.xlu0 %v585
      %v587 = vpop.xlane.xlu0 %586
      %v588 = vsel %vm584, %v577, -inf
      %589 = vmax.xlane.f32.xlu0 %v588
      %v590 = vpop.xlane.xlu0 %589
      %v591 = vsel %vm584, %v578, -inf
      %592 = vmax.xlane.f32.xlu0 %v591
      %v593 = vpop.xlane.xlu0 %592
      %v594 = vsel %vm584, %v579, -inf
      %595 = vmax.xlane.f32.xlu0 %v594
      %v596 = vpop.xlane.xlu0 %595
      %v597 = vsel %vm584, %v580, -inf
      %598 = vmax.xlane.f32.xlu0 %v597
      %v599 = vpop.xlane.xlu0 %598
      %v600 = vsel %vm584, %v581, -inf
      %601 = vmax.xlane.f32.xlu0 %v600
      %v602 = vpop.xlane.xlu0 %601
      %v603 = vsel %vm584, %v582, -inf
      %604 = vmax.xlane.f32.xlu0 %v603
      %v605 = vpop.xlane.xlu0 %604
      %v606 = vsel %vm584, %v583, -inf
      %607 = vmax.xlane.f32.xlu0 %v606
      %v608 = vpop.xlane.xlu0 %607
      %v609 = vsub.f32 %v576, %v587
      %v610 = vsub.f32 %v577, %v590
      %v611 = vsub.f32 %v578, %v593
      %v612 = vsub.f32 %v579, %v596
      %v613 = vsub.f32 %v580, %v599
      %v614 = vsub.f32 %v581, %v602
      %v615 = vsub.f32 %v582, %v605
      %v616 = vsub.f32 %v583, %v608
      %v617 = vmul.f32 %v609, 1.442695
      %v618 = vpow.pop %v617
      %v619 = vmul.f32 %v610, 1.442695
      %v620 = vpow.pop %v619
      %v621 = vmul.f32 %v611, 1.442695
      %v622 = vpow.pop %v621
      %v623 = vmul.f32 %v612, 1.442695
      %v624 = vpow.pop %v623
      %v625 = vmul.f32 %v613, 1.442695
      %v626 = vpow.pop %v625
      %v627 = vmul.f32 %v614, 1.442695
      %v628 = vpow.pop %v627
      %v629 = vmul.f32 %v615, 1.442695
      %v630 = vpow.pop %v629
      %v631 = vmul.f32 %v616, 1.442695
      %v632 = vpow.pop %v631
      %v633 = vsel %vm584, %v618, 0.0
      %634 = vadd.xlane.f32.xlu0 %v633
      %v635 = vpop.xlane.xlu0 %634
      %v636 = vsel %vm584, %v620, 0.0
      %637 = vadd.xlane.f32.xlu0 %v636
      %v638 = vpop.xlane.xlu0 %637
      %v639 = vsel %vm584, %v622, 0.0
      %640 = vadd.xlane.f32.xlu0 %v639
      %v641 = vpop.xlane.xlu0 %640
      %v642 = vsel %vm584, %v624, 0.0
      %643 = vadd.xlane.f32.xlu0 %v642
      %v644 = vpop.xlane.xlu0 %643
      %v645 = vsel %vm584, %v626, 0.0
      %646 = vadd.xlane.f32.xlu0 %v645
      %v647 = vpop.xlane.xlu0 %646
      %v648 = vsel %vm584, %v628, 0.0
      %649 = vadd.xlane.f32.xlu0 %v648
      %v650 = vpop.xlane.xlu0 %649
      %v651 = vsel %vm584, %v630, 0.0
      %652 = vadd.xlane.f32.xlu0 %v651
      %v653 = vpop.xlane.xlu0 %652
      %v654 = vsel %vm584, %v632, 0.0
      %655 = vadd.xlane.f32.xlu0 %v654
      %v656 = vpop.xlane.xlu0 %655
      %v657 = vrcp.pop %v635
      %v658 = vrcp.pop %v638
      %v659 = vrcp.pop %v641
      %v660 = vrcp.pop %v644
      %v661 = vrcp.pop %v647
      %v662 = vrcp.pop %v650
      %v663 = vrcp.pop %v653
      %v664 = vrcp.pop %v656
      %v665 = vmul.f32 %v618, %v657
      %v666 = vmul.f32 %v620, %v658
      %v667 = vmul.f32 %v622, %v659
      %v668 = vmul.f32 %v624, %v660
      %v669 = vmul.f32 %v626, %v661
      %v670 = vmul.f32 %v628, %v662
      %v671 = vmul.f32 %v630, %v663
      %v672 = vmul.f32 %v632, %v664
      %v673 = vpack.c.bf16 %v666, %v665
      %v674 = vpack.c.bf16 %v668, %v667
      %v675 = vpack.c.bf16 %v670, %v669
      %v676 = vpack.c.bf16 %v672, %v671
      %v685 = vunpack.c.l.b16 %v438
      %v686 = vunpack.c.l.b16 %v439
      %v687 = vunpack.c.l.b16 %v440
      %v688 = vunpack.c.l.b16 %v441
      %v689 = vunpack.c.l.b16 %v442
      %v690 = vunpack.c.l.b16 %v443
      %v691 = vunpack.c.l.b16 %v444
      %v692 = vunpack.c.l.b16 %v445
      %v693 = vpack.c.b16 %v686, %v685
      %v694 = vpack.c.b16 %v688, %v687
      %v695 = vpack.c.b16 %v690, %v689
      %v696 = vpack.c.b16 %v692, %v691
      %v702 = vsel %vm584, %v673, 0
      %v705 = vsel %vm584, %v674, 0
      %v708 = vsel %vm584, %v675, 0
      %v711 = vsel %vm584, %v676, 0
      %713 = vmatprep.subr.bf16.mxu0 0
      %714 = vmatpush1.bf16.msra.mxu0 %v693
      %715 = vmatprep.subr.bf16.mxu0 0
      %716 = vmatpush1.bf16.msra.mxu0 %v694
      %717 = vmatprep.subr.bf16.mxu0 0
      %718 = vmatpush1.bf16.msra.mxu0 %v695
      %719 = vmatprep.subr.bf16.mxu0 0
      %720 = vmatpush1.bf16.msra.mxu0 %v696
      %721 = vmatprep.subr.bf16.mxu0 0
      %722 = vmatpush1.bf16.msra.mxu0 0
      %723 = vmatprep.subr.bf16.mxu0 0
      %724 = vmatpush1.bf16.msra.mxu0 0
      %725 = vmatprep.subr.bf16.mxu0 0
      %726 = vmatpush1.bf16.msra.mxu0 0
      %727 = vmatprep.subr.bf16.mxu0 0
      %728 = vmatpush1.bf16.msra.mxu0 0
      %729 = vmatprep.subr.bf16.mxu0 0
      %730 = vmatpush1.bf16.msra.mxu0 0
      %731 = vmatprep.subr.bf16.mxu0 0
      %732 = vmatpush1.bf16.msra.mxu0 0
      %733 = vmatprep.subr.bf16.mxu0 0
      %734 = vmatpush1.bf16.msra.mxu0 0
      %735 = vmatprep.subr.bf16.mxu0 0
      %736 = vmatpush1.bf16.msra.mxu0 0
      %737 = vmatprep.subr.bf16.mxu0 0
      %738 = vmatpush1.bf16.msra.mxu0 0
      %739 = vmatprep.subr.bf16.mxu0 0
      %740 = vmatpush1.bf16.msra.mxu0 0
      %741 = vmatprep.subr.bf16.mxu0 0
      %742 = vmatpush1.bf16.msra.mxu0 0
      %743 = vmatprep.subr.bf16.mxu0 0
      %744 = vmatpush1.bf16.msra.mxu0 0
      %745 = vmatprep.mubr.bf16.mxu0 0
      %746 = vmatmul.mubr.bf16.gmra.mrb[0].mxu0 %v702
      %v747 = vpop.f32.mrb[0].mxu0
      %v748 = vadd.f32 0.0, %v747
      %v749 = vpop.f32.mrb[0].mxu0
      %v750 = vpop.f32.mrb[0].mxu0
      %v751 = vadd.f32 0.0, %v750
      %v752 = vpop.f32.mrb[0].mxu0
      %753 = vmatprep.mubr.bf16.mxu0 0
      %754 = vmatmul.mubr.bf16.gmra.mrb[0].mxu0 %v705
      %v755 = vpop.f32.mrb[0].mxu0
      %v756 = vadd.f32 0.0, %v755
      %v757 = vpop.f32.mrb[0].mxu0
      %v758 = vpop.f32.mrb[0].mxu0
      %v759 = vadd.f32 0.0, %v758
      %v760 = vpop.f32.mrb[0].mxu0
      %761 = vmatprep.mubr.bf16.mxu0 0
      %762 = vmatmul.mubr.bf16.gmra.mrb[0].mxu0 %v708
      %v763 = vpop.f32.mrb[0].mxu0
      %v764 = vadd.f32 0.0, %v763
      %v765 = vpop.f32.mrb[0].mxu0
      %v766 = vpop.f32.mrb[0].mxu0
      %v767 = vadd.f32 0.0, %v766
      %v768 = vpop.f32.mrb[0].mxu0
      %769 = vmatprep.mubr.bf16.mxu0 0
      %770 = vmatmul.mubr.bf16.gmra.mrb[0].mxu0 %v711
      %v771 = vpop.f32.mrb[0].mxu0
      %v772 = vadd.f32 0.0, %v771
      %v773 = vpop.f32.mrb[0].mxu0
      %v774 = vpop.f32.mrb[0].mxu0
      %v775 = vadd.f32 0.0, %v774
      %v776 = vpop.f32.mrb[0].mxu0
      %777 = vdwg.mxu0
      %v778 = vpack.c.bf16 %v751, %v748
      %v779 = vpack.c.bf16 %v759, %v756
      %v780 = vpack.c.bf16 %v767, %v764
      %v781 = vpack.c.bf16 %v775, %v772
      %782 = vst.msk [vmem:[#allocation2] sm:$0xff] %vm486, %v778
      %783 = vst.msk [vmem:[#allocation2 + $0x8] sm:$0xff] %vm486, %v779
      %784 = vst.msk [vmem:[#allocation2 + $0x10] sm:$0xff] %vm486, %v780
      %785 = vst.msk [vmem:[#allocation2 + $0x18] sm:$0xff] %vm486, %v781
      %786 = vrot.lane.b32.xlu0 %v462, 96
      %v787 = vpop.permute.xlu0 %786
      %788 = vrot.lane.b32.xlu0 %v463, 96
      %v789 = vpop.permute.xlu0 %788
      %790 = vrot.lane.b32.xlu0 %v464, 96
      %v791 = vpop.permute.xlu0 %790
      %792 = vrot.lane.b32.xlu0 %v465, 96
      %v793 = vpop.permute.xlu0 %792
      %794 = vrot.lane.b32.xlu0 %v482, 96
      %v795 = vpop.permute.xlu0 %794
      %796 = vrot.lane.b32.xlu0 %v483, 96
      %v797 = vpop.permute.xlu0 %796
      %798 = vrot.lane.b32.xlu0 %v484, 96
      %v799 = vpop.permute.xlu0 %798
      %800 = vrot.lane.b32.xlu0 %v485, 96
      %v801 = vpop.permute.xlu0 %800
      %v803 = vsel %vm486, %v787, 0
      %v806 = vsel %vm486, %v789, 0
      %v809 = vsel %vm486, %v791, 0
      %v812 = vsel %vm486, %v793, 0
      %v815 = vsel %vm486, %v795, 0
      %v818 = vsel %vm486, %v797, 0
      %v821 = vsel %vm486, %v799, 0
      %v824 = vsel %vm486, %v801, 0
      %826 = vmatprep.subr.bf16.mxu0 0
      %827 = vmatpush1.bf16.xpose.msra.mxu0 %v815
      %828 = vmatprep.subr.bf16.mxu0 0
      %829 = vmatpush1.bf16.xpose.msra.mxu0 %v818
      %830 = vmatprep.subr.bf16.mxu0 0
      %831 = vmatpush1.bf16.xpose.msra.mxu0 %v821
      %832 = vmatprep.subr.bf16.mxu0 0
      %833 = vmatpush1.bf16.xpose.msra.mxu0 %v824
      %834 = vmatprep.subr.bf16.mxu0 0
      %835 = vmatpush1.bf16.xpose.msra.mxu0 0
      %836 = vmatprep.subr.bf16.mxu0 0
      %837 = vmatpush1.bf16.xpose.msra.mxu0 0
      %838 = vmatprep.subr.bf16.mxu0 0
      %839 = vmatpush1.bf16.xpose.msra.mxu0 0
      %840 = vmatprep.subr.bf16.mxu0 0
      %841 = vmatpush1.bf16.xpose.msra.mxu0 0
      %842 = vmatprep.subr.bf16.mxu0 0
      %843 = vmatpush1.bf16.xpose.msra.mxu0 0
      %844 = vmatprep.subr.bf16.mxu0 0
      %845 = vmatpush1.bf16.xpose.msra.mxu0 0
      %846 = vmatprep.subr.bf16.mxu0 0
      %847 = vmatpush1.bf16.xpose.msra.mxu0 0
      %848 = vmatprep.subr.bf16.mxu0 0
      %849 = vmatpush1.bf16.xpose.msra.mxu0 0
      %850 = vmatprep.subr.bf16.mxu0 0
      %851 = vmatpush1.bf16.xpose.msra.mxu0 0
      %852 = vmatprep.subr.bf16.mxu0 0
      %853 = vmatpush1.bf16.xpose.msra.mxu0 0
      %854 = vmatprep.subr.bf16.mxu0 0
      %855 = vmatpush1.bf16.xpose.msra.mxu0 0
      %856 = vmatprep.subr.bf16.mxu0 0
      %857 = vmatpush1.bf16.xpose.msra.mxu0 0
      %858 = vmatprep.mubr.bf16.mxu0 0
      %859 = vmatmul.mubr.bf16.gmra.mrb[0].mxu0 %v803
      %v860 = vpop.f32.mrb[0].mxu0
      %v861 = vadd.f32 0.0, %v860
      %v862 = vpop.f32.mrb[0].mxu0
      %v863 = vpop.f32.mrb[0].mxu0
      %v864 = vadd.f32 0.0, %v863
      %v865 = vpop.f32.mrb[0].mxu0
      %866 = vmatprep.mubr.bf16.mxu0 0
      %867 = vmatmul.mubr.bf16.gmra.mrb[0].mxu0 %v806
      %v868 = vpop.f32.mrb[0].mxu0
      %v869 = vadd.f32 0.0, %v868
      %v870 = vpop.f32.mrb[0].mxu0
      %v871 = vpop.f32.mrb[0].mxu0
      %v872 = vadd.f32 0.0, %v871
      %v873 = vpop.f32.mrb[0].mxu0
      %874 = vmatprep.mubr.bf16.mxu0 0
      %875 = vmatmul.mubr.bf16.gmra.mrb[0].mxu0 %v809
      %v876 = vpop.f32.mrb[0].mxu0
      %v877 = vadd.f32 0.0, %v876
      %v878 = vpop.f32.mrb[0].mxu0
      %v879 = vpop.f32.mrb[0].mxu0
      %v880 = vadd.f32 0.0, %v879
      %v881 = vpop.f32.mrb[0].mxu0
      %882 = vmatprep.mubr.bf16.mxu0 0
      %883 = vmatmul.mubr.bf16.gmra.mrb[0].mxu0 %v812
      %v884 = vpop.f32.mrb[0].mxu0
      %v885 = vadd.f32 0.0, %v884
      %v886 = vpop.f32.mrb[0].mxu0
      %v887 = vpop.f32.mrb[0].mxu0
      %v888 = vadd.f32 0.0, %v887
      %v889 = vpop.f32.mrb[0].mxu0
      %890 = vdwg.mxu0
      %v891 = vmul.f32 %v861, 0.17677669
      %v892 = vmul.f32 %v864, 0.17677669
      %v893 = vmul.f32 %v869, 0.17677669
      %v894 = vmul.f32 %v872, 0.17677669
      %v895 = vmul.f32 %v877, 0.17677669
      %v896 = vmul.f32 %v880, 0.17677669
      %v897 = vmul.f32 %v885, 0.17677669
      %v898 = vmul.f32 %v888, 0.17677669
      %v899 = vsel %vm584, %v891, -inf
      %900 = vmax.xlane.f32.xlu0 %v899
      %v901 = vpop.xlane.xlu0 %900
      %v902 = vsel %vm584, %v892, -inf
      %903 = vmax.xlane.f32.xlu0 %v902
      %v904 = vpop.xlane.xlu0 %903
      %v905 = vsel %vm584, %v893, -inf
      %906 = vmax.xlane.f32.xlu0 %v905
      %v907 = vpop.xlane.xlu0 %906
      %v908 = vsel %vm584, %v894, -inf
      %909 = vmax.xlane.f32.xlu0 %v908
      %v910 = vpop.xlane.xlu0 %909
      %v911 = vsel %vm584, %v895, -inf
      %912 = vmax.xlane.f32.xlu0 %v911
      %v913 = vpop.xlane.xlu0 %912
      %v914 = vsel %vm584, %v896, -inf
      %915 = vmax.xlane.f32.xlu0 %v914
      %v916 = vpop.xlane.xlu0 %915
      %v917 = vsel %vm584, %v897, -inf
      %918 = vmax.xlane.f32.xlu0 %v917
      %v919 = vpop.xlane.xlu0 %918
      %v920 = vsel %vm584, %v898, -inf
      %921 = vmax.xlane.f32.xlu0 %v920
      %v922 = vpop.xlane.xlu0 %921
      %v923 = vsub.f32 %v891, %v901
      %v924 = vsub.f32 %v892, %v904
      %v925 = vsub.f32 %v893, %v907
      %v926 = vsub.f32 %v894, %v910
      %v927 = vsub.f32 %v895, %v913
      %v928 = vsub.f32 %v896, %v916
      %v929 = vsub.f32 %v897, %v919
      %v930 = vsub.f32 %v898, %v922
      %v931 = vmul.f32 %v923, 1.442695
      %v932 = vpow.pop %v931
      %v933 = vmul.f32 %v924, 1.442695
      %v934 = vpow.pop %v933
      %v935 = vmul.f32 %v925, 1.442695
      %v936 = vpow.pop %v935
      %v937 = vmul.f32 %v926, 1.442695
      %v938 = vpow.pop %v937
      %v939 = vmul.f32 %v927, 1.442695
      %v940 = vpow.pop %v939
      %v941 = vmul.f32 %v928, 1.442695
      %v942 = vpow.pop %v941
      %v943 = vmul.f32 %v929, 1.442695
      %v944 = vpow.pop %v943
      %v945 = vmul.f32 %v930, 1.442695
      %v946 = vpow.pop %v945
      %v947 = vsel %vm584, %v932, 0.0
      %948 = vadd.xlane.f32.xlu0 %v947
      %v949 = vpop.xlane.xlu0 %948
      %v950 = vsel %vm584, %v934, 0.0
      %951 = vadd.xlane.f32.xlu0 %v950
      %v952 = vpop.xlane.xlu0 %951
      %v953 = vsel %vm584, %v936, 0.0
      %954 = vadd.xlane.f32.xlu0 %v953
      %v955 = vpop.xlane.xlu0 %954
      %v956 = vsel %vm584, %v938, 0.0
      %957 = vadd.xlane.f32.xlu0 %v956
      %v958 = vpop.xlane.xlu0 %957
      %v959 = vsel %vm584, %v940, 0.0
      %960 = vadd.xlane.f32.xlu0 %v959
      %v961 = vpop.xlane.xlu0 %960
      %v962 = vsel %vm584, %v942, 0.0
      %963 = vadd.xlane.f32.xlu0 %v962
      %v964 = vpop.xlane.xlu0 %963
      %v965 = vsel %vm584, %v944, 0.0
      %966 = vadd.xlane.f32.xlu0 %v965
      %v967 = vpop.xlane.xlu0 %966
      %v968 = vsel %vm584, %v946, 0.0
      %969 = vadd.xlane.f32.xlu0 %v968
      %v970 = vpop.xlane.xlu0 %969
      %v971 = vrcp.pop %v949
      %v972 = vrcp.pop %v952
      %v973 = vrcp.pop %v955
      %v974 = vrcp.pop %v958
      %v975 = vrcp.pop %v961
      %v976 = vrcp.pop %v964
      %v977 = vrcp.pop %v967
      %v978 = vrcp.pop %v970
      %v979 = vmul.f32 %v932, %v971
      %v980 = vmul.f32 %v934, %v972
      %v981 = vmul.f32 %v936, %v973
      %v982 = vmul.f32 %v938, %v974
      %v983 = vmul.f32 %v940, %v975
      %v984 = vmul.f32 %v942, %v976
      %v985 = vmul.f32 %v944, %v977
      %v986 = vmul.f32 %v946, %v978
      %v987 = vpack.c.bf16 %v980, %v979
      %v988 = vpack.c.bf16 %v982, %v981
      %v989 = vpack.c.bf16 %v984, %v983
      %v990 = vpack.c.bf16 %v986, %v985
      %991 = vrot.lane.b32.xlu0 %v693, 96
      %v992 = vpop.permute.xlu0 %991
      %993 = vrot.lane.b32.xlu0 %v694, 96
      %v994 = vpop.permute.xlu0 %993
      %995 = vrot.lane.b32.xlu0 %v695, 96
      %v996 = vpop.permute.xlu0 %995
      %997 = vrot.lane.b32.xlu0 %v696, 96
      %v998 = vpop.permute.xlu0 %997
      %v1004 = vsel %vm584, %v987, 0
      %v1007 = vsel %vm584, %v988, 0
      %v1010 = vsel %vm584, %v989, 0
      %v1013 = vsel %vm584, %v990, 0
      %1015 = vmatprep.subr.bf16.mxu0 0
      %1016 = vmatpush1.bf16.msra.mxu0 %v992
      %1017 = vmatprep.subr.bf16.mxu0 0
      %1018 = vmatpush1.bf16.msra.mxu0 %v994
      %1019 = vmatprep.subr.bf16.mxu0 0
      %1020 = vmatpush1.bf16.msra.mxu0 %v996
      %1021 = vmatprep.subr.bf16.mxu0 0
      %1022 = vmatpush1.bf16.msra.mxu0 %v998
      %1023 = vmatprep.subr.bf16.mxu0 0
      %1024 = vmatpush1.bf16.msra.mxu0 0
      %1025 = vmatprep.subr.bf16.mxu0 0
      %1026 = vmatpush1.bf16.msra.mxu0 0
      %1027 = vmatprep.subr.bf16.mxu0 0
      %1028 = vmatpush1.bf16.msra.mxu0 0
      %1029 = vmatprep.subr.bf16.mxu0 0
      %1030 = vmatpush1.bf16.msra.mxu0 0
      %1031 = vmatprep.subr.bf16.mxu0 0
      %1032 = vmatpush1.bf16.msra.mxu0 0
      %1033 = vmatprep.subr.bf16.mxu0 0
      %1034 = vmatpush1.bf16.msra.mxu0 0
      %1035 = vmatprep.subr.bf16.mxu0 0
      %1036 = vmatpush1.bf16.msra.mxu0 0
      %1037 = vmatprep.subr.bf16.mxu0 0
      %1038 = vmatpush1.bf16.msra.mxu0 0
      %1039 = vmatprep.subr.bf16.mxu0 0
      %1040 = vmatpush1.bf16.msra.mxu0 0
      %1041 = vmatprep.subr.bf16.mxu0 0
      %1042 = vmatpush1.bf16.msra.mxu0 0
      %1043 = vmatprep.subr.bf16.mxu0 0
      %1044 = vmatpush1.bf16.msra.mxu0 0
      %1045 = vmatprep.subr.bf16.mxu0 0
      %1046 = vmatpush1.bf16.msra.mxu0 0
      %1047 = vmatprep.mubr.bf16.mxu0 0
      %1048 = vmatmul.mubr.bf16.gmra.mrb[0].mxu0 %v1004
      %v1049 = vpop.f32.mrb[0].mxu0
      %v1050 = vadd.f32 0.0, %v1049
      %v1051 = vpop.f32.mrb[0].mxu0
      %v1052 = vpop.f32.mrb[0].mxu0
      %v1053 = vadd.f32 0.0, %v1052
      %v1054 = vpop.f32.mrb[0].mxu0
      %1055 = vmatprep.mubr.bf16.mxu0 0
      %1056 = vmatmul.mubr.bf16.gmra.mrb[0].mxu0 %v1007
      %v1057 = vpop.f32.mrb[0].mxu0
      %v1058 = vadd.f32 0.0, %v1057
      %v1059 = vpop.f32.mrb[0].mxu0
      %v1060 = vpop.f32.mrb[0].mxu0
      %v1061 = vadd.f32 0.0, %v1060
      %v1062 = vpop.f32.mrb[0].mxu0
      %1063 = vmatprep.mubr.bf16.mxu0 0
      %1064 = vmatmul.mubr.bf16.gmra.mrb[0].mxu0 %v1010
      %v1065 = vpop.f32.mrb[0].mxu0
      %v1066 = vadd.f32 0.0, %v1065
      %v1067 = vpop.f32.mrb[0].mxu0
      %v1068 = vpop.f32.mrb[0].mxu0
      %v1069 = vadd.f32 0.0, %v1068
      %v1070 = vpop.f32.mrb[0].mxu0
      %1071 = vmatprep.mubr.bf16.mxu0 0
      %1072 = vmatmul.mubr.bf16.gmra.mrb[0].mxu0 %v1013
      %v1073 = vpop.f32.mrb[0].mxu0
      %v1074 = vadd.f32 0.0, %v1073
      %v1075 = vpop.f32.mrb[0].mxu0
      %v1076 = vpop.f32.mrb[0].mxu0
      %v1077 = vadd.f32 0.0, %v1076
      %v1078 = vpop.f32.mrb[0].mxu0
      %1079 = vdwg.mxu0
      %v1080 = vpack.c.bf16 %v1053, %v1050
      %v1081 = vpack.c.bf16 %v1061, %v1058
      %v1082 = vpack.c.bf16 %v1069, %v1066
      %v1083 = vpack.c.bf16 %v1077, %v1074
      %1088 = vrot.lane.b32.xlu0 %v1080, 32
      %v1089 = vpop.permute.xlu0 %1088
      %1090 = vrot.lane.b32.xlu0 %v1081, 32
      %v1091 = vpop.permute.xlu0 %1090
      %1092 = vrot.lane.b32.xlu0 %v1082, 32
      %v1093 = vpop.permute.xlu0 %1092
      %1094 = vrot.lane.b32.xlu0 %v1083, 32
      %v1095 = vpop.permute.xlu0 %1094
      %vm1100 = vcmask 523520
      %1101 = vst.msk [vmem:[#allocation2] sm:$0xff] %vm1100, %v1089
      %1102 = vst.msk [vmem:[#allocation2 + $0x8] sm:$0xff] %vm1100, %v1091
      %1103 = vst.msk [vmem:[#allocation2 + $0x10] sm:$0xff] %vm1100, %v1093
      %1104 = vst.msk [vmem:[#allocation2 + $0x18] sm:$0xff] %vm1100, %v1095
      %1105 = vrot.lane.b32.xlu0 %v462, 64
      %v1106 = vpop.permute.xlu0 %1105
      %1107 = vrot.lane.b32.xlu0 %v463, 64
      %v1108 = vpop.permute.xlu0 %1107
      %1109 = vrot.lane.b32.xlu0 %v464, 64
      %v1110 = vpop.permute.xlu0 %1109
      %1111 = vrot.lane.b32.xlu0 %v465, 64
      %v1112 = vpop.permute.xlu0 %1111
      %1113 = vrot.lane.b32.xlu0 %v482, 64
      %v1114 = vpop.permute.xlu0 %1113
      %1115 = vrot.lane.b32.xlu0 %v483, 64
      %v1116 = vpop.permute.xlu0 %1115
      %1117 = vrot.lane.b32.xlu0 %v484, 64
      %v1118 = vpop.permute.xlu0 %1117
      %1119 = vrot.lane.b32.xlu0 %v485, 64
      %v1120 = vpop.permute.xlu0 %1119
      %v1122 = vsel %vm486, %v1106, 0
      %v1125 = vsel %vm486, %v1108, 0
      %v1128 = vsel %vm486, %v1110, 0
      %v1131 = vsel %vm486, %v1112, 0
      %v1134 = vsel %vm486, %v1114, 0
      %v1137 = vsel %vm486, %v1116, 0
      %v1140 = vsel %vm486, %v1118, 0
      %v1143 = vsel %vm486, %v1120, 0
      %1145 = vmatprep.subr.bf16.mxu0 0
      %1146 = vmatpush1.bf16.xpose.msra.mxu0 %v1134
      %1147 = vmatprep.subr.bf16.mxu0 0
      %1148 = vmatpush1.bf16.xpose.msra.mxu0 %v1137
      %1149 = vmatprep.subr.bf16.mxu0 0
      %1150 = vmatpush1.bf16.xpose.msra.mxu0 %v1140
      %1151 = vmatprep.subr.bf16.mxu0 0
      %1152 = vmatpush1.bf16.xpose.msra.mxu0 %v1143
      %1153 = vmatprep.subr.bf16.mxu0 0
      %1154 = vmatpush1.bf16.xpose.msra.mxu0 0
      %1155 = vmatprep.subr.bf16.mxu0 0
      %1156 = vmatpush1.bf16.xpose.msra.mxu0 0
      %1157 = vmatprep.subr.bf16.mxu0 0
      %1158 = vmatpush1.bf16.xpose.msra.mxu0 0
      %1159 = vmatprep.subr.bf16.mxu0 0
      %1160 = vmatpush1.bf16.xpose.msra.mxu0 0
      %1161 = vmatprep.subr.bf16.mxu0 0
      %1162 = vmatpush1.bf16.xpose.msra.mxu0 0
      %1163 = vmatprep.subr.bf16.mxu0 0
      %1164 = vmatpush1.bf16.xpose.msra.mxu0 0
      %1165 = vmatprep.subr.bf16.mxu0 0
      %1166 = vmatpush1.bf16.xpose.msra.mxu0 0
      %1167 = vmatprep.subr.bf16.mxu0 0
      %1168 = vmatpush1.bf16.xpose.msra.mxu0 0
      %1169 = vmatprep.subr.bf16.mxu0 0
      %1170 = vmatpush1.bf16.xpose.msra.mxu0 0
      %1171 = vmatprep.subr.bf16.mxu0 0
      %1172 = vmatpush1.bf16.xpose.msra.mxu0 0
      %1173 = vmatprep.subr.bf16.mxu0 0
      %1174 = vmatpush1.bf16.xpose.msra.mxu0 0
      %1175 = vmatprep.subr.bf16.mxu0 0
      %1176 = vmatpush1.bf16.xpose.msra.mxu0 0
      %1177 = vmatprep.mubr.bf16.mxu0 0
      %1178 = vmatmul.mubr.bf16.gmra.mrb[0].mxu0 %v1122
      %v1179 = vpop.f32.mrb[0].mxu0
      %v1180 = vadd.f32 0.0, %v1179
      %v1181 = vpop.f32.mrb[0].mxu0
      %v1182 = vpop.f32.mrb[0].mxu0
      %v1183 = vadd.f32 0.0, %v1182
      %v1184 = vpop.f32.mrb[0].mxu0
      %1185 = vmatprep.mubr.bf16.mxu0 0
      %1186 = vmatmul.mubr.bf16.gmra.mrb[0].mxu0 %v1125
      %v1187 = vpop.f32.mrb[0].mxu0
      %v1188 = vadd.f32 0.0, %v1187
      %v1189 = vpop.f32.mrb[0].mxu0
      %v1190 = vpop.f32.mrb[0].mxu0
      %v1191 = vadd.f32 0.0, %v1190
      %v1192 = vpop.f32.mrb[0].mxu0
      %1193 = vmatprep.mubr.bf16.mxu0 0
      %1194 = vmatmul.mubr.bf16.gmra.mrb[0].mxu0 %v1128
      %v1195 = vpop.f32.mrb[0].mxu0
      %v1196 = vadd.f32 0.0, %v1195
      %v1197 = vpop.f32.mrb[0].mxu0
      %v1198 = vpop.f32.mrb[0].mxu0
      %v1199 = vadd.f32 0.0, %v1198
      %v1200 = vpop.f32.mrb[0].mxu0
      %1201 = vmatprep.mubr.bf16.mxu0 0
      %1202 = vmatmul.mubr.bf16.gmra.mrb[0].mxu0 %v1131
      %v1203 = vpop.f32.mrb[0].mxu0
      %v1204 = vadd.f32 0.0, %v1203
      %v1205 = vpop.f32.mrb[0].mxu0
      %v1206 = vpop.f32.mrb[0].mxu0
      %v1207 = vadd.f32 0.0, %v1206
      %v1208 = vpop.f32.mrb[0].mxu0
      %1209 = vdwg.mxu0
      %v1210 = vmul.f32 %v1180, 0.17677669
      %v1211 = vmul.f32 %v1183, 0.17677669
      %v1212 = vmul.f32 %v1188, 0.17677669
      %v1213 = vmul.f32 %v1191, 0.17677669
      %v1214 = vmul.f32 %v1196, 0.17677669
      %v1215 = vmul.f32 %v1199, 0.17677669
      %v1216 = vmul.f32 %v1204, 0.17677669
      %v1217 = vmul.f32 %v1207, 0.17677669
      %v1218 = vsel %vm584, %v1210, -inf
      %1219 = vmax.xlane.f32.xlu0 %v1218
      %v1220 = vpop.xlane.xlu0 %1219
      %v1221 = vsel %vm584, %v1211, -inf
      %1222 = vmax.xlane.f32.xlu0 %v1221
      %v1223 = vpop.xlane.xlu0 %1222
      %v1224 = vsel %vm584, %v1212, -inf
      %1225 = vmax.xlane.f32.xlu0 %v1224
      %v1226 = vpop.xlane.xlu0 %1225
      %v1227 = vsel %vm584, %v1213, -inf
      %1228 = vmax.xlane.f32.xlu0 %v1227
      %v1229 = vpop.xlane.xlu0 %1228
      %v1230 = vsel %vm584, %v1214, -inf
      %1231 = vmax.xlane.f32.xlu0 %v1230
      %v1232 = vpop.xlane.xlu0 %1231
      %v1233 = vsel %vm584, %v1215, -inf
      %1234 = vmax.xlane.f32.xlu0 %v1233
      %v1235 = vpop.xlane.xlu0 %1234
      %v1236 = vsel %vm584, %v1216, -inf
      %1237 = vmax.xlane.f32.xlu0 %v1236
      %v1238 = vpop.xlane.xlu0 %1237
      %v1239 = vsel %vm584, %v1217, -inf
      %1240 = vmax.xlane.f32.xlu0 %v1239
      %v1241 = vpop.xlane.xlu0 %1240
      %v1242 = vsub.f32 %v1210, %v1220
      %v1243 = vsub.f32 %v1211, %v1223
      %v1244 = vsub.f32 %v1212, %v1226
      %v1245 = vsub.f32 %v1213, %v1229
      %v1246 = vsub.f32 %v1214, %v1232
      %v1247 = vsub.f32 %v1215, %v1235
      %v1248 = vsub.f32 %v1216, %v1238
      %v1249 = vsub.f32 %v1217, %v1241
      %v1250 = vmul.f32 %v1242, 1.442695
      %v1251 = vpow.pop %v1250
      %v1252 = vmul.f32 %v1243, 1.442695
      %v1253 = vpow.pop %v1252
      %v1254 = vmul.f32 %v1244, 1.442695
      %v1255 = vpow.pop %v1254
      %v1256 = vmul.f32 %v1245, 1.442695
      %v1257 = vpow.pop %v1256
      %v1258 = vmul.f32 %v1246, 1.442695
      %v1259 = vpow.pop %v1258
      %v1260 = vmul.f32 %v1247, 1.442695
      %v1261 = vpow.pop %v1260
      %v1262 = vmul.f32 %v1248, 1.442695
      %v1263 = vpow.pop %v1262
      %v1264 = vmul.f32 %v1249, 1.442695
      %v1265 = vpow.pop %v1264
      %v1266 = vsel %vm584, %v1251, 0.0
      %1267 = vadd.xlane.f32.xlu0 %v1266
      %v1268 = vpop.xlane.xlu0 %1267
      %v1269 = vsel %vm584, %v1253, 0.0
      %1270 = vadd.xlane.f32.xlu0 %v1269
      %v1271 = vpop.xlane.xlu0 %1270
      %v1272 = vsel %vm584, %v1255, 0.0
      %1273 = vadd.xlane.f32.xlu0 %v1272
      %v1274 = vpop.xlane.xlu0 %1273
      %v1275 = vsel %vm584, %v1257, 0.0
      %1276 = vadd.xlane.f32.xlu0 %v1275
      %v1277 = vpop.xlane.xlu0 %1276
      %v1278 = vsel %vm584, %v1259, 0.0
      %1279 = vadd.xlane.f32.xlu0 %v1278
      %v1280 = vpop.xlane.xlu0 %1279
      %v1281 = vsel %vm584, %v1261, 0.0
      %1282 = vadd.xlane.f32.xlu0 %v1281
      %v1283 = vpop.xlane.xlu0 %1282
      %v1284 = vsel %vm584, %v1263, 0.0
      %1285 = vadd.xlane.f32.xlu0 %v1284
      %v1286 = vpop.xlane.xlu0 %1285
      %v1287 = vsel %vm584, %v1265, 0.0
      %1288 = vadd.xlane.f32.xlu0 %v1287
      %v1289 = vpop.xlane.xlu0 %1288
      %v1290 = vrcp.pop %v1268
      %v1291 = vrcp.pop %v1271
      %v1292 = vrcp.pop %v1274
      %v1293 = vrcp.pop %v1277
      %v1294 = vrcp.pop %v1280
      %v1295 = vrcp.pop %v1283
      %v1296 = vrcp.pop %v1286
      %v1297 = vrcp.pop %v1289
      %v1298 = vmul.f32 %v1251, %v1290
      %v1299 = vmul.f32 %v1253, %v1291
      %v1300 = vmul.f32 %v1255, %v1292
      %v1301 = vmul.f32 %v1257, %v1293
      %v1302 = vmul.f32 %v1259, %v1294
      %v1303 = vmul.f32 %v1261, %v1295
      %v1304 = vmul.f32 %v1263, %v1296
      %v1305 = vmul.f32 %v1265, %v1297
      %v1306 = vpack.c.bf16 %v1299, %v1298
      %v1307 = vpack.c.bf16 %v1301, %v1300
      %v1308 = vpack.c.bf16 %v1303, %v1302
      %v1309 = vpack.c.bf16 %v1305, %v1304
      %1310 = vrot.lane.b32.xlu0 %v693, 64
      %v1311 = vpop.permute.xlu0 %1310
      %1312 = vrot.lane.b32.xlu0 %v694, 64
      %v1313 = vpop.permute.xlu0 %1312
      %1314 = vrot.lane.b32.xlu0 %v695, 64
      %v1315 = vpop.permute.xlu0 %1314
      %1316 = vrot.lane.b32.xlu0 %v696, 64
      %v1317 = vpop.permute.xlu0 %1316
      %v1323 = vsel %vm584, %v1306, 0
      %v1326 = vsel %vm584, %v1307, 0
      %v1329 = vsel %vm584, %v1308, 0
      %v1332 = vsel %vm584, %v1309, 0
      %1334 = vmatprep.subr.bf16.mxu0 0
      %1335 = vmatpush1.bf16.msra.mxu0 %v1311
      %1336 = vmatprep.subr.bf16.mxu0 0
      %1337 = vmatpush1.bf16.msra.mxu0 %v1313
      %1338 = vmatprep.subr.bf16.mxu0 0
      %1339 = vmatpush1.bf16.msra.mxu0 %v1315
      %1340 = vmatprep.subr.bf16.mxu0 0
      %1341 = vmatpush1.bf16.msra.mxu0 %v1317
      %1342 = vmatprep.subr.bf16.mxu0 0
      %1343 = vmatpush1.bf16.msra.mxu0 0
      %1344 = vmatprep.subr.bf16.mxu0 0
      %1345 = vmatpush1.bf16.msra.mxu0 0
      %1346 = vmatprep.subr.bf16.mxu0 0
      %1347 = vmatpush1.bf16.msra.mxu0 0
      %1348 = vmatprep.subr.bf16.mxu0 0
      %1349 = vmatpush1.bf16.msra.mxu0 0
      %1350 = vmatprep.subr.bf16.mxu0 0
      %1351 = vmatpush1.bf16.msra.mxu0 0
      %1352 = vmatprep.subr.bf16.mxu0 0
      %1353 = vmatpush1.bf16.msra.mxu0 0
      %1354 = vmatprep.subr.bf16.mxu0 0
      %1355 = vmatpush1.bf16.msra.mxu0 0
      %1356 = vmatprep.subr.bf16.mxu0 0
      %1357 = vmatpush1.bf16.msra.mxu0 0
      %1358 = vmatprep.subr.bf16.mxu0 0
      %1359 = vmatpush1.bf16.msra.mxu0 0
      %1360 = vmatprep.subr.bf16.mxu0 0
      %1361 = vmatpush1.bf16.msra.mxu0 0
      %1362 = vmatprep.subr.bf16.mxu0 0
      %1363 = vmatpush1.bf16.msra.mxu0 0
      %1364 = vmatprep.subr.bf16.mxu0 0
      %1365 = vmatpush1.bf16.msra.mxu0 0
      %1366 = vmatprep.mubr.bf16.mxu0 0
      %1367 = vmatmul.mubr.bf16.gmra.mrb[0].mxu0 %v1323
      %v1368 = vpop.f32.mrb[0].mxu0
      %v1369 = vadd.f32 0.0, %v1368
      %v1370 = vpop.f32.mrb[0].mxu0
      %v1371 = vpop.f32.mrb[0].mxu0
      %v1372 = vadd.f32 0.0, %v1371
      %v1373 = vpop.f32.mrb[0].mxu0
      %1374 = vmatprep.mubr.bf16.mxu0 0
      %1375 = vmatmul.mubr.bf16.gmra.mrb[0].mxu0 %v1326
      %v1376 = vpop.f32.mrb[0].mxu0
      %v1377 = vadd.f32 0.0, %v1376
      %v1378 = vpop.f32.mrb[0].mxu0
      %v1379 = vpop.f32.mrb[0].mxu0
      %v1380 = vadd.f32 0.0, %v1379
      %v1381 = vpop.f32.mrb[0].mxu0
      %1382 = vmatprep.mubr.bf16.mxu0 0
      %1383 = vmatmul.mubr.bf16.gmra.mrb[0].mxu0 %v1329
      %v1384 = vpop.f32.mrb[0].mxu0
      %v1385 = vadd.f32 0.0, %v1384
      %v1386 = vpop.f32.mrb[0].mxu0
      %v1387 = vpop.f32.mrb[0].mxu0
      %v1388 = vadd.f32 0.0, %v1387
      %v1389 = vpop.f32.mrb[0].mxu0
      %1390 = vmatprep.mubr.bf16.mxu0 0
      %1391 = vmatmul.mubr.bf16.gmra.mrb[0].mxu0 %v1332
      %v1392 = vpop.f32.mrb[0].mxu0
      %v1393 = vadd.f32 0.0, %v1392
      %v1394 = vpop.f32.mrb[0].mxu0
      %v1395 = vpop.f32.mrb[0].mxu0
      %v1396 = vadd.f32 0.0, %v1395
      %v1397 = vpop.f32.mrb[0].mxu0
      %1398 = vdwg.mxu0
      %v1399 = vpack.c.bf16 %v1372, %v1369
      %v1400 = vpack.c.bf16 %v1380, %v1377
      %v1401 = vpack.c.bf16 %v1388, %v1385
      %v1402 = vpack.c.bf16 %v1396, %v1393
      %1407 = vrot.lane.b32.xlu0 %v1399, 64
      %v1408 = vpop.permute.xlu0 %1407
      %1409 = vrot.lane.b32.xlu0 %v1400, 64
      %v1410 = vpop.permute.xlu0 %1409
      %1411 = vrot.lane.b32.xlu0 %v1401, 64
      %v1412 = vpop.permute.xlu0 %1411
      %1413 = vrot.lane.b32.xlu0 %v1402, 64
      %v1414 = vpop.permute.xlu0 %1413
      %vm1419 = vcmask 785920
      %1420 = vst.msk [vmem:[#allocation2] sm:$0xff] %vm1419, %v1408
      %1421 = vst.msk [vmem:[#allocation2 + $0x8] sm:$0xff] %vm1419, %v1410
      %1422 = vst.msk [vmem:[#allocation2 + $0x10] sm:$0xff] %vm1419, %v1412
      %1423 = vst.msk [vmem:[#allocation2 + $0x18] sm:$0xff] %vm1419, %v1414
      %1424 = vrot.lane.b32.xlu0 %v462, 32
      %v1425 = vpop.permute.xlu0 %1424
      %1426 = vrot.lane.b32.xlu0 %v463, 32
      %v1427 = vpop.permute.xlu0 %1426
      %1428 = vrot.lane.b32.xlu0 %v464, 32
      %v1429 = vpop.permute.xlu0 %1428
      %1430 = vrot.lane.b32.xlu0 %v465, 32
      %v1431 = vpop.permute.xlu0 %1430
      %1432 = vrot.lane.b32.xlu0 %v482, 32
      %v1433 = vpop.permute.xlu0 %1432
      %1434 = vrot.lane.b32.xlu0 %v483, 32
      %v1435 = vpop.permute.xlu0 %1434
      %1436 = vrot.lane.b32.xlu0 %v484, 32
      %v1437 = vpop.permute.xlu0 %1436
      %1438 = vrot.lane.b32.xlu0 %v485, 32
      %v1439 = vpop.permute.xlu0 %1438
      %v1441 = vsel %vm486, %v1425, 0
      %v1444 = vsel %vm486, %v1427, 0
      %v1447 = vsel %vm486, %v1429, 0
      %v1450 = vsel %vm486, %v1431, 0
      %v1453 = vsel %vm486, %v1433, 0
      %v1456 = vsel %vm486, %v1435, 0
      %v1459 = vsel %vm486, %v1437, 0
      %v1462 = vsel %vm486, %v1439, 0
      %1464 = vmatprep.subr.bf16.mxu0 0
      %1465 = vmatpush1.bf16.xpose.msra.mxu0 %v1453
      %1466 = vmatprep.subr.bf16.mxu0 0
      %1467 = vmatpush1.bf16.xpose.msra.mxu0 %v1456
      %1468 = vmatprep.subr.bf16.mxu0 0
      %1469 = vmatpush1.bf16.xpose.msra.mxu0 %v1459
      %1470 = vmatprep.subr.bf16.mxu0 0
      %1471 = vmatpush1.bf16.xpose.msra.mxu0 %v1462
      %1472 = vmatprep.subr.bf16.mxu0 0
      %1473 = vmatpush1.bf16.xpose.msra.mxu0 0
      %1474 = vmatprep.subr.bf16.mxu0 0
      %1475 = vmatpush1.bf16.xpose.msra.mxu0 0
      %1476 = vmatprep.subr.bf16.mxu0 0
      %1477 = vmatpush1.bf16.xpose.msra.mxu0 0
      %1478 = vmatprep.subr.bf16.mxu0 0
      %1479 = vmatpush1.bf16.xpose.msra.mxu0 0
      %1480 = vmatprep.subr.bf16.mxu0 0
      %1481 = vmatpush1.bf16.xpose.msra.mxu0 0
      %1482 = vmatprep.subr.bf16.mxu0 0
      %1483 = vmatpush1.bf16.xpose.msra.mxu0 0
      %1484 = vmatprep.subr.bf16.mxu0 0
      %1485 = vmatpush1.bf16.xpose.msra.mxu0 0
      %1486 = vmatprep.subr.bf16.mxu0 0
      %1487 = vmatpush1.bf16.xpose.msra.mxu0 0
      %1488 = vmatprep.subr.bf16.mxu0 0
      %1489 = vmatpush1.bf16.xpose.msra.mxu0 0
      %1490 = vmatprep.subr.bf16.mxu0 0
      %1491 = vmatpush1.bf16.xpose.msra.mxu0 0
      %1492 = vmatprep.subr.bf16.mxu0 0
      %1493 = vmatpush1.bf16.xpose.msra.mxu0 0
      %1494 = vmatprep.subr.bf16.mxu0 0
      %1495 = vmatpush1.bf16.xpose.msra.mxu0 0
      %1496 = vmatprep.mubr.bf16.mxu0 0
      %1497 = vmatmul.mubr.bf16.gmra.mrb[0].mxu0 %v1441
      %v1498 = vpop.f32.mrb[0].mxu0
      %v1499 = vadd.f32 0.0, %v1498
      %v1500 = vpop.f32.mrb[0].mxu0
      %v1501 = vpop.f32.mrb[0].mxu0
      %v1502 = vadd.f32 0.0, %v1501
      %v1503 = vpop.f32.mrb[0].mxu0
      %1504 = vmatprep.mubr.bf16.mxu0 0
      %1505 = vmatmul.mubr.bf16.gmra.mrb[0].mxu0 %v1444
      %v1506 = vpop.f32.mrb[0].mxu0
      %v1507 = vadd.f32 0.0, %v1506
      %v1508 = vpop.f32.mrb[0].mxu0
      %v1509 = vpop.f32.mrb[0].mxu0
      %v1510 = vadd.f32 0.0, %v1509
      %v1511 = vpop.f32.mrb[0].mxu0
      %1512 = vmatprep.mubr.bf16.mxu0 0
      %1513 = vmatmul.mubr.bf16.gmra.mrb[0].mxu0 %v1447
      %v1514 = vpop.f32.mrb[0].mxu0
      %v1515 = vadd.f32 0.0, %v1514
      %v1516 = vpop.f32.mrb[0].mxu0
      %v1517 = vpop.f32.mrb[0].mxu0
      %v1518 = vadd.f32 0.0, %v1517
      %v1519 = vpop.f32.mrb[0].mxu0
      %1520 = vmatprep.mubr.bf16.mxu0 0
      %1521 = vmatmul.mubr.bf16.gmra.mrb[0].mxu0 %v1450
      %v1522 = vpop.f32.mrb[0].mxu0
      %v1523 = vadd.f32 0.0, %v1522
      %v1524 = vpop.f32.mrb[0].mxu0
      %v1525 = vpop.f32.mrb[0].mxu0
      %v1526 = vadd.f32 0.0, %v1525
      %v1527 = vpop.f32.mrb[0].mxu0
      %1528 = vdwg.mxu0
      %v1529 = vmul.f32 %v1499, 0.17677669
      %v1530 = vmul.f32 %v1502, 0.17677669
      %v1531 = vmul.f32 %v1507, 0.17677669
      %v1532 = vmul.f32 %v1510, 0.17677669
      %v1533 = vmul.f32 %v1515, 0.17677669
      %v1534 = vmul.f32 %v1518, 0.17677669
      %v1535 = vmul.f32 %v1523, 0.17677669
      %v1536 = vmul.f32 %v1526, 0.17677669
      %v1537 = vsel %vm584, %v1529, -inf
      %1538 = vmax.xlane.f32.xlu0 %v1537
      %v1539 = vpop.xlane.xlu0 %1538
      %v1540 = vsel %vm584, %v1530, -inf
      %1541 = vmax.xlane.f32.xlu0 %v1540
      %v1542 = vpop.xlane.xlu0 %1541
      %v1543 = vsel %vm584, %v1531, -inf
      %1544 = vmax.xlane.f32.xlu0 %v1543
      %v1545 = vpop.xlane.xlu0 %1544
      %v1546 = vsel %vm584, %v1532, -inf
      %1547 = vmax.xlane.f32.xlu0 %v1546
      %v1548 = vpop.xlane.xlu0 %1547
      %v1549 = vsel %vm584, %v1533, -inf
      %1550 = vmax.xlane.f32.xlu0 %v1549
      %v1551 = vpop.xlane.xlu0 %1550
      %v1552 = vsel %vm584, %v1534, -inf
      %1553 = vmax.xlane.f32.xlu0 %v1552
      %v1554 = vpop.xlane.xlu0 %1553
      %v1555 = vsel %vm584, %v1535, -inf
      %1556 = vmax.xlane.f32.xlu0 %v1555
      %v1557 = vpop.xlane.xlu0 %1556
      %v1558 = vsel %vm584, %v1536, -inf
      %1559 = vmax.xlane.f32.xlu0 %v1558
      %v1560 = vpop.xlane.xlu0 %1559
      %v1561 = vsub.f32 %v1529, %v1539
      %v1562 = vsub.f32 %v1530, %v1542
      %v1563 = vsub.f32 %v1531, %v1545
      %v1564 = vsub.f32 %v1532, %v1548
      %v1565 = vsub.f32 %v1533, %v1551
      %v1566 = vsub.f32 %v1534, %v1554
      %v1567 = vsub.f32 %v1535, %v1557
      %v1568 = vsub.f32 %v1536, %v1560
      %v1569 = vmul.f32 %v1561, 1.442695
      %v1570 = vpow.pop %v1569
      %v1571 = vmul.f32 %v1562, 1.442695
      %v1572 = vpow.pop %v1571
      %v1573 = vmul.f32 %v1563, 1.442695
      %v1574 = vpow.pop %v1573
      %v1575 = vmul.f32 %v1564, 1.442695
      %v1576 = vpow.pop %v1575
      %v1577 = vmul.f32 %v1565, 1.442695
      %v1578 = vpow.pop %v1577
      %v1579 = vmul.f32 %v1566, 1.442695
      %v1580 = vpow.pop %v1579
      %v1581 = vmul.f32 %v1567, 1.442695
      %v1582 = vpow.pop %v1581
      %v1583 = vmul.f32 %v1568, 1.442695
      %v1584 = vpow.pop %v1583
      %v1585 = vsel %vm584, %v1570, 0.0
      %1586 = vadd.xlane.f32.xlu0 %v1585
      %v1587 = vpop.xlane.xlu0 %1586
      %v1588 = vsel %vm584, %v1572, 0.0
      %1589 = vadd.xlane.f32.xlu0 %v1588
      %v1590 = vpop.xlane.xlu0 %1589
      %v1591 = vsel %vm584, %v1574, 0.0
      %1592 = vadd.xlane.f32.xlu0 %v1591
      %v1593 = vpop.xlane.xlu0 %1592
      %v1594 = vsel %vm584, %v1576, 0.0
      %1595 = vadd.xlane.f32.xlu0 %v1594
      %v1596 = vpop.xlane.xlu0 %1595
      %v1597 = vsel %vm584, %v1578, 0.0
      %1598 = vadd.xlane.f32.xlu0 %v1597
      %v1599 = vpop.xlane.xlu0 %1598
      %v1600 = vsel %vm584, %v1580, 0.0
      %1601 = vadd.xlane.f32.xlu0 %v1600
      %v1602 = vpop.xlane.xlu0 %1601
      %v1603 = vsel %vm584, %v1582, 0.0
      %1604 = vadd.xlane.f32.xlu0 %v1603
      %v1605 = vpop.xlane.xlu0 %1604
      %v1606 = vsel %vm584, %v1584, 0.0
      %1607 = vadd.xlane.f32.xlu0 %v1606
      %v1608 = vpop.xlane.xlu0 %1607
      %v1609 = vrcp.pop %v1587
      %v1610 = vrcp.pop %v1590
      %v1611 = vrcp.pop %v1593
      %v1612 = vrcp.pop %v1596
      %v1613 = vrcp.pop %v1599
      %v1614 = vrcp.pop %v1602
      %v1615 = vrcp.pop %v1605
      %v1616 = vrcp.pop %v1608
      %v1617 = vmul.f32 %v1570, %v1609
      %v1618 = vmul.f32 %v1572, %v1610
      %v1619 = vmul.f32 %v1574, %v1611
      %v1620 = vmul.f32 %v1576, %v1612
      %v1621 = vmul.f32 %v1578, %v1613
      %v1622 = vmul.f32 %v1580, %v1614
      %v1623 = vmul.f32 %v1582, %v1615
      %v1624 = vmul.f32 %v1584, %v1616
      %v1625 = vpack.c.bf16 %v1618, %v1617
      %v1626 = vpack.c.bf16 %v1620, %v1619
      %v1627 = vpack.c.bf16 %v1622, %v1621
      %v1628 = vpack.c.bf16 %v1624, %v1623
      %1629 = vrot.lane.b32.xlu0 %v693, 32
      %v1630 = vpop.permute.xlu0 %1629
      %1631 = vrot.lane.b32.xlu0 %v694, 32
      %v1632 = vpop.permute.xlu0 %1631
      %1633 = vrot.lane.b32.xlu0 %v695, 32
      %v1634 = vpop.permute.xlu0 %1633
      %1635 = vrot.lane.b32.xlu0 %v696, 32
      %v1636 = vpop.permute.xlu0 %1635
      %v1642 = vsel %vm584, %v1625, 0
      %v1645 = vsel %vm584, %v1626, 0
      %v1648 = vsel %vm584, %v1627, 0
      %v1651 = vsel %vm584, %v1628, 0
      %1653 = vmatprep.subr.bf16.mxu0 0
      %1654 = vmatpush1.bf16.msra.mxu0 %v1630
      %1655 = vmatprep.subr.bf16.mxu0 0
      %1656 = vmatpush1.bf16.msra.mxu0 %v1632
      %1657 = vmatprep.subr.bf16.mxu0 0
      %1658 = vmatpush1.bf16.msra.mxu0 %v1634
      %1659 = vmatprep.subr.bf16.mxu0 0
      %1660 = vmatpush1.bf16.msra.mxu0 %v1636
      %1661 = vmatprep.subr.bf16.mxu0 0
      %1662 = vmatpush1.bf16.msra.mxu0 0
      %1663 = vmatprep.subr.bf16.mxu0 0
      %1664 = vmatpush1.bf16.msra.mxu0 0
      %1665 = vmatprep.subr.bf16.mxu0 0
      %1666 = vmatpush1.bf16.msra.mxu0 0
      %1667 = vmatprep.subr.bf16.mxu0 0
      %1668 = vmatpush1.bf16.msra.mxu0 0
      %1669 = vmatprep.subr.bf16.mxu0 0
      %1670 = vmatpush1.bf16.msra.mxu0 0
      %1671 = vmatprep.subr.bf16.mxu0 0
      %1672 = vmatpush1.bf16.msra.mxu0 0
      %1673 = vmatprep.subr.bf16.mxu0 0
      %1674 = vmatpush1.bf16.msra.mxu0 0
      %1675 = vmatprep.subr.bf16.mxu0 0
      %1676 = vmatpush1.bf16.msra.mxu0 0
      %1677 = vmatprep.subr.bf16.mxu0 0
      %1678 = vmatpush1.bf16.msra.mxu0 0
      %1679 = vmatprep.subr.bf16.mxu0 0
      %1680 = vmatpush1.bf16.msra.mxu0 0
      %1681 = vmatprep.subr.bf16.mxu0 0
      %1682 = vmatpush1.bf16.msra.mxu0 0
      %1683 = vmatprep.subr.bf16.mxu0 0
      %1684 = vmatpush1.bf16.msra.mxu0 0
      %1685 = vmatprep.mubr.bf16.mxu0 0
      %1686 = vmatmul.mubr.bf16.gmra.mrb[0].mxu0 %v1642
      %v1687 = vpop.f32.mrb[0].mxu0
      %v1688 = vadd.f32 0.0, %v1687
      %v1689 = vpop.f32.mrb[0].mxu0
      %v1690 = vpop.f32.mrb[0].mxu0
      %v1691 = vadd.f32 0.0, %v1690
      %v1692 = vpop.f32.mrb[0].mxu0
      %1693 = vmatprep.mubr.bf16.mxu0 0
      %1694 = vmatmul.mubr.bf16.gmra.mrb[0].mxu0 %v1645
      %v1695 = vpop.f32.mrb[0].mxu0
      %v1696 = vadd.f32 0.0, %v1695
      %v1697 = vpop.f32.mrb[0].mxu0
      %v1698 = vpop.f32.mrb[0].mxu0
      %v1699 = vadd.f32 0.0, %v1698
      %v1700 = vpop.f32.mrb[0].mxu0
      %1701 = vmatprep.mubr.bf16.mxu0 0
      %1702 = vmatmul.mubr.bf16.gmra.mrb[0].mxu0 %v1648
      %v1703 = vpop.f32.mrb[0].mxu0
      %v1704 = vadd.f32 0.0, %v1703
      %v1705 = vpop.f32.mrb[0].mxu0
      %v1706 = vpop.f32.mrb[0].mxu0
      %v1707 = vadd.f32 0.0, %v1706
      %v1708 = vpop.f32.mrb[0].mxu0
      %1709 = vmatprep.mubr.bf16.mxu0 0
      %1710 = vmatmul.mubr.bf16.gmra.mrb[0].mxu0 %v1651
      %v1711 = vpop.f32.mrb[0].mxu0
      %v1712 = vadd.f32 0.0, %v1711
      %v1713 = vpop.f32.mrb[0].mxu0
      %v1714 = vpop.f32.mrb[0].mxu0
      %v1715 = vadd.f32 0.0, %v1714
      %v1716 = vpop.f32.mrb[0].mxu0
      %1717 = vdwg.mxu0
      %v1718 = vpack.c.bf16 %v1691, %v1688
      %v1719 = vpack.c.bf16 %v1699, %v1696
      %v1720 = vpack.c.bf16 %v1707, %v1704
      %v1721 = vpack.c.bf16 %v1715, %v1712
      %1726 = vrot.lane.b32.xlu0 %v1718, 96
      %v1727 = vpop.permute.xlu0 %1726
      %1728 = vrot.lane.b32.xlu0 %v1719, 96
      %v1729 = vpop.permute.xlu0 %1728
      %1730 = vrot.lane.b32.xlu0 %v1720, 96
      %v1731 = vpop.permute.xlu0 %1730
      %1732 = vrot.lane.b32.xlu0 %v1721, 96
      %v1733 = vpop.permute.xlu0 %1732
      %vm1738 = vcmask 1048320
      %1739 = vst.msk [vmem:[#allocation2] sm:$0xff] %vm1738, %v1727
      %1740 = vst.msk [vmem:[#allocation2 + $0x8] sm:$0xff] %vm1738, %v1729
      %1741 = vst.msk [vmem:[#allocation2 + $0x10] sm:$0xff] %vm1738, %v1731
      %1742 = vst.msk [vmem:[#allocation2 + $0x18] sm:$0xff] %vm1738, %v1733
      %v1743 = vld [vmem:[#allocation2] sm:$0xff]
      %v1744 = vld [vmem:[#allocation2 + $0x8] sm:$0xff]
      %v1745 = vld [vmem:[#allocation2 + $0x10] sm:$0xff]
      %v1746 = vld [vmem:[#allocation2 + $0x18] sm:$0xff]
      %v1747 = vld [vmem:[%s4] sm:$0xf]
      %v1748 = vld [vmem:[%s4 + $0x4] sm:$0xf]
      %v1749 = vld [vmem:[%s4 + $0x8] sm:$0xf]
      %v1750 = vld [vmem:[%s4 + $0xc] sm:$0xf]
      %v1751 = vld [vmem:[%s4 + $0x10] sm:$0xf]
      %v1752 = vld [vmem:[%s4 + $0x14] sm:$0xf]
      %v1753 = vld [vmem:[%s4 + $0x18] sm:$0xf]
      %v1754 = vld [vmem:[%s4 + $0x1c] sm:$0xf]
      %v1755 = vld [vmem:[%s4 + $0x20] sm:$0xf]
      %v1756 = vld [vmem:[%s4 + $0x24] sm:$0xf]
      %v1757 = vld [vmem:[%s4 + $0x28] sm:$0xf]
      %v1758 = vld [vmem:[%s4 + $0x2c] sm:$0xf]
      %v1759 = vld [vmem:[%s4 + $0x30] sm:$0xf]
      %v1760 = vld [vmem:[%s4 + $0x34] sm:$0xf]
      %v1761 = vld [vmem:[%s4 + $0x38] sm:$0xf]
      %v1762 = vld [vmem:[%s4 + $0x3c] sm:$0xf]
      %v1763 = vld [vmem:[%s5] sm:$0x1]
      %v1765 = vlaneseq
      %v1766 = vshrl.u32 %v1765, 7
      %v1767 = vsub.s32 0, %v1766
      %v1768 = vrot.slane %v1763, %v1767
      %v1786 = vunpack.c.l.b16 %v1747
      %v1787 = vunpack.c.l.b16 %v1748
      %v1788 = vunpack.c.l.b16 %v1749
      %v1789 = vunpack.c.l.b16 %v1750
      %v1790 = vunpack.c.l.b16 %v1751
      %v1791 = vunpack.c.l.b16 %v1752
      %v1792 = vunpack.c.l.b16 %v1753
      %v1793 = vunpack.c.l.b16 %v1754
      %v1794 = vunpack.c.l.b16 %v1755
      %v1795 = vunpack.c.l.b16 %v1756
      %v1796 = vunpack.c.l.b16 %v1757
      %v1797 = vunpack.c.l.b16 %v1758
      %v1798 = vunpack.c.l.b16 %v1759
      %v1799 = vunpack.c.l.b16 %v1760
      %v1800 = vunpack.c.l.b16 %v1761
      %v1801 = vunpack.c.l.b16 %v1762
      %v1802 = vpack.c.b16 %v1787, %v1786
      %v1803 = vpack.c.b16 %v1789, %v1788
      %v1804 = vpack.c.b16 %v1791, %v1790
      %v1805 = vpack.c.b16 %v1793, %v1792
      %v1806 = vpack.c.b16 %v1795, %v1794
      %v1807 = vpack.c.b16 %v1797, %v1796
      %v1808 = vpack.c.b16 %v1799, %v1798
      %v1809 = vpack.c.b16 %v1801, %v1800
      %1818 = vmatprep.subr.bf16.mxu0 0
      %1819 = vmatpush1.bf16.msra.mxu0 %v1802
      %1820 = vmatprep.subr.bf16.mxu0 0
      %1821 = vmatpush1.bf16.msra.mxu0 %v1803
      %1822 = vmatprep.subr.bf16.mxu0 0
      %1823 = vmatpush1.bf16.msra.mxu0 %v1804
      %1824 = vmatprep.subr.bf16.mxu0 0
      %1825 = vmatpush1.bf16.msra.mxu0 %v1805
      %1826 = vmatprep.subr.bf16.mxu0 0
      %1827 = vmatpush1.bf16.msra.mxu0 %v1806
      %1828 = vmatprep.subr.bf16.mxu0 0
      %1829 = vmatpush1.bf16.msra.mxu0 %v1807
      %1830 = vmatprep.subr.bf16.mxu0 0
      %1831 = vmatpush1.bf16.msra.mxu0 %v1808
      %1832 = vmatprep.subr.bf16.mxu0 0
      %1833 = vmatpush1.bf16.msra.mxu0 %v1809
      %1834 = vmatprep.subr.bf16.mxu0 0
      %1835 = vmatpush1.bf16.msra.mxu0 0
      %1836 = vmatprep.subr.bf16.mxu0 0
      %1837 = vmatpush1.bf16.msra.mxu0 0
      %1838 = vmatprep.subr.bf16.mxu0 0
      %1839 = vmatpush1.bf16.msra.mxu0 0
      %1840 = vmatprep.subr.bf16.mxu0 0
      %1841 = vmatpush1.bf16.msra.mxu0 0
      %1842 = vmatprep.subr.bf16.mxu0 0
      %1843 = vmatpush1.bf16.msra.mxu0 0
      %1844 = vmatprep.subr.bf16.mxu0 0
      %1845 = vmatpush1.bf16.msra.mxu0 0
      %1846 = vmatprep.subr.bf16.mxu0 0
      %1847 = vmatpush1.bf16.msra.mxu0 0
      %1848 = vmatprep.subr.bf16.mxu0 0
      %1849 = vmatpush1.bf16.msra.mxu0 0
      %1850 = vmatprep.mubr.bf16.mxu0 0
      %1851 = vmatmul.mubr.bf16.gmra.mrb[0].mxu0 %v1743
      %v1852 = vpop.f32.mrb[0].mxu0
      %v1853 = vadd.f32 %v1768, %v1852
      %v1854 = vpop.f32.mrb[0].mxu0
      %v1855 = vpop.f32.mrb[0].mxu0
      %v1856 = vadd.f32 %v1768, %v1855
      %v1857 = vpop.f32.mrb[0].mxu0
      %1858 = vmatprep.mubr.bf16.mxu0 0
      %1859 = vmatmul.mubr.bf16.gmra.mrb[0].mxu0 %v1744
      %v1860 = vpop.f32.mrb[0].mxu0
      %v1861 = vadd.f32 %v1768, %v1860
      %v1862 = vpop.f32.mrb[0].mxu0
      %v1863 = vpop.f32.mrb[0].mxu0
      %v1864 = vadd.f32 %v1768, %v1863
      %v1865 = vpop.f32.mrb[0].mxu0
      %1866 = vmatprep.mubr.bf16.mxu0 0
      %1867 = vmatmul.mubr.bf16.gmra.mrb[0].mxu0 %v1745
      %v1868 = vpop.f32.mrb[0].mxu0
      %v1869 = vadd.f32 %v1768, %v1868
      %v1870 = vpop.f32.mrb[0].mxu0
      %v1871 = vpop.f32.mrb[0].mxu0
      %v1872 = vadd.f32 %v1768, %v1871
      %v1873 = vpop.f32.mrb[0].mxu0
      %1874 = vmatprep.mubr.bf16.mxu0 0
      %1875 = vmatmul.mubr.bf16.gmra.mrb[0].mxu0 %v1746
      %v1876 = vpop.f32.mrb[0].mxu0
      %v1877 = vadd.f32 %v1768, %v1876
      %v1878 = vpop.f32.mrb[0].mxu0
      %v1879 = vpop.f32.mrb[0].mxu0
      %v1880 = vadd.f32 %v1768, %v1879
      %v1881 = vpop.f32.mrb[0].mxu0
      %1882 = vdwg.mxu0
      %v1883 = vld [vmem:[%s409] sm:$0xff]
      %v1884 = vld [vmem:[%s409 + $0x8] sm:$0xff]
      %v1885 = vld [vmem:[%s409 + $0x10] sm:$0xff]
      %v1886 = vld [vmem:[%s409 + $0x18] sm:$0xff]
      %v1887 = vld [vmem:[%s409 + $0x20] sm:$0xff]
      %v1888 = vld [vmem:[%s409 + $0x28] sm:$0xff]
      %v1889 = vld [vmem:[%s409 + $0x30] sm:$0xff]
      %v1890 = vld [vmem:[%s409 + $0x38] sm:$0xff]
      %v1891 = vadd.f32 %v1883, %v1853
      %v1892 = vadd.f32 %v1884, %v1856
      %v1893 = vadd.f32 %v1885, %v1861
      %v1894 = vadd.f32 %v1886, %v1864
      %v1895 = vadd.f32 %v1887, %v1869
      %v1896 = vadd.f32 %v1888, %v1872
      %v1897 = vadd.f32 %v1889, %v1877
      %v1898 = vadd.f32 %v1890, %v1880
      %v1899 = vld [vmem:[%s6] sm:$0x1]
      %v1900 = vld [vmem:[%s7] sm:$0x1]
      %1901 = vadd.xlane.f32.xlu0 %v1891
      %v1902 = vpop.xlane.xlu0 %1901
      %1903 = vadd.xlane.f32.xlu0 %v1892
      %v1904 = vpop.xlane.xlu0 %1903
      %1905 = vadd.xlane.f32.xlu0 %v1893
      %v1906 = vpop.xlane.xlu0 %1905
      %1907 = vadd.xlane.f32.xlu0 %v1894
      %v1908 = vpop.xlane.xlu0 %1907
      %1909 = vadd.xlane.f32.xlu0 %v1895
      %v1910 = vpop.xlane.xlu0 %1909
      %1911 = vadd.xlane.f32.xlu0 %v1896
      %v1912 = vpop.xlane.xlu0 %1911
      %1913 = vadd.xlane.f32.xlu0 %v1897
      %v1914 = vpop.xlane.xlu0 %1913
      %1915 = vadd.xlane.f32.xlu0 %v1898
      %v1916 = vpop.xlane.xlu0 %1915
      %v1917 = vrcp.pop 128.0
      %v1918 = vmul.f32 %v1902, %v1917
      %v1919 = vmul.f32 %v1904, %v1917
      %v1920 = vmul.f32 %v1906, %v1917
      %v1921 = vmul.f32 %v1908, %v1917
      %v1922 = vmul.f32 %v1910, %v1917
      %v1923 = vmul.f32 %v1912, %v1917
      %v1924 = vmul.f32 %v1914, %v1917
      %v1925 = vmul.f32 %v1916, %v1917
      %v1926 = vsub.f32 %v1891, %v1918
      %v1927 = vsub.f32 %v1892, %v1919
      %v1928 = vsub.f32 %v1893, %v1920
      %v1929 = vsub.f32 %v1894, %v1921
      %v1930 = vsub.f32 %v1895, %v1922
      %v1931 = vsub.f32 %v1896, %v1923
      %v1932 = vsub.f32 %v1897, %v1924
      %v1933 = vsub.f32 %v1898, %v1925
      %v1934 = vmul.f32 %v1926, %v1926
      %v1935 = vmul.f32 %v1927, %v1927
      %v1936 = vmul.f32 %v1928, %v1928
      %v1937 = vmul.f32 %v1929, %v1929
      %v1938 = vmul.f32 %v1930, %v1930
      %v1939 = vmul.f32 %v1931, %v1931
      %v1940 = vmul.f32 %v1932, %v1932
      %v1941 = vmul.f32 %v1933, %v1933
      %1942 = vadd.xlane.f32.xlu0 %v1934
      %v1943 = vpop.xlane.xlu0 %1942
      %1944 = vadd.xlane.f32.xlu0 %v1935
      %v1945 = vpop.xlane.xlu0 %1944
      %1946 = vadd.xlane.f32.xlu0 %v1936
      %v1947 = vpop.xlane.xlu0 %1946
      %1948 = vadd.xlane.f32.xlu0 %v1937
      %v1949 = vpop.xlane.xlu0 %1948
      %1950 = vadd.xlane.f32.xlu0 %v1938
      %v1951 = vpop.xlane.xlu0 %1950
      %1952 = vadd.xlane.f32.xlu0 %v1939
      %v1953 = vpop.xlane.xlu0 %1952
      %1954 = vadd.xlane.f32.xlu0 %v1940
      %v1955 = vpop.xlane.xlu0 %1954
      %1956 = vadd.xlane.f32.xlu0 %v1941
      %v1957 = vpop.xlane.xlu0 %1956
      %v1958 = vmul.f32 %v1943, %v1917
      %v1959 = vmul.f32 %v1945, %v1917
      %v1960 = vmul.f32 %v1947, %v1917
      %v1961 = vmul.f32 %v1949, %v1917
      %v1962 = vmul.f32 %v1951, %v1917
      %v1963 = vmul.f32 %v1953, %v1917
      %v1964 = vmul.f32 %v1955, %v1917
      %v1965 = vmul.f32 %v1957, %v1917
      %v1966 = vadd.f32 %v1958, 1e-05
      %v1967 = vadd.f32 %v1959, 1e-05
      %v1968 = vadd.f32 %v1960, 1e-05
      %v1969 = vadd.f32 %v1961, 1e-05
      %v1970 = vadd.f32 %v1962, 1e-05
      %v1971 = vadd.f32 %v1963, 1e-05
      %v1972 = vadd.f32 %v1964, 1e-05
      %v1973 = vadd.f32 %v1965, 1e-05
      %v1974 = vrsqrt.pop %v1966
      %v1975 = vrsqrt.pop %v1967
      %v1976 = vrsqrt.pop %v1968
      %v1977 = vrsqrt.pop %v1969
      %v1978 = vrsqrt.pop %v1970
      %v1979 = vrsqrt.pop %v1971
      %v1980 = vrsqrt.pop %v1972
      %v1981 = vrsqrt.pop %v1973
      %v1982 = vmul.f32 %v1926, %v1974
      %v1983 = vmul.f32 %v1927, %v1975
      %v1984 = vmul.f32 %v1928, %v1976
      %v1985 = vmul.f32 %v1929, %v1977
      %v1986 = vmul.f32 %v1930, %v1978
      %v1987 = vmul.f32 %v1931, %v1979
      %v1988 = vmul.f32 %v1932, %v1980
      %v1989 = vmul.f32 %v1933, %v1981
      %v1991 = vlaneseq
      %v1992 = vshrl.u32 %v1991, 7
      %v1993 = vsub.s32 0, %v1992
      %v1994 = vrot.slane %v1899, %v1993
      %v1996 = vmul.f32 %v1982, %v1994
      %v1997 = vmul.f32 %v1983, %v1994
      %v1998 = vmul.f32 %v1984, %v1994
      %v1999 = vmul.f32 %v1985, %v1994
      %v2000 = vmul.f32 %v1986, %v1994
      %v2001 = vmul.f32 %v1987, %v1994
      %v2002 = vmul.f32 %v1988, %v1994
      %v2003 = vmul.f32 %v1989, %v1994
      %v2005 = vlaneseq
      %v2006 = vshrl.u32 %v2005, 7
      %v2007 = vsub.s32 0, %v2006
      %v2008 = vrot.slane %v1900, %v2007
      %v2010 = vadd.f32 %v1996, %v2008
      %v2011 = vadd.f32 %v1997, %v2008
      %v2012 = vadd.f32 %v1998, %v2008
      %v2013 = vadd.f32 %v1999, %v2008
      %v2014 = vadd.f32 %v2000, %v2008
      %v2015 = vadd.f32 %v2001, %v2008
      %v2016 = vadd.f32 %v2002, %v2008
      %v2017 = vadd.f32 %v2003, %v2008
      %v2018 = vpack.c.bf16 %v2011, %v2010
      %v2019 = vpack.c.bf16 %v2013, %v2012
      %v2020 = vpack.c.bf16 %v2015, %v2014
      %v2021 = vpack.c.bf16 %v2017, %v2016
      %v2026 = vunpack.c.l.b16 %v2018
      %v2027 = vunpack.c.h.b16 %v2018
      %v2028 = vunpack.c.l.b16 %v2019
      %v2029 = vunpack.c.h.b16 %v2019
      %v2030 = vunpack.c.l.b16 %v2020
      %v2031 = vunpack.c.h.b16 %v2020
      %v2032 = vunpack.c.l.b16 %v2021
      %v2033 = vunpack.c.h.b16 %v2021
      %v2034 = vpack.c.b16 %v2026, %v2026
      %v2035 = vpack.c.b16 %v2027, %v2027
      %v2036 = vpack.c.b16 %v2028, %v2028
      %v2037 = vpack.c.b16 %v2029, %v2029
      %v2038 = vpack.c.b16 %v2030, %v2030
      %v2039 = vpack.c.b16 %v2031, %v2031
      %v2040 = vpack.c.b16 %v2032, %v2032
      %v2041 = vpack.c.b16 %v2033, %v2033
      %2050 = vst [vmem:[%s419] sm:$0xf] %v2034
      %2051 = vst [vmem:[%s419 + $0x4] sm:$0xf] %v2035
      %2052 = vst [vmem:[%s419 + $0x8] sm:$0xf] %v2036
      %2053 = vst [vmem:[%s419 + $0xc] sm:$0xf] %v2037
      %2054 = vst [vmem:[%s419 + $0x10] sm:$0xf] %v2038
      %2055 = vst [vmem:[%s419 + $0x14] sm:$0xf] %v2039
      %2056 = vst [vmem:[%s419 + $0x18] sm:$0xf] %v2040
      %2057 = vst [vmem:[%s419 + $0x1c] sm:$0xf] %v2041
      %s2058 = smul.u32 8, %s24
      %p2059 = scmp.lt.s32.totalorder %s23, 1
      %s2060 = scalar_select %p2059, %s23, 1
      %p2061 = scmp.lt.s32.totalorder %s2058, 7
      %s2062 = scalar_select %p2061, %s2058, 7
      %s2063 = smul.addr %s2060, 8
      %s2064 = sadd.s32 %s2062, %s2063
      %s2065 = smul.addr %s2064, 4
      %s2066 = scalar_lea.vmem %s8, %s2065
      // Predicated region
      $region53: #{_lambda_.7} parent=51 // pred_check
        %p2067 = pneg %p243
      $region54: #{_lambda_.7} parent=51 // pred_check_branch
        %2069 = sbr.rel (%p2067) target = $region56
      $region55: #{_lambda_.7} parent=51 // pred_region
        %s2070 = smul.u32 8, %s24
      $region56: #{_lambda_.7} parent=51 // pred_fallthru
        _
    $region52: #{_lambda_.7} parent=5 // pred_fallthru
      _
    %p2071 = scmp.le.s32.totalorder 2, %s14
    // Predicated region
    $region57: #{_lambda_.7} parent=5 // pred_check
      %p2072 = pneg %p2071
    $region58: #{_lambda_.7} parent=5 // pred_check_branch
      %2074 = sbr.rel (%p2072) target = $region60
    $region59: #{_lambda_.7} parent=5 // pred_region
      %s2075 = ssub.s32 %s14, 2
      // Predicated region
      $region61: #{_lambda_.7} parent=59 // pred_check
        %p2076 = pneg %p249
      $region62: #{_lambda_.7} parent=59 // pred_check_branch
        %2078 = sbr.rel (%p2076) target = $region64
      $region63: #{_lambda_.7} parent=59 // pred_region
        %s2079 = smul.u32 8, %s26
        %p2080 = scmp.lt.s32.totalorder %s25, 1
        %s2081 = scalar_select %p2080, %s25, 1
        %p2082 = scmp.lt.s32.totalorder %s2079, 7
        %s2083 = scalar_select %p2082, %s2079, 7
        %s2084 = smul.addr %s2081, 8
        %s2085 = sadd.s32 %s2083, %s2084
        %s2086 = smul.addr %s2085, 4
        %s2087 = scalar_lea.vmem %s8, %s2086
      $region64: #{_lambda_.7} parent=59 // pred_fallthru
        _
    $region60: #{_lambda_.7} parent=5 // pred_fallthru
      _
  $region6: #{_lambda_.7} parent=0 // loop_footer
    %s18 = sadd.s32 1, %s14
  $region7: #{_lambda_.7} parent=0 // loop_footer_branch
    %13 = sbr.rel target = $region3
  $region8: #{_lambda_.7} parent=0 // loop_exit
    _

// kernel: _lambda_.11
$region0: #{_lambda_.11}
  #allocation0 [shape = 'u32[]', space=smem, size = 0x4, offset = 0x4, fixed_abs, tag = 'smem constant byte address 0x4 - core index']
  #allocation1 [shape = 'u32[144,128]{1,0:T(1,128)}', space=vmem, size = 0x12000, scoped, tag = 'internal scratch']
  %s0 = inlined_call_operand.vmem [shape: bf16[128,128], index: 0, kind: input, shape index: {}]
  %s1 = inlined_call_operand.vmem [shape: bf16[128,256], index: 1, kind: input, shape index: {}]
  %s2 = inlined_call_operand.vmem [shape: f32[1,256], index: 2, kind: input, shape index: {}]
  %s3 = inlined_call_operand.vmem [shape: bf16[256,128], index: 3, kind: input, shape index: {}]
  %s4 = inlined_call_operand.vmem [shape: f32[1,128], index: 4, kind: input, shape index: {}]
  %s5 = inlined_call_operand.vmem [shape: f32[1,128], index: 5, kind: input, shape index: {}]
  %s6 = inlined_call_operand.vmem [shape: f32[1,128], index: 6, kind: input, shape index: {}]
  %s7 = inlined_call_operand.vmem [shape: f32[1,128], index: 7, kind: input, shape index: {}]
  %s8 = inlined_call_operand.vmem [shape: f32[1,128], index: 8, kind: input, shape index: {}]
  %s9 = inlined_call_operand.hbm [shape: f32[128,128], index: 9, kind: output, shape index: {}]
  %s10 = sld [smem:[#allocation0]]
  $region46: #{_lambda_.11} parent=0
    _
  %s12 = ssub.s32 1, %s10
  %s13 = scalar_select 0, %s12, %s10
  $region1: #{_lambda_.11} parent=0
    #allocation2 [shape = 'u8[65536]{0}', space=vmem, size = 0x10000, scoped, tag = 'output window, operand 0, single buffered']
    #allocation3 [shape = 's32[1]{0}', space=sflag, size = 0x4, scoped, tag = 'scoped memory for _lambda_.11']
    %14 = vsyncpa [#allocation3], 0
    // Predicated region
    $region2: #{_lambda_.11} parent=1 // pred_check
      _
    $region3: #{_lambda_.11} parent=1 // pred_check_branch
      %16 = sbr.rel (0) target = $region5
    $region4: #{_lambda_.11} parent=1 // pred_region
      _
    $region5: #{_lambda_.11} parent=1 // pred_fallthru
      _
    // Predicated region
    $region6: #{_lambda_.11} parent=1 // pred_check
      _
    $region7: #{_lambda_.11} parent=1 // pred_check_branch
      %18 = sbr.rel (0) target = $region9
    $region8: #{_lambda_.11} parent=1 // pred_region
      _
    $region9: #{_lambda_.11} parent=1 // pred_fallthru
      _
    // Predicated region
    $region10: #{_lambda_.11} parent=1 // pred_check
      _
    $region11: #{_lambda_.11} parent=1 // pred_check_branch
      %20 = sbr.rel (0) target = $region13
    $region12: #{_lambda_.11} parent=1 // pred_region
      _
    $region13: #{_lambda_.11} parent=1 // pred_fallthru
      _
    // Predicated region
    $region14: #{_lambda_.11} parent=1 // pred_check
      _
    $region15: #{_lambda_.11} parent=1 // pred_check_branch
      %22 = sbr.rel (0) target = $region17
    $region16: #{_lambda_.11} parent=1 // pred_region
      _
    $region17: #{_lambda_.11} parent=1 // pred_fallthru
      _
    // Predicated region
    $region18: #{_lambda_.11} parent=1 // pred_check
      _
    $region19: #{_lambda_.11} parent=1 // pred_check_branch
      %24 = sbr.rel (0) target = $region21
    $region20: #{_lambda_.11} parent=1 // pred_region
      _
    $region21: #{_lambda_.11} parent=1 // pred_fallthru
      _
    // Predicated region
    $region22: #{_lambda_.11} parent=1 // pred_check
      _
    $region23: #{_lambda_.11} parent=1 // pred_check_branch
      %26 = sbr.rel (0) target = $region25
    $region24: #{_lambda_.11} parent=1 // pred_region
      _
    $region25: #{_lambda_.11} parent=1 // pred_fallthru
      _
    // Predicated region
    $region26: #{_lambda_.11} parent=1 // pred_check
      _
    $region27: #{_lambda_.11} parent=1 // pred_check_branch
      %28 = sbr.rel (0) target = $region29
    $region28: #{_lambda_.11} parent=1 // pred_region
      _
    $region29: #{_lambda_.11} parent=1 // pred_fallthru
      _
    // Predicated region
    $region30: #{_lambda_.11} parent=1 // pred_check
      _
    $region31: #{_lambda_.11} parent=1 // pred_check_branch
      %30 = sbr.rel (0) target = $region33
    $region32: #{_lambda_.11} parent=1 // pred_region
      _
    $region33: #{_lambda_.11} parent=1 // pred_fallthru
      _
    // Predicated region
    $region34: #{_lambda_.11} parent=1 // pred_check
      _
    $region35: #{_lambda_.11} parent=1 // pred_check_branch
      %32 = sbr.rel (0) target = $region37
    $region36: #{_lambda_.11} parent=1 // pred_region
      _
    $region37: #{_lambda_.11} parent=1 // pred_fallthru
      _
    %v34 = vld [vmem:[%s0] sm:$0xf]
    %v35 = vld [vmem:[%s0 + $0x4] sm:$0xf]
    %v36 = vld [vmem:[%s0 + $0x8] sm:$0xf]
    %v37 = vld [vmem:[%s0 + $0xc] sm:$0xf]
    %v38 = vld [vmem:[%s0 + $0x10] sm:$0xf]
    %v39 = vld [vmem:[%s0 + $0x14] sm:$0xf]
    %v40 = vld [vmem:[%s0 + $0x18] sm:$0xf]
    %v41 = vld [vmem:[%s0 + $0x1c] sm:$0xf]
    %v42 = vld [vmem:[%s0 + $0x20] sm:$0xf]
    %v43 = vld [vmem:[%s0 + $0x24] sm:$0xf]
    %v44 = vld [vmem:[%s0 + $0x28] sm:$0xf]
    %v45 = vld [vmem:[%s0 + $0x2c] sm:$0xf]
    %v46 = vld [vmem:[%s0 + $0x30] sm:$0xf]
    %v47 = vld [vmem:[%s0 + $0x34] sm:$0xf]
    %v48 = vld [vmem:[%s0 + $0x38] sm:$0xf]
    %v49 = vld [vmem:[%s0 + $0x3c] sm:$0xf]
    %v50 = vld [vmem:[%s1] sm:$0xff]
    %v51 = vld [vmem:[%s1 + $0x8] sm:$0xff]
    %v52 = vld [vmem:[%s1 + $0x10] sm:$0xff]
    %v53 = vld [vmem:[%s1 + $0x18] sm:$0xff]
    %v54 = vld [vmem:[%s1 + $0x20] sm:$0xff]
    %v55 = vld [vmem:[%s1 + $0x28] sm:$0xff]
    %v56 = vld [vmem:[%s1 + $0x30] sm:$0xff]
    %v57 = vld [vmem:[%s1 + $0x38] sm:$0xff]
    %v58 = vld [vmem:[%s1 + $0x40] sm:$0xff]
    %v59 = vld [vmem:[%s1 + $0x48] sm:$0xff]
    %v60 = vld [vmem:[%s1 + $0x50] sm:$0xff]
    %v61 = vld [vmem:[%s1 + $0x58] sm:$0xff]
    %v62 = vld [vmem:[%s1 + $0x60] sm:$0xff]
    %v63 = vld [vmem:[%s1 + $0x68] sm:$0xff]
    %v64 = vld [vmem:[%s1 + $0x70] sm:$0xff]
    %v65 = vld [vmem:[%s1 + $0x78] sm:$0xff]
    %v66 = vld [vmem:[%s2] sm:$0x3]
    %v68 = vlaneseq
    %v69 = vshrl.u32 %v68, 7
    %v70 = vsub.s32 0, %v69
    %v71 = vrot.slane %v66, %v70
    %v72 = vlaneseq
    %v73 = vshrl.u32 %v72, 7
    %v74 = vsub.s32 1, %v73
    %v75 = vrot.slane %v66, %v74
    %v94 = vunpack.c.l.b16 %v34
    %v95 = vunpack.c.l.b16 %v35
    %v96 = vunpack.c.l.b16 %v36
    %v97 = vunpack.c.l.b16 %v37
    %v98 = vunpack.c.l.b16 %v38
    %v99 = vunpack.c.l.b16 %v39
    %v100 = vunpack.c.l.b16 %v40
    %v101 = vunpack.c.l.b16 %v41
    %v102 = vunpack.c.l.b16 %v42
    %v103 = vunpack.c.l.b16 %v43
    %v104 = vunpack.c.l.b16 %v44
    %v105 = vunpack.c.l.b16 %v45
    %v106 = vunpack.c.l.b16 %v46
    %v107 = vunpack.c.l.b16 %v47
    %v108 = vunpack.c.l.b16 %v48
    %v109 = vunpack.c.l.b16 %v49
    %v110 = vpack.c.b16 %v95, %v94
    %v111 = vpack.c.b16 %v97, %v96
    %v112 = vpack.c.b16 %v99, %v98
    %v113 = vpack.c.b16 %v101, %v100
    %v114 = vpack.c.b16 %v103, %v102
    %v115 = vpack.c.b16 %v105, %v104
    %v116 = vpack.c.b16 %v107, %v106
    %v117 = vpack.c.b16 %v109, %v108
    %v142 = vunpack.c.l.b16 %v50
    %v143 = vunpack.c.h.b16 %v50
    %v144 = vunpack.c.l.b16 %v51
    %v145 = vunpack.c.h.b16 %v51
    %v146 = vunpack.c.l.b16 %v52
    %v147 = vunpack.c.h.b16 %v52
    %v148 = vunpack.c.l.b16 %v53
    %v149 = vunpack.c.h.b16 %v53
    %v150 = vunpack.c.l.b16 %v54
    %v151 = vunpack.c.h.b16 %v54
    %v152 = vunpack.c.l.b16 %v55
    %v153 = vunpack.c.h.b16 %v55
    %v154 = vunpack.c.l.b16 %v56
    %v155 = vunpack.c.h.b16 %v56
    %v156 = vunpack.c.l.b16 %v57
    %v157 = vunpack.c.h.b16 %v57
    %v158 = vunpack.c.l.b16 %v58
    %v159 = vunpack.c.h.b16 %v58
    %v160 = vunpack.c.l.b16 %v59
    %v161 = vunpack.c.h.b16 %v59
    %v162 = vunpack.c.l.b16 %v60
    %v163 = vunpack.c.h.b16 %v60
    %v164 = vunpack.c.l.b16 %v61
    %v165 = vunpack.c.h.b16 %v61
    %v166 = vunpack.c.l.b16 %v62
    %v167 = vunpack.c.h.b16 %v62
    %v168 = vunpack.c.l.b16 %v63
    %v169 = vunpack.c.h.b16 %v63
    %v170 = vunpack.c.l.b16 %v64
    %v171 = vunpack.c.h.b16 %v64
    %v172 = vunpack.c.l.b16 %v65
    %v173 = vunpack.c.h.b16 %v65
    %v174 = vpack.c.b16 %v144, %v142
    %v175 = vpack.c.b16 %v145, %v143
    %v176 = vpack.c.b16 %v148, %v146
    %v177 = vpack.c.b16 %v149, %v147
    %v178 = vpack.c.b16 %v152, %v150
    %v179 = vpack.c.b16 %v153, %v151
    %v180 = vpack.c.b16 %v156, %v154
    %v181 = vpack.c.b16 %v157, %v155
    %v182 = vpack.c.b16 %v160, %v158
    %v183 = vpack.c.b16 %v161, %v159
    %v184 = vpack.c.b16 %v164, %v162
    %v185 = vpack.c.b16 %v165, %v163
    %v186 = vpack.c.b16 %v168, %v166
    %v187 = vpack.c.b16 %v169, %v167
    %v188 = vpack.c.b16 %v172, %v170
    %v189 = vpack.c.b16 %v173, %v171
    %206 = vmatprep.subr.bf16.mxu0 %v175
    %207 = vmatpush1.bf16.msra.mxu0 %v174
    %208 = vmatprep.subr.bf16.mxu0 %v177
    %209 = vmatpush1.bf16.msra.mxu0 %v176
    %210 = vmatprep.subr.bf16.mxu0 %v179
    %211 = vmatpush1.bf16.msra.mxu0 %v178
    %212 = vmatprep.subr.bf16.mxu0 %v181
    %213 = vmatpush1.bf16.msra.mxu0 %v180
    %214 = vmatprep.subr.bf16.mxu0 %v183
    %215 = vmatpush1.bf16.msra.mxu0 %v182
    %216 = vmatprep.subr.bf16.mxu0 %v185
    %217 = vmatpush1.bf16.msra.mxu0 %v184
    %218 = vmatprep.subr.bf16.mxu0 %v187
    %219 = vmatpush1.bf16.msra.mxu0 %v186
    %220 = vmatprep.subr.bf16.mxu0 %v189
    %221 = vmatpush1.bf16.msra.mxu0 %v188
    %222 = vmatprep.subr.bf16.mxu0 0
    %223 = vmatpush1.bf16.msra.mxu0 0
    %224 = vmatprep.subr.bf16.mxu0 0
    %225 = vmatpush1.bf16.msra.mxu0 0
    %226 = vmatprep.subr.bf16.mxu0 0
    %227 = vmatpush1.bf16.msra.mxu0 0
    %228 = vmatprep.subr.bf16.mxu0 0
    %229 = vmatpush1.bf16.msra.mxu0 0
    %230 = vmatprep.subr.bf16.mxu0 0
    %231 = vmatpush1.bf16.msra.mxu0 0
    %232 = vmatprep.subr.bf16.mxu0 0
    %233 = vmatpush1.bf16.msra.mxu0 0
    %234 = vmatprep.subr.bf16.mxu0 0
    %235 = vmatpush1.bf16.msra.mxu0 0
    %236 = vmatprep.subr.bf16.mxu0 0
    %237 = vmatpush1.bf16.msra.mxu0 0
    %238 = vmatprep.mubr.bf16.mxu0 0
    %239 = vmatmul.mubr.bf16.gmra.mrb[0].mxu0 %v110
    %v240 = vpop.f32.mrb[0].mxu0
    %v241 = vadd.f32 %v71, %v240
    %v242 = vpop.f32.mrb[0].mxu0
    %v243 = vadd.f32 %v75, %v242
    %v244 = vpop.f32.mrb[0].mxu0
    %v245 = vadd.f32 %v71, %v244
    %v246 = vpop.f32.mrb[0].mxu0
    %v247 = vadd.f32 %v75, %v246
    %248 = vmatprep.mubr.bf16.mxu0 0
    %249 = vmatmul.mubr.bf16.gmra.mrb[0].mxu0 %v111
    %v250 = vpop.f32.mrb[0].mxu0
    %v251 = vadd.f32 %v71, %v250
    %v252 = vpop.f32.mrb[0].mxu0
    %v253 = vadd.f32 %v75, %v252
    %v254 = vpop.f32.mrb[0].mxu0
    %v255 = vadd.f32 %v71, %v254
    %v256 = vpop.f32.mrb[0].mxu0
    %v257 = vadd.f32 %v75, %v256
    %258 = vmatprep.mubr.bf16.mxu0 0
    %259 = vmatmul.mubr.bf16.gmra.mrb[0].mxu0 %v112
    %v260 = vpop.f32.mrb[0].mxu0
    %v261 = vadd.f32 %v71, %v260
    %v262 = vpop.f32.mrb[0].mxu0
    %v263 = vadd.f32 %v75, %v262
    %v264 = vpop.f32.mrb[0].mxu0
    %v265 = vadd.f32 %v71, %v264
    %v266 = vpop.f32.mrb[0].mxu0
    %v267 = vadd.f32 %v75, %v266
    %268 = vmatprep.mubr.bf16.mxu0 0
    %269 = vmatmul.mubr.bf16.gmra.mrb[0].mxu0 %v113
    %v270 = vpop.f32.mrb[0].mxu0
    %v271 = vadd.f32 %v71, %v270
    %v272 = vpop.f32.mrb[0].mxu0
    %v273 = vadd.f32 %v75, %v272
    %v274 = vpop.f32.mrb[0].mxu0
    %v275 = vadd.f32 %v71, %v274
    %v276 = vpop.f32.mrb[0].mxu0
    %v277 = vadd.f32 %v75, %v276
    %278 = vmatprep.mubr.bf16.mxu0 0
    %279 = vmatmul.mubr.bf16.gmra.mrb[0].mxu0 %v114
    %v280 = vpop.f32.mrb[0].mxu0
    %v281 = vadd.f32 %v71, %v280
    %v282 = vpop.f32.mrb[0].mxu0
    %v283 = vadd.f32 %v75, %v282
    %v284 = vpop.f32.mrb[0].mxu0
    %v285 = vadd.f32 %v71, %v284
    %v286 = vpop.f32.mrb[0].mxu0
    %v287 = vadd.f32 %v75, %v286
    %288 = vmatprep.mubr.bf16.mxu0 0
    %289 = vmatmul.mubr.bf16.gmra.mrb[0].mxu0 %v115
    %v290 = vpop.f32.mrb[0].mxu0
    %v291 = vadd.f32 %v71, %v290
    %v292 = vpop.f32.mrb[0].mxu0
    %v293 = vadd.f32 %v75, %v292
    %v294 = vpop.f32.mrb[0].mxu0
    %v295 = vadd.f32 %v71, %v294
    %v296 = vpop.f32.mrb[0].mxu0
    %v297 = vadd.f32 %v75, %v296
    %298 = vmatprep.mubr.bf16.mxu0 0
    %299 = vmatmul.mubr.bf16.gmra.mrb[0].mxu0 %v116
    %v300 = vpop.f32.mrb[0].mxu0
    %v301 = vadd.f32 %v71, %v300
    %v302 = vpop.f32.mrb[0].mxu0
    %v303 = vadd.f32 %v75, %v302
    %v304 = vpop.f32.mrb[0].mxu0
    %v305 = vadd.f32 %v71, %v304
    %v306 = vpop.f32.mrb[0].mxu0
    %v307 = vadd.f32 %v75, %v306
    %308 = vmatprep.mubr.bf16.mxu0 0
    %309 = vmatmul.mubr.bf16.gmra.mrb[0].mxu0 %v117
    %v310 = vpop.f32.mrb[0].mxu0
    %v311 = vadd.f32 %v71, %v310
    %v312 = vpop.f32.mrb[0].mxu0
    %v313 = vadd.f32 %v75, %v312
    %v314 = vpop.f32.mrb[0].mxu0
    %v315 = vadd.f32 %v71, %v314
    %v316 = vpop.f32.mrb[0].mxu0
    %v317 = vadd.f32 %v75, %v316
    %318 = vdwg.mxu0
    %v319 = vmax.f32 %v241, 0.0
    %v320 = vmax.f32 %v243, 0.0
    %v321 = vmax.f32 %v245, 0.0
    %v322 = vmax.f32 %v247, 0.0
    %v323 = vmax.f32 %v251, 0.0
    %v324 = vmax.f32 %v253, 0.0
    %v325 = vmax.f32 %v255, 0.0
    %v326 = vmax.f32 %v257, 0.0
    %v327 = vmax.f32 %v261, 0.0
    %v328 = vmax.f32 %v263, 0.0
    %v329 = vmax.f32 %v265, 0.0
    %v330 = vmax.f32 %v267, 0.0
    %v331 = vmax.f32 %v271, 0.0
    %v332 = vmax.f32 %v273, 0.0
    %v333 = vmax.f32 %v275, 0.0
    %v334 = vmax.f32 %v277, 0.0
    %v335 = vmax.f32 %v281, 0.0
    %v336 = vmax.f32 %v283, 0.0
    %v337 = vmax.f32 %v285, 0.0
    %v338 = vmax.f32 %v287, 0.0
    %v339 = vmax.f32 %v291, 0.0
    %v340 = vmax.f32 %v293, 0.0
    %v341 = vmax.f32 %v295, 0.0
    %v342 = vmax.f32 %v297, 0.0
    %v343 = vmax.f32 %v301, 0.0
    %v344 = vmax.f32 %v303, 0.0
    %v345 = vmax.f32 %v305, 0.0
    %v346 = vmax.f32 %v307, 0.0
    %v347 = vmax.f32 %v311, 0.0
    %v348 = vmax.f32 %v313, 0.0
    %v349 = vmax.f32 %v315, 0.0
    %v350 = vmax.f32 %v317, 0.0
    %v351 = vpack.c.bf16 %v321, %v319
    %v352 = vpack.c.bf16 %v322, %v320
    %v353 = vpack.c.bf16 %v325, %v323
    %v354 = vpack.c.bf16 %v326, %v324
    %v355 = vpack.c.bf16 %v329, %v327
    %v356 = vpack.c.bf16 %v330, %v328
    %v357 = vpack.c.bf16 %v333, %v331
    %v358 = vpack.c.bf16 %v334, %v332
    %v359 = vpack.c.bf16 %v337, %v335
    %v360 = vpack.c.bf16 %v338, %v336
    %v361 = vpack.c.bf16 %v341, %v339
    %v362 = vpack.c.bf16 %v342, %v340
    %v363 = vpack.c.bf16 %v345, %v343
    %v364 = vpack.c.bf16 %v346, %v344
    %v365 = vpack.c.bf16 %v349, %v347
    %v366 = vpack.c.bf16 %v350, %v348
    %v367 = vld [vmem:[%s3] sm:$0xf]
    %v368 = vld [vmem:[%s3 + $0x4] sm:$0xf]
    %v369 = vld [vmem:[%s3 + $0x8] sm:$0xf]
    %v370 = vld [vmem:[%s3 + $0xc] sm:$0xf]
    %v371 = vld [vmem:[%s3 + $0x10] sm:$0xf]
    %v372 = vld [vmem:[%s3 + $0x14] sm:$0xf]
    %v373 = vld [vmem:[%s3 + $0x18] sm:$0xf]
    %v374 = vld [vmem:[%s3 + $0x1c] sm:$0xf]
    %v375 = vld [vmem:[%s3 + $0x20] sm:$0xf]
    %v376 = vld [vmem:[%s3 + $0x24] sm:$0xf]
    %v377 = vld [vmem:[%s3 + $0x28] sm:$0xf]
    %v378 = vld [vmem:[%s3 + $0x2c] sm:$0xf]
    %v379 = vld [vmem:[%s3 + $0x30] sm:$0xf]
    %v380 = vld [vmem:[%s3 + $0x34] sm:$0xf]
    %v381 = vld [vmem:[%s3 + $0x38] sm:$0xf]
    %v382 = vld [vmem:[%s3 + $0x3c] sm:$0xf]
    %v383 = vld [vmem:[%s3 + $0x40] sm:$0xf]
    %v384 = vld [vmem:[%s3 + $0x44] sm:$0xf]
    %v385 = vld [vmem:[%s3 + $0x48] sm:$0xf]
    %v386 = vld [vmem:[%s3 + $0x4c] sm:$0xf]
    %v387 = vld [vmem:[%s3 + $0x50] sm:$0xf]
    %v388 = vld [vmem:[%s3 + $0x54] sm:$0xf]
    %v389 = vld [vmem:[%s3 + $0x58] sm:$0xf]
    %v390 = vld [vmem:[%s3 + $0x5c] sm:$0xf]
    %v391 = vld [vmem:[%s3 + $0x60] sm:$0xf]
    %v392 = vld [vmem:[%s3 + $0x64] sm:$0xf]
    %v393 = vld [vmem:[%s3 + $0x68] sm:$0xf]
    %v394 = vld [vmem:[%s3 + $0x6c] sm:$0xf]
    %v395 = vld [vmem:[%s3 + $0x70] sm:$0xf]
    %v396 = vld [vmem:[%s3 + $0x74] sm:$0xf]
    %v397 = vld [vmem:[%s3 + $0x78] sm:$0xf]
    %v398 = vld [vmem:[%s3 + $0x7c] sm:$0xf]
    %v399 = vld [vmem:[%s4] sm:$0x1]
    %v401 = vlaneseq
    %v402 = vshrl.u32 %v401, 7
    %v403 = vsub.s32 0, %v402
    %v404 = vrot.slane %v399, %v403
    %v438 = vunpack.c.l.b16 %v367
    %v439 = vunpack.c.l.b16 %v368
    %v440 = vunpack.c.l.b16 %v369
    %v441 = vunpack.c.l.b16 %v370
    %v442 = vunpack.c.l.b16 %v371
    %v443 = vunpack.c.l.b16 %v372
    %v444 = vunpack.c.l.b16 %v373
    %v445 = vunpack.c.l.b16 %v374
    %v446 = vunpack.c.l.b16 %v375
    %v447 = vunpack.c.l.b16 %v376
    %v448 = vunpack.c.l.b16 %v377
    %v449 = vunpack.c.l.b16 %v378
    %v450 = vunpack.c.l.b16 %v379
    %v451 = vunpack.c.l.b16 %v380
    %v452 = vunpack.c.l.b16 %v381
    %v453 = vunpack.c.l.b16 %v382
    %v454 = vunpack.c.l.b16 %v383
    %v455 = vunpack.c.l.b16 %v384
    %v456 = vunpack.c.l.b16 %v385
    %v457 = vunpack.c.l.b16 %v386
    %v458 = vunpack.c.l.b16 %v387
    %v459 = vunpack.c.l.b16 %v388
    %v460 = vunpack.c.l.b16 %v389
    %v461 = vunpack.c.l.b16 %v390
    %v462 = vunpack.c.l.b16 %v391
    %v463 = vunpack.c.l.b16 %v392
    %v464 = vunpack.c.l.b16 %v393
    %v465 = vunpack.c.l.b16 %v394
    %v466 = vunpack.c.l.b16 %v395
    %v467 = vunpack.c.l.b16 %v396
    %v468 = vunpack.c.l.b16 %v397
    %v469 = vunpack.c.l.b16 %v398
    %v470 = vpack.c.b16 %v439, %v438
    %v471 = vpack.c.b16 %v441, %v440
    %v472 = vpack.c.b16 %v443, %v442
    %v473 = vpack.c.b16 %v445, %v444
    %v474 = vpack.c.b16 %v447, %v446
    %v475 = vpack.c.b16 %v449, %v448
    %v476 = vpack.c.b16 %v451, %v450
    %v477 = vpack.c.b16 %v453, %v452
    %v478 = vpack.c.b16 %v455, %v454
    %v479 = vpack.c.b16 %v457, %v456
    %v480 = vpack.c.b16 %v459, %v458
    %v481 = vpack.c.b16 %v461, %v460
    %v482 = vpack.c.b16 %v463, %v462
    %v483 = vpack.c.b16 %v465, %v464
    %v484 = vpack.c.b16 %v467, %v466
    %v485 = vpack.c.b16 %v469, %v468
    %502 = vmatprep.subr.bf16.mxu0 0
    %503 = vmatpush1.bf16.msra.mxu0 %v470
    %504 = vmatprep.subr.bf16.mxu0 0
    %505 = vmatpush1.bf16.msra.mxu0 %v471
    %506 = vmatprep.subr.bf16.mxu0 0
    %507 = vmatpush1.bf16.msra.mxu0 %v472
    %508 = vmatprep.subr.bf16.mxu0 0
    %509 = vmatpush1.bf16.msra.mxu0 %v473
    %510 = vmatprep.subr.bf16.mxu0 0
    %511 = vmatpush1.bf16.msra.mxu0 %v474
    %512 = vmatprep.subr.bf16.mxu0 0
    %513 = vmatpush1.bf16.msra.mxu0 %v475
    %514 = vmatprep.subr.bf16.mxu0 0
    %515 = vmatpush1.bf16.msra.mxu0 %v476
    %516 = vmatprep.subr.bf16.mxu0 0
    %517 = vmatpush1.bf16.msra.mxu0 %v477
    %518 = vmatprep.subr.bf16.mxu0 0
    %519 = vmatpush1.bf16.msra.mxu0 %v478
    %520 = vmatprep.subr.bf16.mxu0 0
    %521 = vmatpush1.bf16.msra.mxu0 %v479
    %522 = vmatprep.subr.bf16.mxu0 0
    %523 = vmatpush1.bf16.msra.mxu0 %v480
    %524 = vmatprep.subr.bf16.mxu0 0
    %525 = vmatpush1.bf16.msra.mxu0 %v481
    %526 = vmatprep.subr.bf16.mxu0 0
    %527 = vmatpush1.bf16.msra.mxu0 %v482
    %528 = vmatprep.subr.bf16.mxu0 0
    %529 = vmatpush1.bf16.msra.mxu0 %v483
    %530 = vmatprep.subr.bf16.mxu0 0
    %531 = vmatpush1.bf16.msra.mxu0 %v484
    %532 = vmatprep.subr.bf16.mxu0 0
    %533 = vmatpush1.bf16.msra.mxu0 %v485
    %534 = vmatprep.mubr.bf16.mxu0 %v352
    %535 = vmatmul.mubr.bf16.gmra.mrb[0].mxu0 %v351
    %v536 = vpop.f32.mrb[0].mxu0
    %v537 = vadd.f32 %v404, %v536
    %v538 = vpop.f32.mrb[0].mxu0
    %v539 = vpop.f32.mrb[0].mxu0
    %v540 = vadd.f32 %v404, %v539
    %v541 = vpop.f32.mrb[0].mxu0
    %542 = vmatprep.mubr.bf16.mxu0 %v354
    %543 = vmatmul.mubr.bf16.gmra.mrb[0].mxu0 %v353
    %v544 = vpop.f32.mrb[0].mxu0
    %v545 = vadd.f32 %v404, %v544
    %v546 = vpop.f32.mrb[0].mxu0
    %v547 = vpop.f32.mrb[0].mxu0
    %v548 = vadd.f32 %v404, %v547
    %v549 = vpop.f32.mrb[0].mxu0
    %550 = vmatprep.mubr.bf16.mxu0 %v356
    %551 = vmatmul.mubr.bf16.gmra.mrb[0].mxu0 %v355
    %v552 = vpop.f32.mrb[0].mxu0
    %v553 = vadd.f32 %v404, %v552
    %v554 = vpop.f32.mrb[0].mxu0
    %v555 = vpop.f32.mrb[0].mxu0
    %v556 = vadd.f32 %v404, %v555
    %v557 = vpop.f32.mrb[0].mxu0
    %558 = vmatprep.mubr.bf16.mxu0 %v358
    %559 = vmatmul.mubr.bf16.gmra.mrb[0].mxu0 %v357
    %v560 = vpop.f32.mrb[0].mxu0
    %v561 = vadd.f32 %v404, %v560
    %v562 = vpop.f32.mrb[0].mxu0
    %v563 = vpop.f32.mrb[0].mxu0
    %v564 = vadd.f32 %v404, %v563
    %v565 = vpop.f32.mrb[0].mxu0
    %566 = vmatprep.mubr.bf16.mxu0 %v360
    %567 = vmatmul.mubr.bf16.gmra.mrb[0].mxu0 %v359
    %v568 = vpop.f32.mrb[0].mxu0
    %v569 = vadd.f32 %v404, %v568
    %v570 = vpop.f32.mrb[0].mxu0
    %v571 = vpop.f32.mrb[0].mxu0
    %v572 = vadd.f32 %v404, %v571
    %v573 = vpop.f32.mrb[0].mxu0
    %574 = vmatprep.mubr.bf16.mxu0 %v362
    %575 = vmatmul.mubr.bf16.gmra.mrb[0].mxu0 %v361
    %v576 = vpop.f32.mrb[0].mxu0
    %v577 = vadd.f32 %v404, %v576
    %v578 = vpop.f32.mrb[0].mxu0
    %v579 = vpop.f32.mrb[0].mxu0
    %v580 = vadd.f32 %v404, %v579
    %v581 = vpop.f32.mrb[0].mxu0
    %582 = vmatprep.mubr.bf16.mxu0 %v364
    %583 = vmatmul.mubr.bf16.gmra.mrb[0].mxu0 %v363
    %v584 = vpop.f32.mrb[0].mxu0
    %v585 = vadd.f32 %v404, %v584
    %v586 = vpop.f32.mrb[0].mxu0
    %v587 = vpop.f32.mrb[0].mxu0
    %v588 = vadd.f32 %v404, %v587
    %v589 = vpop.f32.mrb[0].mxu0
    %590 = vmatprep.mubr.bf16.mxu0 %v366
    %591 = vmatmul.mubr.bf16.gmra.mrb[0].mxu0 %v365
    %v592 = vpop.f32.mrb[0].mxu0
    %v593 = vadd.f32 %v404, %v592
    %v594 = vpop.f32.mrb[0].mxu0
    %v595 = vpop.f32.mrb[0].mxu0
    %v596 = vadd.f32 %v404, %v595
    %v597 = vpop.f32.mrb[0].mxu0
    %598 = vdwg.mxu0
    %v599 = vunpack.c.l.bf16 %v34
    %v600 = vunpack.c.l.bf16 %v35
    %v601 = vunpack.c.l.bf16 %v36
    %v602 = vunpack.c.l.bf16 %v37
    %v603 = vunpack.c.l.bf16 %v38
    %v604 = vunpack.c.l.bf16 %v39
    %v605 = vunpack.c.l.bf16 %v40
    %v606 = vunpack.c.l.bf16 %v41
    %v607 = vunpack.c.l.bf16 %v42
    %v608 = vunpack.c.l.bf16 %v43
    %v609 = vunpack.c.l.bf16 %v44
    %v610 = vunpack.c.l.bf16 %v45
    %v611 = vunpack.c.l.bf16 %v46
    %v612 = vunpack.c.l.bf16 %v47
    %v613 = vunpack.c.l.bf16 %v48
    %v614 = vunpack.c.l.bf16 %v49
    %v615 = vadd.f32 %v599, %v537
    %v616 = vadd.f32 %v600, %v540
    %v617 = vadd.f32 %v601, %v545
    %v618 = vadd.f32 %v602, %v548
    %v619 = vadd.f32 %v603, %v553
    %v620 = vadd.f32 %v604, %v556
    %v621 = vadd.f32 %v605, %v561
    %v622 = vadd.f32 %v606, %v564
    %v623 = vadd.f32 %v607, %v569
    %v624 = vadd.f32 %v608, %v572
    %v625 = vadd.f32 %v609, %v577
    %v626 = vadd.f32 %v610, %v580
    %v627 = vadd.f32 %v611, %v585
    %v628 = vadd.f32 %v612, %v588
    %v629 = vadd.f32 %v613, %v593
    %v630 = vadd.f32 %v614, %v596
    %v631 = vld [vmem:[%s5] sm:$0x1]
    %v632 = vld [vmem:[%s6] sm:$0x1]
    %633 = vadd.xlane.f32.xlu0 %v615
    %v634 = vpop.xlane.xlu0 %633
    %635 = vadd.xlane.f32.xlu0 %v616
    %v636 = vpop.xlane.xlu0 %635
    %637 = vadd.xlane.f32.xlu0 %v617
    %v638 = vpop.xlane.xlu0 %637
    %639 = vadd.xlane.f32.xlu0 %v618
    %v640 = vpop.xlane.xlu0 %639
    %641 = vadd.xlane.f32.xlu0 %v619
    %v642 = vpop.xlane.xlu0 %641
    %643 = vadd.xlane.f32.xlu0 %v620
    %v644 = vpop.xlane.xlu0 %643
    %645 = vadd.xlane.f32.xlu0 %v621
    %v646 = vpop.xlane.xlu0 %645
    %647 = vadd.xlane.f32.xlu0 %v622
    %v648 = vpop.xlane.xlu0 %647
    %649 = vadd.xlane.f32.xlu0 %v623
    %v650 = vpop.xlane.xlu0 %649
    %651 = vadd.xlane.f32.xlu0 %v624
    %v652 = vpop.xlane.xlu0 %651
    %653 = vadd.xlane.f32.xlu0 %v625
    %v654 = vpop.xlane.xlu0 %653
    %655 = vadd.xlane.f32.xlu0 %v626
    %v656 = vpop.xlane.xlu0 %655
    %657 = vadd.xlane.f32.xlu0 %v627
    %v658 = vpop.xlane.xlu0 %657
    %659 = vadd.xlane.f32.xlu0 %v628
    %v660 = vpop.xlane.xlu0 %659
    %661 = vadd.xlane.f32.xlu0 %v629
    %v662 = vpop.xlane.xlu0 %661
    %663 = vadd.xlane.f32.xlu0 %v630
    %v664 = vpop.xlane.xlu0 %663
    %v665 = vrcp.pop 128.0
    %v666 = vmul.f32 %v634, %v665
    %v667 = vmul.f32 %v636, %v665
    %v668 = vmul.f32 %v638, %v665
    %v669 = vmul.f32 %v640, %v665
    %v670 = vmul.f32 %v642, %v665
    %v671 = vmul.f32 %v644, %v665
    %v672 = vmul.f32 %v646, %v665
    %v673 = vmul.f32 %v648, %v665
    %v674 = vmul.f32 %v650, %v665
    %v675 = vmul.f32 %v652, %v665
    %v676 = vmul.f32 %v654, %v665
    %v677 = vmul.f32 %v656, %v665
    %v678 = vmul.f32 %v658, %v665
    %v679 = vmul.f32 %v660, %v665
    %v680 = vmul.f32 %v662, %v665
    %v681 = vmul.f32 %v664, %v665
    %v682 = vsub.f32 %v615, %v666
    %v683 = vsub.f32 %v616, %v667
    %v684 = vsub.f32 %v617, %v668
    %v685 = vsub.f32 %v618, %v669
    %v686 = vsub.f32 %v619, %v670
    %v687 = vsub.f32 %v620, %v671
    %v688 = vsub.f32 %v621, %v672
    %v689 = vsub.f32 %v622, %v673
    %v690 = vsub.f32 %v623, %v674
    %v691 = vsub.f32 %v624, %v675
    %v692 = vsub.f32 %v625, %v676
    %v693 = vsub.f32 %v626, %v677
    %v694 = vsub.f32 %v627, %v678
    %v695 = vsub.f32 %v628, %v679
    %v696 = vsub.f32 %v629, %v680
    %v697 = vsub.f32 %v630, %v681
    %v698 = vmul.f32 %v682, %v682
    %v699 = vmul.f32 %v683, %v683
    %v700 = vmul.f32 %v684, %v684
    %v701 = vmul.f32 %v685, %v685
    %v702 = vmul.f32 %v686, %v686
    %v703 = vmul.f32 %v687, %v687
    %v704 = vmul.f32 %v688, %v688
    %v705 = vmul.f32 %v689, %v689
    %v706 = vmul.f32 %v690, %v690
    %v707 = vmul.f32 %v691, %v691
    %v708 = vmul.f32 %v692, %v692
    %v709 = vmul.f32 %v693, %v693
    %v710 = vmul.f32 %v694, %v694
    %v711 = vmul.f32 %v695, %v695
    %v712 = vmul.f32 %v696, %v696
    %v713 = vmul.f32 %v697, %v697
    %714 = vadd.xlane.f32.xlu0 %v698
    %v715 = vpop.xlane.xlu0 %714
    %716 = vadd.xlane.f32.xlu0 %v699
    %v717 = vpop.xlane.xlu0 %716
    %718 = vadd.xlane.f32.xlu0 %v700
    %v719 = vpop.xlane.xlu0 %718
    %720 = vadd.xlane.f32.xlu0 %v701
    %v721 = vpop.xlane.xlu0 %720
    %722 = vadd.xlane.f32.xlu0 %v702
    %v723 = vpop.xlane.xlu0 %722
    %724 = vadd.xlane.f32.xlu0 %v703
    %v725 = vpop.xlane.xlu0 %724
    %726 = vadd.xlane.f32.xlu0 %v704
    %v727 = vpop.xlane.xlu0 %726
    %728 = vadd.xlane.f32.xlu0 %v705
    %v729 = vpop.xlane.xlu0 %728
    %730 = vadd.xlane.f32.xlu0 %v706
    %v731 = vpop.xlane.xlu0 %730
    %732 = vadd.xlane.f32.xlu0 %v707
    %v733 = vpop.xlane.xlu0 %732
    %734 = vadd.xlane.f32.xlu0 %v708
    %v735 = vpop.xlane.xlu0 %734
    %736 = vadd.xlane.f32.xlu0 %v709
    %v737 = vpop.xlane.xlu0 %736
    %738 = vadd.xlane.f32.xlu0 %v710
    %v739 = vpop.xlane.xlu0 %738
    %740 = vadd.xlane.f32.xlu0 %v711
    %v741 = vpop.xlane.xlu0 %740
    %742 = vadd.xlane.f32.xlu0 %v712
    %v743 = vpop.xlane.xlu0 %742
    %744 = vadd.xlane.f32.xlu0 %v713
    %v745 = vpop.xlane.xlu0 %744
    %v746 = vmul.f32 %v715, %v665
    %v747 = vmul.f32 %v717, %v665
    %v748 = vmul.f32 %v719, %v665
    %v749 = vmul.f32 %v721, %v665
    %v750 = vmul.f32 %v723, %v665
    %v751 = vmul.f32 %v725, %v665
    %v752 = vmul.f32 %v727, %v665
    %v753 = vmul.f32 %v729, %v665
    %v754 = vmul.f32 %v731, %v665
    %v755 = vmul.f32 %v733, %v665
    %v756 = vmul.f32 %v735, %v665
    %v757 = vmul.f32 %v737, %v665
    %v758 = vmul.f32 %v739, %v665
    %v759 = vmul.f32 %v741, %v665
    %v760 = vmul.f32 %v743, %v665
    %v761 = vmul.f32 %v745, %v665
    %v762 = vadd.f32 %v746, 1e-05
    %v763 = vadd.f32 %v747, 1e-05
    %v764 = vadd.f32 %v748, 1e-05
    %v765 = vadd.f32 %v749, 1e-05
    %v766 = vadd.f32 %v750, 1e-05
    %v767 = vadd.f32 %v751, 1e-05
    %v768 = vadd.f32 %v752, 1e-05
    %v769 = vadd.f32 %v753, 1e-05
    %v770 = vadd.f32 %v754, 1e-05
    %v771 = vadd.f32 %v755, 1e-05
    %v772 = vadd.f32 %v756, 1e-05
    %v773 = vadd.f32 %v757, 1e-05
    %v774 = vadd.f32 %v758, 1e-05
    %v775 = vadd.f32 %v759, 1e-05
    %v776 = vadd.f32 %v760, 1e-05
    %v777 = vadd.f32 %v761, 1e-05
    %v778 = vrsqrt.pop %v762
    %v779 = vrsqrt.pop %v763
    %v780 = vrsqrt.pop %v764
    %v781 = vrsqrt.pop %v765
    %v782 = vrsqrt.pop %v766
    %v783 = vrsqrt.pop %v767
    %v784 = vrsqrt.pop %v768
    %v785 = vrsqrt.pop %v769
    %v786 = vrsqrt.pop %v770
    %v787 = vrsqrt.pop %v771
    %v788 = vrsqrt.pop %v772
    %v789 = vrsqrt.pop %v773
    %v790 = vrsqrt.pop %v774
    %v791 = vrsqrt.pop %v775
    %v792 = vrsqrt.pop %v776
    %v793 = vrsqrt.pop %v777
    %v794 = vmul.f32 %v682, %v778
    %v795 = vmul.f32 %v683, %v779
    %v796 = vmul.f32 %v684, %v780
    %v797 = vmul.f32 %v685, %v781
    %v798 = vmul.f32 %v686, %v782
    %v799 = vmul.f32 %v687, %v783
    %v800 = vmul.f32 %v688, %v784
    %v801 = vmul.f32 %v689, %v785
    %v802 = vmul.f32 %v690, %v786
    %v803 = vmul.f32 %v691, %v787
    %v804 = vmul.f32 %v692, %v788
    %v805 = vmul.f32 %v693, %v789
    %v806 = vmul.f32 %v694, %v790
    %v807 = vmul.f32 %v695, %v791
    %v808 = vmul.f32 %v696, %v792
    %v809 = vmul.f32 %v697, %v793
    %v811 = vlaneseq
    %v812 = vshrl.u32 %v811, 7
    %v813 = vsub.s32 0, %v812
    %v814 = vrot.slane %v631, %v813
    %v816 = vmul.f32 %v794, %v814
    %v817 = vmul.f32 %v795, %v814
    %v818 = vmul.f32 %v796, %v814
    %v819 = vmul.f32 %v797, %v814
    %v820 = vmul.f32 %v798, %v814
    %v821 = vmul.f32 %v799, %v814
    %v822 = vmul.f32 %v800, %v814
    %v823 = vmul.f32 %v801, %v814
    %v824 = vmul.f32 %v802, %v814
    %v825 = vmul.f32 %v803, %v814
    %v826 = vmul.f32 %v804, %v814
    %v827 = vmul.f32 %v805, %v814
    %v828 = vmul.f32 %v806, %v814
    %v829 = vmul.f32 %v807, %v814
    %v830 = vmul.f32 %v808, %v814
    %v831 = vmul.f32 %v809, %v814
    %v833 = vlaneseq
    %v834 = vshrl.u32 %v833, 7
    %v835 = vsub.s32 0, %v834
    %v836 = vrot.slane %v632, %v835
    %v838 = vadd.f32 %v816, %v836
    %v839 = vadd.f32 %v817, %v836
    %v840 = vadd.f32 %v818, %v836
    %v841 = vadd.f32 %v819, %v836
    %v842 = vadd.f32 %v820, %v836
    %v843 = vadd.f32 %v821, %v836
    %v844 = vadd.f32 %v822, %v836
    %v845 = vadd.f32 %v823, %v836
    %v846 = vadd.f32 %v824, %v836
    %v847 = vadd.f32 %v825, %v836
    %v848 = vadd.f32 %v826, %v836
    %v849 = vadd.f32 %v827, %v836
    %v850 = vadd.f32 %v828, %v836
    %v851 = vadd.f32 %v829, %v836
    %v852 = vadd.f32 %v830, %v836
    %v853 = vadd.f32 %v831, %v836
    %v854 = vld [vmem:[%s7] sm:$0x1]
    %v855 = vld [vmem:[%s8] sm:$0x1]
    %856 = vadd.xlane.f32.xlu0 %v838
    %v857 = vpop.xlane.xlu0 %856
    %858 = vadd.xlane.f32.xlu0 %v839
    %v859 = vpop.xlane.xlu0 %858
    %860 = vadd.xlane.f32.xlu0 %v840
    %v861 = vpop.xlane.xlu0 %860
    %862 = vadd.xlane.f32.xlu0 %v841
    %v863 = vpop.xlane.xlu0 %862
    %864 = vadd.xlane.f32.xlu0 %v842
    %v865 = vpop.xlane.xlu0 %864
    %866 = vadd.xlane.f32.xlu0 %v843
    %v867 = vpop.xlane.xlu0 %866
    %868 = vadd.xlane.f32.xlu0 %v844
    %v869 = vpop.xlane.xlu0 %868
    %870 = vadd.xlane.f32.xlu0 %v845
    %v871 = vpop.xlane.xlu0 %870
    %872 = vadd.xlane.f32.xlu0 %v846
    %v873 = vpop.xlane.xlu0 %872
    %874 = vadd.xlane.f32.xlu0 %v847
    %v875 = vpop.xlane.xlu0 %874
    %876 = vadd.xlane.f32.xlu0 %v848
    %v877 = vpop.xlane.xlu0 %876
    %878 = vadd.xlane.f32.xlu0 %v849
    %v879 = vpop.xlane.xlu0 %878
    %880 = vadd.xlane.f32.xlu0 %v850
    %v881 = vpop.xlane.xlu0 %880
    %882 = vadd.xlane.f32.xlu0 %v851
    %v883 = vpop.xlane.xlu0 %882
    %884 = vadd.xlane.f32.xlu0 %v852
    %v885 = vpop.xlane.xlu0 %884
    %886 = vadd.xlane.f32.xlu0 %v853
    %v887 = vpop.xlane.xlu0 %886
    %v888 = vmul.f32 %v857, %v665
    %v889 = vmul.f32 %v859, %v665
    %v890 = vmul.f32 %v861, %v665
    %v891 = vmul.f32 %v863, %v665
    %v892 = vmul.f32 %v865, %v665
    %v893 = vmul.f32 %v867, %v665
    %v894 = vmul.f32 %v869, %v665
    %v895 = vmul.f32 %v871, %v665
    %v896 = vmul.f32 %v873, %v665
    %v897 = vmul.f32 %v875, %v665
    %v898 = vmul.f32 %v877, %v665
    %v899 = vmul.f32 %v879, %v665
    %v900 = vmul.f32 %v881, %v665
    %v901 = vmul.f32 %v883, %v665
    %v902 = vmul.f32 %v885, %v665
    %v903 = vmul.f32 %v887, %v665
    %v904 = vsub.f32 %v838, %v888
    %v905 = vsub.f32 %v839, %v889
    %v906 = vsub.f32 %v840, %v890
    %v907 = vsub.f32 %v841, %v891
    %v908 = vsub.f32 %v842, %v892
    %v909 = vsub.f32 %v843, %v893
    %v910 = vsub.f32 %v844, %v894
    %v911 = vsub.f32 %v845, %v895
    %v912 = vsub.f32 %v846, %v896
    %v913 = vsub.f32 %v847, %v897
    %v914 = vsub.f32 %v848, %v898
    %v915 = vsub.f32 %v849, %v899
    %v916 = vsub.f32 %v850, %v900
    %v917 = vsub.f32 %v851, %v901
    %v918 = vsub.f32 %v852, %v902
    %v919 = vsub.f32 %v853, %v903
    %v920 = vmul.f32 %v904, %v904
    %v921 = vmul.f32 %v905, %v905
    %v922 = vmul.f32 %v906, %v906
    %v923 = vmul.f32 %v907, %v907
    %v924 = vmul.f32 %v908, %v908
    %v925 = vmul.f32 %v909, %v909
    %v926 = vmul.f32 %v910, %v910
    %v927 = vmul.f32 %v911, %v911
    %v928 = vmul.f32 %v912, %v912
    %v929 = vmul.f32 %v913, %v913
    %v930 = vmul.f32 %v914, %v914
    %v931 = vmul.f32 %v915, %v915
    %v932 = vmul.f32 %v916, %v916
    %v933 = vmul.f32 %v917, %v917
    %v934 = vmul.f32 %v918, %v918
    %v935 = vmul.f32 %v919, %v919
    %936 = vadd.xlane.f32.xlu0 %v920
    %v937 = vpop.xlane.xlu0 %936
    %938 = vadd.xlane.f32.xlu0 %v921
    %v939 = vpop.xlane.xlu0 %938
    %940 = vadd.xlane.f32.xlu0 %v922
    %v941 = vpop.xlane.xlu0 %940
    %942 = vadd.xlane.f32.xlu0 %v923
    %v943 = vpop.xlane.xlu0 %942
    %944 = vadd.xlane.f32.xlu0 %v924
    %v945 = vpop.xlane.xlu0 %944
    %946 = vadd.xlane.f32.xlu0 %v925
    %v947 = vpop.xlane.xlu0 %946
    %948 = vadd.xlane.f32.xlu0 %v926
    %v949 = vpop.xlane.xlu0 %948
    %950 = vadd.xlane.f32.xlu0 %v927
    %v951 = vpop.xlane.xlu0 %950
    %952 = vadd.xlane.f32.xlu0 %v928
    %v953 = vpop.xlane.xlu0 %952
    %954 = vadd.xlane.f32.xlu0 %v929
    %v955 = vpop.xlane.xlu0 %954
    %956 = vadd.xlane.f32.xlu0 %v930
    %v957 = vpop.xlane.xlu0 %956
    %958 = vadd.xlane.f32.xlu0 %v931
    %v959 = vpop.xlane.xlu0 %958
    %960 = vadd.xlane.f32.xlu0 %v932
    %v961 = vpop.xlane.xlu0 %960
    %962 = vadd.xlane.f32.xlu0 %v933
    %v963 = vpop.xlane.xlu0 %962
    %964 = vadd.xlane.f32.xlu0 %v934
    %v965 = vpop.xlane.xlu0 %964
    %966 = vadd.xlane.f32.xlu0 %v935
    %v967 = vpop.xlane.xlu0 %966
    %v968 = vmul.f32 %v937, %v665
    %v969 = vmul.f32 %v939, %v665
    %v970 = vmul.f32 %v941, %v665
    %v971 = vmul.f32 %v943, %v665
    %v972 = vmul.f32 %v945, %v665
    %v973 = vmul.f32 %v947, %v665
    %v974 = vmul.f32 %v949, %v665
    %v975 = vmul.f32 %v951, %v665
    %v976 = vmul.f32 %v953, %v665
    %v977 = vmul.f32 %v955, %v665
    %v978 = vmul.f32 %v957, %v665
    %v979 = vmul.f32 %v959, %v665
    %v980 = vmul.f32 %v961, %v665
    %v981 = vmul.f32 %v963, %v665
    %v982 = vmul.f32 %v965, %v665
    %v983 = vmul.f32 %v967, %v665
    %v984 = vadd.f32 %v968, 1e-05
    %v985 = vadd.f32 %v969, 1e-05
    %v986 = vadd.f32 %v970, 1e-05
    %v987 = vadd.f32 %v971, 1e-05
    %v988 = vadd.f32 %v972, 1e-05
    %v989 = vadd.f32 %v973, 1e-05
    %v990 = vadd.f32 %v974, 1e-05
    %v991 = vadd.f32 %v975, 1e-05
    %v992 = vadd.f32 %v976, 1e-05
    %v993 = vadd.f32 %v977, 1e-05
    %v994 = vadd.f32 %v978, 1e-05
    %v995 = vadd.f32 %v979, 1e-05
    %v996 = vadd.f32 %v980, 1e-05
    %v997 = vadd.f32 %v981, 1e-05
    %v998 = vadd.f32 %v982, 1e-05
    %v999 = vadd.f32 %v983, 1e-05
    %v1000 = vrsqrt.pop %v984
    %v1001 = vrsqrt.pop %v985
    %v1002 = vrsqrt.pop %v986
    %v1003 = vrsqrt.pop %v987
    %v1004 = vrsqrt.pop %v988
    %v1005 = vrsqrt.pop %v989
    %v1006 = vrsqrt.pop %v990
    %v1007 = vrsqrt.pop %v991
    %v1008 = vrsqrt.pop %v992
    %v1009 = vrsqrt.pop %v993
    %v1010 = vrsqrt.pop %v994
    %v1011 = vrsqrt.pop %v995
    %v1012 = vrsqrt.pop %v996
    %v1013 = vrsqrt.pop %v997
    %v1014 = vrsqrt.pop %v998
    %v1015 = vrsqrt.pop %v999
    %v1016 = vmul.f32 %v904, %v1000
    %v1017 = vmul.f32 %v905, %v1001
    %v1018 = vmul.f32 %v906, %v1002
    %v1019 = vmul.f32 %v907, %v1003
    %v1020 = vmul.f32 %v908, %v1004
    %v1021 = vmul.f32 %v909, %v1005
    %v1022 = vmul.f32 %v910, %v1006
    %v1023 = vmul.f32 %v911, %v1007
    %v1024 = vmul.f32 %v912, %v1008
    %v1025 = vmul.f32 %v913, %v1009
    %v1026 = vmul.f32 %v914, %v1010
    %v1027 = vmul.f32 %v915, %v1011
    %v1028 = vmul.f32 %v916, %v1012
    %v1029 = vmul.f32 %v917, %v1013
    %v1030 = vmul.f32 %v918, %v1014
    %v1031 = vmul.f32 %v919, %v1015
    %v1033 = vlaneseq
    %v1034 = vshrl.u32 %v1033, 7
    %v1035 = vsub.s32 0, %v1034
    %v1036 = vrot.slane %v854, %v1035
    %v1038 = vmul.f32 %v1016, %v1036
    %v1039 = vmul.f32 %v1017, %v1036
    %v1040 = vmul.f32 %v1018, %v1036
    %v1041 = vmul.f32 %v1019, %v1036
    %v1042 = vmul.f32 %v1020, %v1036
    %v1043 = vmul.f32 %v1021, %v1036
    %v1044 = vmul.f32 %v1022, %v1036
    %v1045 = vmul.f32 %v1023, %v1036
    %v1046 = vmul.f32 %v1024, %v1036
    %v1047 = vmul.f32 %v1025, %v1036
    %v1048 = vmul.f32 %v1026, %v1036
    %v1049 = vmul.f32 %v1027, %v1036
    %v1050 = vmul.f32 %v1028, %v1036
    %v1051 = vmul.f32 %v1029, %v1036
    %v1052 = vmul.f32 %v1030, %v1036
    %v1053 = vmul.f32 %v1031, %v1036
    %v1055 = vlaneseq
    %v1056 = vshrl.u32 %v1055, 7
    %v1057 = vsub.s32 0, %v1056
    %v1058 = vrot.slane %v855, %v1057
    %v1060 = vadd.f32 %v1038, %v1058
    %v1061 = vadd.f32 %v1039, %v1058
    %v1062 = vadd.f32 %v1040, %v1058
    %v1063 = vadd.f32 %v1041, %v1058
    %v1064 = vadd.f32 %v1042, %v1058
    %v1065 = vadd.f32 %v1043, %v1058
    %v1066 = vadd.f32 %v1044, %v1058
    %v1067 = vadd.f32 %v1045, %v1058
    %v1068 = vadd.f32 %v1046, %v1058
    %v1069 = vadd.f32 %v1047, %v1058
    %v1070 = vadd.f32 %v1048, %v1058
    %v1071 = vadd.f32 %v1049, %v1058
    %v1072 = vadd.f32 %v1050, %v1058
    %v1073 = vadd.f32 %v1051, %v1058
    %v1074 = vadd.f32 %v1052, %v1058
    %v1075 = vadd.f32 %v1053, %v1058
    %1076 = vst [vmem:[#allocation2] sm:$0xff] %v1060
    %1077 = vst [vmem:[#allocation2 + $0x8] sm:$0xff] %v1061
    %1078 = vst [vmem:[#allocation2 + $0x10] sm:$0xff] %v1062
    %1079 = vst [vmem:[#allocation2 + $0x18] sm:$0xff] %v1063
    %1080 = vst [vmem:[#allocation2 + $0x20] sm:$0xff] %v1064
    %1081 = vst [vmem:[#allocation2 + $0x28] sm:$0xff] %v1065
    %1082 = vst [vmem:[#allocation2 + $0x30] sm:$0xff] %v1066
    %1083 = vst [vmem:[#allocation2 + $0x38] sm:$0xff] %v1067
    %1084 = vst [vmem:[#allocation2 + $0x40] sm:$0xff] %v1068
    %1085 = vst [vmem:[#allocation2 + $0x48] sm:$0xff] %v1069
    %1086 = vst [vmem:[#allocation2 + $0x50] sm:$0xff] %v1070
    %1087 = vst [vmem:[#allocation2 + $0x58] sm:$0xff] %v1071
    %1088 = vst [vmem:[#allocation2 + $0x60] sm:$0xff] %v1072
    %1089 = vst [vmem:[#allocation2 + $0x68] sm:$0xff] %v1073
    %1090 = vst [vmem:[#allocation2 + $0x70] sm:$0xff] %v1074
    %1091 = vst [vmem:[#allocation2 + $0x78] sm:$0xff] %v1075
    // Predicated region
    $region38: #{_lambda_.11} parent=1 // pred_check
      _
    $region39: #{_lambda_.11} parent=1 // pred_check_branch
      %1093 = sbr.rel (0) target = $region41
    $region40: #{_lambda_.11} parent=1 // pred_region
      %s1095 = ssub.s32 2048, 2048
      %1096 = vsyncadd [#allocation3], %s1095
      %s1097 = sshll.u32 [#allocation2], 4
      %s1098 = int_to_ptr.vmem [resolvable:$true] %s1097
      %1103 = dma.vmem_to_hbm [thread:$0]  %s1098, 2048, %s9, [#allocation3], 128, 128, 8
    $region41: #{_lambda_.11} parent=1 // pred_fallthru
      _
    // Predicated region
    $region42: #{_lambda_.11} parent=1 // pred_check
      _
    $region43: #{_lambda_.11} parent=1 // pred_check_branch
      %1105 = sbr.rel (0) target = $region45
    $region44: #{_lambda_.11} parent=1 // pred_region
      %1106 = dma.done [#allocation3], 2048
    $region45: #{_lambda_.11} parent=1 // pred_fallthru
      _
    %1107 = vsyncpa [#allocation3], 1

// kernel: _lambda_.10
$region0: #{_lambda_.10}
  #allocation0 [shape = 'u32[]', space=smem, size = 0x4, offset = 0x4, fixed_abs, tag = 'smem constant byte address 0x4 - core index']
  #allocation1 [shape = 'u32[144,128]{1,0:T(1,128)}', space=vmem, size = 0x12000, scoped, tag = 'internal scratch']
  #allocation2 [shape = 'bf16[64,128]{1,0:T(16,128)(2,1)}', space=vmem, size = 0x4000, scoped, tag = 'scratch operand']
  %s0 = inlined_call_operand.vmem [shape: bf16[2,64,128], index: 0, kind: input, shape index: {}]
  %s1 = inlined_call_operand.vmem [shape: bf16[2,64,128], index: 1, kind: input, shape index: {}]
  %s2 = inlined_call_operand.vmem [shape: bf16[2,64,128], index: 2, kind: input, shape index: {}]
  %s3 = inlined_call_operand.vmem [shape: bf16[2,64,128], index: 3, kind: input, shape index: {}]
  %s4 = inlined_call_operand.vmem [shape: bf16[128,128], index: 4, kind: input, shape index: {}]
  %s5 = inlined_call_operand.vmem [shape: f32[1,128], index: 5, kind: input, shape index: {}]
  %s6 = inlined_call_operand.vmem [shape: f32[1,128], index: 6, kind: input, shape index: {}]
  %s7 = inlined_call_operand.vmem [shape: f32[1,128], index: 7, kind: input, shape index: {}]
  %s8 = inlined_call_operand.vmem [shape: bf16[2,64,128], index: 8, kind: output, shape index: {}]
  %s9 = sld [smem:[#allocation0]]
  $region65: #{_lambda_.10} parent=0
    _
  %s11 = ssub.s32 1, %s9
  %s12 = scalar_select 0, %s11, %s9
  loop: start=0, step=1, limit=4
  $region2: #{_lambda_.10} parent=0 // loop_pre_header
    _
  $region3: #{_lambda_.10} parent=0 // loop_header
    %s14 = sphi 0, %s18
    %p15 = scmp.ge.s32.totalorder %s14, 4
    %s21 = sphi 0, %s33
    %s22 = sphi 0, %s29
    %s23 = sphi 0, %s21
    %s24 = sphi 0, %s22
    %s25 = sphi 0, %s23
    %s26 = sphi 0, %s24
    %s38 = sphi 0, %s40
    %s41 = sphi 0, %s38
    %s42 = sphi 0, %s41
    %s58 = sphi 0, %s42
    %s64 = sphi 0, %s66
    %s67 = sphi 0, %s64
    %s68 = sphi 0, %s67
    %s84 = sphi 0, %s68
    %s90 = sphi 0, %s92
    %s93 = sphi 0, %s90
    %s94 = sphi 0, %s93
    %s110 = sphi 0, %s94
    %s118 = sphi 0, %s120
    %s121 = sphi 0, %s118
    %s122 = sphi 0, %s121
    %s138 = sphi 0, %s122
    %s142 = sphi 0, %s142
    %s144 = sphi 0, %s142
    %s145 = sphi 0, %s144
    %s159 = sphi 0, %s145
    %s163 = sphi 0, %s163
    %s165 = sphi 0, %s163
    %s166 = sphi 0, %s165
    %s180 = sphi 0, %s166
    %s184 = sphi 0, %s184
    %s186 = sphi 0, %s184
    %s187 = sphi 0, %s186
    %s201 = sphi 0, %s187
    %s205 = sphi 0, %s205
    %s207 = sphi 0, %s205
    %s208 = sphi 0, %s207
    %s222 = sphi 0, %s208
    %s230 = sphi 0, %s232
    %s233 = sphi 0, %s230
    %s234 = sphi 0, %s233
    %s250 = sphi 0, %s234
  $region4: #{_lambda_.10} parent=0 // loop_header_branch
    %17 = sbr.rel (%p15) target = $region8
  $region5: #{_lambda_.10} parent=0 // loop_body
    %s19 = ssub.s32 %s14, 1
    %s20 = ssub.s32 %s14, 2
    %s27 = sadd.s32 1, %s22
    %p28 = scmp.ge.s32.totalorder %s27, 1
    %s29 = scalar_select %p28, 0, %s27
    %s30 = sadd.s32 1, %s21
    %s31 = scalar_select %p28, %s30, %s21
    %p32 = scmp.ge.s32.totalorder %s31, 2
    %s33 = scalar_select %p32, 0, %s31
    %s34 = ssub.s32 %s21, %s33
    %s35 = ssub.s32 %s22, %s29
    %s36 = sor.u32 %s34, %s35
    %p37 = scmp.eq.s32.totalorder %s36, 0
    %s39 = sadd.s32 %s38, 1
    %s40 = scalar_select %p37, %s38, %s39
    %p43 = pneg %p37
    %p44 = scmp.eq.s32.totalorder %s14, 1
    %p45 = por %p43, %p44
    %p46 = scmp.ne.s32.totalorder %s38, %s41
    %p47 = scmp.eq.s32.totalorder %s14, 0
    %p48 = por %p46, %p47
    %p49 = scmp.ne.s32.totalorder %s38, %s41
    %p50 = scmp.eq.s32.totalorder %s19, 1
    %p51 = por %p49, %p50
    %p52 = scmp.ne.s32.totalorder %s41, %s42
    %p53 = scmp.eq.s32.totalorder %s19, 0
    %p54 = por %p52, %p53
    %p55 = scmp.ne.s32.totalorder %s41, %s42
    %p56 = scmp.eq.s32.totalorder %s20, 1
    %p57 = por %p55, %p56
    %p59 = scmp.ne.s32.totalorder %s42, %s58
    %p60 = scmp.eq.s32.totalorder %s20, 0
    %p61 = por %p59, %p60
    %s62 = ssub.s32 %s21, %s33
    %p63 = scmp.eq.s32.totalorder %s62, 0
    %s65 = sadd.s32 %s64, 1
    %s66 = scalar_select %p63, %s64, %s65
    %p69 = pneg %p63
    %p70 = scmp.eq.s32.totalorder %s14, 1
    %p71 = por %p69, %p70
    %p72 = scmp.ne.s32.totalorder %s64, %s67
    %p73 = scmp.eq.s32.totalorder %s14, 0
    %p74 = por %p72, %p73
    %p75 = scmp.ne.s32.totalorder %s64, %s67
    %p76 = scmp.eq.s32.totalorder %s19, 1
    %p77 = por %p75, %p76
    %p78 = scmp.ne.s32.totalorder %s67, %s68
    %p79 = scmp.eq.s32.totalorder %s19, 0
    %p80 = por %p78, %p79
    %p81 = scmp.ne.s32.totalorder %s67, %s68
    %p82 = scmp.eq.s32.totalorder %s20, 1
    %p83 = por %p81, %p82
    %p85 = scmp.ne.s32.totalorder %s68, %s84
    %p86 = scmp.eq.s32.totalorder %s20, 0
    %p87 = por %p85, %p86
    %s88 = ssub.s32 %s21, %s33
    %p89 = scmp.eq.s32.totalorder %s88, 0
    %s91 = sadd.s32 %s90, 1
    %s92 = scalar_select %p89, %s90, %s91
    %p95 = pneg %p89
    %p96 = scmp.eq.s32.totalorder %s14, 1
    %p97 = por %p95, %p96
    %p98 = scmp.ne.s32.totalorder %s90, %s93
    %p99 = scmp.eq.s32.totalorder %s14, 0
    %p100 = por %p98, %p99
    %p101 = scmp.ne.s32.totalorder %s90, %s93
    %p102 = scmp.eq.s32.totalorder %s19, 1
    %p103 = por %p101, %p102
    %p104 = scmp.ne.s32.totalorder %s93, %s94
    %p105 = scmp.eq.s32.totalorder %s19, 0
    %p106 = por %p104, %p105
    %p107 = scmp.ne.s32.totalorder %s93, %s94
    %p108 = scmp.eq.s32.totalorder %s20, 1
    %p109 = por %p107, %p108
    %p111 = scmp.ne.s32.totalorder %s94, %s110
    %p112 = scmp.eq.s32.totalorder %s20, 0
    %p113 = por %p111, %p112
    %s114 = ssub.s32 %s21, %s33
    %s115 = ssub.s32 %s22, %s29
    %s116 = sor.u32 %s114, %s115
    %p117 = scmp.eq.s32.totalorder %s116, 0
    %s119 = sadd.s32 %s118, 1
    %s120 = scalar_select %p117, %s118, %s119
    %p123 = pneg %p117
    %p124 = scmp.eq.s32.totalorder %s14, 1
    %p125 = por %p123, %p124
    %p126 = scmp.ne.s32.totalorder %s118, %s121
    %p127 = scmp.eq.s32.totalorder %s14, 0
    %p128 = por %p126, %p127
    %p129 = scmp.ne.s32.totalorder %s118, %s121
    %p130 = scmp.eq.s32.totalorder %s19, 1
    %p131 = por %p129, %p130
    %p132 = scmp.ne.s32.totalorder %s121, %s122
    %p133 = scmp.eq.s32.totalorder %s19, 0
    %p134 = por %p132, %p133
    %p135 = scmp.ne.s32.totalorder %s121, %s122
    %p136 = scmp.eq.s32.totalorder %s20, 1
    %p137 = por %p135, %p136
    %p139 = scmp.ne.s32.totalorder %s122, %s138
    %p140 = scmp.eq.s32.totalorder %s20, 0
    %p141 = por %p139, %p140
    %s143 = sadd.s32 %s142, 1
    %p146 = scmp.eq.s32.totalorder %s14, 1
    %p147 = scmp.ne.s32.totalorder %s142, %s144
    %p148 = scmp.eq.s32.totalorder %s14, 0
    %p149 = por %p147, %p148
    %p150 = scmp.ne.s32.totalorder %s142, %s144
    %p151 = scmp.eq.s32.totalorder %s19, 1
    %p152 = por %p150, %p151
    %p153 = scmp.ne.s32.totalorder %s144, %s145
    %p154 = scmp.eq.s32.totalorder %s19, 0
    %p155 = por %p153, %p154
    %p156 = scmp.ne.s32.totalorder %s144, %s145
    %p157 = scmp.eq.s32.totalorder %s20, 1
    %p158 = por %p156, %p157
    %p160 = scmp.ne.s32.totalorder %s145, %s159
    %p161 = scmp.eq.s32.totalorder %s20, 0
    %p162 = por %p160, %p161
    %s164 = sadd.s32 %s163, 1
    %p167 = scmp.eq.s32.totalorder %s14, 1
    %p168 = scmp.ne.s32.totalorder %s163, %s165
    %p169 = scmp.eq.s32.totalorder %s14, 0
    %p170 = por %p168, %p169
    %p171 = scmp.ne.s32.totalorder %s163, %s165
    %p172 = scmp.eq.s32.totalorder %s19, 1
    %p173 = por %p171, %p172
    %p174 = scmp.ne.s32.totalorder %s165, %s166
    %p175 = scmp.eq.s32.totalorder %s19, 0
    %p176 = por %p174, %p175
    %p177 = scmp.ne.s32.totalorder %s165, %s166
    %p178 = scmp.eq.s32.totalorder %s20, 1
    %p179 = por %p177, %p178
    %p181 = scmp.ne.s32.totalorder %s166, %s180
    %p182 = scmp.eq.s32.totalorder %s20, 0
    %p183 = por %p181, %p182
    %s185 = sadd.s32 %s184, 1
    %p188 = scmp.eq.s32.totalorder %s14, 1
    %p189 = scmp.ne.s32.totalorder %s184, %s186
    %p190 = scmp.eq.s32.totalorder %s14, 0
    %p191 = por %p189, %p190
    %p192 = scmp.ne.s32.totalorder %s184, %s186
    %p193 = scmp.eq.s32.totalorder %s19, 1
    %p194 = por %p192, %p193
    %p195 = scmp.ne.s32.totalorder %s186, %s187
    %p196 = scmp.eq.s32.totalorder %s19, 0
    %p197 = por %p195, %p196
    %p198 = scmp.ne.s32.totalorder %s186, %s187
    %p199 = scmp.eq.s32.totalorder %s20, 1
    %p200 = por %p198, %p199
    %p202 = scmp.ne.s32.totalorder %s187, %s201
    %p203 = scmp.eq.s32.totalorder %s20, 0
    %p204 = por %p202, %p203
    %s206 = sadd.s32 %s205, 1
    %p209 = scmp.eq.s32.totalorder %s14, 1
    %p210 = scmp.ne.s32.totalorder %s205, %s207
    %p211 = scmp.eq.s32.totalorder %s14, 0
    %p212 = por %p210, %p211
    %p213 = scmp.ne.s32.totalorder %s205, %s207
    %p214 = scmp.eq.s32.totalorder %s19, 1
    %p215 = por %p213, %p214
    %p216 = scmp.ne.s32.totalorder %s207, %s208
    %p217 = scmp.eq.s32.totalorder %s19, 0
    %p218 = por %p216, %p217
    %p219 = scmp.ne.s32.totalorder %s207, %s208
    %p220 = scmp.eq.s32.totalorder %s20, 1
    %p221 = por %p219, %p220
    %p223 = scmp.ne.s32.totalorder %s208, %s222
    %p224 = scmp.eq.s32.totalorder %s20, 0
    %p225 = por %p223, %p224
    %s226 = ssub.s32 %s21, %s33
    %s227 = ssub.s32 %s22, %s29
    %s228 = sor.u32 %s226, %s227
    %p229 = scmp.eq.s32.totalorder %s228, 0
    %s231 = sadd.s32 %s230, 1
    %s232 = scalar_select %p229, %s230, %s231
    %p235 = pneg %p229
    %p236 = scmp.eq.s32.totalorder %s14, 1
    %p237 = por %p235, %p236
    %p238 = scmp.ne.s32.totalorder %s230, %s233
    %p239 = scmp.eq.s32.totalorder %s14, 0
    %p240 = por %p238, %p239
    %p241 = scmp.ne.s32.totalorder %s230, %s233
    %p242 = scmp.eq.s32.totalorder %s19, 1
    %p243 = por %p241, %p242
    %p244 = scmp.ne.s32.totalorder %s233, %s234
    %p245 = scmp.eq.s32.totalorder %s19, 0
    %p246 = por %p244, %p245
    %p247 = scmp.ne.s32.totalorder %s233, %s234
    %p248 = scmp.eq.s32.totalorder %s20, 1
    %p249 = por %p247, %p248
    %p251 = scmp.ne.s32.totalorder %s234, %s250
    %p252 = scmp.eq.s32.totalorder %s20, 0
    %p253 = por %p251, %p252
    %p254 = scmp.le.s32.totalorder 1, %s14
    %p255 = scmp.lt.s32.totalorder %s14, 3
    %p256 = pnand %p254, %p255
    %p257 = pneg %p256
    // Predicated region
    $region9: #{_lambda_.10} parent=5 // pred_check
      _
    $region10: #{_lambda_.10} parent=5 // pred_check_branch
      %259 = sbr.rel (%p256) target = $region12
    $region11: #{_lambda_.10} parent=5 // pred_region
      %s260 = ssub.s32 %s14, 1
      // Predicated region
      $region13: #{_lambda_.10} parent=11 // pred_check
        %p261 = pneg %p155
      $region14: #{_lambda_.10} parent=11 // pred_check_branch
        %263 = sbr.rel (%p261) target = $region16
      $region15: #{_lambda_.10} parent=11 // pred_region
        _
      $region16: #{_lambda_.10} parent=11 // pred_fallthru
        _
      // Predicated region
      $region17: #{_lambda_.10} parent=11 // pred_check
        %p264 = pneg %p176
      $region18: #{_lambda_.10} parent=11 // pred_check_branch
        %266 = sbr.rel (%p264) target = $region20
      $region19: #{_lambda_.10} parent=11 // pred_region
        _
      $region20: #{_lambda_.10} parent=11 // pred_fallthru
        _
      // Predicated region
      $region21: #{_lambda_.10} parent=11 // pred_check
        %p267 = pneg %p197
      $region22: #{_lambda_.10} parent=11 // pred_check_branch
        %269 = sbr.rel (%p267) target = $region24
      $region23: #{_lambda_.10} parent=11 // pred_region
        _
      $region24: #{_lambda_.10} parent=11 // pred_fallthru
        _
      // Predicated region
      $region25: #{_lambda_.10} parent=11 // pred_check
        %p270 = pneg %p218
      $region26: #{_lambda_.10} parent=11 // pred_check_branch
        %272 = sbr.rel (%p270) target = $region28
      $region27: #{_lambda_.10} parent=11 // pred_region
        _
      $region28: #{_lambda_.10} parent=11 // pred_fallthru
        _
    $region12: #{_lambda_.10} parent=5 // pred_fallthru
      _
    %p273 = scmp.lt.s32.totalorder %s14, 2
    // Predicated region
    $region29: #{_lambda_.10} parent=5 // pred_check
      %p274 = pneg %p273
    $region30: #{_lambda_.10} parent=5 // pred_check_branch
      %276 = sbr.rel (%p274) target = $region32
    $region31: #{_lambda_.10} parent=5 // pred_region
      // Predicated region
      $region33: #{_lambda_.10} parent=31 // pred_check
        %p277 = pneg %p48
      $region34: #{_lambda_.10} parent=31 // pred_check_branch
        %279 = sbr.rel (%p277) target = $region36
      $region35: #{_lambda_.10} parent=31 // pred_region
        %s280 = smul.u32 8, %s22
        %p281 = scmp.lt.s32.totalorder %s21, 1
        %s282 = scalar_select %p281, %s21, 1
        %p283 = scmp.lt.s32.totalorder %s280, 7
        %s284 = scalar_select %p283, %s280, 7
        %s285 = smul.addr %s282, 8
        %s286 = sadd.s32 %s284, %s285
        %s287 = smul.addr %s286, 4
        %s288 = scalar_lea.vmem %s0, %s287
        %s289 = smul.u32 8, %s22
      $region36: #{_lambda_.10} parent=31 // pred_fallthru
        _
      // Predicated region
      $region37: #{_lambda_.10} parent=31 // pred_check
        %p290 = pneg %p74
      $region38: #{_lambda_.10} parent=31 // pred_check_branch
        %292 = sbr.rel (%p290) target = $region40
      $region39: #{_lambda_.10} parent=31 // pred_region
        %p293 = scmp.lt.s32.totalorder %s21, 1
        %s294 = scalar_select %p293, %s21, 1
        %s295 = smul.addr %s294, 8
        %s296 = smul.addr %s295, 4
        %s297 = scalar_lea.vmem %s1, %s296
      $region40: #{_lambda_.10} parent=31 // pred_fallthru
        _
      // Predicated region
      $region41: #{_lambda_.10} parent=31 // pred_check
        %p298 = pneg %p100
      $region42: #{_lambda_.10} parent=31 // pred_check_branch
        %300 = sbr.rel (%p298) target = $region44
      $region43: #{_lambda_.10} parent=31 // pred_region
        %p301 = scmp.lt.s32.totalorder %s21, 1
        %s302 = scalar_select %p301, %s21, 1
        %s303 = smul.addr %s302, 8
        %s304 = smul.addr %s303, 4
        %s305 = scalar_lea.vmem %s2, %s304
      $region44: #{_lambda_.10} parent=31 // pred_fallthru
        _
      // Predicated region
      $region45: #{_lambda_.10} parent=31 // pred_check
        %p306 = pneg %p128
      $region46: #{_lambda_.10} parent=31 // pred_check_branch
        %308 = sbr.rel (%p306) target = $region48
      $region47: #{_lambda_.10} parent=31 // pred_region
        %s309 = smul.u32 8, %s22
        %p310 = scmp.lt.s32.totalorder %s21, 1
        %s311 = scalar_select %p310, %s21, 1
        %p312 = scmp.lt.s32.totalorder %s309, 7
        %s313 = scalar_select %p312, %s309, 7
        %s314 = smul.addr %s311, 8
        %s315 = sadd.s32 %s313, %s314
        %s316 = smul.addr %s315, 4
        %s317 = scalar_lea.vmem %s3, %s316
        %s318 = smul.u32 8, %s22
      $region48: #{_lambda_.10} parent=31 // pred_fallthru
        _
    $region32: #{_lambda_.10} parent=5 // pred_fallthru
      _
    %p319 = scmp.le.s32.totalorder 1, %s14
    %p320 = scmp.lt.s32.totalorder %s14, 3
    %p321 = pnand %p319, %p320
    %p322 = pneg %p321
    // Predicated region
    $region49: #{_lambda_.10} parent=5 // pred_check
      _
    $region50: #{_lambda_.10} parent=5 // pred_check_branch
      %324 = sbr.rel (%p321) target = $region52
    $region51: #{_lambda_.10} parent=5 // pred_region
      %s325 = ssub.s32 %s14, 1
      %s326 = smul.u32 8, %s24
      %p327 = scmp.lt.s32.totalorder %s23, 1
      %s328 = scalar_select %p327, %s23, 1
      %p329 = scmp.lt.s32.totalorder %s326, 7
      %s330 = scalar_select %p329, %s326, 7
      %s331 = smul.addr %s328, 8
      %s332 = sadd.s32 %s330, %s331
      %s333 = smul.addr %s332, 4
      %s334 = scalar_lea.vmem %s0, %s333
      %p335 = pneg %p54
      %p336 = pneg %p51
      %p337 = scmp.lt.s32.totalorder %s23, 1
      %s338 = scalar_select %p337, %s23, 1
      %s339 = smul.addr %s338, 8
      %s340 = smul.addr %s339, 4
      %s341 = scalar_lea.vmem %s1, %s340
      %p342 = pneg %p80
      %p343 = pneg %p77
      %p344 = scmp.lt.s32.totalorder %s23, 1
      %s345 = scalar_select %p344, %s23, 1
      %s346 = smul.addr %s345, 8
      %s347 = smul.addr %s346, 4
      %s348 = scalar_lea.vmem %s2, %s347
      %p349 = pneg %p106
      %p350 = pneg %p103
      %s351 = smul.u32 8, %s24
      %p352 = scmp.lt.s32.totalorder %s23, 1
      %s353 = scalar_select %p352, %s23, 1
      %p354 = scmp.lt.s32.totalorder %s351, 7
      %s355 = scalar_select %p354, %s351, 7
      %s356 = smul.addr %s353, 8
      %s357 = sadd.s32 %s355, %s356
      %s358 = smul.addr %s357, 4
      %s359 = scalar_lea.vmem %s3, %s358
      %p360 = pneg %p134
      %p361 = pneg %p131
      %p362 = pneg %p155
      %p363 = pneg %p152
      %p364 = pneg %p176
      %p365 = pneg %p173
      %p366 = pneg %p197
      %p367 = pneg %p194
      %p368 = pneg %p218
      %p369 = pneg %p215
      %p370 = pneg %p246
      %p371 = pneg %p243
      %s372 = smul.u32 8, %s24
      %p373 = scmp.lt.s32.totalorder %s23, 1
      %s374 = scalar_select %p373, %s23, 1
      %p375 = scmp.lt.s32.totalorder %s372, 7
      %s376 = scalar_select %p375, %s372, 7
      %s377 = smul.addr %s374, 8
      %s378 = sadd.s32 %s376, %s377
      %s379 = smul.addr %s378, 4
      %s380 = scalar_lea.vmem %s8, %s379
      %s381 = smul.u32 8, %s24
      %p382 = scmp.lt.s32.totalorder %s23, 1
      %s383 = scalar_select %p382, %s23, 1
      %p384 = scmp.lt.s32.totalorder %s381, 7
      %s385 = scalar_select %p384, %s381, 7
      %s386 = smul.addr %s383, 8
      %s387 = sadd.s32 %s385, %s386
      %s388 = smul.addr %s387, 4
      %s389 = scalar_lea.vmem %s0, %s388
      %s390 = smul.u32 8, %s24
      %p391 = scmp.lt.s32.totalorder %s23, 1
      %s392 = scalar_select %p391, %s23, 1
      %s393 = smul.addr %s392, 8
      %s394 = smul.addr %s393, 4
      %s395 = scalar_lea.vmem %s1, %s394
      %p396 = scmp.lt.s32.totalorder %s23, 1
      %s397 = scalar_select %p396, %s23, 1
      %s398 = smul.addr %s397, 8
      %s399 = smul.addr %s398, 4
      %s400 = scalar_lea.vmem %s2, %s399
      %s401 = smul.u32 8, %s24
      %p402 = scmp.lt.s32.totalorder %s23, 1
      %s403 = scalar_select %p402, %s23, 1
      %p404 = scmp.lt.s32.totalorder %s401, 7
      %s405 = scalar_select %p404, %s401, 7
      %s406 = smul.addr %s403, 8
      %s407 = sadd.s32 %s405, %s406
      %s408 = smul.addr %s407, 4
      %s409 = scalar_lea.vmem %s3, %s408
      %s410 = smul.u32 8, %s24
      %s411 = smul.u32 8, %s24
      %p412 = scmp.lt.s32.totalorder %s23, 1
      %s413 = scalar_select %p412, %s23, 1
      %p414 = scmp.lt.s32.totalorder %s411, 7
      %s415 = scalar_select %p414, %s411, 7
      %s416 = smul.addr %s413, 8
      %s417 = sadd.s32 %s415, %s416
      %s418 = smul.addr %s417, 4
      %s419 = scalar_lea.vmem %s8, %s418
      %s420 = smul.u32 8, %s24
      %v422 = vld [vmem:[%s389] sm:$0xf]
      %v423 = vld [vmem:[%s389 + $0x4] sm:$0xf]
      %v424 = vld [vmem:[%s389 + $0x8] sm:$0xf]
      %v425 = vld [vmem:[%s389 + $0xc] sm:$0xf]
      %v426 = vld [vmem:[%s389 + $0x10] sm:$0xf]
      %v427 = vld [vmem:[%s389 + $0x14] sm:$0xf]
      %v428 = vld [vmem:[%s389 + $0x18] sm:$0xf]
      %v429 = vld [vmem:[%s389 + $0x1c] sm:$0xf]
      %v430 = vld [vmem:[%s395] sm:$0xf]
      %v431 = vld [vmem:[%s395 + $0x4] sm:$0xf]
      %v432 = vld [vmem:[%s395 + $0x8] sm:$0xf]
      %v433 = vld [vmem:[%s395 + $0xc] sm:$0xf]
      %v434 = vld [vmem:[%s395 + $0x10] sm:$0xf]
      %v435 = vld [vmem:[%s395 + $0x14] sm:$0xf]
      %v436 = vld [vmem:[%s395 + $0x18] sm:$0xf]
      %v437 = vld [vmem:[%s395 + $0x1c] sm:$0xf]
      %v438 = vld [vmem:[%s400] sm:$0xf]
      %v439 = vld [vmem:[%s400 + $0x4] sm:$0xf]
      %v440 = vld [vmem:[%s400 + $0x8] sm:$0xf]
      %v441 = vld [vmem:[%s400 + $0xc] sm:$0xf]
      %v442 = vld [vmem:[%s400 + $0x10] sm:$0xf]
      %v443 = vld [vmem:[%s400 + $0x14] sm:$0xf]
      %v444 = vld [vmem:[%s400 + $0x18] sm:$0xf]
      %v445 = vld [vmem:[%s400 + $0x1c] sm:$0xf]
      %v454 = vunpack.c.l.b16 %v422
      %v455 = vunpack.c.l.b16 %v423
      %v456 = vunpack.c.l.b16 %v424
      %v457 = vunpack.c.l.b16 %v425
      %v458 = vunpack.c.l.b16 %v426
      %v459 = vunpack.c.l.b16 %v427
      %v460 = vunpack.c.l.b16 %v428
      %v461 = vunpack.c.l.b16 %v429
      %v462 = vpack.c.b16 %v455, %v454
      %v463 = vpack.c.b16 %v457, %v456
      %v464 = vpack.c.b16 %v459, %v458
      %v465 = vpack.c.b16 %v461, %v460
      %v474 = vunpack.c.l.b16 %v430
      %v475 = vunpack.c.l.b16 %v431
      %v476 = vunpack.c.l.b16 %v432
      %v477 = vunpack.c.l.b16 %v433
      %v478 = vunpack.c.l.b16 %v434
      %v479 = vunpack.c.l.b16 %v435
      %v480 = vunpack.c.l.b16 %v436
      %v481 = vunpack.c.l.b16 %v437
      %v482 = vpack.c.b16 %v475, %v474
      %v483 = vpack.c.b16 %v477, %v476
      %v484 = vpack.c.b16 %v479, %v478
      %v485 = vpack.c.b16 %v481, %v480
      %vm486 = vcmask 261120
      %v488 = vsel %vm486, %v462, 0
      %v491 = vsel %vm486, %v463, 0
      %v494 = vsel %vm486, %v464, 0
      %v497 = vsel %vm486, %v465, 0
      %v500 = vsel %vm486, %v482, 0
      %v503 = vsel %vm486, %v483, 0
      %v506 = vsel %vm486, %v484, 0
      %v509 = vsel %vm486, %v485, 0
      %511 = vmatprep.subr.bf16.mxu0 0
      %512 = vmatpush1.bf16.xpose.msra.mxu0 %v500
      %513 = vmatprep.subr.bf16.mxu0 0
      %514 = vmatpush1.bf16.xpose.msra.mxu0 %v503
      %515 = vmatprep.subr.bf16.mxu0 0
      %516 = vmatpush1.bf16.xpose.msra.mxu0 %v506
      %517 = vmatprep.subr.bf16.mxu0 0
      %518 = vmatpush1.bf16.xpose.msra.mxu0 %v509
      %519 = vmatprep.subr.bf16.mxu0 0
      %520 = vmatpush1.bf16.xpose.msra.mxu0 0
      %521 = vmatprep.subr.bf16.mxu0 0
      %522 = vmatpush1.bf16.xpose.msra.mxu0 0
      %523 = vmatprep.subr.bf16.mxu0 0
      %524 = vmatpush1.bf16.xpose.msra.mxu0 0
      %525 = vmatprep.subr.bf16.mxu0 0
      %526 = vmatpush1.bf16.xpose.msra.mxu0 0
      %527 = vmatprep.subr.bf16.mxu0 0
      %528 = vmatpush1.bf16.xpose.msra.mxu0 0
      %529 = vmatprep.subr.bf16.mxu0 0
      %530 = vmatpush1.bf16.xpose.msra.mxu0 0
      %531 = vmatprep.subr.bf16.mxu0 0
      %532 = vmatpush1.bf16.xpose.msra.mxu0 0
      %533 = vmatprep.subr.bf16.mxu0 0
      %534 = vmatpush1.bf16.xpose.msra.mxu0 0
      %535 = vmatprep.subr.bf16.mxu0 0
      %536 = vmatpush1.bf16.xpose.msra.mxu0 0
      %537 = vmatprep.subr.bf16.mxu0 0
      %538 = vmatpush1.bf16.xpose.msra.mxu0 0
      %539 = vmatprep.subr.bf16.mxu0 0
      %540 = vmatpush1.bf16.xpose.msra.mxu0 0
      %541 = vmatprep.subr.bf16.mxu0 0
      %542 = vmatpush1.bf16.xpose.msra.mxu0 0
      %543 = vmatprep.mubr.bf16.mxu0 0
      %544 = vmatmul.mubr.bf16.gmra.mrb[0].mxu0 %v488
      %v545 = vpop.f32.mrb[0].mxu0
      %v546 = vadd.f32 0.0, %v545
      %v547 = vpop.f32.mrb[0].mxu0
      %v548 = vpop.f32.mrb[0].mxu0
      %v549 = vadd.f32 0.0, %v548
      %v550 = vpop.f32.mrb[0].mxu0
      %551 = vmatprep.mubr.bf16.mxu0 0
      %552 = vmatmul.mubr.bf16.gmra.mrb[0].mxu0 %v491
      %v553 = vpop.f32.mrb[0].mxu0
      %v554 = vadd.f32 0.0, %v553
      %v555 = vpop.f32.mrb[0].mxu0
      %v556 = vpop.f32.mrb[0].mxu0
      %v557 = vadd.f32 0.0, %v556
      %v558 = vpop.f32.mrb[0].mxu0
      %559 = vmatprep.mubr.bf16.mxu0 0
      %560 = vmatmul.mubr.bf16.gmra.mrb[0].mxu0 %v494
      %v561 = vpop.f32.mrb[0].mxu0
      %v562 = vadd.f32 0.0, %v561
      %v563 = vpop.f32.mrb[0].mxu0
      %v564 = vpop.f32.mrb[0].mxu0
      %v565 = vadd.f32 0.0, %v564
      %v566 = vpop.f32.mrb[0].mxu0
      %567 = vmatprep.mubr.bf16.mxu0 0
      %568 = vmatmul.mubr.bf16.gmra.mrb[0].mxu0 %v497
      %v569 = vpop.f32.mrb[0].mxu0
      %v570 = vadd.f32 0.0, %v569
      %v571 = vpop.f32.mrb[0].mxu0
      %v572 = vpop.f32.mrb[0].mxu0
      %v573 = vadd.f32 0.0, %v572
      %v574 = vpop.f32.mrb[0].mxu0
      %575 = vdwg.mxu0
      %v576 = vmul.f32 %v546, 0.17677669
      %v577 = vmul.f32 %v549, 0.17677669
      %v578 = vmul.f32 %v554, 0.17677669
      %v579 = vmul.f32 %v557, 0.17677669
      %v580 = vmul.f32 %v562, 0.17677669
      %v581 = vmul.f32 %v565, 0.17677669
      %v582 = vmul.f32 %v570, 0.17677669
      %v583 = vmul.f32 %v573, 0.17677669
      %vm584 = vcmask 523264
      %v585 = vsel %vm584, %v576, -inf
      %586 = vmax.xlane.f32.xlu0 %v585
      %v587 = vpop.xlane.xlu0 %586
      %v588 = vsel %vm584, %v577, -inf
      %589 = vmax.xlane.f32.xlu0 %v588
      %v590 = vpop.xlane.xlu0 %589
      %v591 = vsel %vm584, %v578, -inf
      %592 = vmax.xlane.f32.xlu0 %v591
      %v593 = vpop.xlane.xlu0 %592
      %v594 = vsel %vm584, %v579, -inf
      %595 = vmax.xlane.f32.xlu0 %v594
      %v596 = vpop.xlane.xlu0 %595
      %v597 = vsel %vm584, %v580, -inf
      %598 = vmax.xlane.f32.xlu0 %v597
      %v599 = vpop.xlane.xlu0 %598
      %v600 = vsel %vm584, %v581, -inf
      %601 = vmax.xlane.f32.xlu0 %v600
      %v602 = vpop.xlane.xlu0 %601
      %v603 = vsel %vm584, %v582, -inf
      %604 = vmax.xlane.f32.xlu0 %v603
      %v605 = vpop.xlane.xlu0 %604
      %v606 = vsel %vm584, %v583, -inf
      %607 = vmax.xlane.f32.xlu0 %v606
      %v608 = vpop.xlane.xlu0 %607
      %v609 = vsub.f32 %v576, %v587
      %v610 = vsub.f32 %v577, %v590
      %v611 = vsub.f32 %v578, %v593
      %v612 = vsub.f32 %v579, %v596
      %v613 = vsub.f32 %v580, %v599
      %v614 = vsub.f32 %v581, %v602
      %v615 = vsub.f32 %v582, %v605
      %v616 = vsub.f32 %v583, %v608
      %v617 = vmul.f32 %v609, 1.442695
      %v618 = vpow.pop %v617
      %v619 = vmul.f32 %v610, 1.442695
      %v620 = vpow.pop %v619
      %v621 = vmul.f32 %v611, 1.442695
      %v622 = vpow.pop %v621
      %v623 = vmul.f32 %v612, 1.442695
      %v624 = vpow.pop %v623
      %v625 = vmul.f32 %v613, 1.442695
      %v626 = vpow.pop %v625
      %v627 = vmul.f32 %v614, 1.442695
      %v628 = vpow.pop %v627
      %v629 = vmul.f32 %v615, 1.442695
      %v630 = vpow.pop %v629
      %v631 = vmul.f32 %v616, 1.442695
      %v632 = vpow.pop %v631
      %v633 = vsel %vm584, %v618, 0.0
      %634 = vadd.xlane.f32.xlu0 %v633
      %v635 = vpop.xlane.xlu0 %634
      %v636 = vsel %vm584, %v620, 0.0
      %637 = vadd.xlane.f32.xlu0 %v636
      %v638 = vpop.xlane.xlu0 %637
      %v639 = vsel %vm584, %v622, 0.0
      %640 = vadd.xlane.f32.xlu0 %v639
      %v641 = vpop.xlane.xlu0 %640
      %v642 = vsel %vm584, %v624, 0.0
      %643 = vadd.xlane.f32.xlu0 %v642
      %v644 = vpop.xlane.xlu0 %643
      %v645 = vsel %vm584, %v626, 0.0
      %646 = vadd.xlane.f32.xlu0 %v645
      %v647 = vpop.xlane.xlu0 %646
      %v648 = vsel %vm584, %v628, 0.0
      %649 = vadd.xlane.f32.xlu0 %v648
      %v650 = vpop.xlane.xlu0 %649
      %v651 = vsel %vm584, %v630, 0.0
      %652 = vadd.xlane.f32.xlu0 %v651
      %v653 = vpop.xlane.xlu0 %652
      %v654 = vsel %vm584, %v632, 0.0
      %655 = vadd.xlane.f32.xlu0 %v654
      %v656 = vpop.xlane.xlu0 %655
      %v657 = vrcp.pop %v635
      %v658 = vrcp.pop %v638
      %v659 = vrcp.pop %v641
      %v660 = vrcp.pop %v644
      %v661 = vrcp.pop %v647
      %v662 = vrcp.pop %v650
      %v663 = vrcp.pop %v653
      %v664 = vrcp.pop %v656
      %v665 = vmul.f32 %v618, %v657
      %v666 = vmul.f32 %v620, %v658
      %v667 = vmul.f32 %v622, %v659
      %v668 = vmul.f32 %v624, %v660
      %v669 = vmul.f32 %v626, %v661
      %v670 = vmul.f32 %v628, %v662
      %v671 = vmul.f32 %v630, %v663
      %v672 = vmul.f32 %v632, %v664
      %v673 = vpack.c.bf16 %v666, %v665
      %v674 = vpack.c.bf16 %v668, %v667
      %v675 = vpack.c.bf16 %v670, %v669
      %v676 = vpack.c.bf16 %v672, %v671
      %v685 = vunpack.c.l.b16 %v438
      %v686 = vunpack.c.l.b16 %v439
      %v687 = vunpack.c.l.b16 %v440
      %v688 = vunpack.c.l.b16 %v441
      %v689 = vunpack.c.l.b16 %v442
      %v690 = vunpack.c.l.b16 %v443
      %v691 = vunpack.c.l.b16 %v444
      %v692 = vunpack.c.l.b16 %v445
      %v693 = vpack.c.b16 %v686, %v685
      %v694 = vpack.c.b16 %v688, %v687
      %v695 = vpack.c.b16 %v690, %v689
      %v696 = vpack.c.b16 %v692, %v691
      %v702 = vsel %vm584, %v673, 0
      %v705 = vsel %vm584, %v674, 0
      %v708 = vsel %vm584, %v675, 0
      %v711 = vsel %vm584, %v676, 0
      %713 = vmatprep.subr.bf16.mxu0 0
      %714 = vmatpush1.bf16.msra.mxu0 %v693
      %715 = vmatprep.subr.bf16.mxu0 0
      %716 = vmatpush1.bf16.msra.mxu0 %v694
      %717 = vmatprep.subr.bf16.mxu0 0
      %718 = vmatpush1.bf16.msra.mxu0 %v695
      %719 = vmatprep.subr.bf16.mxu0 0
      %720 = vmatpush1.bf16.msra.mxu0 %v696
      %721 = vmatprep.subr.bf16.mxu0 0
      %722 = vmatpush1.bf16.msra.mxu0 0
      %723 = vmatprep.subr.bf16.mxu0 0
      %724 = vmatpush1.bf16.msra.mxu0 0
      %725 = vmatprep.subr.bf16.mxu0 0
      %726 = vmatpush1.bf16.msra.mxu0 0
      %727 = vmatprep.subr.bf16.mxu0 0
      %728 = vmatpush1.bf16.msra.mxu0 0
      %729 = vmatprep.subr.bf16.mxu0 0
      %730 = vmatpush1.bf16.msra.mxu0 0
      %731 = vmatprep.subr.bf16.mxu0 0
      %732 = vmatpush1.bf16.msra.mxu0 0
      %733 = vmatprep.subr.bf16.mxu0 0
      %734 = vmatpush1.bf16.msra.mxu0 0
      %735 = vmatprep.subr.bf16.mxu0 0
      %736 = vmatpush1.bf16.msra.mxu0 0
      %737 = vmatprep.subr.bf16.mxu0 0
      %738 = vmatpush1.bf16.msra.mxu0 0
      %739 = vmatprep.subr.bf16.mxu0 0
      %740 = vmatpush1.bf16.msra.mxu0 0
      %741 = vmatprep.subr.bf16.mxu0 0
      %742 = vmatpush1.bf16.msra.mxu0 0
      %743 = vmatprep.subr.bf16.mxu0 0
      %744 = vmatpush1.bf16.msra.mxu0 0
      %745 = vmatprep.mubr.bf16.mxu0 0
      %746 = vmatmul.mubr.bf16.gmra.mrb[0].mxu0 %v702
      %v747 = vpop.f32.mrb[0].mxu0
      %v748 = vadd.f32 0.0, %v747
      %v749 = vpop.f32.mrb[0].mxu0
      %v750 = vpop.f32.mrb[0].mxu0
      %v751 = vadd.f32 0.0, %v750
      %v752 = vpop.f32.mrb[0].mxu0
      %753 = vmatprep.mubr.bf16.mxu0 0
      %754 = vmatmul.mubr.bf16.gmra.mrb[0].mxu0 %v705
      %v755 = vpop.f32.mrb[0].mxu0
      %v756 = vadd.f32 0.0, %v755
      %v757 = vpop.f32.mrb[0].mxu0
      %v758 = vpop.f32.mrb[0].mxu0
      %v759 = vadd.f32 0.0, %v758
      %v760 = vpop.f32.mrb[0].mxu0
      %761 = vmatprep.mubr.bf16.mxu0 0
      %762 = vmatmul.mubr.bf16.gmra.mrb[0].mxu0 %v708
      %v763 = vpop.f32.mrb[0].mxu0
      %v764 = vadd.f32 0.0, %v763
      %v765 = vpop.f32.mrb[0].mxu0
      %v766 = vpop.f32.mrb[0].mxu0
      %v767 = vadd.f32 0.0, %v766
      %v768 = vpop.f32.mrb[0].mxu0
      %769 = vmatprep.mubr.bf16.mxu0 0
      %770 = vmatmul.mubr.bf16.gmra.mrb[0].mxu0 %v711
      %v771 = vpop.f32.mrb[0].mxu0
      %v772 = vadd.f32 0.0, %v771
      %v773 = vpop.f32.mrb[0].mxu0
      %v774 = vpop.f32.mrb[0].mxu0
      %v775 = vadd.f32 0.0, %v774
      %v776 = vpop.f32.mrb[0].mxu0
      %777 = vdwg.mxu0
      %v778 = vpack.c.bf16 %v751, %v748
      %v779 = vpack.c.bf16 %v759, %v756
      %v780 = vpack.c.bf16 %v767, %v764
      %v781 = vpack.c.bf16 %v775, %v772
      %782 = vst.msk [vmem:[#allocation2] sm:$0xff] %vm486, %v778
      %783 = vst.msk [vmem:[#allocation2 + $0x8] sm:$0xff] %vm486, %v779
      %784 = vst.msk [vmem:[#allocation2 + $0x10] sm:$0xff] %vm486, %v780
      %785 = vst.msk [vmem:[#allocation2 + $0x18] sm:$0xff] %vm486, %v781
      %786 = vrot.lane.b32.xlu0 %v462, 96
      %v787 = vpop.permute.xlu0 %786
      %788 = vrot.lane.b32.xlu0 %v463, 96
      %v789 = vpop.permute.xlu0 %788
      %790 = vrot.lane.b32.xlu0 %v464, 96
      %v791 = vpop.permute.xlu0 %790
      %792 = vrot.lane.b32.xlu0 %v465, 96
      %v793 = vpop.permute.xlu0 %792
      %794 = vrot.lane.b32.xlu0 %v482, 96
      %v795 = vpop.permute.xlu0 %794
      %796 = vrot.lane.b32.xlu0 %v483, 96
      %v797 = vpop.permute.xlu0 %796
      %798 = vrot.lane.b32.xlu0 %v484, 96
      %v799 = vpop.permute.xlu0 %798
      %800 = vrot.lane.b32.xlu0 %v485, 96
      %v801 = vpop.permute.xlu0 %800
      %v803 = vsel %vm486, %v787, 0
      %v806 = vsel %vm486, %v789, 0
      %v809 = vsel %vm486, %v791, 0
      %v812 = vsel %vm486, %v793, 0
      %v815 = vsel %vm486, %v795, 0
      %v818 = vsel %vm486, %v797, 0
      %v821 = vsel %vm486, %v799, 0
      %v824 = vsel %vm486, %v801, 0
      %826 = vmatprep.subr.bf16.mxu0 0
      %827 = vmatpush1.bf16.xpose.msra.mxu0 %v815
      %828 = vmatprep.subr.bf16.mxu0 0
      %829 = vmatpush1.bf16.xpose.msra.mxu0 %v818
      %830 = vmatprep.subr.bf16.mxu0 0
      %831 = vmatpush1.bf16.xpose.msra.mxu0 %v821
      %832 = vmatprep.subr.bf16.mxu0 0
      %833 = vmatpush1.bf16.xpose.msra.mxu0 %v824
      %834 = vmatprep.subr.bf16.mxu0 0
      %835 = vmatpush1.bf16.xpose.msra.mxu0 0
      %836 = vmatprep.subr.bf16.mxu0 0
      %837 = vmatpush1.bf16.xpose.msra.mxu0 0
      %838 = vmatprep.subr.bf16.mxu0 0
      %839 = vmatpush1.bf16.xpose.msra.mxu0 0
      %840 = vmatprep.subr.bf16.mxu0 0
      %841 = vmatpush1.bf16.xpose.msra.mxu0 0
      %842 = vmatprep.subr.bf16.mxu0 0
      %843 = vmatpush1.bf16.xpose.msra.mxu0 0
      %844 = vmatprep.subr.bf16.mxu0 0
      %845 = vmatpush1.bf16.xpose.msra.mxu0 0
      %846 = vmatprep.subr.bf16.mxu0 0
      %847 = vmatpush1.bf16.xpose.msra.mxu0 0
      %848 = vmatprep.subr.bf16.mxu0 0
      %849 = vmatpush1.bf16.xpose.msra.mxu0 0
      %850 = vmatprep.subr.bf16.mxu0 0
      %851 = vmatpush1.bf16.xpose.msra.mxu0 0
      %852 = vmatprep.subr.bf16.mxu0 0
      %853 = vmatpush1.bf16.xpose.msra.mxu0 0
      %854 = vmatprep.subr.bf16.mxu0 0
      %855 = vmatpush1.bf16.xpose.msra.mxu0 0
      %856 = vmatprep.subr.bf16.mxu0 0
      %857 = vmatpush1.bf16.xpose.msra.mxu0 0
      %858 = vmatprep.mubr.bf16.mxu0 0
      %859 = vmatmul.mubr.bf16.gmra.mrb[0].mxu0 %v803
      %v860 = vpop.f32.mrb[0].mxu0
      %v861 = vadd.f32 0.0, %v860
      %v862 = vpop.f32.mrb[0].mxu0
      %v863 = vpop.f32.mrb[0].mxu0
      %v864 = vadd.f32 0.0, %v863
      %v865 = vpop.f32.mrb[0].mxu0
      %866 = vmatprep.mubr.bf16.mxu0 0
      %867 = vmatmul.mubr.bf16.gmra.mrb[0].mxu0 %v806
      %v868 = vpop.f32.mrb[0].mxu0
      %v869 = vadd.f32 0.0, %v868
      %v870 = vpop.f32.mrb[0].mxu0
      %v871 = vpop.f32.mrb[0].mxu0
      %v872 = vadd.f32 0.0, %v871
      %v873 = vpop.f32.mrb[0].mxu0
      %874 = vmatprep.mubr.bf16.mxu0 0
      %875 = vmatmul.mubr.bf16.gmra.mrb[0].mxu0 %v809
      %v876 = vpop.f32.mrb[0].mxu0
      %v877 = vadd.f32 0.0, %v876
      %v878 = vpop.f32.mrb[0].mxu0
      %v879 = vpop.f32.mrb[0].mxu0
      %v880 = vadd.f32 0.0, %v879
      %v881 = vpop.f32.mrb[0].mxu0
      %882 = vmatprep.mubr.bf16.mxu0 0
      %883 = vmatmul.mubr.bf16.gmra.mrb[0].mxu0 %v812
      %v884 = vpop.f32.mrb[0].mxu0
      %v885 = vadd.f32 0.0, %v884
      %v886 = vpop.f32.mrb[0].mxu0
      %v887 = vpop.f32.mrb[0].mxu0
      %v888 = vadd.f32 0.0, %v887
      %v889 = vpop.f32.mrb[0].mxu0
      %890 = vdwg.mxu0
      %v891 = vmul.f32 %v861, 0.17677669
      %v892 = vmul.f32 %v864, 0.17677669
      %v893 = vmul.f32 %v869, 0.17677669
      %v894 = vmul.f32 %v872, 0.17677669
      %v895 = vmul.f32 %v877, 0.17677669
      %v896 = vmul.f32 %v880, 0.17677669
      %v897 = vmul.f32 %v885, 0.17677669
      %v898 = vmul.f32 %v888, 0.17677669
      %v899 = vsel %vm584, %v891, -inf
      %900 = vmax.xlane.f32.xlu0 %v899
      %v901 = vpop.xlane.xlu0 %900
      %v902 = vsel %vm584, %v892, -inf
      %903 = vmax.xlane.f32.xlu0 %v902
      %v904 = vpop.xlane.xlu0 %903
      %v905 = vsel %vm584, %v893, -inf
      %906 = vmax.xlane.f32.xlu0 %v905
      %v907 = vpop.xlane.xlu0 %906
      %v908 = vsel %vm584, %v894, -inf
      %909 = vmax.xlane.f32.xlu0 %v908
      %v910 = vpop.xlane.xlu0 %909
      %v911 = vsel %vm584, %v895, -inf
      %912 = vmax.xlane.f32.xlu0 %v911
      %v913 = vpop.xlane.xlu0 %912
      %v914 = vsel %vm584, %v896, -inf
      %915 = vmax.xlane.f32.xlu0 %v914
      %v916 = vpop.xlane.xlu0 %915
      %v917 = vsel %vm584, %v897, -inf
      %918 = vmax.xlane.f32.xlu0 %v917
      %v919 = vpop.xlane.xlu0 %918
      %v920 = vsel %vm584, %v898, -inf
      %921 = vmax.xlane.f32.xlu0 %v920
      %v922 = vpop.xlane.xlu0 %921
      %v923 = vsub.f32 %v891, %v901
      %v924 = vsub.f32 %v892, %v904
      %v925 = vsub.f32 %v893, %v907
      %v926 = vsub.f32 %v894, %v910
      %v927 = vsub.f32 %v895, %v913
      %v928 = vsub.f32 %v896, %v916
      %v929 = vsub.f32 %v897, %v919
      %v930 = vsub.f32 %v898, %v922
      %v931 = vmul.f32 %v923, 1.442695
      %v932 = vpow.pop %v931
      %v933 = vmul.f32 %v924, 1.442695
      %v934 = vpow.pop %v933
      %v935 = vmul.f32 %v925, 1.442695
      %v936 = vpow.pop %v935
      %v937 = vmul.f32 %v926, 1.442695
      %v938 = vpow.pop %v937
      %v939 = vmul.f32 %v927, 1.442695
      %v940 = vpow.pop %v939
      %v941 = vmul.f32 %v928, 1.442695
      %v942 = vpow.pop %v941
      %v943 = vmul.f32 %v929, 1.442695
      %v944 = vpow.pop %v943
      %v945 = vmul.f32 %v930, 1.442695
      %v946 = vpow.pop %v945
      %v947 = vsel %vm584, %v932, 0.0
      %948 = vadd.xlane.f32.xlu0 %v947
      %v949 = vpop.xlane.xlu0 %948
      %v950 = vsel %vm584, %v934, 0.0
      %951 = vadd.xlane.f32.xlu0 %v950
      %v952 = vpop.xlane.xlu0 %951
      %v953 = vsel %vm584, %v936, 0.0
      %954 = vadd.xlane.f32.xlu0 %v953
      %v955 = vpop.xlane.xlu0 %954
      %v956 = vsel %vm584, %v938, 0.0
      %957 = vadd.xlane.f32.xlu0 %v956
      %v958 = vpop.xlane.xlu0 %957
      %v959 = vsel %vm584, %v940, 0.0
      %960 = vadd.xlane.f32.xlu0 %v959
      %v961 = vpop.xlane.xlu0 %960
      %v962 = vsel %vm584, %v942, 0.0
      %963 = vadd.xlane.f32.xlu0 %v962
      %v964 = vpop.xlane.xlu0 %963
      %v965 = vsel %vm584, %v944, 0.0
      %966 = vadd.xlane.f32.xlu0 %v965
      %v967 = vpop.xlane.xlu0 %966
      %v968 = vsel %vm584, %v946, 0.0
      %969 = vadd.xlane.f32.xlu0 %v968
      %v970 = vpop.xlane.xlu0 %969
      %v971 = vrcp.pop %v949
      %v972 = vrcp.pop %v952
      %v973 = vrcp.pop %v955
      %v974 = vrcp.pop %v958
      %v975 = vrcp.pop %v961
      %v976 = vrcp.pop %v964
      %v977 = vrcp.pop %v967
      %v978 = vrcp.pop %v970
      %v979 = vmul.f32 %v932, %v971
      %v980 = vmul.f32 %v934, %v972
      %v981 = vmul.f32 %v936, %v973
      %v982 = vmul.f32 %v938, %v974
      %v983 = vmul.f32 %v940, %v975
      %v984 = vmul.f32 %v942, %v976
      %v985 = vmul.f32 %v944, %v977
      %v986 = vmul.f32 %v946, %v978
      %v987 = vpack.c.bf16 %v980, %v979
      %v988 = vpack.c.bf16 %v982, %v981
      %v989 = vpack.c.bf16 %v984, %v983
      %v990 = vpack.c.bf16 %v986, %v985
      %991 = vrot.lane.b32.xlu0 %v693, 96
      %v992 = vpop.permute.xlu0 %991
      %993 = vrot.lane.b32.xlu0 %v694, 96
      %v994 = vpop.permute.xlu0 %993
      %995 = vrot.lane.b32.xlu0 %v695, 96
      %v996 = vpop.permute.xlu0 %995
      %997 = vrot.lane.b32.xlu0 %v696, 96
      %v998 = vpop.permute.xlu0 %997
      %v1004 = vsel %vm584, %v987, 0
      %v1007 = vsel %vm584, %v988, 0
      %v1010 = vsel %vm584, %v989, 0
      %v1013 = vsel %vm584, %v990, 0
      %1015 = vmatprep.subr.bf16.mxu0 0
      %1016 = vmatpush1.bf16.msra.mxu0 %v992
      %1017 = vmatprep.subr.bf16.mxu0 0
      %1018 = vmatpush1.bf16.msra.mxu0 %v994
      %1019 = vmatprep.subr.bf16.mxu0 0
      %1020 = vmatpush1.bf16.msra.mxu0 %v996
      %1021 = vmatprep.subr.bf16.mxu0 0
      %1022 = vmatpush1.bf16.msra.mxu0 %v998
      %1023 = vmatprep.subr.bf16.mxu0 0
      %1024 = vmatpush1.bf16.msra.mxu0 0
      %1025 = vmatprep.subr.bf16.mxu0 0
      %1026 = vmatpush1.bf16.msra.mxu0 0
      %1027 = vmatprep.subr.bf16.mxu0 0
      %1028 = vmatpush1.bf16.msra.mxu0 0
      %1029 = vmatprep.subr.bf16.mxu0 0
      %1030 = vmatpush1.bf16.msra.mxu0 0
      %1031 = vmatprep.subr.bf16.mxu0 0
      %1032 = vmatpush1.bf16.msra.mxu0 0
      %1033 = vmatprep.subr.bf16.mxu0 0
      %1034 = vmatpush1.bf16.msra.mxu0 0
      %1035 = vmatprep.subr.bf16.mxu0 0
      %1036 = vmatpush1.bf16.msra.mxu0 0
      %1037 = vmatprep.subr.bf16.mxu0 0
      %1038 = vmatpush1.bf16.msra.mxu0 0
      %1039 = vmatprep.subr.bf16.mxu0 0
      %1040 = vmatpush1.bf16.msra.mxu0 0
      %1041 = vmatprep.subr.bf16.mxu0 0
      %1042 = vmatpush1.bf16.msra.mxu0 0
      %1043 = vmatprep.subr.bf16.mxu0 0
      %1044 = vmatpush1.bf16.msra.mxu0 0
      %1045 = vmatprep.subr.bf16.mxu0 0
      %1046 = vmatpush1.bf16.msra.mxu0 0
      %1047 = vmatprep.mubr.bf16.mxu0 0
      %1048 = vmatmul.mubr.bf16.gmra.mrb[0].mxu0 %v1004
      %v1049 = vpop.f32.mrb[0].mxu0
      %v1050 = vadd.f32 0.0, %v1049
      %v1051 = vpop.f32.mrb[0].mxu0
      %v1052 = vpop.f32.mrb[0].mxu0
      %v1053 = vadd.f32 0.0, %v1052
      %v1054 = vpop.f32.mrb[0].mxu0
      %1055 = vmatprep.mubr.bf16.mxu0 0
      %1056 = vmatmul.mubr.bf16.gmra.mrb[0].mxu0 %v1007
      %v1057 = vpop.f32.mrb[0].mxu0
      %v1058 = vadd.f32 0.0, %v1057
      %v1059 = vpop.f32.mrb[0].mxu0
      %v1060 = vpop.f32.mrb[0].mxu0
      %v1061 = vadd.f32 0.0, %v1060
      %v1062 = vpop.f32.mrb[0].mxu0
      %1063 = vmatprep.mubr.bf16.mxu0 0
      %1064 = vmatmul.mubr.bf16.gmra.mrb[0].mxu0 %v1010
      %v1065 = vpop.f32.mrb[0].mxu0
      %v1066 = vadd.f32 0.0, %v1065
      %v1067 = vpop.f32.mrb[0].mxu0
      %v1068 = vpop.f32.mrb[0].mxu0
      %v1069 = vadd.f32 0.0, %v1068
      %v1070 = vpop.f32.mrb[0].mxu0
      %1071 = vmatprep.mubr.bf16.mxu0 0
      %1072 = vmatmul.mubr.bf16.gmra.mrb[0].mxu0 %v1013
      %v1073 = vpop.f32.mrb[0].mxu0
      %v1074 = vadd.f32 0.0, %v1073
      %v1075 = vpop.f32.mrb[0].mxu0
      %v1076 = vpop.f32.mrb[0].mxu0
      %v1077 = vadd.f32 0.0, %v1076
      %v1078 = vpop.f32.mrb[0].mxu0
      %1079 = vdwg.mxu0
      %v1080 = vpack.c.bf16 %v1053, %v1050
      %v1081 = vpack.c.bf16 %v1061, %v1058
      %v1082 = vpack.c.bf16 %v1069, %v1066
      %v1083 = vpack.c.bf16 %v1077, %v1074
      %1088 = vrot.lane.b32.xlu0 %v1080, 32
      %v1089 = vpop.permute.xlu0 %1088
      %1090 = vrot.lane.b32.xlu0 %v1081, 32
      %v1091 = vpop.permute.xlu0 %1090
      %1092 = vrot.lane.b32.xlu0 %v1082, 32
      %v1093 = vpop.permute.xlu0 %1092
      %1094 = vrot.lane.b32.xlu0 %v1083, 32
      %v1095 = vpop.permute.xlu0 %1094
      %vm1100 = vcmask 523520
      %1101 = vst.msk [vmem:[#allocation2] sm:$0xff] %vm1100, %v1089
      %1102 = vst.msk [vmem:[#allocation2 + $0x8] sm:$0xff] %vm1100, %v1091
      %1103 = vst.msk [vmem:[#allocation2 + $0x10] sm:$0xff] %vm1100, %v1093
      %1104 = vst.msk [vmem:[#allocation2 + $0x18] sm:$0xff] %vm1100, %v1095
      %1105 = vrot.lane.b32.xlu0 %v462, 64
      %v1106 = vpop.permute.xlu0 %1105
      %1107 = vrot.lane.b32.xlu0 %v463, 64
      %v1108 = vpop.permute.xlu0 %1107
      %1109 = vrot.lane.b32.xlu0 %v464, 64
      %v1110 = vpop.permute.xlu0 %1109
      %1111 = vrot.lane.b32.xlu0 %v465, 64
      %v1112 = vpop.permute.xlu0 %1111
      %1113 = vrot.lane.b32.xlu0 %v482, 64
      %v1114 = vpop.permute.xlu0 %1113
      %1115 = vrot.lane.b32.xlu0 %v483, 64
      %v1116 = vpop.permute.xlu0 %1115
      %1117 = vrot.lane.b32.xlu0 %v484, 64
      %v1118 = vpop.permute.xlu0 %1117
      %1119 = vrot.lane.b32.xlu0 %v485, 64
      %v1120 = vpop.permute.xlu0 %1119
      %v1122 = vsel %vm486, %v1106, 0
      %v1125 = vsel %vm486, %v1108, 0
      %v1128 = vsel %vm486, %v1110, 0
      %v1131 = vsel %vm486, %v1112, 0
      %v1134 = vsel %vm486, %v1114, 0
      %v1137 = vsel %vm486, %v1116, 0
      %v1140 = vsel %vm486, %v1118, 0
      %v1143 = vsel %vm486, %v1120, 0
      %1145 = vmatprep.subr.bf16.mxu0 0
      %1146 = vmatpush1.bf16.xpose.msra.mxu0 %v1134
      %1147 = vmatprep.subr.bf16.mxu0 0
      %1148 = vmatpush1.bf16.xpose.msra.mxu0 %v1137
      %1149 = vmatprep.subr.bf16.mxu0 0
      %1150 = vmatpush1.bf16.xpose.msra.mxu0 %v1140
      %1151 = vmatprep.subr.bf16.mxu0 0
      %1152 = vmatpush1.bf16.xpose.msra.mxu0 %v1143
      %1153 = vmatprep.subr.bf16.mxu0 0
      %1154 = vmatpush1.bf16.xpose.msra.mxu0 0
      %1155 = vmatprep.subr.bf16.mxu0 0
      %1156 = vmatpush1.bf16.xpose.msra.mxu0 0
      %1157 = vmatprep.subr.bf16.mxu0 0
      %1158 = vmatpush1.bf16.xpose.msra.mxu0 0
      %1159 = vmatprep.subr.bf16.mxu0 0
      %1160 = vmatpush1.bf16.xpose.msra.mxu0 0
      %1161 = vmatprep.subr.bf16.mxu0 0
      %1162 = vmatpush1.bf16.xpose.msra.mxu0 0
      %1163 = vmatprep.subr.bf16.mxu0 0
      %1164 = vmatpush1.bf16.xpose.msra.mxu0 0
      %1165 = vmatprep.subr.bf16.mxu0 0
      %1166 = vmatpush1.bf16.xpose.msra.mxu0 0
      %1167 = vmatprep.subr.bf16.mxu0 0
      %1168 = vmatpush1.bf16.xpose.msra.mxu0 0
      %1169 = vmatprep.subr.bf16.mxu0 0
      %1170 = vmatpush1.bf16.xpose.msra.mxu0 0
      %1171 = vmatprep.subr.bf16.mxu0 0
      %1172 = vmatpush1.bf16.xpose.msra.mxu0 0
      %1173 = vmatprep.subr.bf16.mxu0 0
      %1174 = vmatpush1.bf16.xpose.msra.mxu0 0
      %1175 = vmatprep.subr.bf16.mxu0 0
      %1176 = vmatpush1.bf16.xpose.msra.mxu0 0
      %1177 = vmatprep.mubr.bf16.mxu0 0
      %1178 = vmatmul.mubr.bf16.gmra.mrb[0].mxu0 %v1122
      %v1179 = vpop.f32.mrb[0].mxu0
      %v1180 = vadd.f32 0.0, %v1179
      %v1181 = vpop.f32.mrb[0].mxu0
      %v1182 = vpop.f32.mrb[0].mxu0
      %v1183 = vadd.f32 0.0, %v1182
      %v1184 = vpop.f32.mrb[0].mxu0
      %1185 = vmatprep.mubr.bf16.mxu0 0
      %1186 = vmatmul.mubr.bf16.gmra.mrb[0].mxu0 %v1125
      %v1187 = vpop.f32.mrb[0].mxu0
      %v1188 = vadd.f32 0.0, %v1187
      %v1189 = vpop.f32.mrb[0].mxu0
      %v1190 = vpop.f32.mrb[0].mxu0
      %v1191 = vadd.f32 0.0, %v1190
      %v1192 = vpop.f32.mrb[0].mxu0
      %1193 = vmatprep.mubr.bf16.mxu0 0
      %1194 = vmatmul.mubr.bf16.gmra.mrb[0].mxu0 %v1128
      %v1195 = vpop.f32.mrb[0].mxu0
      %v1196 = vadd.f32 0.0, %v1195
      %v1197 = vpop.f32.mrb[0].mxu0
      %v1198 = vpop.f32.mrb[0].mxu0
      %v1199 = vadd.f32 0.0, %v1198
      %v1200 = vpop.f32.mrb[0].mxu0
      %1201 = vmatprep.mubr.bf16.mxu0 0
      %1202 = vmatmul.mubr.bf16.gmra.mrb[0].mxu0 %v1131
      %v1203 = vpop.f32.mrb[0].mxu0
      %v1204 = vadd.f32 0.0, %v1203
      %v1205 = vpop.f32.mrb[0].mxu0
      %v1206 = vpop.f32.mrb[0].mxu0
      %v1207 = vadd.f32 0.0, %v1206
      %v1208 = vpop.f32.mrb[0].mxu0
      %1209 = vdwg.mxu0
      %v1210 = vmul.f32 %v1180, 0.17677669
      %v1211 = vmul.f32 %v1183, 0.17677669
      %v1212 = vmul.f32 %v1188, 0.17677669
      %v1213 = vmul.f32 %v1191, 0.17677669
      %v1214 = vmul.f32 %v1196, 0.17677669
      %v1215 = vmul.f32 %v1199, 0.17677669
      %v1216 = vmul.f32 %v1204, 0.17677669
      %v1217 = vmul.f32 %v1207, 0.17677669
      %v1218 = vsel %vm584, %v1210, -inf
      %1219 = vmax.xlane.f32.xlu0 %v1218
      %v1220 = vpop.xlane.xlu0 %1219
      %v1221 = vsel %vm584, %v1211, -inf
      %1222 = vmax.xlane.f32.xlu0 %v1221
      %v1223 = vpop.xlane.xlu0 %1222
      %v1224 = vsel %vm584, %v1212, -inf
      %1225 = vmax.xlane.f32.xlu0 %v1224
      %v1226 = vpop.xlane.xlu0 %1225
      %v1227 = vsel %vm584, %v1213, -inf
      %1228 = vmax.xlane.f32.xlu0 %v1227
      %v1229 = vpop.xlane.xlu0 %1228
      %v1230 = vsel %vm584, %v1214, -inf
      %1231 = vmax.xlane.f32.xlu0 %v1230
      %v1232 = vpop.xlane.xlu0 %1231
      %v1233 = vsel %vm584, %v1215, -inf
      %1234 = vmax.xlane.f32.xlu0 %v1233
      %v1235 = vpop.xlane.xlu0 %1234
      %v1236 = vsel %vm584, %v1216, -inf
      %1237 = vmax.xlane.f32.xlu0 %v1236
      %v1238 = vpop.xlane.xlu0 %1237
      %v1239 = vsel %vm584, %v1217, -inf
      %1240 = vmax.xlane.f32.xlu0 %v1239
      %v1241 = vpop.xlane.xlu0 %1240
      %v1242 = vsub.f32 %v1210, %v1220
      %v1243 = vsub.f32 %v1211, %v1223
      %v1244 = vsub.f32 %v1212, %v1226
      %v1245 = vsub.f32 %v1213, %v1229
      %v1246 = vsub.f32 %v1214, %v1232
      %v1247 = vsub.f32 %v1215, %v1235
      %v1248 = vsub.f32 %v1216, %v1238
      %v1249 = vsub.f32 %v1217, %v1241
      %v1250 = vmul.f32 %v1242, 1.442695
      %v1251 = vpow.pop %v1250
      %v1252 = vmul.f32 %v1243, 1.442695
      %v1253 = vpow.pop %v1252
      %v1254 = vmul.f32 %v1244, 1.442695
      %v1255 = vpow.pop %v1254
      %v1256 = vmul.f32 %v1245, 1.442695
      %v1257 = vpow.pop %v1256
      %v1258 = vmul.f32 %v1246, 1.442695
      %v1259 = vpow.pop %v1258
      %v1260 = vmul.f32 %v1247, 1.442695
      %v1261 = vpow.pop %v1260
      %v1262 = vmul.f32 %v1248, 1.442695
      %v1263 = vpow.pop %v1262
      %v1264 = vmul.f32 %v1249, 1.442695
      %v1265 = vpow.pop %v1264
      %v1266 = vsel %vm584, %v1251, 0.0
      %1267 = vadd.xlane.f32.xlu0 %v1266
      %v1268 = vpop.xlane.xlu0 %1267
      %v1269 = vsel %vm584, %v1253, 0.0
      %1270 = vadd.xlane.f32.xlu0 %v1269
      %v1271 = vpop.xlane.xlu0 %1270
      %v1272 = vsel %vm584, %v1255, 0.0
      %1273 = vadd.xlane.f32.xlu0 %v1272
      %v1274 = vpop.xlane.xlu0 %1273
      %v1275 = vsel %vm584, %v1257, 0.0
      %1276 = vadd.xlane.f32.xlu0 %v1275
      %v1277 = vpop.xlane.xlu0 %1276
      %v1278 = vsel %vm584, %v1259, 0.0
      %1279 = vadd.xlane.f32.xlu0 %v1278
      %v1280 = vpop.xlane.xlu0 %1279
      %v1281 = vsel %vm584, %v1261, 0.0
      %1282 = vadd.xlane.f32.xlu0 %v1281
      %v1283 = vpop.xlane.xlu0 %1282
      %v1284 = vsel %vm584, %v1263, 0.0
      %1285 = vadd.xlane.f32.xlu0 %v1284
      %v1286 = vpop.xlane.xlu0 %1285
      %v1287 = vsel %vm584, %v1265, 0.0
      %1288 = vadd.xlane.f32.xlu0 %v1287
      %v1289 = vpop.xlane.xlu0 %1288
      %v1290 = vrcp.pop %v1268
      %v1291 = vrcp.pop %v1271
      %v1292 = vrcp.pop %v1274
      %v1293 = vrcp.pop %v1277
      %v1294 = vrcp.pop %v1280
      %v1295 = vrcp.pop %v1283
      %v1296 = vrcp.pop %v1286
      %v1297 = vrcp.pop %v1289
      %v1298 = vmul.f32 %v1251, %v1290
      %v1299 = vmul.f32 %v1253, %v1291
      %v1300 = vmul.f32 %v1255, %v1292
      %v1301 = vmul.f32 %v1257, %v1293
      %v1302 = vmul.f32 %v1259, %v1294
      %v1303 = vmul.f32 %v1261, %v1295
      %v1304 = vmul.f32 %v1263, %v1296
      %v1305 = vmul.f32 %v1265, %v1297
      %v1306 = vpack.c.bf16 %v1299, %v1298
      %v1307 = vpack.c.bf16 %v1301, %v1300
      %v1308 = vpack.c.bf16 %v1303, %v1302
      %v1309 = vpack.c.bf16 %v1305, %v1304
      %1310 = vrot.lane.b32.xlu0 %v693, 64
      %v1311 = vpop.permute.xlu0 %1310
      %1312 = vrot.lane.b32.xlu0 %v694, 64
      %v1313 = vpop.permute.xlu0 %1312
      %1314 = vrot.lane.b32.xlu0 %v695, 64
      %v1315 = vpop.permute.xlu0 %1314
      %1316 = vrot.lane.b32.xlu0 %v696, 64
      %v1317 = vpop.permute.xlu0 %1316
      %v1323 = vsel %vm584, %v1306, 0
      %v1326 = vsel %vm584, %v1307, 0
      %v1329 = vsel %vm584, %v1308, 0
      %v1332 = vsel %vm584, %v1309, 0
      %1334 = vmatprep.subr.bf16.mxu0 0
      %1335 = vmatpush1.bf16.msra.mxu0 %v1311
      %1336 = vmatprep.subr.bf16.mxu0 0
      %1337 = vmatpush1.bf16.msra.mxu0 %v1313
      %1338 = vmatprep.subr.bf16.mxu0 0
      %1339 = vmatpush1.bf16.msra.mxu0 %v1315
      %1340 = vmatprep.subr.bf16.mxu0 0
      %1341 = vmatpush1.bf16.msra.mxu0 %v1317
      %1342 = vmatprep.subr.bf16.mxu0 0
      %1343 = vmatpush1.bf16.msra.mxu0 0
      %1344 = vmatprep.subr.bf16.mxu0 0
      %1345 = vmatpush1.bf16.msra.mxu0 0
      %1346 = vmatprep.subr.bf16.mxu0 0
      %1347 = vmatpush1.bf16.msra.mxu0 0
      %1348 = vmatprep.subr.bf16.mxu0 0
      %1349 = vmatpush1.bf16.msra.mxu0 0
      %1350 = vmatprep.subr.bf16.mxu0 0
      %1351 = vmatpush1.bf16.msra.mxu0 0
      %1352 = vmatprep.subr.bf16.mxu0 0
      %1353 = vmatpush1.bf16.msra.mxu0 0
      %1354 = vmatprep.subr.bf16.mxu0 0
      %1355 = vmatpush1.bf16.msra.mxu0 0
      %1356 = vmatprep.subr.bf16.mxu0 0
      %1357 = vmatpush1.bf16.msra.mxu0 0
      %1358 = vmatprep.subr.bf16.mxu0 0
      %1359 = vmatpush1.bf16.msra.mxu0 0
      %1360 = vmatprep.subr.bf16.mxu0 0
      %1361 = vmatpush1.bf16.msra.mxu0 0
      %1362 = vmatprep.subr.bf16.mxu0 0
      %1363 = vmatpush1.bf16.msra.mxu0 0
      %1364 = vmatprep.subr.bf16.mxu0 0
      %1365 = vmatpush1.bf16.msra.mxu0 0
      %1366 = vmatprep.mubr.bf16.mxu0 0
      %1367 = vmatmul.mubr.bf16.gmra.mrb[0].mxu0 %v1323
      %v1368 = vpop.f32.mrb[0].mxu0
      %v1369 = vadd.f32 0.0, %v1368
      %v1370 = vpop.f32.mrb[0].mxu0
      %v1371 = vpop.f32.mrb[0].mxu0
      %v1372 = vadd.f32 0.0, %v1371
      %v1373 = vpop.f32.mrb[0].mxu0
      %1374 = vmatprep.mubr.bf16.mxu0 0
      %1375 = vmatmul.mubr.bf16.gmra.mrb[0].mxu0 %v1326
      %v1376 = vpop.f32.mrb[0].mxu0
      %v1377 = vadd.f32 0.0, %v1376
      %v1378 = vpop.f32.mrb[0].mxu0
      %v1379 = vpop.f32.mrb[0].mxu0
      %v1380 = vadd.f32 0.0, %v1379
      %v1381 = vpop.f32.mrb[0].mxu0
      %1382 = vmatprep.mubr.bf16.mxu0 0
      %1383 = vmatmul.mubr.bf16.gmra.mrb[0].mxu0 %v1329
      %v1384 = vpop.f32.mrb[0].mxu0
      %v1385 = vadd.f32 0.0, %v1384
      %v1386 = vpop.f32.mrb[0].mxu0
      %v1387 = vpop.f32.mrb[0].mxu0
      %v1388 = vadd.f32 0.0, %v1387
      %v1389 = vpop.f32.mrb[0].mxu0
      %1390 = vmatprep.mubr.bf16.mxu0 0
      %1391 = vmatmul.mubr.bf16.gmra.mrb[0].mxu0 %v1332
      %v1392 = vpop.f32.mrb[0].mxu0
      %v1393 = vadd.f32 0.0, %v1392
      %v1394 = vpop.f32.mrb[0].mxu0
      %v1395 = vpop.f32.mrb[0].mxu0
      %v1396 = vadd.f32 0.0, %v1395
      %v1397 = vpop.f32.mrb[0].mxu0
      %1398 = vdwg.mxu0
      %v1399 = vpack.c.bf16 %v1372, %v1369
      %v1400 = vpack.c.bf16 %v1380, %v1377
      %v1401 = vpack.c.bf16 %v1388, %v1385
      %v1402 = vpack.c.bf16 %v1396, %v1393
      %1407 = vrot.lane.b32.xlu0 %v1399, 64
      %v1408 = vpop.permute.xlu0 %1407
      %1409 = vrot.lane.b32.xlu0 %v1400, 64
      %v1410 = vpop.permute.xlu0 %1409
      %1411 = vrot.lane.b32.xlu0 %v1401, 64
      %v1412 = vpop.permute.xlu0 %1411
      %1413 = vrot.lane.b32.xlu0 %v1402, 64
      %v1414 = vpop.permute.xlu0 %1413
      %vm1419 = vcmask 785920
      %1420 = vst.msk [vmem:[#allocation2] sm:$0xff] %vm1419, %v1408
      %1421 = vst.msk [vmem:[#allocation2 + $0x8] sm:$0xff] %vm1419, %v1410
      %1422 = vst.msk [vmem:[#allocation2 + $0x10] sm:$0xff] %vm1419, %v1412
      %1423 = vst.msk [vmem:[#allocation2 + $0x18] sm:$0xff] %vm1419, %v1414
      %1424 = vrot.lane.b32.xlu0 %v462, 32
      %v1425 = vpop.permute.xlu0 %1424
      %1426 = vrot.lane.b32.xlu0 %v463, 32
      %v1427 = vpop.permute.xlu0 %1426
      %1428 = vrot.lane.b32.xlu0 %v464, 32
      %v1429 = vpop.permute.xlu0 %1428
      %1430 = vrot.lane.b32.xlu0 %v465, 32
      %v1431 = vpop.permute.xlu0 %1430
      %1432 = vrot.lane.b32.xlu0 %v482, 32
      %v1433 = vpop.permute.xlu0 %1432
      %1434 = vrot.lane.b32.xlu0 %v483, 32
      %v1435 = vpop.permute.xlu0 %1434
      %1436 = vrot.lane.b32.xlu0 %v484, 32
      %v1437 = vpop.permute.xlu0 %1436
      %1438 = vrot.lane.b32.xlu0 %v485, 32
      %v1439 = vpop.permute.xlu0 %1438
      %v1441 = vsel %vm486, %v1425, 0
      %v1444 = vsel %vm486, %v1427, 0
      %v1447 = vsel %vm486, %v1429, 0
      %v1450 = vsel %vm486, %v1431, 0
      %v1453 = vsel %vm486, %v1433, 0
      %v1456 = vsel %vm486, %v1435, 0
      %v1459 = vsel %vm486, %v1437, 0
      %v1462 = vsel %vm486, %v1439, 0
      %1464 = vmatprep.subr.bf16.mxu0 0
      %1465 = vmatpush1.bf16.xpose.msra.mxu0 %v1453
      %1466 = vmatprep.subr.bf16.mxu0 0
      %1467 = vmatpush1.bf16.xpose.msra.mxu0 %v1456
      %1468 = vmatprep.subr.bf16.mxu0 0
      %1469 = vmatpush1.bf16.xpose.msra.mxu0 %v1459
      %1470 = vmatprep.subr.bf16.mxu0 0
      %1471 = vmatpush1.bf16.xpose.msra.mxu0 %v1462
      %1472 = vmatprep.subr.bf16.mxu0 0
      %1473 = vmatpush1.bf16.xpose.msra.mxu0 0
      %1474 = vmatprep.subr.bf16.mxu0 0
      %1475 = vmatpush1.bf16.xpose.msra.mxu0 0
      %1476 = vmatprep.subr.bf16.mxu0 0
      %1477 = vmatpush1.bf16.xpose.msra.mxu0 0
      %1478 = vmatprep.subr.bf16.mxu0 0
      %1479 = vmatpush1.bf16.xpose.msra.mxu0 0
      %1480 = vmatprep.subr.bf16.mxu0 0
      %1481 = vmatpush1.bf16.xpose.msra.mxu0 0
      %1482 = vmatprep.subr.bf16.mxu0 0
      %1483 = vmatpush1.bf16.xpose.msra.mxu0 0
      %1484 = vmatprep.subr.bf16.mxu0 0
      %1485 = vmatpush1.bf16.xpose.msra.mxu0 0
      %1486 = vmatprep.subr.bf16.mxu0 0
      %1487 = vmatpush1.bf16.xpose.msra.mxu0 0
      %1488 = vmatprep.subr.bf16.mxu0 0
      %1489 = vmatpush1.bf16.xpose.msra.mxu0 0
      %1490 = vmatprep.subr.bf16.mxu0 0
      %1491 = vmatpush1.bf16.xpose.msra.mxu0 0
      %1492 = vmatprep.subr.bf16.mxu0 0
      %1493 = vmatpush1.bf16.xpose.msra.mxu0 0
      %1494 = vmatprep.subr.bf16.mxu0 0
      %1495 = vmatpush1.bf16.xpose.msra.mxu0 0
      %1496 = vmatprep.mubr.bf16.mxu0 0
      %1497 = vmatmul.mubr.bf16.gmra.mrb[0].mxu0 %v1441
      %v1498 = vpop.f32.mrb[0].mxu0
      %v1499 = vadd.f32 0.0, %v1498
      %v1500 = vpop.f32.mrb[0].mxu0
      %v1501 = vpop.f32.mrb[0].mxu0
      %v1502 = vadd.f32 0.0, %v1501
      %v1503 = vpop.f32.mrb[0].mxu0
      %1504 = vmatprep.mubr.bf16.mxu0 0
      %1505 = vmatmul.mubr.bf16.gmra.mrb[0].mxu0 %v1444
      %v1506 = vpop.f32.mrb[0].mxu0
      %v1507 = vadd.f32 0.0, %v1506
      %v1508 = vpop.f32.mrb[0].mxu0
      %v1509 = vpop.f32.mrb[0].mxu0
      %v1510 = vadd.f32 0.0, %v1509
      %v1511 = vpop.f32.mrb[0].mxu0
      %1512 = vmatprep.mubr.bf16.mxu0 0
      %1513 = vmatmul.mubr.bf16.gmra.mrb[0].mxu0 %v1447
      %v1514 = vpop.f32.mrb[0].mxu0
      %v1515 = vadd.f32 0.0, %v1514
      %v1516 = vpop.f32.mrb[0].mxu0
      %v1517 = vpop.f32.mrb[0].mxu0
      %v1518 = vadd.f32 0.0, %v1517
      %v1519 = vpop.f32.mrb[0].mxu0
      %1520 = vmatprep.mubr.bf16.mxu0 0
      %1521 = vmatmul.mubr.bf16.gmra.mrb[0].mxu0 %v1450
      %v1522 = vpop.f32.mrb[0].mxu0
      %v1523 = vadd.f32 0.0, %v1522
      %v1524 = vpop.f32.mrb[0].mxu0
      %v1525 = vpop.f32.mrb[0].mxu0
      %v1526 = vadd.f32 0.0, %v1525
      %v1527 = vpop.f32.mrb[0].mxu0
      %1528 = vdwg.mxu0
      %v1529 = vmul.f32 %v1499, 0.17677669
      %v1530 = vmul.f32 %v1502, 0.17677669
      %v1531 = vmul.f32 %v1507, 0.17677669
      %v1532 = vmul.f32 %v1510, 0.17677669
      %v1533 = vmul.f32 %v1515, 0.17677669
      %v1534 = vmul.f32 %v1518, 0.17677669
      %v1535 = vmul.f32 %v1523, 0.17677669
      %v1536 = vmul.f32 %v1526, 0.17677669
      %v1537 = vsel %vm584, %v1529, -inf
      %1538 = vmax.xlane.f32.xlu0 %v1537
      %v1539 = vpop.xlane.xlu0 %1538
      %v1540 = vsel %vm584, %v1530, -inf
      %1541 = vmax.xlane.f32.xlu0 %v1540
      %v1542 = vpop.xlane.xlu0 %1541
      %v1543 = vsel %vm584, %v1531, -inf
      %1544 = vmax.xlane.f32.xlu0 %v1543
      %v1545 = vpop.xlane.xlu0 %1544
      %v1546 = vsel %vm584, %v1532, -inf
      %1547 = vmax.xlane.f32.xlu0 %v1546
      %v1548 = vpop.xlane.xlu0 %1547
      %v1549 = vsel %vm584, %v1533, -inf
      %1550 = vmax.xlane.f32.xlu0 %v1549
      %v1551 = vpop.xlane.xlu0 %1550
      %v1552 = vsel %vm584, %v1534, -inf
      %1553 = vmax.xlane.f32.xlu0 %v1552
      %v1554 = vpop.xlane.xlu0 %1553
      %v1555 = vsel %vm584, %v1535, -inf
      %1556 = vmax.xlane.f32.xlu0 %v1555
      %v1557 = vpop.xlane.xlu0 %1556
      %v1558 = vsel %vm584, %v1536, -inf
      %1559 = vmax.xlane.f32.xlu0 %v1558
      %v1560 = vpop.xlane.xlu0 %1559
      %v1561 = vsub.f32 %v1529, %v1539
      %v1562 = vsub.f32 %v1530, %v1542
      %v1563 = vsub.f32 %v1531, %v1545
      %v1564 = vsub.f32 %v1532, %v1548
      %v1565 = vsub.f32 %v1533, %v1551
      %v1566 = vsub.f32 %v1534, %v1554
      %v1567 = vsub.f32 %v1535, %v1557
      %v1568 = vsub.f32 %v1536, %v1560
      %v1569 = vmul.f32 %v1561, 1.442695
      %v1570 = vpow.pop %v1569
      %v1571 = vmul.f32 %v1562, 1.442695
      %v1572 = vpow.pop %v1571
      %v1573 = vmul.f32 %v1563, 1.442695
      %v1574 = vpow.pop %v1573
      %v1575 = vmul.f32 %v1564, 1.442695
      %v1576 = vpow.pop %v1575
      %v1577 = vmul.f32 %v1565, 1.442695
      %v1578 = vpow.pop %v1577
      %v1579 = vmul.f32 %v1566, 1.442695
      %v1580 = vpow.pop %v1579
      %v1581 = vmul.f32 %v1567, 1.442695
      %v1582 = vpow.pop %v1581
      %v1583 = vmul.f32 %v1568, 1.442695
      %v1584 = vpow.pop %v1583
      %v1585 = vsel %vm584, %v1570, 0.0
      %1586 = vadd.xlane.f32.xlu0 %v1585
      %v1587 = vpop.xlane.xlu0 %1586
      %v1588 = vsel %vm584, %v1572, 0.0
      %1589 = vadd.xlane.f32.xlu0 %v1588
      %v1590 = vpop.xlane.xlu0 %1589
      %v1591 = vsel %vm584, %v1574, 0.0
      %1592 = vadd.xlane.f32.xlu0 %v1591
      %v1593 = vpop.xlane.xlu0 %1592
      %v1594 = vsel %vm584, %v1576, 0.0
      %1595 = vadd.xlane.f32.xlu0 %v1594
      %v1596 = vpop.xlane.xlu0 %1595
      %v1597 = vsel %vm584, %v1578, 0.0
      %1598 = vadd.xlane.f32.xlu0 %v1597
      %v1599 = vpop.xlane.xlu0 %1598
      %v1600 = vsel %vm584, %v1580, 0.0
      %1601 = vadd.xlane.f32.xlu0 %v1600
      %v1602 = vpop.xlane.xlu0 %1601
      %v1603 = vsel %vm584, %v1582, 0.0
      %1604 = vadd.xlane.f32.xlu0 %v1603
      %v1605 = vpop.xlane.xlu0 %1604
      %v1606 = vsel %vm584, %v1584, 0.0
      %1607 = vadd.xlane.f32.xlu0 %v1606
      %v1608 = vpop.xlane.xlu0 %1607
      %v1609 = vrcp.pop %v1587
      %v1610 = vrcp.pop %v1590
      %v1611 = vrcp.pop %v1593
      %v1612 = vrcp.pop %v1596
      %v1613 = vrcp.pop %v1599
      %v1614 = vrcp.pop %v1602
      %v1615 = vrcp.pop %v1605
      %v1616 = vrcp.pop %v1608
      %v1617 = vmul.f32 %v1570, %v1609
      %v1618 = vmul.f32 %v1572, %v1610
      %v1619 = vmul.f32 %v1574, %v1611
      %v1620 = vmul.f32 %v1576, %v1612
      %v1621 = vmul.f32 %v1578, %v1613
      %v1622 = vmul.f32 %v1580, %v1614
      %v1623 = vmul.f32 %v1582, %v1615
      %v1624 = vmul.f32 %v1584, %v1616
      %v1625 = vpack.c.bf16 %v1618, %v1617
      %v1626 = vpack.c.bf16 %v1620, %v1619
      %v1627 = vpack.c.bf16 %v1622, %v1621
      %v1628 = vpack.c.bf16 %v1624, %v1623
      %1629 = vrot.lane.b32.xlu0 %v693, 32
      %v1630 = vpop.permute.xlu0 %1629
      %1631 = vrot.lane.b32.xlu0 %v694, 32
      %v1632 = vpop.permute.xlu0 %1631
      %1633 = vrot.lane.b32.xlu0 %v695, 32
      %v1634 = vpop.permute.xlu0 %1633
      %1635 = vrot.lane.b32.xlu0 %v696, 32
      %v1636 = vpop.permute.xlu0 %1635
      %v1642 = vsel %vm584, %v1625, 0
      %v1645 = vsel %vm584, %v1626, 0
      %v1648 = vsel %vm584, %v1627, 0
      %v1651 = vsel %vm584, %v1628, 0
      %1653 = vmatprep.subr.bf16.mxu0 0
      %1654 = vmatpush1.bf16.msra.mxu0 %v1630
      %1655 = vmatprep.subr.bf16.mxu0 0
      %1656 = vmatpush1.bf16.msra.mxu0 %v1632
      %1657 = vmatprep.subr.bf16.mxu0 0
      %1658 = vmatpush1.bf16.msra.mxu0 %v1634
      %1659 = vmatprep.subr.bf16.mxu0 0
      %1660 = vmatpush1.bf16.msra.mxu0 %v1636
      %1661 = vmatprep.subr.bf16.mxu0 0
      %1662 = vmatpush1.bf16.msra.mxu0 0
      %1663 = vmatprep.subr.bf16.mxu0 0
      %1664 = vmatpush1.bf16.msra.mxu0 0
      %1665 = vmatprep.subr.bf16.mxu0 0
      %1666 = vmatpush1.bf16.msra.mxu0 0
      %1667 = vmatprep.subr.bf16.mxu0 0
      %1668 = vmatpush1.bf16.msra.mxu0 0
      %1669 = vmatprep.subr.bf16.mxu0 0
      %1670 = vmatpush1.bf16.msra.mxu0 0
      %1671 = vmatprep.subr.bf16.mxu0 0
      %1672 = vmatpush1.bf16.msra.mxu0 0
      %1673 = vmatprep.subr.bf16.mxu0 0
      %1674 = vmatpush1.bf16.msra.mxu0 0
      %1675 = vmatprep.subr.bf16.mxu0 0
      %1676 = vmatpush1.bf16.msra.mxu0 0
      %1677 = vmatprep.subr.bf16.mxu0 0
      %1678 = vmatpush1.bf16.msra.mxu0 0
      %1679 = vmatprep.subr.bf16.mxu0 0
      %1680 = vmatpush1.bf16.msra.mxu0 0
      %1681 = vmatprep.subr.bf16.mxu0 0
      %1682 = vmatpush1.bf16.msra.mxu0 0
      %1683 = vmatprep.subr.bf16.mxu0 0
      %1684 = vmatpush1.bf16.msra.mxu0 0
      %1685 = vmatprep.mubr.bf16.mxu0 0
      %1686 = vmatmul.mubr.bf16.gmra.mrb[0].mxu0 %v1642
      %v1687 = vpop.f32.mrb[0].mxu0
      %v1688 = vadd.f32 0.0, %v1687
      %v1689 = vpop.f32.mrb[0].mxu0
      %v1690 = vpop.f32.mrb[0].mxu0
      %v1691 = vadd.f32 0.0, %v1690
      %v1692 = vpop.f32.mrb[0].mxu0
      %1693 = vmatprep.mubr.bf16.mxu0 0
      %1694 = vmatmul.mubr.bf16.gmra.mrb[0].mxu0 %v1645
      %v1695 = vpop.f32.mrb[0].mxu0
      %v1696 = vadd.f32 0.0, %v1695
      %v1697 = vpop.f32.mrb[0].mxu0
      %v1698 = vpop.f32.mrb[0].mxu0
      %v1699 = vadd.f32 0.0, %v1698
      %v1700 = vpop.f32.mrb[0].mxu0
      %1701 = vmatprep.mubr.bf16.mxu0 0
      %1702 = vmatmul.mubr.bf16.gmra.mrb[0].mxu0 %v1648
      %v1703 = vpop.f32.mrb[0].mxu0
      %v1704 = vadd.f32 0.0, %v1703
      %v1705 = vpop.f32.mrb[0].mxu0
      %v1706 = vpop.f32.mrb[0].mxu0
      %v1707 = vadd.f32 0.0, %v1706
      %v1708 = vpop.f32.mrb[0].mxu0
      %1709 = vmatprep.mubr.bf16.mxu0 0
      %1710 = vmatmul.mubr.bf16.gmra.mrb[0].mxu0 %v1651
      %v1711 = vpop.f32.mrb[0].mxu0
      %v1712 = vadd.f32 0.0, %v1711
      %v1713 = vpop.f32.mrb[0].mxu0
      %v1714 = vpop.f32.mrb[0].mxu0
      %v1715 = vadd.f32 0.0, %v1714
      %v1716 = vpop.f32.mrb[0].mxu0
      %1717 = vdwg.mxu0
      %v1718 = vpack.c.bf16 %v1691, %v1688
      %v1719 = vpack.c.bf16 %v1699, %v1696
      %v1720 = vpack.c.bf16 %v1707, %v1704
      %v1721 = vpack.c.bf16 %v1715, %v1712
      %1726 = vrot.lane.b32.xlu0 %v1718, 96
      %v1727 = vpop.permute.xlu0 %1726
      %1728 = vrot.lane.b32.xlu0 %v1719, 96
      %v1729 = vpop.permute.xlu0 %1728
      %1730 = vrot.lane.b32.xlu0 %v1720, 96
      %v1731 = vpop.permute.xlu0 %1730
      %1732 = vrot.lane.b32.xlu0 %v1721, 96
      %v1733 = vpop.permute.xlu0 %1732
      %vm1738 = vcmask 1048320
      %1739 = vst.msk [vmem:[#allocation2] sm:$0xff] %vm1738, %v1727
      %1740 = vst.msk [vmem:[#allocation2 + $0x8] sm:$0xff] %vm1738, %v1729
      %1741 = vst.msk [vmem:[#allocation2 + $0x10] sm:$0xff] %vm1738, %v1731
      %1742 = vst.msk [vmem:[#allocation2 + $0x18] sm:$0xff] %vm1738, %v1733
      %v1743 = vld [vmem:[#allocation2] sm:$0xff]
      %v1744 = vld [vmem:[#allocation2 + $0x8] sm:$0xff]
      %v1745 = vld [vmem:[#allocation2 + $0x10] sm:$0xff]
      %v1746 = vld [vmem:[#allocation2 + $0x18] sm:$0xff]
      %v1747 = vld [vmem:[%s4] sm:$0xf]
      %v1748 = vld [vmem:[%s4 + $0x4] sm:$0xf]
      %v1749 = vld [vmem:[%s4 + $0x8] sm:$0xf]
      %v1750 = vld [vmem:[%s4 + $0xc] sm:$0xf]
      %v1751 = vld [vmem:[%s4 + $0x10] sm:$0xf]
      %v1752 = vld [vmem:[%s4 + $0x14] sm:$0xf]
      %v1753 = vld [vmem:[%s4 + $0x18] sm:$0xf]
      %v1754 = vld [vmem:[%s4 + $0x1c] sm:$0xf]
      %v1755 = vld [vmem:[%s4 + $0x20] sm:$0xf]
      %v1756 = vld [vmem:[%s4 + $0x24] sm:$0xf]
      %v1757 = vld [vmem:[%s4 + $0x28] sm:$0xf]
      %v1758 = vld [vmem:[%s4 + $0x2c] sm:$0xf]
      %v1759 = vld [vmem:[%s4 + $0x30] sm:$0xf]
      %v1760 = vld [vmem:[%s4 + $0x34] sm:$0xf]
      %v1761 = vld [vmem:[%s4 + $0x38] sm:$0xf]
      %v1762 = vld [vmem:[%s4 + $0x3c] sm:$0xf]
      %v1763 = vld [vmem:[%s5] sm:$0x1]
      %v1765 = vlaneseq
      %v1766 = vshrl.u32 %v1765, 7
      %v1767 = vsub.s32 0, %v1766
      %v1768 = vrot.slane %v1763, %v1767
      %v1786 = vunpack.c.l.b16 %v1747
      %v1787 = vunpack.c.l.b16 %v1748
      %v1788 = vunpack.c.l.b16 %v1749
      %v1789 = vunpack.c.l.b16 %v1750
      %v1790 = vunpack.c.l.b16 %v1751
      %v1791 = vunpack.c.l.b16 %v1752
      %v1792 = vunpack.c.l.b16 %v1753
      %v1793 = vunpack.c.l.b16 %v1754
      %v1794 = vunpack.c.l.b16 %v1755
      %v1795 = vunpack.c.l.b16 %v1756
      %v1796 = vunpack.c.l.b16 %v1757
      %v1797 = vunpack.c.l.b16 %v1758
      %v1798 = vunpack.c.l.b16 %v1759
      %v1799 = vunpack.c.l.b16 %v1760
      %v1800 = vunpack.c.l.b16 %v1761
      %v1801 = vunpack.c.l.b16 %v1762
      %v1802 = vpack.c.b16 %v1787, %v1786
      %v1803 = vpack.c.b16 %v1789, %v1788
      %v1804 = vpack.c.b16 %v1791, %v1790
      %v1805 = vpack.c.b16 %v1793, %v1792
      %v1806 = vpack.c.b16 %v1795, %v1794
      %v1807 = vpack.c.b16 %v1797, %v1796
      %v1808 = vpack.c.b16 %v1799, %v1798
      %v1809 = vpack.c.b16 %v1801, %v1800
      %1818 = vmatprep.subr.bf16.mxu0 0
      %1819 = vmatpush1.bf16.msra.mxu0 %v1802
      %1820 = vmatprep.subr.bf16.mxu0 0
      %1821 = vmatpush1.bf16.msra.mxu0 %v1803
      %1822 = vmatprep.subr.bf16.mxu0 0
      %1823 = vmatpush1.bf16.msra.mxu0 %v1804
      %1824 = vmatprep.subr.bf16.mxu0 0
      %1825 = vmatpush1.bf16.msra.mxu0 %v1805
      %1826 = vmatprep.subr.bf16.mxu0 0
      %1827 = vmatpush1.bf16.msra.mxu0 %v1806
      %1828 = vmatprep.subr.bf16.mxu0 0
      %1829 = vmatpush1.bf16.msra.mxu0 %v1807
      %1830 = vmatprep.subr.bf16.mxu0 0
      %1831 = vmatpush1.bf16.msra.mxu0 %v1808
      %1832 = vmatprep.subr.bf16.mxu0 0
      %1833 = vmatpush1.bf16.msra.mxu0 %v1809
      %1834 = vmatprep.subr.bf16.mxu0 0
      %1835 = vmatpush1.bf16.msra.mxu0 0
      %1836 = vmatprep.subr.bf16.mxu0 0
      %1837 = vmatpush1.bf16.msra.mxu0 0
      %1838 = vmatprep.subr.bf16.mxu0 0
      %1839 = vmatpush1.bf16.msra.mxu0 0
      %1840 = vmatprep.subr.bf16.mxu0 0
      %1841 = vmatpush1.bf16.msra.mxu0 0
      %1842 = vmatprep.subr.bf16.mxu0 0
      %1843 = vmatpush1.bf16.msra.mxu0 0
      %1844 = vmatprep.subr.bf16.mxu0 0
      %1845 = vmatpush1.bf16.msra.mxu0 0
      %1846 = vmatprep.subr.bf16.mxu0 0
      %1847 = vmatpush1.bf16.msra.mxu0 0
      %1848 = vmatprep.subr.bf16.mxu0 0
      %1849 = vmatpush1.bf16.msra.mxu0 0
      %1850 = vmatprep.mubr.bf16.mxu0 0
      %1851 = vmatmul.mubr.bf16.gmra.mrb[0].mxu0 %v1743
      %v1852 = vpop.f32.mrb[0].mxu0
      %v1853 = vadd.f32 %v1768, %v1852
      %v1854 = vpop.f32.mrb[0].mxu0
      %v1855 = vpop.f32.mrb[0].mxu0
      %v1856 = vadd.f32 %v1768, %v1855
      %v1857 = vpop.f32.mrb[0].mxu0
      %1858 = vmatprep.mubr.bf16.mxu0 0
      %1859 = vmatmul.mubr.bf16.gmra.mrb[0].mxu0 %v1744
      %v1860 = vpop.f32.mrb[0].mxu0
      %v1861 = vadd.f32 %v1768, %v1860
      %v1862 = vpop.f32.mrb[0].mxu0
      %v1863 = vpop.f32.mrb[0].mxu0
      %v1864 = vadd.f32 %v1768, %v1863
      %v1865 = vpop.f32.mrb[0].mxu0
      %1866 = vmatprep.mubr.bf16.mxu0 0
      %1867 = vmatmul.mubr.bf16.gmra.mrb[0].mxu0 %v1745
      %v1868 = vpop.f32.mrb[0].mxu0
      %v1869 = vadd.f32 %v1768, %v1868
      %v1870 = vpop.f32.mrb[0].mxu0
      %v1871 = vpop.f32.mrb[0].mxu0
      %v1872 = vadd.f32 %v1768, %v1871
      %v1873 = vpop.f32.mrb[0].mxu0
      %1874 = vmatprep.mubr.bf16.mxu0 0
      %1875 = vmatmul.mubr.bf16.gmra.mrb[0].mxu0 %v1746
      %v1876 = vpop.f32.mrb[0].mxu0
      %v1877 = vadd.f32 %v1768, %v1876
      %v1878 = vpop.f32.mrb[0].mxu0
      %v1879 = vpop.f32.mrb[0].mxu0
      %v1880 = vadd.f32 %v1768, %v1879
      %v1881 = vpop.f32.mrb[0].mxu0
      %1882 = vdwg.mxu0
      %v1883 = vld [vmem:[%s409] sm:$0xf]
      %v1884 = vld [vmem:[%s409 + $0x4] sm:$0xf]
      %v1885 = vld [vmem:[%s409 + $0x8] sm:$0xf]
      %v1886 = vld [vmem:[%s409 + $0xc] sm:$0xf]
      %v1887 = vld [vmem:[%s409 + $0x10] sm:$0xf]
      %v1888 = vld [vmem:[%s409 + $0x14] sm:$0xf]
      %v1889 = vld [vmem:[%s409 + $0x18] sm:$0xf]
      %v1890 = vld [vmem:[%s409 + $0x1c] sm:$0xf]
      %v1891 = vunpack.c.l.bf16 %v1883
      %v1892 = vunpack.c.l.bf16 %v1884
      %v1893 = vunpack.c.l.bf16 %v1885
      %v1894 = vunpack.c.l.bf16 %v1886
      %v1895 = vunpack.c.l.bf16 %v1887
      %v1896 = vunpack.c.l.bf16 %v1888
      %v1897 = vunpack.c.l.bf16 %v1889
      %v1898 = vunpack.c.l.bf16 %v1890
      %v1899 = vadd.f32 %v1891, %v1853
      %v1900 = vadd.f32 %v1892, %v1856
      %v1901 = vadd.f32 %v1893, %v1861
      %v1902 = vadd.f32 %v1894, %v1864
      %v1903 = vadd.f32 %v1895, %v1869
      %v1904 = vadd.f32 %v1896, %v1872
      %v1905 = vadd.f32 %v1897, %v1877
      %v1906 = vadd.f32 %v1898, %v1880
      %v1907 = vld [vmem:[%s6] sm:$0x1]
      %v1908 = vld [vmem:[%s7] sm:$0x1]
      %1909 = vadd.xlane.f32.xlu0 %v1899
      %v1910 = vpop.xlane.xlu0 %1909
      %1911 = vadd.xlane.f32.xlu0 %v1900
      %v1912 = vpop.xlane.xlu0 %1911
      %1913 = vadd.xlane.f32.xlu0 %v1901
      %v1914 = vpop.xlane.xlu0 %1913
      %1915 = vadd.xlane.f32.xlu0 %v1902
      %v1916 = vpop.xlane.xlu0 %1915
      %1917 = vadd.xlane.f32.xlu0 %v1903
      %v1918 = vpop.xlane.xlu0 %1917
      %1919 = vadd.xlane.f32.xlu0 %v1904
      %v1920 = vpop.xlane.xlu0 %1919
      %1921 = vadd.xlane.f32.xlu0 %v1905
      %v1922 = vpop.xlane.xlu0 %1921
      %1923 = vadd.xlane.f32.xlu0 %v1906
      %v1924 = vpop.xlane.xlu0 %1923
      %v1925 = vrcp.pop 128.0
      %v1926 = vmul.f32 %v1910, %v1925
      %v1927 = vmul.f32 %v1912, %v1925
      %v1928 = vmul.f32 %v1914, %v1925
      %v1929 = vmul.f32 %v1916, %v1925
      %v1930 = vmul.f32 %v1918, %v1925
      %v1931 = vmul.f32 %v1920, %v1925
      %v1932 = vmul.f32 %v1922, %v1925
      %v1933 = vmul.f32 %v1924, %v1925
      %v1934 = vsub.f32 %v1899, %v1926
      %v1935 = vsub.f32 %v1900, %v1927
      %v1936 = vsub.f32 %v1901, %v1928
      %v1937 = vsub.f32 %v1902, %v1929
      %v1938 = vsub.f32 %v1903, %v1930
      %v1939 = vsub.f32 %v1904, %v1931
      %v1940 = vsub.f32 %v1905, %v1932
      %v1941 = vsub.f32 %v1906, %v1933
      %v1942 = vmul.f32 %v1934, %v1934
      %v1943 = vmul.f32 %v1935, %v1935
      %v1944 = vmul.f32 %v1936, %v1936
      %v1945 = vmul.f32 %v1937, %v1937
      %v1946 = vmul.f32 %v1938, %v1938
      %v1947 = vmul.f32 %v1939, %v1939
      %v1948 = vmul.f32 %v1940, %v1940
      %v1949 = vmul.f32 %v1941, %v1941
      %1950 = vadd.xlane.f32.xlu0 %v1942
      %v1951 = vpop.xlane.xlu0 %1950
      %1952 = vadd.xlane.f32.xlu0 %v1943
      %v1953 = vpop.xlane.xlu0 %1952
      %1954 = vadd.xlane.f32.xlu0 %v1944
      %v1955 = vpop.xlane.xlu0 %1954
      %1956 = vadd.xlane.f32.xlu0 %v1945
      %v1957 = vpop.xlane.xlu0 %1956
      %1958 = vadd.xlane.f32.xlu0 %v1946
      %v1959 = vpop.xlane.xlu0 %1958
      %1960 = vadd.xlane.f32.xlu0 %v1947
      %v1961 = vpop.xlane.xlu0 %1960
      %1962 = vadd.xlane.f32.xlu0 %v1948
      %v1963 = vpop.xlane.xlu0 %1962
      %1964 = vadd.xlane.f32.xlu0 %v1949
      %v1965 = vpop.xlane.xlu0 %1964
      %v1966 = vmul.f32 %v1951, %v1925
      %v1967 = vmul.f32 %v1953, %v1925
      %v1968 = vmul.f32 %v1955, %v1925
      %v1969 = vmul.f32 %v1957, %v1925
      %v1970 = vmul.f32 %v1959, %v1925
      %v1971 = vmul.f32 %v1961, %v1925
      %v1972 = vmul.f32 %v1963, %v1925
      %v1973 = vmul.f32 %v1965, %v1925
      %v1974 = vadd.f32 %v1966, 1e-05
      %v1975 = vadd.f32 %v1967, 1e-05
      %v1976 = vadd.f32 %v1968, 1e-05
      %v1977 = vadd.f32 %v1969, 1e-05
      %v1978 = vadd.f32 %v1970, 1e-05
      %v1979 = vadd.f32 %v1971, 1e-05
      %v1980 = vadd.f32 %v1972, 1e-05
      %v1981 = vadd.f32 %v1973, 1e-05
      %v1982 = vrsqrt.pop %v1974
      %v1983 = vrsqrt.pop %v1975
      %v1984 = vrsqrt.pop %v1976
      %v1985 = vrsqrt.pop %v1977
      %v1986 = vrsqrt.pop %v1978
      %v1987 = vrsqrt.pop %v1979
      %v1988 = vrsqrt.pop %v1980
      %v1989 = vrsqrt.pop %v1981
      %v1990 = vmul.f32 %v1934, %v1982
      %v1991 = vmul.f32 %v1935, %v1983
      %v1992 = vmul.f32 %v1936, %v1984
      %v1993 = vmul.f32 %v1937, %v1985
      %v1994 = vmul.f32 %v1938, %v1986
      %v1995 = vmul.f32 %v1939, %v1987
      %v1996 = vmul.f32 %v1940, %v1988
      %v1997 = vmul.f32 %v1941, %v1989
      %v1999 = vlaneseq
      %v2000 = vshrl.u32 %v1999, 7
      %v2001 = vsub.s32 0, %v2000
      %v2002 = vrot.slane %v1907, %v2001
      %v2004 = vmul.f32 %v1990, %v2002
      %v2005 = vmul.f32 %v1991, %v2002
      %v2006 = vmul.f32 %v1992, %v2002
      %v2007 = vmul.f32 %v1993, %v2002
      %v2008 = vmul.f32 %v1994, %v2002
      %v2009 = vmul.f32 %v1995, %v2002
      %v2010 = vmul.f32 %v1996, %v2002
      %v2011 = vmul.f32 %v1997, %v2002
      %v2013 = vlaneseq
      %v2014 = vshrl.u32 %v2013, 7
      %v2015 = vsub.s32 0, %v2014
      %v2016 = vrot.slane %v1908, %v2015
      %v2018 = vadd.f32 %v2004, %v2016
      %v2019 = vadd.f32 %v2005, %v2016
      %v2020 = vadd.f32 %v2006, %v2016
      %v2021 = vadd.f32 %v2007, %v2016
      %v2022 = vadd.f32 %v2008, %v2016
      %v2023 = vadd.f32 %v2009, %v2016
      %v2024 = vadd.f32 %v2010, %v2016
      %v2025 = vadd.f32 %v2011, %v2016
      %v2026 = vpack.c.bf16 %v2019, %v2018
      %v2027 = vpack.c.bf16 %v2021, %v2020
      %v2028 = vpack.c.bf16 %v2023, %v2022
      %v2029 = vpack.c.bf16 %v2025, %v2024
      %v2034 = vunpack.c.l.b16 %v2026
      %v2035 = vunpack.c.h.b16 %v2026
      %v2036 = vunpack.c.l.b16 %v2027
      %v2037 = vunpack.c.h.b16 %v2027
      %v2038 = vunpack.c.l.b16 %v2028
      %v2039 = vunpack.c.h.b16 %v2028
      %v2040 = vunpack.c.l.b16 %v2029
      %v2041 = vunpack.c.h.b16 %v2029
      %v2042 = vpack.c.b16 %v2034, %v2034
      %v2043 = vpack.c.b16 %v2035, %v2035
      %v2044 = vpack.c.b16 %v2036, %v2036
      %v2045 = vpack.c.b16 %v2037, %v2037
      %v2046 = vpack.c.b16 %v2038, %v2038
      %v2047 = vpack.c.b16 %v2039, %v2039
      %v2048 = vpack.c.b16 %v2040, %v2040
      %v2049 = vpack.c.b16 %v2041, %v2041
      %2058 = vst [vmem:[%s419] sm:$0xf] %v2042
      %2059 = vst [vmem:[%s419 + $0x4] sm:$0xf] %v2043
      %2060 = vst [vmem:[%s419 + $0x8] sm:$0xf] %v2044
      %2061 = vst [vmem:[%s419 + $0xc] sm:$0xf] %v2045
      %2062 = vst [vmem:[%s419 + $0x10] sm:$0xf] %v2046
      %2063 = vst [vmem:[%s419 + $0x14] sm:$0xf] %v2047
      %2064 = vst [vmem:[%s419 + $0x18] sm:$0xf] %v2048
      %2065 = vst [vmem:[%s419 + $0x1c] sm:$0xf] %v2049
      %s2066 = smul.u32 8, %s24
      %p2067 = scmp.lt.s32.totalorder %s23, 1
      %s2068 = scalar_select %p2067, %s23, 1
      %p2069 = scmp.lt.s32.totalorder %s2066, 7
      %s2070 = scalar_select %p2069, %s2066, 7
      %s2071 = smul.addr %s2068, 8
      %s2072 = sadd.s32 %s2070, %s2071
      %s2073 = smul.addr %s2072, 4
      %s2074 = scalar_lea.vmem %s8, %s2073
      // Predicated region
      $region53: #{_lambda_.10} parent=51 // pred_check
        %p2075 = pneg %p243
      $region54: #{_lambda_.10} parent=51 // pred_check_branch
        %2077 = sbr.rel (%p2075) target = $region56
      $region55: #{_lambda_.10} parent=51 // pred_region
        %s2078 = smul.u32 8, %s24
      $region56: #{_lambda_.10} parent=51 // pred_fallthru
        _
    $region52: #{_lambda_.10} parent=5 // pred_fallthru
      _
    %p2079 = scmp.le.s32.totalorder 2, %s14
    // Predicated region
    $region57: #{_lambda_.10} parent=5 // pred_check
      %p2080 = pneg %p2079
    $region58: #{_lambda_.10} parent=5 // pred_check_branch
      %2082 = sbr.rel (%p2080) target = $region60
    $region59: #{_lambda_.10} parent=5 // pred_region
      %s2083 = ssub.s32 %s14, 2
      // Predicated region
      $region61: #{_lambda_.10} parent=59 // pred_check
        %p2084 = pneg %p249
      $region62: #{_lambda_.10} parent=59 // pred_check_branch
        %2086 = sbr.rel (%p2084) target = $region64
      $region63: #{_lambda_.10} parent=59 // pred_region
        %s2087 = smul.u32 8, %s26
        %p2088 = scmp.lt.s32.totalorder %s25, 1
        %s2089 = scalar_select %p2088, %s25, 1
        %p2090 = scmp.lt.s32.totalorder %s2087, 7
        %s2091 = scalar_select %p2090, %s2087, 7
        %s2092 = smul.addr %s2089, 8
        %s2093 = sadd.s32 %s2091, %s2092
        %s2094 = smul.addr %s2093, 4
        %s2095 = scalar_lea.vmem %s8, %s2094
      $region64: #{_lambda_.10} parent=59 // pred_fallthru
        _
    $region60: #{_lambda_.10} parent=5 // pred_fallthru
      _
  $region6: #{_lambda_.10} parent=0 // loop_footer
    %s18 = sadd.s32 1, %s14
  $region7: #{_lambda_.10} parent=0 // loop_footer_branch
    %13 = sbr.rel target = $region3
  $region8: #{_lambda_.10} parent=0 // loop_exit
    _

</llo_original>
